<compile_context>
chip_gen: v7x
topology: tpu7x:2x2x1
jax: 0.10.0
libtpu: 0.0.40
codegen_flags: <defaults>
</compile_context>

<pallas_src>
import jax
import jax.numpy as jnp
from jax import lax
from jax.experimental import pallas as pl
from jax.experimental.pallas import tpu as pltpu

EPS = 1e-5
NEG_SLOPE = 0.2
LANE = 128


def _round_up(x, m):
    return (x + m - 1) // m * m


def _pick_block_images(N, H, W, Cp):
    """Largest image count per grid step that divides N and keeps the per-step
    VMEM footprint (double-buffered ins/outs + pad scratch + f32 accumulator)
    well under the default scoped VMEM limit on all generations."""
    per_img = H * W * Cp * 24 + (H + 2) * (W + 2) * Cp * 2   # rough bytes/image
    budget = 12 * 2 ** 20
    for bt in (8, 4, 2, 1):
        if N % bt == 0 and bt * per_img <= budget:
            return bt
    return 1


# --------------------------------------------------------------------------- #
# in-kernel helpers
# --------------------------------------------------------------------------- #
def _fill_padded(pad_ref, img, Bt, H, W, Cp):
    """Write img (Bt, H, W, Cp) into pad_ref (Bt, H+2, W+2, Cp) with a zero
    halo.  The interior is stored directly (offset-1 masked store on the
    sublane axis); only the four 1-wide border strips are zeroed -- no
    image-sized concatenate temp, no full-scratch zero fill."""
    dt = pad_ref.dtype
    zrow = jnp.zeros((Bt, 1, W + 2, Cp), dt)
    pad_ref[:, 0:1, :, :] = zrow
    pad_ref[:, H + 1:H + 2, :, :] = zrow
    zcol = jnp.zeros((Bt, H, 1, Cp), dt)
    pad_ref[:, 1:H + 1, 0:1, :] = zcol
    pad_ref[:, 1:H + 1, W + 1:W + 2, :] = zcol
    pad_ref[:, 1:H + 1, 1:W + 1, :] = img.astype(dt)


def _conv3x3(pad_ref, w_ref, Bt, H, W, Cp):
    """3x3 conv as 9 accumulated (Bt*H*W, Cp) x (Cp, Cp) matmuls, bf16 inputs,
    single f32 accumulator.  No (M, 9*Cp) im2col temp."""
    acc = jnp.zeros((Bt * H * W, Cp), jnp.float32)
    for dy in range(3):
        for dx in range(3):
            t = 3 * dy + dx
            patch = pad_ref[:, dy:dy + H, dx:dx + W, :].reshape(Bt * H * W, Cp)
            acc = acc + jnp.dot(patch, w_ref[t * Cp:(t + 1) * Cp, :],
                                preferred_element_type=jnp.float32)
    return acc


def _partial_stats(y):
    """Per-channel (sum, sum of squares) of y (M, Cp) f32 -> (1, 2, Cp)."""
    s = jnp.sum(y, axis=0, keepdims=True)
    ss = jnp.sum(y * y, axis=0, keepdims=True)
    return jnp.concatenate([s, ss], axis=0)[None]


# --------------------------------------------------------------------------- #
# kernels
# --------------------------------------------------------------------------- #
def _conv1_kernel(x_ref, w_ref, y_ref, stats_ref, pad_ref):
    # x_ref: (Bt, H, W, Cp) bf16 | w_ref: (9*Cp, Cp) bf16
    # y_ref: (Bt, H, W, Cp) bf16 | stats_ref: (1, 2, Cp) f32
    # pad_ref: (Bt, H+2, W+2, Cp) bf16 scratch
    Bt, H, W, Cp = x_ref.shape
    _fill_padded(pad_ref, x_ref[...], Bt, H, W, Cp)
    y = _conv3x3(pad_ref, w_ref, Bt, H, W, Cp)            # f32 (Bt*H*W, Cp)
    y_ref[...] = y.reshape(Bt, H, W, Cp).astype(y_ref.dtype)
    stats_ref[...] = _partial_stats(y)                    # stats taken in f32


def _conv2_kernel(y1_ref, sc_ref, sh_ref, w_ref, y2_ref, stats_ref, pad_ref):
    # y1_ref: (Bt, H, W, Cp) bf16 pre-BN conv1 output
    # sc/sh : (1, Cp) f32 BN1 folded scale/shift
    Bt, H, W, Cp = y1_ref.shape
    z = y1_ref[...].astype(jnp.float32) * sc_ref[0, :] + sh_ref[0, :]  # BN1
    z = jnp.where(z >= 0, z, NEG_SLOPE * z)                # LeakyReLU(0.2), f32
    _fill_padded(pad_ref, z, Bt, H, W, Cp)                 # cast to bf16 at store
    y = _conv3x3(pad_ref, w_ref, Bt, H, W, Cp)
    y2_ref[...] = y.reshape(Bt, H, W, Cp).astype(y2_ref.dtype)
    stats_ref[...] = _partial_stats(y)


# --------------------------------------------------------------------------- #
# wrapper
# --------------------------------------------------------------------------- #
def res_block_pallas(x_nchw, params, block_images=None):
    """Forward pass of Res_block. x_nchw: (N, C, H, W) float32."""
    x_nchw = x_nchw.astype(jnp.float32)
    N, C, H, W = x_nchw.shape
    Cp = _round_up(C, LANE)

    Bt = _pick_block_images(N, H, W, Cp) if block_images is None else block_images
    assert N % Bt == 0
    G = N // Bt

    # NCHW -> NHWC, zero-pad channels to the 128-lane width, bf16 for the MXU.
    # Padded weights / gamma / beta are zero, so extra lanes stay exact zeros.
    x_bf = jnp.pad(jnp.transpose(x_nchw, (0, 2, 3, 1)),
                   ((0, 0), (0, 0), (0, 0), (0, Cp - C))).astype(jnp.bfloat16)

    def taps(w_oihw):
        # (Cout, Cin, 3, 3) -> (3, 3, Cin, Cout) -> channel pad -> (9*Cp, Cp)
        w = jnp.transpose(w_oihw, (2, 3, 1, 0))
        w = jnp.pad(w, ((0, 0), (0, 0), (0, Cp - C), (0, Cp - C)))
        return w.reshape(9 * Cp, Cp).astype(jnp.bfloat16)

    w1, w2 = taps(params["w1"]), taps(params["w2"])

    def padc(v):
        return jnp.pad(v.astype(jnp.float32), (0, Cp - C))

    g1, b1 = padc(params["g1"]), padc(params["b1"])
    g2, b2 = padc(params["g2"]), padc(params["b2"])

    img_spec = pl.BlockSpec((Bt, H, W, Cp), lambda n: (n, 0, 0, 0))
    # TODO(synk): w_spec has a constant index_map but is still double-buffered;
    # pipeline_mode=pl.Buffered(1) (or a one-shot scratch copy) would free
    # ~0.6 MiB at Cp=128 -- only matters for large Cp on v7x's 64 MiB VMEM.
    w_spec = pl.BlockSpec((9 * Cp, Cp), lambda n: (0, 0))
    vec_spec = pl.BlockSpec((1, Cp), lambda n: (0, 0))
    stats_spec = pl.BlockSpec((1, 2, Cp), lambda n: (n, 0, 0))
    pad_scratch = pltpu.VMEM((Bt, H + 2, W + 2, Cp), jnp.bfloat16)
    cparams = pltpu.CompilerParams(dimension_semantics=("parallel",))

    # ---- pass 1: conv1 (bf16 out) + partial BN1 stats (f32) ----------------- #
    y1, st1 = pl.pallas_call(
        _conv1_kernel,
        out_shape=(jax.ShapeDtypeStruct((N, H, W, Cp), jnp.bfloat16),
                   jax.ShapeDtypeStruct((G, 2, Cp), jnp.float32)),
        grid=(G,),
        in_specs=[img_spec, w_spec],
        out_specs=(img_spec, stats_spec),
        scratch_shapes=[pad_scratch],
        compiler_params=cparams,
    )(x_bf, w1)

    count = float(N * H * W)

    def bn_affine(stats, gamma, beta):
        # reduce per-step partials -> batch mean/var -> folded scale/shift
        s = jnp.sum(stats[:, 0, :], axis=0)
        ss = jnp.sum(stats[:, 1, :], axis=0)
        mean = s / count
        var = jnp.maximum(ss / count - mean * mean, 0.0)      # biased variance
        scale = gamma * lax.rsqrt(var + EPS)
        shift = beta - mean * scale
        return scale.reshape(1, Cp), shift.reshape(1, Cp)

    sc1, sh1 = bn_affine(st1, g1, b1)

    # ---- pass 2: BN1 + LeakyReLU + conv2 + partial BN2 stats ---------------- #
    y2, st2 = pl.pallas_call(
        _conv2_kernel,
        out_shape=(jax.ShapeDtypeStruct((N, H, W, Cp), jnp.float32),
                   jax.ShapeDtypeStruct((G, 2, Cp), jnp.float32)),
        grid=(G,),
        in_specs=[img_spec, vec_spec, vec_spec, w_spec],
        out_specs=(img_spec, stats_spec),
        scratch_shapes=[pad_scratch],
        compiler_params=cparams,
    )(y1, sc1, sh1, w2)

    sc2, sh2 = bn_affine(st2, g2, b2)

    # ---- epilogue (plain XLA, fuses with the slice + NHWC->NCHW transpose):
    #      BN2 affine + residual add.  Residual uses the original f32 NCHW x,
    #      so no padded f32 copy of x needs to stay live.
    out_nhwc = y2[..., :C] * sc2[0, :C] + sh2[0, :C]
    return jnp.transpose(out_nhwc, (0, 3, 1, 2)) + x_nchw


# --------------------------------------------------------------------------- #
# pure-JAX reference (training-mode BN), mirrors the PyTorch forward
# --------------------------------------------------------------------------- #
def res_block_ref(x, p):
    def conv(z, w):
        return lax.conv_general_dilated(
            z, w, (1, 1), ((1, 1), (1, 1)),
            dimension_numbers=("NCHW", "OIHW", "NCHW"))

    def bn(z, g, b):
        m = jnp.mean(z, axis=(0, 2, 3), keepdims=True)
        v = jnp.mean((z - m) ** 2, axis=(0, 2, 3), keepdims=True)
        return ((z - m) * lax.rsqrt(v + EPS) * g.reshape(1, -1, 1, 1)
                + b.reshape(1, -1, 1, 1))

    y = conv(x, p["w1"])
    y = bn(y, p["g1"], p["b1"])
    y = jnp.where(y >= 0, y, NEG_SLOPE * y)
    y = conv(y, p["w2"])
    y = bn(y, p["g2"], p["b2"])
    return y + x


if __name__ == "__main__":
    key = jax.random.PRNGKey(0)
    N, C, H, W = 2, 8, 16, 16          # small shapes; module default channels=64
    ks = jax.random.split(key, 7)
    fan_in = C * 3 * 3
    params = {
        "w1": jax.random.normal(ks[0], (C, C, 3, 3), jnp.float32) * (2.0 / fan_in) ** 0.5,
        "w2": jax.random.normal(ks[1], (C, C, 3, 3), jnp.float32) * (2.0 / fan_in) ** 0.5,
        "g1": 1.0 + 0.1 * jax.random.normal(ks[2], (C,), jnp.float32),
        "b1": 0.1 * jax.random.normal(ks[3], (C,), jnp.float32),
        "g2": 1.0 + 0.1 * jax.random.normal(ks[4], (C,), jnp.float32),
        "b2": 0.1 * jax.random.normal(ks[5], (C,), jnp.float32),
    }
    x = jax.random.normal(ks[6], (N, C, H, W), jnp.float32)

    out = jax.block_until_ready(res_block_pallas(x, params))
    ref = jax.block_until_ready(res_block_ref(x, params))

    assert out.shape == x.shape
    max_err = float(jnp.max(jnp.abs(out - ref)))
    if max_err < 5e-2:
        print("KERNEL_OK")
    else:
        raise SystemExit(f"mismatch vs reference: max_err={max_err}")
</pallas_src>

<mosaic_0001>
module attributes {stable_mosaic.version = 11 : i64} {
  func.func @_conv1_kernel(%arg0: i32, %arg1: memref<2x16x16x128xbf16, #tpu.memory_space<vmem>>, %arg2: memref<1152x128xbf16, #tpu.memory_space<vmem>>, %arg3: memref<2x16x16x128xbf16, #tpu.memory_space<vmem>>, %arg4: memref<1x2x128xf32, #tpu.memory_space<vmem>>, %arg5: memref<2x18x18x128xbf16, #tpu.memory_space<vmem>>) attributes {dimension_semantics = [#tpu.dimension_semantics<parallel>], iteration_bounds = array<i64: 1>, scalar_prefetch = 0 : i64, scratch_operands = 1 : i64, tpu.core_type = #tpu.core_type<tc>, window_params = [{transform_indices = @transform_0, window_bounds = array<i64: 2, 16, 16, 128>}, {pipeline_mode = #tpu.pipeline_mode<synchronous>, transform_indices = @transform_1, window_bounds = array<i64: 1152, 128>}, {transform_indices = @transform_2, window_bounds = array<i64: 2, 16, 16, 128>}, {transform_indices = @transform_3, window_bounds = array<i64: 1, 2, 128>}]} {
    %c0 = arith.constant 0 : index
    %c0_0 = arith.constant 0 : index
    %c0_1 = arith.constant 0 : index
    %c0_2 = arith.constant 0 : index
    %0 = vector.load %arg1[%c0, %c0_0, %c0_1, %c0_2] : memref<2x16x16x128xbf16, #tpu.memory_space<vmem>>, vector<2x16x16x128xbf16>
    %cst = arith.constant 0.000000e+00 : bf16
    %1 = vector.broadcast %cst : bf16 to vector<2x1x18x128xbf16>
    %c0_3 = arith.constant 0 : index
    %c0_4 = arith.constant 0 : index
    %c0_5 = arith.constant 0 : index
    %c0_6 = arith.constant 0 : index
    %2 = vector.load %arg5[%c0_3, %c0_4, %c0_5, %c0_6] : memref<2x18x18x128xbf16, #tpu.memory_space<vmem>>, vector<2x1x18x128xbf16>
    tpu.vector_store %arg5[%c0_3, %c0_4, %c0_5, %c0_6], %1 {strides = array<i32>} : memref<2x18x18x128xbf16, #tpu.memory_space<vmem>>, vector<2x1x18x128xbf16>,
    %c0_7 = arith.constant 0 : index
    %c17 = arith.constant 17 : index
    %c0_8 = arith.constant 0 : index
    %c0_9 = arith.constant 0 : index
    %3 = vector.load %arg5[%c0_7, %c17, %c0_8, %c0_9] : memref<2x18x18x128xbf16, #tpu.memory_space<vmem>>, vector<2x1x18x128xbf16>
    tpu.vector_store %arg5[%c0_7, %c17, %c0_8, %c0_9], %1 {strides = array<i32>} : memref<2x18x18x128xbf16, #tpu.memory_space<vmem>>, vector<2x1x18x128xbf16>,
    %cst_10 = arith.constant 0.000000e+00 : bf16
    %4 = vector.broadcast %cst_10 : bf16 to vector<2x16x1x128xbf16>
    %c0_11 = arith.constant 0 : index
    %c1 = arith.constant 1 : index
    %c0_12 = arith.constant 0 : index
    %c0_13 = arith.constant 0 : index
    %5 = vector.load %arg5[%c0_11, %c1, %c0_12, %c0_13] : memref<2x18x18x128xbf16, #tpu.memory_space<vmem>>, vector<2x16x1x128xbf16>
    tpu.vector_store %arg5[%c0_11, %c1, %c0_12, %c0_13], %4 {strides = array<i32>} : memref<2x18x18x128xbf16, #tpu.memory_space<vmem>>, vector<2x16x1x128xbf16>,
    %c0_14 = arith.constant 0 : index
    %c1_15 = arith.constant 1 : index
    %c17_16 = arith.constant 17 : index
    %c0_17 = arith.constant 0 : index
    %6 = vector.load %arg5[%c0_14, %c1_15, %c17_16, %c0_17] : memref<2x18x18x128xbf16, #tpu.memory_space<vmem>>, vector<2x16x1x128xbf16>
    tpu.vector_store %arg5[%c0_14, %c1_15, %c17_16, %c0_17], %4 {strides = array<i32>} : memref<2x18x18x128xbf16, #tpu.memory_space<vmem>>, vector<2x16x1x128xbf16>,
    %c0_18 = arith.constant 0 : index
    %c1_19 = arith.constant 1 : index
    %c1_20 = arith.constant 1 : index
    %c0_21 = arith.constant 0 : index
    %7 = vector.load %arg5[%c0_18, %c1_19, %c1_20, %c0_21] : memref<2x18x18x128xbf16, #tpu.memory_space<vmem>>, vector<2x16x16x128xbf16>
    tpu.vector_store %arg5[%c0_18, %c1_19, %c1_20, %c0_21], %0 {strides = array<i32>} : memref<2x18x18x128xbf16, #tpu.memory_space<vmem>>, vector<2x16x16x128xbf16>,
    %cst_22 = arith.constant 0.000000e+00 : f32
    %8 = vector.broadcast %cst_22 : f32 to vector<512x128xf32>
    %c0_23 = arith.constant 0 : index
    %c0_24 = arith.constant 0 : index
    %c0_25 = arith.constant 0 : index
    %c0_26 = arith.constant 0 : index
    %9 = vector.load %arg5[%c0_23, %c0_24, %c0_25, %c0_26] : memref<2x18x18x128xbf16, #tpu.memory_space<vmem>>, vector<2x16x16x128xbf16>
    %10 = vector.shape_cast %9 : vector<2x16x16x128xbf16> to vector<512x128xbf16>
    %c0_27 = arith.constant 0 : index
    %c0_28 = arith.constant 0 : index
    %11 = vector.load %arg2[%c0_27, %c0_28] : memref<1152x128xbf16, #tpu.memory_space<vmem>>, vector<128x128xbf16>
    %cst_29 = arith.constant dense<0.000000e+00> : vector<512x128xf32>
    %12 = tpu.matmul %10, %11, %cst_29 {dimension_numbers = #tpu.dot_dimension_numbers<[1], [0], [0], [1], [0, 0, 1, 1], [], []>} : vector<512x128xbf16>, vector<128x128xbf16>, vector<512x128xf32> -> vector<512x128xf32>
    %13 = arith.addf %8, %12 : vector<512x128xf32>
    %c0_30 = arith.constant 0 : index
    %c0_31 = arith.constant 0 : index
    %c1_32 = arith.constant 1 : index
    %c0_33 = arith.constant 0 : index
    %14 = vector.load %arg5[%c0_30, %c0_31, %c1_32, %c0_33] : memref<2x18x18x128xbf16, #tpu.memory_space<vmem>>, vector<2x16x16x128xbf16>
    %15 = vector.shape_cast %14 : vector<2x16x16x128xbf16> to vector<512x128xbf16>
    %c128 = arith.constant 128 : index
    %c0_34 = arith.constant 0 : index
    %16 = vector.load %arg2[%c128, %c0_34] : memref<1152x128xbf16, #tpu.memory_space<vmem>>, vector<128x128xbf16>
    %cst_35 = arith.constant dense<0.000000e+00> : vector<512x128xf32>
    %17 = tpu.matmul %15, %16, %cst_35 {dimension_numbers = #tpu.dot_dimension_numbers<[1], [0], [0], [1], [0, 0, 1, 1], [], []>} : vector<512x128xbf16>, vector<128x128xbf16>, vector<512x128xf32> -> vector<512x128xf32>
    %18 = arith.addf %13, %17 : vector<512x128xf32>
    %c0_36 = arith.constant 0 : index
    %c0_37 = arith.constant 0 : index
    %c2 = arith.constant 2 : index
    %c0_38 = arith.constant 0 : index
    %19 = vector.load %arg5[%c0_36, %c0_37, %c2, %c0_38] : memref<2x18x18x128xbf16, #tpu.memory_space<vmem>>, vector<2x16x16x128xbf16>
    %20 = vector.shape_cast %19 : vector<2x16x16x128xbf16> to vector<512x128xbf16>
    %c256 = arith.constant 256 : index
    %c0_39 = arith.constant 0 : index
    %21 = vector.load %arg2[%c256, %c0_39] : memref<1152x128xbf16, #tpu.memory_space<vmem>>, vector<128x128xbf16>
    %cst_40 = arith.constant dense<0.000000e+00> : vector<512x128xf32>
    %22 = tpu.matmul %20, %21, %cst_40 {dimension_numbers = #tpu.dot_dimension_numbers<[1], [0], [0], [1], [0, 0, 1, 1], [], []>} : vector<512x128xbf16>, vector<128x128xbf16>, vector<512x128xf32> -> vector<512x128xf32>
    %23 = arith.addf %18, %22 : vector<512x128xf32>
    %c0_41 = arith.constant 0 : index
    %c1_42 = arith.constant 1 : index
    %c0_43 = arith.constant 0 : index
    %c0_44 = arith.constant 0 : index
    %24 = vector.load %arg5[%c0_41, %c1_42, %c0_43, %c0_44] : memref<2x18x18x128xbf16, #tpu.memory_space<vmem>>, vector<2x16x16x128xbf16>
    %25 = vector.shape_cast %24 : vector<2x16x16x128xbf16> to vector<512x128xbf16>
    %c384 = arith.constant 384 : index
    %c0_45 = arith.constant 0 : index
    %26 = vector.load %arg2[%c384, %c0_45] : memref<1152x128xbf16, #tpu.memory_space<vmem>>, vector<128x128xbf16>
    %cst_46 = arith.constant dense<0.000000e+00> : vector<512x128xf32>
    %27 = tpu.matmul %25, %26, %cst_46 {dimension_numbers = #tpu.dot_dimension_numbers<[1], [0], [0], [1], [0, 0, 1, 1], [], []>} : vector<512x128xbf16>, vector<128x128xbf16>, vector<512x128xf32> -> vector<512x128xf32>
    %28 = arith.addf %23, %27 : vector<512x128xf32>
    %c0_47 = arith.constant 0 : index
    %c1_48 = arith.constant 1 : index
    %c1_49 = arith.constant 1 : index
    %c0_50 = arith.constant 0 : index
    %29 = vector.load %arg5[%c0_47, %c1_48, %c1_49, %c0_50] : memref<2x18x18x128xbf16, #tpu.memory_space<vmem>>, vector<2x16x16x128xbf16>
    %30 = vector.shape_cast %29 : vector<2x16x16x128xbf16> to vector<512x128xbf16>
    %c512 = arith.constant 512 : index
    %c0_51 = arith.constant 0 : index
    %31 = vector.load %arg2[%c512, %c0_51] : memref<1152x128xbf16, #tpu.memory_space<vmem>>, vector<128x128xbf16>
    %cst_52 = arith.constant dense<0.000000e+00> : vector<512x128xf32>
    %32 = tpu.matmul %30, %31, %cst_52 {dimension_numbers = #tpu.dot_dimension_numbers<[1], [0], [0], [1], [0, 0, 1, 1], [], []>} : vector<512x128xbf16>, vector<128x128xbf16>, vector<512x128xf32> -> vector<512x128xf32>
    %33 = arith.addf %28, %32 : vector<512x128xf32>
    %c0_53 = arith.constant 0 : index
    %c1_54 = arith.constant 1 : index
    %c2_55 = arith.constant 2 : index
    %c0_56 = arith.constant 0 : index
    %34 = vector.load %arg5[%c0_53, %c1_54, %c2_55, %c0_56] : memref<2x18x18x128xbf16, #tpu.memory_space<vmem>>, vector<2x16x16x128xbf16>
    %35 = vector.shape_cast %34 : vector<2x16x16x128xbf16> to vector<512x128xbf16>
    %c640 = arith.constant 640 : index
    %c0_57 = arith.constant 0 : index
    %36 = vector.load %arg2[%c640, %c0_57] : memref<1152x128xbf16, #tpu.memory_space<vmem>>, vector<128x128xbf16>
    %cst_58 = arith.constant dense<0.000000e+00> : vector<512x128xf32>
    %37 = tpu.matmul %35, %36, %cst_58 {dimension_numbers = #tpu.dot_dimension_numbers<[1], [0], [0], [1], [0, 0, 1, 1], [], []>} : vector<512x128xbf16>, vector<128x128xbf16>, vector<512x128xf32> -> vector<512x128xf32>
    %38 = arith.addf %33, %37 : vector<512x128xf32>
    %c0_59 = arith.constant 0 : index
    %c2_60 = arith.constant 2 : index
    %c0_61 = arith.constant 0 : index
    %c0_62 = arith.constant 0 : index
    %39 = vector.load %arg5[%c0_59, %c2_60, %c0_61, %c0_62] : memref<2x18x18x128xbf16, #tpu.memory_space<vmem>>, vector<2x16x16x128xbf16>
    %40 = vector.shape_cast %39 : vector<2x16x16x128xbf16> to vector<512x128xbf16>
    %c768 = arith.constant 768 : index
    %c0_63 = arith.constant 0 : index
    %41 = vector.load %arg2[%c768, %c0_63] : memref<1152x128xbf16, #tpu.memory_space<vmem>>, vector<128x128xbf16>
    %cst_64 = arith.constant dense<0.000000e+00> : vector<512x128xf32>
    %42 = tpu.matmul %40, %41, %cst_64 {dimension_numbers = #tpu.dot_dimension_numbers<[1], [0], [0], [1], [0, 0, 1, 1], [], []>} : vector<512x128xbf16>, vector<128x128xbf16>, vector<512x128xf32> -> vector<512x128xf32>
    %43 = arith.addf %38, %42 : vector<512x128xf32>
    %c0_65 = arith.constant 0 : index
    %c2_66 = arith.constant 2 : index
    %c1_67 = arith.constant 1 : index
    %c0_68 = arith.constant 0 : index
    %44 = vector.load %arg5[%c0_65, %c2_66, %c1_67, %c0_68] : memref<2x18x18x128xbf16, #tpu.memory_space<vmem>>, vector<2x16x16x128xbf16>
    %45 = vector.shape_cast %44 : vector<2x16x16x128xbf16> to vector<512x128xbf16>
    %c896 = arith.constant 896 : index
    %c0_69 = arith.constant 0 : index
    %46 = vector.load %arg2[%c896, %c0_69] : memref<1152x128xbf16, #tpu.memory_space<vmem>>, vector<128x128xbf16>
    %cst_70 = arith.constant dense<0.000000e+00> : vector<512x128xf32>
    %47 = tpu.matmul %45, %46, %cst_70 {dimension_numbers = #tpu.dot_dimension_numbers<[1], [0], [0], [1], [0, 0, 1, 1], [], []>} : vector<512x128xbf16>, vector<128x128xbf16>, vector<512x128xf32> -> vector<512x128xf32>
    %48 = arith.addf %43, %47 : vector<512x128xf32>
    %c0_71 = arith.constant 0 : index
    %c2_72 = arith.constant 2 : index
    %c2_73 = arith.constant 2 : index
    %c0_74 = arith.constant 0 : index
    %49 = vector.load %arg5[%c0_71, %c2_72, %c2_73, %c0_74] : memref<2x18x18x128xbf16, #tpu.memory_space<vmem>>, vector<2x16x16x128xbf16>
    %50 = vector.shape_cast %49 : vector<2x16x16x128xbf16> to vector<512x128xbf16>
    %c1024 = arith.constant 1024 : index
    %c0_75 = arith.constant 0 : index
    %51 = vector.load %arg2[%c1024, %c0_75] : memref<1152x128xbf16, #tpu.memory_space<vmem>>, vector<128x128xbf16>
    %cst_76 = arith.constant dense<0.000000e+00> : vector<512x128xf32>
    %52 = tpu.matmul %50, %51, %cst_76 {dimension_numbers = #tpu.dot_dimension_numbers<[1], [0], [0], [1], [0, 0, 1, 1], [], []>} : vector<512x128xbf16>, vector<128x128xbf16>, vector<512x128xf32> -> vector<512x128xf32>
    %53 = arith.addf %48, %52 : vector<512x128xf32>
    %54 = vector.shape_cast %53 : vector<512x128xf32> to vector<2x16x16x128xf32>
    %55 = arith.truncf %54 : vector<2x16x16x128xf32> to vector<2x16x16x128xbf16>
    %c0_77 = arith.constant 0 : index
    %c0_78 = arith.constant 0 : index
    %c0_79 = arith.constant 0 : index
    %c0_80 = arith.constant 0 : index
    %56 = vector.load %arg3[%c0_77, %c0_78, %c0_79, %c0_80] : memref<2x16x16x128xbf16, #tpu.memory_space<vmem>>, vector<2x16x16x128xbf16>
    tpu.vector_store %arg3[%c0_77, %c0_78, %c0_79, %c0_80], %55 {strides = array<i32>} : memref<2x16x16x128xbf16, #tpu.memory_space<vmem>>, vector<2x16x16x128xbf16>,
    %cst_81 = arith.constant dense<0.000000e+00> : vector<128xf32>
    %57 = vector.multi_reduction <add>, %53, %cst_81 [0] : vector<512x128xf32> to vector<128xf32>
    %58 = vector.shape_cast %57 : vector<128xf32> to vector<1x128xf32>
    %59 = arith.mulf %53, %53 : vector<512x128xf32>
    %cst_82 = arith.constant dense<0.000000e+00> : vector<128xf32>
    %60 = vector.multi_reduction <add>, %59, %cst_82 [0] : vector<512x128xf32> to vector<128xf32>
    %61 = vector.shape_cast %60 : vector<128xf32> to vector<1x128xf32>
    %62 = tpu.concatenate %58, %61 in 0 : vector<1x128xf32>, vector<1x128xf32> -> vector<2x128xf32>
    %63 = vector.shape_cast %62 : vector<2x128xf32> to vector<1x2x128xf32>
    %c0_83 = arith.constant 0 : index
    %c0_84 = arith.constant 0 : index
    %c0_85 = arith.constant 0 : index
    %64 = vector.load %arg4[%c0_83, %c0_84, %c0_85] : memref<1x2x128xf32, #tpu.memory_space<vmem>>, vector<1x2x128xf32>
    tpu.vector_store %arg4[%c0_83, %c0_84, %c0_85], %63 {strides = array<i32>} : memref<1x2x128xf32, #tpu.memory_space<vmem>>, vector<1x2x128xf32>,
    return
  }
  func.func @transform_0(%arg0: i32) -> (i32, i32, i32, i32) {
    %c0_i32 = arith.constant 0 : i32
    %c0_i32_0 = arith.constant 0 : i32
    %c0_i32_1 = arith.constant 0 : i32
    %c0_i32_2 = arith.constant 0 : i32
    return %arg0, %c0_i32, %c0_i32_0, %c0_i32_1 : i32, i32, i32, i32
  }
  func.func @transform_1(%arg0: i32) -> (i32, i32) {
    %c0_i32 = arith.constant 0 : i32
    %c0_i32_0 = arith.constant 0 : i32
    %c0_i32_1 = arith.constant 0 : i32
    return %c0_i32, %c0_i32_0 : i32, i32
  }
  func.func @transform_2(%arg0: i32) -> (i32, i32, i32, i32) {
    %c0_i32 = arith.constant 0 : i32
    %c0_i32_0 = arith.constant 0 : i32
    %c0_i32_1 = arith.constant 0 : i32
    %c0_i32_2 = arith.constant 0 : i32
    return %arg0, %c0_i32, %c0_i32_0, %c0_i32_1 : i32, i32, i32, i32
  }
  func.func @transform_3(%arg0: i32) -> (i32, i32, i32) {
    %c0_i32 = arith.constant 0 : i32
    %c0_i32_0 = arith.constant 0 : i32
    %c0_i32_1 = arith.constant 0 : i32
    return %arg0, %c0_i32, %c0_i32_0 : i32, i32, i32
  }
}

</mosaic_0001>

<llo_original>
// kernel: tpu_custom_call.1
$region0: #{tpu_custom_call.1}
  #allocation0 [shape = 'u32[]', space=smem, size = 0x4, offset = 0x4, fixed_abs, tag = 'smem constant byte address 0x4 - core index']
  #allocation1 [shape = 'u32[144,128]{1,0:T(1,128)}', space=vmem, size = 0x12000, scoped, tag = 'internal scratch']
  #allocation2 [shape = 'bf16[2,18,18,128]{3,2,1,0:T(8,128)(2,1)}', space=vmem, size = 0x36000, scoped, tag = 'scratch operand']
  %s0 = inlined_call_operand.hbm [shape: bf16[2,16,16,128], index: 0, kind: input, shape index: {}]
  %s1 = inlined_call_operand.hbm [shape: bf16[1152,128], index: 1, kind: input, shape index: {}]
  %s2 = inlined_call_operand.hbm [shape: bf16[2,16,16,128], index: 2, kind: output, shape index: {0}]
  %s3 = inlined_call_operand.hbm [shape: f32[1,2,128], index: 3, kind: output, shape index: {1}]
  %4 = xla_tuple %s2, %s3
  %s5 = sld [smem:[#allocation0]]
  $region34: #{tpu_custom_call.1} parent=0
    _
  %s7 = ssub.s32 1, %s5
  %s8 = scalar_select 0, %s7, %s5
  $region1: #{tpu_custom_call.1} parent=0
    #allocation3 [shape = 'u8[131072]{0}', space=vmem, size = 0x20000, scoped, tag = 'input window, operand 0, single buffered']
    #allocation4 [shape = 's32[1]{0}', space=sflag, size = 0x4, scoped, tag = 'scoped memory for tpu_custom_call.1']
    #allocation5 [shape = 's32[1]{0}', space=sflag, size = 0x4, scoped, tag = 'scoped memory for tpu_custom_call.1']
    #allocation6 [shape = 'u8[294912]{0}', space=vmem, size = 0x48000, scoped, tag = 'input window, operand 1, single buffered']
    #allocation7 [shape = 's32[1]{0}', space=sflag, size = 0x4, scoped, tag = 'scoped memory for tpu_custom_call.1']
    #allocation8 [shape = 'u8[131072]{0}', space=vmem, size = 0x20000, scoped, tag = 'output window, operand 0, single buffered']
    #allocation9 [shape = 'u8[1024]{0}', space=vmem, size = 0x400, scoped, tag = 'output window, operand 1, single buffered']
    #allocation10 [shape = 's32[1]{0}', space=sflag, size = 0x4, scoped, tag = 'scoped memory for tpu_custom_call.1']
    %9 = vsyncpa [#allocation4], 0
    %10 = vsyncpa [#allocation7], 0
    %11 = vsyncpa [#allocation5], 0
    %12 = vsyncpa [#allocation10], 0
    // Predicated region
    $region2: #{tpu_custom_call.1} parent=1 // pred_check
      _
    $region3: #{tpu_custom_call.1} parent=1 // pred_check_branch
      %14 = sbr.rel (0) target = $region5
    $region4: #{tpu_custom_call.1} parent=1 // pred_region
      %s16 = ssub.s32 4096, 4096
      %17 = vsyncadd [#allocation4], %s16
      %s18 = sshll.u32 [#allocation3], 4
      %s19 = int_to_ptr.vmem [resolvable:$true] %s18
      %24 = dma.hbm_to_vmem [thread:$0]  %s0, 4096, %s19, [#allocation4], 64, 64, 4
    $region5: #{tpu_custom_call.1} parent=1 // pred_fallthru
      _
    // Predicated region
    $region6: #{tpu_custom_call.1} parent=1 // pred_check
      _
    $region7: #{tpu_custom_call.1} parent=1 // pred_check_branch
      %26 = sbr.rel (0) target = $region9
    $region8: #{tpu_custom_call.1} parent=1 // pred_region
      %s28 = ssub.s32 9216, 9216
      %29 = vsyncadd [#allocation7], %s28
      %s30 = sshll.u32 [#allocation6], 4
      %s31 = int_to_ptr.vmem [resolvable:$true] %s30
      %36 = dma.hbm_to_vmem [thread:$0]  %s1, 9216, %s31, [#allocation7], 64, 64, 4
    $region9: #{tpu_custom_call.1} parent=1 // pred_fallthru
      _
    // Predicated region
    $region10: #{tpu_custom_call.1} parent=1 // pred_check
      _
    $region11: #{tpu_custom_call.1} parent=1 // pred_check_branch
      %38 = sbr.rel (0) target = $region13
    $region12: #{tpu_custom_call.1} parent=1 // pred_region
      %39 = dma.done [#allocation4], 4096
    $region13: #{tpu_custom_call.1} parent=1 // pred_fallthru
      _
    // Predicated region
    $region14: #{tpu_custom_call.1} parent=1 // pred_check
      _
    $region15: #{tpu_custom_call.1} parent=1 // pred_check_branch
      %41 = sbr.rel (0) target = $region17
    $region16: #{tpu_custom_call.1} parent=1 // pred_region
      %42 = dma.done [#allocation7], 9216
    $region17: #{tpu_custom_call.1} parent=1 // pred_fallthru
      _
    %v44 = vld [vmem:[#allocation3] sm:$0xf]
    %v45 = vld [vmem:[#allocation3 + $0x4] sm:$0xf]
    %v46 = vld [vmem:[#allocation3 + $0x8] sm:$0xf]
    %v47 = vld [vmem:[#allocation3 + $0xc] sm:$0xf]
    %v48 = vld [vmem:[#allocation3 + $0x10] sm:$0xf]
    %v49 = vld [vmem:[#allocation3 + $0x14] sm:$0xf]
    %v50 = vld [vmem:[#allocation3 + $0x18] sm:$0xf]
    %v51 = vld [vmem:[#allocation3 + $0x1c] sm:$0xf]
    %v52 = vld [vmem:[#allocation3 + $0x20] sm:$0xf]
    %v53 = vld [vmem:[#allocation3 + $0x24] sm:$0xf]
    %v54 = vld [vmem:[#allocation3 + $0x28] sm:$0xf]
    %v55 = vld [vmem:[#allocation3 + $0x2c] sm:$0xf]
    %v56 = vld [vmem:[#allocation3 + $0x30] sm:$0xf]
    %v57 = vld [vmem:[#allocation3 + $0x34] sm:$0xf]
    %v58 = vld [vmem:[#allocation3 + $0x38] sm:$0xf]
    %v59 = vld [vmem:[#allocation3 + $0x3c] sm:$0xf]
    %v60 = vld [vmem:[#allocation3 + $0x40] sm:$0xf]
    %v61 = vld [vmem:[#allocation3 + $0x44] sm:$0xf]
    %v62 = vld [vmem:[#allocation3 + $0x48] sm:$0xf]
    %v63 = vld [vmem:[#allocation3 + $0x4c] sm:$0xf]
    %v64 = vld [vmem:[#allocation3 + $0x50] sm:$0xf]
    %v65 = vld [vmem:[#allocation3 + $0x54] sm:$0xf]
    %v66 = vld [vmem:[#allocation3 + $0x58] sm:$0xf]
    %v67 = vld [vmem:[#allocation3 + $0x5c] sm:$0xf]
    %v68 = vld [vmem:[#allocation3 + $0x60] sm:$0xf]
    %v69 = vld [vmem:[#allocation3 + $0x64] sm:$0xf]
    %v70 = vld [vmem:[#allocation3 + $0x68] sm:$0xf]
    %v71 = vld [vmem:[#allocation3 + $0x6c] sm:$0xf]
    %v72 = vld [vmem:[#allocation3 + $0x70] sm:$0xf]
    %v73 = vld [vmem:[#allocation3 + $0x74] sm:$0xf]
    %v74 = vld [vmem:[#allocation3 + $0x78] sm:$0xf]
    %v75 = vld [vmem:[#allocation3 + $0x7c] sm:$0xf]
    %v76 = vld [vmem:[#allocation3 + $0x80] sm:$0xf]
    %v77 = vld [vmem:[#allocation3 + $0x84] sm:$0xf]
    %v78 = vld [vmem:[#allocation3 + $0x88] sm:$0xf]
    %v79 = vld [vmem:[#allocation3 + $0x8c] sm:$0xf]
    %v80 = vld [vmem:[#allocation3 + $0x90] sm:$0xf]
    %v81 = vld [vmem:[#allocation3 + $0x94] sm:$0xf]
    %v82 = vld [vmem:[#allocation3 + $0x98] sm:$0xf]
    %v83 = vld [vmem:[#allocation3 + $0x9c] sm:$0xf]
    %v84 = vld [vmem:[#allocation3 + $0xa0] sm:$0xf]
    %v85 = vld [vmem:[#allocation3 + $0xa4] sm:$0xf]
    %v86 = vld [vmem:[#allocation3 + $0xa8] sm:$0xf]
    %v87 = vld [vmem:[#allocation3 + $0xac] sm:$0xf]
    %v88 = vld [vmem:[#allocation3 + $0xb0] sm:$0xf]
    %v89 = vld [vmem:[#allocation3 + $0xb4] sm:$0xf]
    %v90 = vld [vmem:[#allocation3 + $0xb8] sm:$0xf]
    %v91 = vld [vmem:[#allocation3 + $0xbc] sm:$0xf]
    %v92 = vld [vmem:[#allocation3 + $0xc0] sm:$0xf]
    %v93 = vld [vmem:[#allocation3 + $0xc4] sm:$0xf]
    %v94 = vld [vmem:[#allocation3 + $0xc8] sm:$0xf]
    %v95 = vld [vmem:[#allocation3 + $0xcc] sm:$0xf]
    %v96 = vld [vmem:[#allocation3 + $0xd0] sm:$0xf]
    %v97 = vld [vmem:[#allocation3 + $0xd4] sm:$0xf]
    %v98 = vld [vmem:[#allocation3 + $0xd8] sm:$0xf]
    %v99 = vld [vmem:[#allocation3 + $0xdc] sm:$0xf]
    %v100 = vld [vmem:[#allocation3 + $0xe0] sm:$0xf]
    %v101 = vld [vmem:[#allocation3 + $0xe4] sm:$0xf]
    %v102 = vld [vmem:[#allocation3 + $0xe8] sm:$0xf]
    %v103 = vld [vmem:[#allocation3 + $0xec] sm:$0xf]
    %v104 = vld [vmem:[#allocation3 + $0xf0] sm:$0xf]
    %v105 = vld [vmem:[#allocation3 + $0xf4] sm:$0xf]
    %v106 = vld [vmem:[#allocation3 + $0xf8] sm:$0xf]
    %v107 = vld [vmem:[#allocation3 + $0xfc] sm:$0xf]
    %108 = vst [vmem:[#allocation2] sm:$0xf] 0
    %109 = vst [vmem:[#allocation2 + $0x4] sm:$0xf] 0
    %110 = vst [vmem:[#allocation2 + $0x8] sm:$0x1] 0
    %111 = vst [vmem:[#allocation2 + $0xd8] sm:$0xf] 0
    %112 = vst [vmem:[#allocation2 + $0xdc] sm:$0xf] 0
    %113 = vst [vmem:[#allocation2 + $0xe0] sm:$0x1] 0
    %s114 = scalar_lea.vmem [#allocation2], 204
    %115 = vst [vmem:[%s114] sm:$0xf] 0
    %116 = vst [vmem:[%s114 + $0x4] sm:$0xf] 0
    %117 = vst [vmem:[%s114 + $0x8] sm:$0x1] 0
    %118 = vst [vmem:[%s114 + $0xd8] sm:$0xf] 0
    %119 = vst [vmem:[%s114 + $0xdc] sm:$0xf] 0
    %120 = vst [vmem:[%s114 + $0xe0] sm:$0x1] 0
    %s121 = scalar_lea.vmem [#allocation2], 12
    %vm122 = vcmask 1040384
    %vm123 = vsmask.f32 256
    %vm124 = vmand %vm122, %vm123
    %v125 = vld [vmem:[%s121] sm:$0x1]
    %v126 = vsel %vm124, 0, %v125
    %127 = vst [vmem:[%s121] sm:$0x1] %v126
    %v128 = vld [vmem:[%s121 + $0xc] sm:$0x1]
    %v129 = vsel %vm124, 0, %v128
    %130 = vst [vmem:[%s121 + $0xc] sm:$0x1] %v129
    %v131 = vld [vmem:[%s121 + $0x18] sm:$0x1]
    %v132 = vsel %vm124, 0, %v131
    %133 = vst [vmem:[%s121 + $0x18] sm:$0x1] %v132
    %v134 = vld [vmem:[%s121 + $0x24] sm:$0x1]
    %v135 = vsel %vm124, 0, %v134
    %136 = vst [vmem:[%s121 + $0x24] sm:$0x1] %v135
    %v137 = vld [vmem:[%s121 + $0x30] sm:$0x1]
    %v138 = vsel %vm124, 0, %v137
    %139 = vst [vmem:[%s121 + $0x30] sm:$0x1] %v138
    %v140 = vld [vmem:[%s121 + $0x3c] sm:$0x1]
    %v141 = vsel %vm124, 0, %v140
    %142 = vst [vmem:[%s121 + $0x3c] sm:$0x1] %v141
    %v143 = vld [vmem:[%s121 + $0x48] sm:$0x1]
    %v144 = vsel %vm124, 0, %v143
    %145 = vst [vmem:[%s121 + $0x48] sm:$0x1] %v144
    %v146 = vld [vmem:[%s121 + $0x54] sm:$0x1]
    %v147 = vsel %vm124, 0, %v146
    %148 = vst [vmem:[%s121 + $0x54] sm:$0x1] %v147
    %v149 = vld [vmem:[%s121 + $0x60] sm:$0x1]
    %v150 = vsel %vm124, 0, %v149
    %151 = vst [vmem:[%s121 + $0x60] sm:$0x1] %v150
    %v152 = vld [vmem:[%s121 + $0x6c] sm:$0x1]
    %v153 = vsel %vm124, 0, %v152
    %154 = vst [vmem:[%s121 + $0x6c] sm:$0x1] %v153
    %v155 = vld [vmem:[%s121 + $0x78] sm:$0x1]
    %v156 = vsel %vm124, 0, %v155
    %157 = vst [vmem:[%s121 + $0x78] sm:$0x1] %v156
    %v158 = vld [vmem:[%s121 + $0x84] sm:$0x1]
    %v159 = vsel %vm124, 0, %v158
    %160 = vst [vmem:[%s121 + $0x84] sm:$0x1] %v159
    %v161 = vld [vmem:[%s121 + $0x90] sm:$0x1]
    %v162 = vsel %vm124, 0, %v161
    %163 = vst [vmem:[%s121 + $0x90] sm:$0x1] %v162
    %v164 = vld [vmem:[%s121 + $0x9c] sm:$0x1]
    %v165 = vsel %vm124, 0, %v164
    %166 = vst [vmem:[%s121 + $0x9c] sm:$0x1] %v165
    %v167 = vld [vmem:[%s121 + $0xa8] sm:$0x1]
    %v168 = vsel %vm124, 0, %v167
    %169 = vst [vmem:[%s121 + $0xa8] sm:$0x1] %v168
    %v170 = vld [vmem:[%s121 + $0xb4] sm:$0x1]
    %v171 = vsel %vm124, 0, %v170
    %172 = vst [vmem:[%s121 + $0xb4] sm:$0x1] %v171
    %v173 = vld [vmem:[%s121 + $0xd8] sm:$0x1]
    %v174 = vsel %vm124, 0, %v173
    %175 = vst [vmem:[%s121 + $0xd8] sm:$0x1] %v174
    %v176 = vld [vmem:[%s121 + $0xe4] sm:$0x1]
    %v177 = vsel %vm124, 0, %v176
    %178 = vst [vmem:[%s121 + $0xe4] sm:$0x1] %v177
    %v179 = vld [vmem:[%s121 + $0xf0] sm:$0x1]
    %v180 = vsel %vm124, 0, %v179
    %181 = vst [vmem:[%s121 + $0xf0] sm:$0x1] %v180
    %v182 = vld [vmem:[%s121 + $0xfc] sm:$0x1]
    %v183 = vsel %vm124, 0, %v182
    %184 = vst [vmem:[%s121 + $0xfc] sm:$0x1] %v183
    %v185 = vld [vmem:[%s121 + $0x108] sm:$0x1]
    %v186 = vsel %vm124, 0, %v185
    %187 = vst [vmem:[%s121 + $0x108] sm:$0x1] %v186
    %v188 = vld [vmem:[%s121 + $0x114] sm:$0x1]
    %v189 = vsel %vm124, 0, %v188
    %190 = vst [vmem:[%s121 + $0x114] sm:$0x1] %v189
    %v191 = vld [vmem:[%s121 + $0x120] sm:$0x1]
    %v192 = vsel %vm124, 0, %v191
    %193 = vst [vmem:[%s121 + $0x120] sm:$0x1] %v192
    %v194 = vld [vmem:[%s121 + $0x12c] sm:$0x1]
    %v195 = vsel %vm124, 0, %v194
    %196 = vst [vmem:[%s121 + $0x12c] sm:$0x1] %v195
    %v197 = vld [vmem:[%s121 + $0x138] sm:$0x1]
    %v198 = vsel %vm124, 0, %v197
    %199 = vst [vmem:[%s121 + $0x138] sm:$0x1] %v198
    %v200 = vld [vmem:[%s121 + $0x144] sm:$0x1]
    %v201 = vsel %vm124, 0, %v200
    %202 = vst [vmem:[%s121 + $0x144] sm:$0x1] %v201
    %v203 = vld [vmem:[%s121 + $0x150] sm:$0x1]
    %v204 = vsel %vm124, 0, %v203
    %205 = vst [vmem:[%s121 + $0x150] sm:$0x1] %v204
    %v206 = vld [vmem:[%s121 + $0x15c] sm:$0x1]
    %v207 = vsel %vm124, 0, %v206
    %208 = vst [vmem:[%s121 + $0x15c] sm:$0x1] %v207
    %v209 = vld [vmem:[%s121 + $0x168] sm:$0x1]
    %v210 = vsel %vm124, 0, %v209
    %211 = vst [vmem:[%s121 + $0x168] sm:$0x1] %v210
    %v212 = vld [vmem:[%s121 + $0x174] sm:$0x1]
    %v213 = vsel %vm124, 0, %v212
    %214 = vst [vmem:[%s121 + $0x174] sm:$0x1] %v213
    %v215 = vld [vmem:[%s121 + $0x180] sm:$0x1]
    %v216 = vsel %vm124, 0, %v215
    %217 = vst [vmem:[%s121 + $0x180] sm:$0x1] %v216
    %v218 = vld [vmem:[%s121 + $0x18c] sm:$0x1]
    %v219 = vsel %vm124, 0, %v218
    %220 = vst [vmem:[%s121 + $0x18c] sm:$0x1] %v219
    %vm221 = vsmask.f32 7938
    %vm222 = vmand %vm122, %vm221
    %v223 = vld [vmem:[%s121 + $0x8] sm:$0x1]
    %v224 = vsel %vm222, 0, %v223
    %225 = vst [vmem:[%s121 + $0x8] sm:$0x1] %v224
    %v226 = vld [vmem:[%s121 + $0x14] sm:$0x1]
    %v227 = vsel %vm222, 0, %v226
    %228 = vst [vmem:[%s121 + $0x14] sm:$0x1] %v227
    %v229 = vld [vmem:[%s121 + $0x20] sm:$0x1]
    %v230 = vsel %vm222, 0, %v229
    %231 = vst [vmem:[%s121 + $0x20] sm:$0x1] %v230
    %v232 = vld [vmem:[%s121 + $0x2c] sm:$0x1]
    %v233 = vsel %vm222, 0, %v232
    %234 = vst [vmem:[%s121 + $0x2c] sm:$0x1] %v233
    %v235 = vld [vmem:[%s121 + $0x38] sm:$0x1]
    %v236 = vsel %vm222, 0, %v235
    %237 = vst [vmem:[%s121 + $0x38] sm:$0x1] %v236
    %v238 = vld [vmem:[%s121 + $0x44] sm:$0x1]
    %v239 = vsel %vm222, 0, %v238
    %240 = vst [vmem:[%s121 + $0x44] sm:$0x1] %v239
    %v241 = vld [vmem:[%s121 + $0x50] sm:$0x1]
    %v242 = vsel %vm222, 0, %v241
    %243 = vst [vmem:[%s121 + $0x50] sm:$0x1] %v242
    %v244 = vld [vmem:[%s121 + $0x5c] sm:$0x1]
    %v245 = vsel %vm222, 0, %v244
    %246 = vst [vmem:[%s121 + $0x5c] sm:$0x1] %v245
    %v247 = vld [vmem:[%s121 + $0x68] sm:$0x1]
    %v248 = vsel %vm222, 0, %v247
    %249 = vst [vmem:[%s121 + $0x68] sm:$0x1] %v248
    %v250 = vld [vmem:[%s121 + $0x74] sm:$0x1]
    %v251 = vsel %vm222, 0, %v250
    %252 = vst [vmem:[%s121 + $0x74] sm:$0x1] %v251
    %v253 = vld [vmem:[%s121 + $0x80] sm:$0x1]
    %v254 = vsel %vm222, 0, %v253
    %255 = vst [vmem:[%s121 + $0x80] sm:$0x1] %v254
    %v256 = vld [vmem:[%s121 + $0x8c] sm:$0x1]
    %v257 = vsel %vm222, 0, %v256
    %258 = vst [vmem:[%s121 + $0x8c] sm:$0x1] %v257
    %v259 = vld [vmem:[%s121 + $0x98] sm:$0x1]
    %v260 = vsel %vm222, 0, %v259
    %261 = vst [vmem:[%s121 + $0x98] sm:$0x1] %v260
    %v262 = vld [vmem:[%s121 + $0xa4] sm:$0x1]
    %v263 = vsel %vm222, 0, %v262
    %264 = vst [vmem:[%s121 + $0xa4] sm:$0x1] %v263
    %v265 = vld [vmem:[%s121 + $0xb0] sm:$0x1]
    %v266 = vsel %vm222, 0, %v265
    %267 = vst [vmem:[%s121 + $0xb0] sm:$0x1] %v266
    %v268 = vld [vmem:[%s121 + $0xbc] sm:$0x1]
    %v269 = vsel %vm222, 0, %v268
    %270 = vst [vmem:[%s121 + $0xbc] sm:$0x1] %v269
    %v271 = vld [vmem:[%s121 + $0xe0] sm:$0x1]
    %v272 = vsel %vm222, 0, %v271
    %273 = vst [vmem:[%s121 + $0xe0] sm:$0x1] %v272
    %v274 = vld [vmem:[%s121 + $0xec] sm:$0x1]
    %v275 = vsel %vm222, 0, %v274
    %276 = vst [vmem:[%s121 + $0xec] sm:$0x1] %v275
    %v277 = vld [vmem:[%s121 + $0xf8] sm:$0x1]
    %v278 = vsel %vm222, 0, %v277
    %279 = vst [vmem:[%s121 + $0xf8] sm:$0x1] %v278
    %v280 = vld [vmem:[%s121 + $0x104] sm:$0x1]
    %v281 = vsel %vm222, 0, %v280
    %282 = vst [vmem:[%s121 + $0x104] sm:$0x1] %v281
    %v283 = vld [vmem:[%s121 + $0x110] sm:$0x1]
    %v284 = vsel %vm222, 0, %v283
    %285 = vst [vmem:[%s121 + $0x110] sm:$0x1] %v284
    %v286 = vld [vmem:[%s121 + $0x11c] sm:$0x1]
    %v287 = vsel %vm222, 0, %v286
    %288 = vst [vmem:[%s121 + $0x11c] sm:$0x1] %v287
    %v289 = vld [vmem:[%s121 + $0x128] sm:$0x1]
    %v290 = vsel %vm222, 0, %v289
    %291 = vst [vmem:[%s121 + $0x128] sm:$0x1] %v290
    %v292 = vld [vmem:[%s121 + $0x134] sm:$0x1]
    %v293 = vsel %vm222, 0, %v292
    %294 = vst [vmem:[%s121 + $0x134] sm:$0x1] %v293
    %v295 = vld [vmem:[%s121 + $0x140] sm:$0x1]
    %v296 = vsel %vm222, 0, %v295
    %297 = vst [vmem:[%s121 + $0x140] sm:$0x1] %v296
    %v298 = vld [vmem:[%s121 + $0x14c] sm:$0x1]
    %v299 = vsel %vm222, 0, %v298
    %300 = vst [vmem:[%s121 + $0x14c] sm:$0x1] %v299
    %v301 = vld [vmem:[%s121 + $0x158] sm:$0x1]
    %v302 = vsel %vm222, 0, %v301
    %303 = vst [vmem:[%s121 + $0x158] sm:$0x1] %v302
    %v304 = vld [vmem:[%s121 + $0x164] sm:$0x1]
    %v305 = vsel %vm222, 0, %v304
    %306 = vst [vmem:[%s121 + $0x164] sm:$0x1] %v305
    %v307 = vld [vmem:[%s121 + $0x170] sm:$0x1]
    %v308 = vsel %vm222, 0, %v307
    %309 = vst [vmem:[%s121 + $0x170] sm:$0x1] %v308
    %v310 = vld [vmem:[%s121 + $0x17c] sm:$0x1]
    %v311 = vsel %vm222, 0, %v310
    %312 = vst [vmem:[%s121 + $0x17c] sm:$0x1] %v311
    %v313 = vld [vmem:[%s121 + $0x188] sm:$0x1]
    %v314 = vsel %vm222, 0, %v313
    %315 = vst [vmem:[%s121 + $0x188] sm:$0x1] %v314
    %v316 = vld [vmem:[%s121 + $0x194] sm:$0x1]
    %v317 = vsel %vm222, 0, %v316
    %318 = vst [vmem:[%s121 + $0x194] sm:$0x1] %v317
    %vm319 = vsmask.f32 4368
    %vm320 = vmor %vm123, %vm319
    %v322 = vshrl.u32 %v44, 16
    %v324 = vrot.slane %v322, 7
    %v325 = vshll.u32 %v44, 16
    %v327 = vor.u32 %v324, %v325
    %v328 = vrot.slane %v324, 4
    %v330 = vshrl.u32 %v45, 16
    %v332 = vrot.slane %v330, 7
    %v333 = vshll.u32 %v45, 16
    %v335 = vor.u32 %v332, %v333
    %v336 = vsel %vm320, %v328, %v335
    %v337 = vrot.slane %v332, 4
    %v339 = vshrl.u32 %v46, 16
    %v341 = vrot.slane %v339, 7
    %v342 = vshll.u32 %v46, 16
    %v344 = vor.u32 %v341, %v342
    %v345 = vrot.slane %v341, 4
    %v347 = vshrl.u32 %v47, 16
    %v349 = vrot.slane %v347, 7
    %v350 = vshll.u32 %v47, 16
    %v352 = vor.u32 %v349, %v350
    %v353 = vsel %vm320, %v345, %v352
    %v354 = vrot.slane %v349, 4
    %v356 = vshrl.u32 %v48, 16
    %v358 = vrot.slane %v356, 7
    %v359 = vshll.u32 %v48, 16
    %v361 = vor.u32 %v358, %v359
    %v362 = vrot.slane %v358, 4
    %v364 = vshrl.u32 %v49, 16
    %v366 = vrot.slane %v364, 7
    %v367 = vshll.u32 %v49, 16
    %v369 = vor.u32 %v366, %v367
    %v370 = vsel %vm320, %v362, %v369
    %v371 = vrot.slane %v366, 4
    %v373 = vshrl.u32 %v50, 16
    %v375 = vrot.slane %v373, 7
    %v376 = vshll.u32 %v50, 16
    %v378 = vor.u32 %v375, %v376
    %v379 = vrot.slane %v375, 4
    %v381 = vshrl.u32 %v51, 16
    %v383 = vrot.slane %v381, 7
    %v384 = vshll.u32 %v51, 16
    %v386 = vor.u32 %v383, %v384
    %v387 = vsel %vm320, %v379, %v386
    %v388 = vrot.slane %v383, 4
    %v390 = vshrl.u32 %v52, 16
    %v392 = vrot.slane %v390, 7
    %v393 = vshll.u32 %v52, 16
    %v395 = vor.u32 %v392, %v393
    %v396 = vrot.slane %v392, 4
    %v398 = vshrl.u32 %v53, 16
    %v400 = vrot.slane %v398, 7
    %v401 = vshll.u32 %v53, 16
    %v403 = vor.u32 %v400, %v401
    %v404 = vsel %vm320, %v396, %v403
    %v405 = vrot.slane %v400, 4
    %v407 = vshrl.u32 %v54, 16
    %v409 = vrot.slane %v407, 7
    %v410 = vshll.u32 %v54, 16
    %v412 = vor.u32 %v409, %v410
    %v413 = vrot.slane %v409, 4
    %v415 = vshrl.u32 %v55, 16
    %v417 = vrot.slane %v415, 7
    %v418 = vshll.u32 %v55, 16
    %v420 = vor.u32 %v417, %v418
    %v421 = vsel %vm320, %v413, %v420
    %v422 = vrot.slane %v417, 4
    %v424 = vshrl.u32 %v56, 16
    %v426 = vrot.slane %v424, 7
    %v427 = vshll.u32 %v56, 16
    %v429 = vor.u32 %v426, %v427
    %v430 = vrot.slane %v426, 4
    %v432 = vshrl.u32 %v57, 16
    %v434 = vrot.slane %v432, 7
    %v435 = vshll.u32 %v57, 16
    %v437 = vor.u32 %v434, %v435
    %v438 = vsel %vm320, %v430, %v437
    %v439 = vrot.slane %v434, 4
    %v441 = vshrl.u32 %v58, 16
    %v443 = vrot.slane %v441, 7
    %v444 = vshll.u32 %v58, 16
    %v446 = vor.u32 %v443, %v444
    %v447 = vrot.slane %v443, 4
    %v449 = vshrl.u32 %v59, 16
    %v451 = vrot.slane %v449, 7
    %v452 = vshll.u32 %v59, 16
    %v454 = vor.u32 %v451, %v452
    %v455 = vsel %vm320, %v447, %v454
    %v456 = vrot.slane %v451, 4
    %v458 = vshrl.u32 %v60, 16
    %v460 = vrot.slane %v458, 7
    %v461 = vshll.u32 %v60, 16
    %v463 = vor.u32 %v460, %v461
    %v464 = vrot.slane %v460, 4
    %v466 = vshrl.u32 %v61, 16
    %v468 = vrot.slane %v466, 7
    %v469 = vshll.u32 %v61, 16
    %v471 = vor.u32 %v468, %v469
    %v472 = vsel %vm320, %v464, %v471
    %v473 = vrot.slane %v468, 4
    %v475 = vshrl.u32 %v62, 16
    %v477 = vrot.slane %v475, 7
    %v478 = vshll.u32 %v62, 16
    %v480 = vor.u32 %v477, %v478
    %v481 = vrot.slane %v477, 4
    %v483 = vshrl.u32 %v63, 16
    %v485 = vrot.slane %v483, 7
    %v486 = vshll.u32 %v63, 16
    %v488 = vor.u32 %v485, %v486
    %v489 = vsel %vm320, %v481, %v488
    %v490 = vrot.slane %v485, 4
    %v492 = vshrl.u32 %v64, 16
    %v494 = vrot.slane %v492, 7
    %v495 = vshll.u32 %v64, 16
    %v497 = vor.u32 %v494, %v495
    %v498 = vrot.slane %v494, 4
    %v500 = vshrl.u32 %v65, 16
    %v502 = vrot.slane %v500, 7
    %v503 = vshll.u32 %v65, 16
    %v505 = vor.u32 %v502, %v503
    %v506 = vsel %vm320, %v498, %v505
    %v507 = vrot.slane %v502, 4
    %v509 = vshrl.u32 %v66, 16
    %v511 = vrot.slane %v509, 7
    %v512 = vshll.u32 %v66, 16
    %v514 = vor.u32 %v511, %v512
    %v515 = vrot.slane %v511, 4
    %v517 = vshrl.u32 %v67, 16
    %v519 = vrot.slane %v517, 7
    %v520 = vshll.u32 %v67, 16
    %v522 = vor.u32 %v519, %v520
    %v523 = vsel %vm320, %v515, %v522
    %v524 = vrot.slane %v519, 4
    %v526 = vshrl.u32 %v68, 16
    %v528 = vrot.slane %v526, 7
    %v529 = vshll.u32 %v68, 16
    %v531 = vor.u32 %v528, %v529
    %v532 = vrot.slane %v528, 4
    %v534 = vshrl.u32 %v69, 16
    %v536 = vrot.slane %v534, 7
    %v537 = vshll.u32 %v69, 16
    %v539 = vor.u32 %v536, %v537
    %v540 = vsel %vm320, %v532, %v539
    %v541 = vrot.slane %v536, 4
    %v543 = vshrl.u32 %v70, 16
    %v545 = vrot.slane %v543, 7
    %v546 = vshll.u32 %v70, 16
    %v548 = vor.u32 %v545, %v546
    %v549 = vrot.slane %v545, 4
    %v551 = vshrl.u32 %v71, 16
    %v553 = vrot.slane %v551, 7
    %v554 = vshll.u32 %v71, 16
    %v556 = vor.u32 %v553, %v554
    %v557 = vsel %vm320, %v549, %v556
    %v558 = vrot.slane %v553, 4
    %v560 = vshrl.u32 %v72, 16
    %v562 = vrot.slane %v560, 7
    %v563 = vshll.u32 %v72, 16
    %v565 = vor.u32 %v562, %v563
    %v566 = vrot.slane %v562, 4
    %v568 = vshrl.u32 %v73, 16
    %v570 = vrot.slane %v568, 7
    %v571 = vshll.u32 %v73, 16
    %v573 = vor.u32 %v570, %v571
    %v574 = vsel %vm320, %v566, %v573
    %v575 = vrot.slane %v570, 4
    %v577 = vshrl.u32 %v74, 16
    %v579 = vrot.slane %v577, 7
    %v580 = vshll.u32 %v74, 16
    %v582 = vor.u32 %v579, %v580
    %v583 = vrot.slane %v579, 4
    %v585 = vshrl.u32 %v75, 16
    %v587 = vrot.slane %v585, 7
    %v588 = vshll.u32 %v75, 16
    %v590 = vor.u32 %v587, %v588
    %v591 = vsel %vm320, %v583, %v590
    %v592 = vrot.slane %v587, 4
    %v594 = vshrl.u32 %v76, 16
    %v596 = vrot.slane %v594, 7
    %v597 = vshll.u32 %v76, 16
    %v599 = vor.u32 %v596, %v597
    %v600 = vrot.slane %v596, 4
    %v602 = vshrl.u32 %v77, 16
    %v604 = vrot.slane %v602, 7
    %v605 = vshll.u32 %v77, 16
    %v607 = vor.u32 %v604, %v605
    %v608 = vsel %vm320, %v600, %v607
    %v609 = vrot.slane %v604, 4
    %v611 = vshrl.u32 %v78, 16
    %v613 = vrot.slane %v611, 7
    %v614 = vshll.u32 %v78, 16
    %v616 = vor.u32 %v613, %v614
    %v617 = vrot.slane %v613, 4
    %v619 = vshrl.u32 %v79, 16
    %v621 = vrot.slane %v619, 7
    %v622 = vshll.u32 %v79, 16
    %v624 = vor.u32 %v621, %v622
    %v625 = vsel %vm320, %v617, %v624
    %v626 = vrot.slane %v621, 4
    %v628 = vshrl.u32 %v80, 16
    %v630 = vrot.slane %v628, 7
    %v631 = vshll.u32 %v80, 16
    %v633 = vor.u32 %v630, %v631
    %v634 = vrot.slane %v630, 4
    %v636 = vshrl.u32 %v81, 16
    %v638 = vrot.slane %v636, 7
    %v639 = vshll.u32 %v81, 16
    %v641 = vor.u32 %v638, %v639
    %v642 = vsel %vm320, %v634, %v641
    %v643 = vrot.slane %v638, 4
    %v645 = vshrl.u32 %v82, 16
    %v647 = vrot.slane %v645, 7
    %v648 = vshll.u32 %v82, 16
    %v650 = vor.u32 %v647, %v648
    %v651 = vrot.slane %v647, 4
    %v653 = vshrl.u32 %v83, 16
    %v655 = vrot.slane %v653, 7
    %v656 = vshll.u32 %v83, 16
    %v658 = vor.u32 %v655, %v656
    %v659 = vsel %vm320, %v651, %v658
    %v660 = vrot.slane %v655, 4
    %v662 = vshrl.u32 %v84, 16
    %v664 = vrot.slane %v662, 7
    %v665 = vshll.u32 %v84, 16
    %v667 = vor.u32 %v664, %v665
    %v668 = vrot.slane %v664, 4
    %v670 = vshrl.u32 %v85, 16
    %v672 = vrot.slane %v670, 7
    %v673 = vshll.u32 %v85, 16
    %v675 = vor.u32 %v672, %v673
    %v676 = vsel %vm320, %v668, %v675
    %v677 = vrot.slane %v672, 4
    %v679 = vshrl.u32 %v86, 16
    %v681 = vrot.slane %v679, 7
    %v682 = vshll.u32 %v86, 16
    %v684 = vor.u32 %v681, %v682
    %v685 = vrot.slane %v681, 4
    %v687 = vshrl.u32 %v87, 16
    %v689 = vrot.slane %v687, 7
    %v690 = vshll.u32 %v87, 16
    %v692 = vor.u32 %v689, %v690
    %v693 = vsel %vm320, %v685, %v692
    %v694 = vrot.slane %v689, 4
    %v696 = vshrl.u32 %v88, 16
    %v698 = vrot.slane %v696, 7
    %v699 = vshll.u32 %v88, 16
    %v701 = vor.u32 %v698, %v699
    %v702 = vrot.slane %v698, 4
    %v704 = vshrl.u32 %v89, 16
    %v706 = vrot.slane %v704, 7
    %v707 = vshll.u32 %v89, 16
    %v709 = vor.u32 %v706, %v707
    %v710 = vsel %vm320, %v702, %v709
    %v711 = vrot.slane %v706, 4
    %v713 = vshrl.u32 %v90, 16
    %v715 = vrot.slane %v713, 7
    %v716 = vshll.u32 %v90, 16
    %v718 = vor.u32 %v715, %v716
    %v719 = vrot.slane %v715, 4
    %v721 = vshrl.u32 %v91, 16
    %v723 = vrot.slane %v721, 7
    %v724 = vshll.u32 %v91, 16
    %v726 = vor.u32 %v723, %v724
    %v727 = vsel %vm320, %v719, %v726
    %v728 = vrot.slane %v723, 4
    %v730 = vshrl.u32 %v92, 16
    %v732 = vrot.slane %v730, 7
    %v733 = vshll.u32 %v92, 16
    %v735 = vor.u32 %v732, %v733
    %v736 = vrot.slane %v732, 4
    %v738 = vshrl.u32 %v93, 16
    %v740 = vrot.slane %v738, 7
    %v741 = vshll.u32 %v93, 16
    %v743 = vor.u32 %v740, %v741
    %v744 = vsel %vm320, %v736, %v743
    %v745 = vrot.slane %v740, 4
    %v747 = vshrl.u32 %v94, 16
    %v749 = vrot.slane %v747, 7
    %v750 = vshll.u32 %v94, 16
    %v752 = vor.u32 %v749, %v750
    %v753 = vrot.slane %v749, 4
    %v755 = vshrl.u32 %v95, 16
    %v757 = vrot.slane %v755, 7
    %v758 = vshll.u32 %v95, 16
    %v760 = vor.u32 %v757, %v758
    %v761 = vsel %vm320, %v753, %v760
    %v762 = vrot.slane %v757, 4
    %v764 = vshrl.u32 %v96, 16
    %v766 = vrot.slane %v764, 7
    %v767 = vshll.u32 %v96, 16
    %v769 = vor.u32 %v766, %v767
    %v770 = vrot.slane %v766, 4
    %v772 = vshrl.u32 %v97, 16
    %v774 = vrot.slane %v772, 7
    %v775 = vshll.u32 %v97, 16
    %v777 = vor.u32 %v774, %v775
    %v778 = vsel %vm320, %v770, %v777
    %v779 = vrot.slane %v774, 4
    %v781 = vshrl.u32 %v98, 16
    %v783 = vrot.slane %v781, 7
    %v784 = vshll.u32 %v98, 16
    %v786 = vor.u32 %v783, %v784
    %v787 = vrot.slane %v783, 4
    %v789 = vshrl.u32 %v99, 16
    %v791 = vrot.slane %v789, 7
    %v792 = vshll.u32 %v99, 16
    %v794 = vor.u32 %v791, %v792
    %v795 = vsel %vm320, %v787, %v794
    %v796 = vrot.slane %v791, 4
    %v798 = vshrl.u32 %v100, 16
    %v800 = vrot.slane %v798, 7
    %v801 = vshll.u32 %v100, 16
    %v803 = vor.u32 %v800, %v801
    %v804 = vrot.slane %v800, 4
    %v806 = vshrl.u32 %v101, 16
    %v808 = vrot.slane %v806, 7
    %v809 = vshll.u32 %v101, 16
    %v811 = vor.u32 %v808, %v809
    %v812 = vsel %vm320, %v804, %v811
    %v813 = vrot.slane %v808, 4
    %v815 = vshrl.u32 %v102, 16
    %v817 = vrot.slane %v815, 7
    %v818 = vshll.u32 %v102, 16
    %v820 = vor.u32 %v817, %v818
    %v821 = vrot.slane %v817, 4
    %v823 = vshrl.u32 %v103, 16
    %v825 = vrot.slane %v823, 7
    %v826 = vshll.u32 %v103, 16
    %v828 = vor.u32 %v825, %v826
    %v829 = vsel %vm320, %v821, %v828
    %v830 = vrot.slane %v825, 4
    %v832 = vshrl.u32 %v104, 16
    %v834 = vrot.slane %v832, 7
    %v835 = vshll.u32 %v104, 16
    %v837 = vor.u32 %v834, %v835
    %v838 = vrot.slane %v834, 4
    %v840 = vshrl.u32 %v105, 16
    %v842 = vrot.slane %v840, 7
    %v843 = vshll.u32 %v105, 16
    %v845 = vor.u32 %v842, %v843
    %v846 = vsel %vm320, %v838, %v845
    %v847 = vrot.slane %v842, 4
    %v849 = vshrl.u32 %v106, 16
    %v851 = vrot.slane %v849, 7
    %v852 = vshll.u32 %v106, 16
    %v854 = vor.u32 %v851, %v852
    %v855 = vrot.slane %v851, 4
    %v857 = vshrl.u32 %v107, 16
    %v859 = vrot.slane %v857, 7
    %v860 = vshll.u32 %v107, 16
    %v862 = vor.u32 %v859, %v860
    %v863 = vsel %vm320, %v855, %v862
    %v864 = vrot.slane %v859, 4
    %vm961 = vcmask 1043456
    %vm962 = vmand %vm961, %vm221
    %v963 = vld [vmem:[%s121] sm:$0xf]
    %v964 = vsel %vm962, %v327, %v963
    %965 = vst [vmem:[%s121] sm:$0xf] %v964
    %966 = vst [vmem:[%s121 + $0x4] sm:$0xf] %v336
    %v967 = vld [vmem:[%s121 + $0x8] sm:$0x1]
    %v968 = vsel %vm124, %v337, %v967
    %969 = vst [vmem:[%s121 + $0x8] sm:$0x1] %v968
    %v970 = vld [vmem:[%s121 + $0xc] sm:$0xf]
    %v971 = vsel %vm962, %v344, %v970
    %972 = vst [vmem:[%s121 + $0xc] sm:$0xf] %v971
    %973 = vst [vmem:[%s121 + $0x10] sm:$0xf] %v353
    %v974 = vld [vmem:[%s121 + $0x14] sm:$0x1]
    %v975 = vsel %vm124, %v354, %v974
    %976 = vst [vmem:[%s121 + $0x14] sm:$0x1] %v975
    %v977 = vld [vmem:[%s121 + $0x18] sm:$0xf]
    %v978 = vsel %vm962, %v361, %v977
    %979 = vst [vmem:[%s121 + $0x18] sm:$0xf] %v978
    %980 = vst [vmem:[%s121 + $0x1c] sm:$0xf] %v370
    %v981 = vld [vmem:[%s121 + $0x20] sm:$0x1]
    %v982 = vsel %vm124, %v371, %v981
    %983 = vst [vmem:[%s121 + $0x20] sm:$0x1] %v982
    %v984 = vld [vmem:[%s121 + $0x24] sm:$0xf]
    %v985 = vsel %vm962, %v378, %v984
    %986 = vst [vmem:[%s121 + $0x24] sm:$0xf] %v985
    %987 = vst [vmem:[%s121 + $0x28] sm:$0xf] %v387
    %v988 = vld [vmem:[%s121 + $0x2c] sm:$0x1]
    %v989 = vsel %vm124, %v388, %v988
    %990 = vst [vmem:[%s121 + $0x2c] sm:$0x1] %v989
    %v991 = vld [vmem:[%s121 + $0x30] sm:$0xf]
    %v992 = vsel %vm962, %v395, %v991
    %993 = vst [vmem:[%s121 + $0x30] sm:$0xf] %v992
    %994 = vst [vmem:[%s121 + $0x34] sm:$0xf] %v404
    %v995 = vld [vmem:[%s121 + $0x38] sm:$0x1]
    %v996 = vsel %vm124, %v405, %v995
    %997 = vst [vmem:[%s121 + $0x38] sm:$0x1] %v996
    %v998 = vld [vmem:[%s121 + $0x3c] sm:$0xf]
    %v999 = vsel %vm962, %v412, %v998
    %1000 = vst [vmem:[%s121 + $0x3c] sm:$0xf] %v999
    %1001 = vst [vmem:[%s121 + $0x40] sm:$0xf] %v421
    %v1002 = vld [vmem:[%s121 + $0x44] sm:$0x1]
    %v1003 = vsel %vm124, %v422, %v1002
    %1004 = vst [vmem:[%s121 + $0x44] sm:$0x1] %v1003
    %v1005 = vld [vmem:[%s121 + $0x48] sm:$0xf]
    %v1006 = vsel %vm962, %v429, %v1005
    %1007 = vst [vmem:[%s121 + $0x48] sm:$0xf] %v1006
    %1008 = vst [vmem:[%s121 + $0x4c] sm:$0xf] %v438
    %v1009 = vld [vmem:[%s121 + $0x50] sm:$0x1]
    %v1010 = vsel %vm124, %v439, %v1009
    %1011 = vst [vmem:[%s121 + $0x50] sm:$0x1] %v1010
    %v1012 = vld [vmem:[%s121 + $0x54] sm:$0xf]
    %v1013 = vsel %vm962, %v446, %v1012
    %1014 = vst [vmem:[%s121 + $0x54] sm:$0xf] %v1013
    %1015 = vst [vmem:[%s121 + $0x58] sm:$0xf] %v455
    %v1016 = vld [vmem:[%s121 + $0x5c] sm:$0x1]
    %v1017 = vsel %vm124, %v456, %v1016
    %1018 = vst [vmem:[%s121 + $0x5c] sm:$0x1] %v1017
    %v1019 = vld [vmem:[%s121 + $0x60] sm:$0xf]
    %v1020 = vsel %vm962, %v463, %v1019
    %1021 = vst [vmem:[%s121 + $0x60] sm:$0xf] %v1020
    %1022 = vst [vmem:[%s121 + $0x64] sm:$0xf] %v472
    %v1023 = vld [vmem:[%s121 + $0x68] sm:$0x1]
    %v1024 = vsel %vm124, %v473, %v1023
    %1025 = vst [vmem:[%s121 + $0x68] sm:$0x1] %v1024
    %v1026 = vld [vmem:[%s121 + $0x6c] sm:$0xf]
    %v1027 = vsel %vm962, %v480, %v1026
    %1028 = vst [vmem:[%s121 + $0x6c] sm:$0xf] %v1027
    %1029 = vst [vmem:[%s121 + $0x70] sm:$0xf] %v489
    %v1030 = vld [vmem:[%s121 + $0x74] sm:$0x1]
    %v1031 = vsel %vm124, %v490, %v1030
    %1032 = vst [vmem:[%s121 + $0x74] sm:$0x1] %v1031
    %v1033 = vld [vmem:[%s121 + $0x78] sm:$0xf]
    %v1034 = vsel %vm962, %v497, %v1033
    %1035 = vst [vmem:[%s121 + $0x78] sm:$0xf] %v1034
    %1036 = vst [vmem:[%s121 + $0x7c] sm:$0xf] %v506
    %v1037 = vld [vmem:[%s121 + $0x80] sm:$0x1]
    %v1038 = vsel %vm124, %v507, %v1037
    %1039 = vst [vmem:[%s121 + $0x80] sm:$0x1] %v1038
    %v1040 = vld [vmem:[%s121 + $0x84] sm:$0xf]
    %v1041 = vsel %vm962, %v514, %v1040
    %1042 = vst [vmem:[%s121 + $0x84] sm:$0xf] %v1041
    %1043 = vst [vmem:[%s121 + $0x88] sm:$0xf] %v523
    %v1044 = vld [vmem:[%s121 + $0x8c] sm:$0x1]
    %v1045 = vsel %vm124, %v524, %v1044
    %1046 = vst [vmem:[%s121 + $0x8c] sm:$0x1] %v1045
    %v1047 = vld [vmem:[%s121 + $0x90] sm:$0xf]
    %v1048 = vsel %vm962, %v531, %v1047
    %1049 = vst [vmem:[%s121 + $0x90] sm:$0xf] %v1048
    %1050 = vst [vmem:[%s121 + $0x94] sm:$0xf] %v540
    %v1051 = vld [vmem:[%s121 + $0x98] sm:$0x1]
    %v1052 = vsel %vm124, %v541, %v1051
    %1053 = vst [vmem:[%s121 + $0x98] sm:$0x1] %v1052
    %v1054 = vld [vmem:[%s121 + $0x9c] sm:$0xf]
    %v1055 = vsel %vm962, %v548, %v1054
    %1056 = vst [vmem:[%s121 + $0x9c] sm:$0xf] %v1055
    %1057 = vst [vmem:[%s121 + $0xa0] sm:$0xf] %v557
    %v1058 = vld [vmem:[%s121 + $0xa4] sm:$0x1]
    %v1059 = vsel %vm124, %v558, %v1058
    %1060 = vst [vmem:[%s121 + $0xa4] sm:$0x1] %v1059
    %v1061 = vld [vmem:[%s121 + $0xa8] sm:$0xf]
    %v1062 = vsel %vm962, %v565, %v1061
    %1063 = vst [vmem:[%s121 + $0xa8] sm:$0xf] %v1062
    %1064 = vst [vmem:[%s121 + $0xac] sm:$0xf] %v574
    %v1065 = vld [vmem:[%s121 + $0xb0] sm:$0x1]
    %v1066 = vsel %vm124, %v575, %v1065
    %1067 = vst [vmem:[%s121 + $0xb0] sm:$0x1] %v1066
    %v1068 = vld [vmem:[%s121 + $0xb4] sm:$0xf]
    %v1069 = vsel %vm962, %v582, %v1068
    %1070 = vst [vmem:[%s121 + $0xb4] sm:$0xf] %v1069
    %1071 = vst [vmem:[%s121 + $0xb8] sm:$0xf] %v591
    %v1072 = vld [vmem:[%s121 + $0xbc] sm:$0x1]
    %v1073 = vsel %vm124, %v592, %v1072
    %1074 = vst [vmem:[%s121 + $0xbc] sm:$0x1] %v1073
    %v1075 = vld [vmem:[%s121 + $0xd8] sm:$0xf]
    %v1076 = vsel %vm962, %v599, %v1075
    %1077 = vst [vmem:[%s121 + $0xd8] sm:$0xf] %v1076
    %1078 = vst [vmem:[%s121 + $0xdc] sm:$0xf] %v608
    %v1079 = vld [vmem:[%s121 + $0xe0] sm:$0x1]
    %v1080 = vsel %vm124, %v609, %v1079
    %1081 = vst [vmem:[%s121 + $0xe0] sm:$0x1] %v1080
    %v1082 = vld [vmem:[%s121 + $0xe4] sm:$0xf]
    %v1083 = vsel %vm962, %v616, %v1082
    %1084 = vst [vmem:[%s121 + $0xe4] sm:$0xf] %v1083
    %1085 = vst [vmem:[%s121 + $0xe8] sm:$0xf] %v625
    %v1086 = vld [vmem:[%s121 + $0xec] sm:$0x1]
    %v1087 = vsel %vm124, %v626, %v1086
    %1088 = vst [vmem:[%s121 + $0xec] sm:$0x1] %v1087
    %v1089 = vld [vmem:[%s121 + $0xf0] sm:$0xf]
    %v1090 = vsel %vm962, %v633, %v1089
    %1091 = vst [vmem:[%s121 + $0xf0] sm:$0xf] %v1090
    %1092 = vst [vmem:[%s121 + $0xf4] sm:$0xf] %v642
    %v1093 = vld [vmem:[%s121 + $0xf8] sm:$0x1]
    %v1094 = vsel %vm124, %v643, %v1093
    %1095 = vst [vmem:[%s121 + $0xf8] sm:$0x1] %v1094
    %v1096 = vld [vmem:[%s121 + $0xfc] sm:$0xf]
    %v1097 = vsel %vm962, %v650, %v1096
    %1098 = vst [vmem:[%s121 + $0xfc] sm:$0xf] %v1097
    %1099 = vst [vmem:[%s121 + $0x100] sm:$0xf] %v659
    %v1100 = vld [vmem:[%s121 + $0x104] sm:$0x1]
    %v1101 = vsel %vm124, %v660, %v1100
    %1102 = vst [vmem:[%s121 + $0x104] sm:$0x1] %v1101
    %v1103 = vld [vmem:[%s121 + $0x108] sm:$0xf]
    %v1104 = vsel %vm962, %v667, %v1103
    %1105 = vst [vmem:[%s121 + $0x108] sm:$0xf] %v1104
    %1106 = vst [vmem:[%s121 + $0x10c] sm:$0xf] %v676
    %v1107 = vld [vmem:[%s121 + $0x110] sm:$0x1]
    %v1108 = vsel %vm124, %v677, %v1107
    %1109 = vst [vmem:[%s121 + $0x110] sm:$0x1] %v1108
    %v1110 = vld [vmem:[%s121 + $0x114] sm:$0xf]
    %v1111 = vsel %vm962, %v684, %v1110
    %1112 = vst [vmem:[%s121 + $0x114] sm:$0xf] %v1111
    %1113 = vst [vmem:[%s121 + $0x118] sm:$0xf] %v693
    %v1114 = vld [vmem:[%s121 + $0x11c] sm:$0x1]
    %v1115 = vsel %vm124, %v694, %v1114
    %1116 = vst [vmem:[%s121 + $0x11c] sm:$0x1] %v1115
    %v1117 = vld [vmem:[%s121 + $0x120] sm:$0xf]
    %v1118 = vsel %vm962, %v701, %v1117
    %1119 = vst [vmem:[%s121 + $0x120] sm:$0xf] %v1118
    %1120 = vst [vmem:[%s121 + $0x124] sm:$0xf] %v710
    %v1121 = vld [vmem:[%s121 + $0x128] sm:$0x1]
    %v1122 = vsel %vm124, %v711, %v1121
    %1123 = vst [vmem:[%s121 + $0x128] sm:$0x1] %v1122
    %v1124 = vld [vmem:[%s121 + $0x12c] sm:$0xf]
    %v1125 = vsel %vm962, %v718, %v1124
    %1126 = vst [vmem:[%s121 + $0x12c] sm:$0xf] %v1125
    %1127 = vst [vmem:[%s121 + $0x130] sm:$0xf] %v727
    %v1128 = vld [vmem:[%s121 + $0x134] sm:$0x1]
    %v1129 = vsel %vm124, %v728, %v1128
    %1130 = vst [vmem:[%s121 + $0x134] sm:$0x1] %v1129
    %v1131 = vld [vmem:[%s121 + $0x138] sm:$0xf]
    %v1132 = vsel %vm962, %v735, %v1131
    %1133 = vst [vmem:[%s121 + $0x138] sm:$0xf] %v1132
    %1134 = vst [vmem:[%s121 + $0x13c] sm:$0xf] %v744
    %v1135 = vld [vmem:[%s121 + $0x140] sm:$0x1]
    %v1136 = vsel %vm124, %v745, %v1135
    %1137 = vst [vmem:[%s121 + $0x140] sm:$0x1] %v1136
    %v1138 = vld [vmem:[%s121 + $0x144] sm:$0xf]
    %v1139 = vsel %vm962, %v752, %v1138
    %1140 = vst [vmem:[%s121 + $0x144] sm:$0xf] %v1139
    %1141 = vst [vmem:[%s121 + $0x148] sm:$0xf] %v761
    %v1142 = vld [vmem:[%s121 + $0x14c] sm:$0x1]
    %v1143 = vsel %vm124, %v762, %v1142
    %1144 = vst [vmem:[%s121 + $0x14c] sm:$0x1] %v1143
    %v1145 = vld [vmem:[%s121 + $0x150] sm:$0xf]
    %v1146 = vsel %vm962, %v769, %v1145
    %1147 = vst [vmem:[%s121 + $0x150] sm:$0xf] %v1146
    %1148 = vst [vmem:[%s121 + $0x154] sm:$0xf] %v778
    %v1149 = vld [vmem:[%s121 + $0x158] sm:$0x1]
    %v1150 = vsel %vm124, %v779, %v1149
    %1151 = vst [vmem:[%s121 + $0x158] sm:$0x1] %v1150
    %v1152 = vld [vmem:[%s121 + $0x15c] sm:$0xf]
    %v1153 = vsel %vm962, %v786, %v1152
    %1154 = vst [vmem:[%s121 + $0x15c] sm:$0xf] %v1153
    %1155 = vst [vmem:[%s121 + $0x160] sm:$0xf] %v795
    %v1156 = vld [vmem:[%s121 + $0x164] sm:$0x1]
    %v1157 = vsel %vm124, %v796, %v1156
    %1158 = vst [vmem:[%s121 + $0x164] sm:$0x1] %v1157
    %v1159 = vld [vmem:[%s121 + $0x168] sm:$0xf]
    %v1160 = vsel %vm962, %v803, %v1159
    %1161 = vst [vmem:[%s121 + $0x168] sm:$0xf] %v1160
    %1162 = vst [vmem:[%s121 + $0x16c] sm:$0xf] %v812
    %v1163 = vld [vmem:[%s121 + $0x170] sm:$0x1]
    %v1164 = vsel %vm124, %v813, %v1163
    %1165 = vst [vmem:[%s121 + $0x170] sm:$0x1] %v1164
    %v1166 = vld [vmem:[%s121 + $0x174] sm:$0xf]
    %v1167 = vsel %vm962, %v820, %v1166
    %1168 = vst [vmem:[%s121 + $0x174] sm:$0xf] %v1167
    %1169 = vst [vmem:[%s121 + $0x178] sm:$0xf] %v829
    %v1170 = vld [vmem:[%s121 + $0x17c] sm:$0x1]
    %v1171 = vsel %vm124, %v830, %v1170
    %1172 = vst [vmem:[%s121 + $0x17c] sm:$0x1] %v1171
    %v1173 = vld [vmem:[%s121 + $0x180] sm:$0xf]
    %v1174 = vsel %vm962, %v837, %v1173
    %1175 = vst [vmem:[%s121 + $0x180] sm:$0xf] %v1174
    %1176 = vst [vmem:[%s121 + $0x184] sm:$0xf] %v846
    %v1177 = vld [vmem:[%s121 + $0x188] sm:$0x1]
    %v1178 = vsel %vm124, %v847, %v1177
    %1179 = vst [vmem:[%s121 + $0x188] sm:$0x1] %v1178
    %v1180 = vld [vmem:[%s121 + $0x18c] sm:$0xf]
    %v1181 = vsel %vm962, %v854, %v1180
    %1182 = vst [vmem:[%s121 + $0x18c] sm:$0xf] %v1181
    %1183 = vst [vmem:[%s121 + $0x190] sm:$0xf] %v863
    %v1184 = vld [vmem:[%s121 + $0x194] sm:$0x1]
    %v1185 = vsel %vm124, %v864, %v1184
    %1186 = vst [vmem:[%s121 + $0x194] sm:$0x1] %v1185
    %v1187 = vld [vmem:[#allocation2] sm:$0xf]
    %v1188 = vld [vmem:[#allocation2 + $0x4] sm:$0xf]
    %v1189 = vld [vmem:[#allocation2 + $0xc] sm:$0xf]
    %v1190 = vld [vmem:[#allocation2 + $0x10] sm:$0xf]
    %v1191 = vld [vmem:[#allocation2 + $0x18] sm:$0xf]
    %v1192 = vld [vmem:[#allocation2 + $0x1c] sm:$0xf]
    %v1193 = vld [vmem:[#allocation2 + $0x24] sm:$0xf]
    %v1194 = vld [vmem:[#allocation2 + $0x28] sm:$0xf]
    %v1195 = vld [vmem:[#allocation2 + $0x30] sm:$0xf]
    %v1196 = vld [vmem:[#allocation2 + $0x34] sm:$0xf]
    %v1197 = vld [vmem:[#allocation2 + $0x3c] sm:$0xf]
    %v1198 = vld [vmem:[#allocation2 + $0x40] sm:$0xf]
    %v1199 = vld [vmem:[#allocation2 + $0x48] sm:$0xf]
    %v1200 = vld [vmem:[#allocation2 + $0x4c] sm:$0xf]
    %v1201 = vld [vmem:[#allocation2 + $0x54] sm:$0xf]
    %v1202 = vld [vmem:[#allocation2 + $0x58] sm:$0xf]
    %v1203 = vld [vmem:[#allocation2 + $0x60] sm:$0xf]
    %v1204 = vld [vmem:[#allocation2 + $0x64] sm:$0xf]
    %v1205 = vld [vmem:[#allocation2 + $0x6c] sm:$0xf]
    %v1206 = vld [vmem:[#allocation2 + $0x70] sm:$0xf]
    %v1207 = vld [vmem:[#allocation2 + $0x78] sm:$0xf]
    %v1208 = vld [vmem:[#allocation2 + $0x7c] sm:$0xf]
    %v1209 = vld [vmem:[#allocation2 + $0x84] sm:$0xf]
    %v1210 = vld [vmem:[#allocation2 + $0x88] sm:$0xf]
    %v1211 = vld [vmem:[#allocation2 + $0x90] sm:$0xf]
    %v1212 = vld [vmem:[#allocation2 + $0x94] sm:$0xf]
    %v1213 = vld [vmem:[#allocation2 + $0x9c] sm:$0xf]
    %v1214 = vld [vmem:[#allocation2 + $0xa0] sm:$0xf]
    %v1215 = vld [vmem:[#allocation2 + $0xa8] sm:$0xf]
    %v1216 = vld [vmem:[#allocation2 + $0xac] sm:$0xf]
    %v1217 = vld [vmem:[#allocation2 + $0xb4] sm:$0xf]
    %v1218 = vld [vmem:[#allocation2 + $0xb8] sm:$0xf]
    %v1219 = vld [vmem:[#allocation2 + $0xd8] sm:$0xf]
    %v1220 = vld [vmem:[#allocation2 + $0xdc] sm:$0xf]
    %v1221 = vld [vmem:[#allocation2 + $0xe4] sm:$0xf]
    %v1222 = vld [vmem:[#allocation2 + $0xe8] sm:$0xf]
    %v1223 = vld [vmem:[#allocation2 + $0xf0] sm:$0xf]
    %v1224 = vld [vmem:[#allocation2 + $0xf4] sm:$0xf]
    %v1225 = vld [vmem:[#allocation2 + $0xfc] sm:$0xf]
    %v1226 = vld [vmem:[#allocation2 + $0x100] sm:$0xf]
    %v1227 = vld [vmem:[#allocation2 + $0x108] sm:$0xf]
    %v1228 = vld [vmem:[#allocation2 + $0x10c] sm:$0xf]
    %v1229 = vld [vmem:[#allocation2 + $0x114] sm:$0xf]
    %v1230 = vld [vmem:[#allocation2 + $0x118] sm:$0xf]
    %v1231 = vld [vmem:[#allocation2 + $0x120] sm:$0xf]
    %v1232 = vld [vmem:[#allocation2 + $0x124] sm:$0xf]
    %v1233 = vld [vmem:[#allocation2 + $0x12c] sm:$0xf]
    %v1234 = vld [vmem:[#allocation2 + $0x130] sm:$0xf]
    %v1235 = vld [vmem:[#allocation2 + $0x138] sm:$0xf]
    %v1236 = vld [vmem:[#allocation2 + $0x13c] sm:$0xf]
    %v1237 = vld [vmem:[#allocation2 + $0x144] sm:$0xf]
    %v1238 = vld [vmem:[#allocation2 + $0x148] sm:$0xf]
    %v1239 = vld [vmem:[#allocation2 + $0x150] sm:$0xf]
    %v1240 = vld [vmem:[#allocation2 + $0x154] sm:$0xf]
    %v1241 = vld [vmem:[#allocation2 + $0x15c] sm:$0xf]
    %v1242 = vld [vmem:[#allocation2 + $0x160] sm:$0xf]
    %v1243 = vld [vmem:[#allocation2 + $0x168] sm:$0xf]
    %v1244 = vld [vmem:[#allocation2 + $0x16c] sm:$0xf]
    %v1245 = vld [vmem:[#allocation2 + $0x174] sm:$0xf]
    %v1246 = vld [vmem:[#allocation2 + $0x178] sm:$0xf]
    %v1247 = vld [vmem:[#allocation2 + $0x180] sm:$0xf]
    %v1248 = vld [vmem:[#allocation2 + $0x184] sm:$0xf]
    %v1249 = vld [vmem:[#allocation2 + $0x18c] sm:$0xf]
    %v1250 = vld [vmem:[#allocation2 + $0x190] sm:$0xf]
    %v1251 = vld [vmem:[#allocation6] sm:$0xf]
    %v1252 = vld [vmem:[#allocation6 + $0x4] sm:$0xf]
    %v1253 = vld [vmem:[#allocation6 + $0x8] sm:$0xf]
    %v1254 = vld [vmem:[#allocation6 + $0xc] sm:$0xf]
    %v1255 = vld [vmem:[#allocation6 + $0x10] sm:$0xf]
    %v1256 = vld [vmem:[#allocation6 + $0x14] sm:$0xf]
    %v1257 = vld [vmem:[#allocation6 + $0x18] sm:$0xf]
    %v1258 = vld [vmem:[#allocation6 + $0x1c] sm:$0xf]
    %v1259 = vld [vmem:[#allocation6 + $0x20] sm:$0xf]
    %v1260 = vld [vmem:[#allocation6 + $0x24] sm:$0xf]
    %v1261 = vld [vmem:[#allocation6 + $0x28] sm:$0xf]
    %v1262 = vld [vmem:[#allocation6 + $0x2c] sm:$0xf]
    %v1263 = vld [vmem:[#allocation6 + $0x30] sm:$0xf]
    %v1264 = vld [vmem:[#allocation6 + $0x34] sm:$0xf]
    %v1265 = vld [vmem:[#allocation6 + $0x38] sm:$0xf]
    %v1266 = vld [vmem:[#allocation6 + $0x3c] sm:$0xf]
    %v1267 = vld [vmem:[#allocation2 + $0x8] sm:$0x1]
    %v1268 = vld [vmem:[#allocation2 + $0x14] sm:$0x1]
    %v1269 = vld [vmem:[#allocation2 + $0x20] sm:$0x1]
    %v1270 = vld [vmem:[#allocation2 + $0x2c] sm:$0x1]
    %v1271 = vld [vmem:[#allocation2 + $0x38] sm:$0x1]
    %v1272 = vld [vmem:[#allocation2 + $0x44] sm:$0x1]
    %v1273 = vld [vmem:[#allocation2 + $0x50] sm:$0x1]
    %v1274 = vld [vmem:[#allocation2 + $0x5c] sm:$0x1]
    %v1275 = vld [vmem:[#allocation2 + $0x68] sm:$0x1]
    %v1276 = vld [vmem:[#allocation2 + $0x74] sm:$0x1]
    %v1277 = vld [vmem:[#allocation2 + $0x80] sm:$0x1]
    %v1278 = vld [vmem:[#allocation2 + $0x8c] sm:$0x1]
    %v1279 = vld [vmem:[#allocation2 + $0x98] sm:$0x1]
    %v1280 = vld [vmem:[#allocation2 + $0xa4] sm:$0x1]
    %v1281 = vld [vmem:[#allocation2 + $0xb0] sm:$0x1]
    %v1282 = vld [vmem:[#allocation2 + $0xbc] sm:$0x1]
    %v1283 = vld [vmem:[#allocation2 + $0xe0] sm:$0x1]
    %v1284 = vld [vmem:[#allocation2 + $0xec] sm:$0x1]
    %v1285 = vld [vmem:[#allocation2 + $0xf8] sm:$0x1]
    %v1286 = vld [vmem:[#allocation2 + $0x104] sm:$0x1]
    %v1287 = vld [vmem:[#allocation2 + $0x110] sm:$0x1]
    %v1288 = vld [vmem:[#allocation2 + $0x11c] sm:$0x1]
    %v1289 = vld [vmem:[#allocation2 + $0x128] sm:$0x1]
    %v1290 = vld [vmem:[#allocation2 + $0x134] sm:$0x1]
    %v1291 = vld [vmem:[#allocation2 + $0x140] sm:$0x1]
    %v1292 = vld [vmem:[#allocation2 + $0x14c] sm:$0x1]
    %v1293 = vld [vmem:[#allocation2 + $0x158] sm:$0x1]
    %v1294 = vld [vmem:[#allocation2 + $0x164] sm:$0x1]
    %v1295 = vld [vmem:[#allocation2 + $0x170] sm:$0x1]
    %v1296 = vld [vmem:[#allocation2 + $0x17c] sm:$0x1]
    %v1297 = vld [vmem:[#allocation2 + $0x188] sm:$0x1]
    %v1298 = vld [vmem:[#allocation2 + $0x194] sm:$0x1]
    %vm1299 = vsmask.f32 3328
    %vm1300 = vsmask.f32 7440
    %vm1301 = vmor %vm1299, %vm1300
    %v1303 = vshrl.u32 %v1187, 16
    %v1305 = vrot.slane %v1303, 4
    %v1306 = vshll.u32 %v1187, 16
    %v1308 = vrot.slane %v1306, 5
    %v1309 = vor.u32 %v1305, %v1308
    %v1310 = vrot.slane %v1309, 4
    %v1312 = vshll.u32 %v1188, 16
    %v1314 = vrot.slane %v1312, 5
    %v1315 = vsel %vm1301, %v1310, %v1314
    %v1316 = vshrl.u32 %v1188, 16
    %v1318 = vrot.slane %v1316, 4
    %v1319 = vor.u32 %v1318, %v1314
    %v1320 = vrot.slane %v1319, 4
    %v1322 = vshll.u32 %v1267, 16
    %v1324 = vrot.slane %v1322, 5
    %v1325 = vsel %vm1301, %v1320, %v1324
    %v1327 = vshrl.u32 %v1189, 16
    %v1329 = vrot.slane %v1327, 4
    %v1330 = vshll.u32 %v1189, 16
    %v1332 = vrot.slane %v1330, 5
    %v1333 = vor.u32 %v1329, %v1332
    %v1334 = vrot.slane %v1333, 4
    %v1336 = vshll.u32 %v1190, 16
    %v1338 = vrot.slane %v1336, 5
    %v1339 = vsel %vm1301, %v1334, %v1338
    %v1340 = vshrl.u32 %v1190, 16
    %v1342 = vrot.slane %v1340, 4
    %v1343 = vor.u32 %v1342, %v1338
    %v1344 = vrot.slane %v1343, 4
    %v1346 = vshll.u32 %v1268, 16
    %v1348 = vrot.slane %v1346, 5
    %v1349 = vsel %vm1301, %v1344, %v1348
    %v1351 = vshrl.u32 %v1191, 16
    %v1353 = vrot.slane %v1351, 4
    %v1354 = vshll.u32 %v1191, 16
    %v1356 = vrot.slane %v1354, 5
    %v1357 = vor.u32 %v1353, %v1356
    %v1358 = vrot.slane %v1357, 4
    %v1360 = vshll.u32 %v1192, 16
    %v1362 = vrot.slane %v1360, 5
    %v1363 = vsel %vm1301, %v1358, %v1362
    %v1364 = vshrl.u32 %v1192, 16
    %v1366 = vrot.slane %v1364, 4
    %v1367 = vor.u32 %v1366, %v1362
    %v1368 = vrot.slane %v1367, 4
    %v1370 = vshll.u32 %v1269, 16
    %v1372 = vrot.slane %v1370, 5
    %v1373 = vsel %vm1301, %v1368, %v1372
    %v1375 = vshrl.u32 %v1193, 16
    %v1377 = vrot.slane %v1375, 4
    %v1378 = vshll.u32 %v1193, 16
    %v1380 = vrot.slane %v1378, 5
    %v1381 = vor.u32 %v1377, %v1380
    %v1382 = vrot.slane %v1381, 4
    %v1384 = vshll.u32 %v1194, 16
    %v1386 = vrot.slane %v1384, 5
    %v1387 = vsel %vm1301, %v1382, %v1386
    %v1388 = vshrl.u32 %v1194, 16
    %v1390 = vrot.slane %v1388, 4
    %v1391 = vor.u32 %v1390, %v1386
    %v1392 = vrot.slane %v1391, 4
    %v1394 = vshll.u32 %v1270, 16
    %v1396 = vrot.slane %v1394, 5
    %v1397 = vsel %vm1301, %v1392, %v1396
    %v1399 = vshrl.u32 %v1195, 16
    %v1401 = vrot.slane %v1399, 4
    %v1402 = vshll.u32 %v1195, 16
    %v1404 = vrot.slane %v1402, 5
    %v1405 = vor.u32 %v1401, %v1404
    %v1406 = vrot.slane %v1405, 4
    %v1408 = vshll.u32 %v1196, 16
    %v1410 = vrot.slane %v1408, 5
    %v1411 = vsel %vm1301, %v1406, %v1410
    %v1412 = vshrl.u32 %v1196, 16
    %v1414 = vrot.slane %v1412, 4
    %v1415 = vor.u32 %v1414, %v1410
    %v1416 = vrot.slane %v1415, 4
    %v1418 = vshll.u32 %v1271, 16
    %v1420 = vrot.slane %v1418, 5
    %v1421 = vsel %vm1301, %v1416, %v1420
    %v1423 = vshrl.u32 %v1197, 16
    %v1425 = vrot.slane %v1423, 4
    %v1426 = vshll.u32 %v1197, 16
    %v1428 = vrot.slane %v1426, 5
    %v1429 = vor.u32 %v1425, %v1428
    %v1430 = vrot.slane %v1429, 4
    %v1432 = vshll.u32 %v1198, 16
    %v1434 = vrot.slane %v1432, 5
    %v1435 = vsel %vm1301, %v1430, %v1434
    %v1436 = vshrl.u32 %v1198, 16
    %v1438 = vrot.slane %v1436, 4
    %v1439 = vor.u32 %v1438, %v1434
    %v1440 = vrot.slane %v1439, 4
    %v1442 = vshll.u32 %v1272, 16
    %v1444 = vrot.slane %v1442, 5
    %v1445 = vsel %vm1301, %v1440, %v1444
    %v1447 = vshrl.u32 %v1199, 16
    %v1449 = vrot.slane %v1447, 4
    %v1450 = vshll.u32 %v1199, 16
    %v1452 = vrot.slane %v1450, 5
    %v1453 = vor.u32 %v1449, %v1452
    %v1454 = vrot.slane %v1453, 4
    %v1456 = vshll.u32 %v1200, 16
    %v1458 = vrot.slane %v1456, 5
    %v1459 = vsel %vm1301, %v1454, %v1458
    %v1460 = vshrl.u32 %v1200, 16
    %v1462 = vrot.slane %v1460, 4
    %v1463 = vor.u32 %v1462, %v1458
    %v1464 = vrot.slane %v1463, 4
    %v1466 = vshll.u32 %v1273, 16
    %v1468 = vrot.slane %v1466, 5
    %v1469 = vsel %vm1301, %v1464, %v1468
    %v1471 = vshrl.u32 %v1201, 16
    %v1473 = vrot.slane %v1471, 4
    %v1474 = vshll.u32 %v1201, 16
    %v1476 = vrot.slane %v1474, 5
    %v1477 = vor.u32 %v1473, %v1476
    %v1478 = vrot.slane %v1477, 4
    %v1480 = vshll.u32 %v1202, 16
    %v1482 = vrot.slane %v1480, 5
    %v1483 = vsel %vm1301, %v1478, %v1482
    %v1484 = vshrl.u32 %v1202, 16
    %v1486 = vrot.slane %v1484, 4
    %v1487 = vor.u32 %v1486, %v1482
    %v1488 = vrot.slane %v1487, 4
    %v1490 = vshll.u32 %v1274, 16
    %v1492 = vrot.slane %v1490, 5
    %v1493 = vsel %vm1301, %v1488, %v1492
    %v1495 = vshrl.u32 %v1203, 16
    %v1497 = vrot.slane %v1495, 4
    %v1498 = vshll.u32 %v1203, 16
    %v1500 = vrot.slane %v1498, 5
    %v1501 = vor.u32 %v1497, %v1500
    %v1502 = vrot.slane %v1501, 4
    %v1504 = vshll.u32 %v1204, 16
    %v1506 = vrot.slane %v1504, 5
    %v1507 = vsel %vm1301, %v1502, %v1506
    %v1508 = vshrl.u32 %v1204, 16
    %v1510 = vrot.slane %v1508, 4
    %v1511 = vor.u32 %v1510, %v1506
    %v1512 = vrot.slane %v1511, 4
    %v1514 = vshll.u32 %v1275, 16
    %v1516 = vrot.slane %v1514, 5
    %v1517 = vsel %vm1301, %v1512, %v1516
    %v1519 = vshrl.u32 %v1205, 16
    %v1521 = vrot.slane %v1519, 4
    %v1522 = vshll.u32 %v1205, 16
    %v1524 = vrot.slane %v1522, 5
    %v1525 = vor.u32 %v1521, %v1524
    %v1526 = vrot.slane %v1525, 4
    %v1528 = vshll.u32 %v1206, 16
    %v1530 = vrot.slane %v1528, 5
    %v1531 = vsel %vm1301, %v1526, %v1530
    %v1532 = vshrl.u32 %v1206, 16
    %v1534 = vrot.slane %v1532, 4
    %v1535 = vor.u32 %v1534, %v1530
    %v1536 = vrot.slane %v1535, 4
    %v1538 = vshll.u32 %v1276, 16
    %v1540 = vrot.slane %v1538, 5
    %v1541 = vsel %vm1301, %v1536, %v1540
    %v1543 = vshrl.u32 %v1207, 16
    %v1545 = vrot.slane %v1543, 4
    %v1546 = vshll.u32 %v1207, 16
    %v1548 = vrot.slane %v1546, 5
    %v1549 = vor.u32 %v1545, %v1548
    %v1550 = vrot.slane %v1549, 4
    %v1552 = vshll.u32 %v1208, 16
    %v1554 = vrot.slane %v1552, 5
    %v1555 = vsel %vm1301, %v1550, %v1554
    %v1556 = vshrl.u32 %v1208, 16
    %v1558 = vrot.slane %v1556, 4
    %v1559 = vor.u32 %v1558, %v1554
    %v1560 = vrot.slane %v1559, 4
    %v1562 = vshll.u32 %v1277, 16
    %v1564 = vrot.slane %v1562, 5
    %v1565 = vsel %vm1301, %v1560, %v1564
    %v1567 = vshrl.u32 %v1209, 16
    %v1569 = vrot.slane %v1567, 4
    %v1570 = vshll.u32 %v1209, 16
    %v1572 = vrot.slane %v1570, 5
    %v1573 = vor.u32 %v1569, %v1572
    %v1574 = vrot.slane %v1573, 4
    %v1576 = vshll.u32 %v1210, 16
    %v1578 = vrot.slane %v1576, 5
    %v1579 = vsel %vm1301, %v1574, %v1578
    %v1580 = vshrl.u32 %v1210, 16
    %v1582 = vrot.slane %v1580, 4
    %v1583 = vor.u32 %v1582, %v1578
    %v1584 = vrot.slane %v1583, 4
    %v1586 = vshll.u32 %v1278, 16
    %v1588 = vrot.slane %v1586, 5
    %v1589 = vsel %vm1301, %v1584, %v1588
    %v1591 = vshrl.u32 %v1211, 16
    %v1593 = vrot.slane %v1591, 4
    %v1594 = vshll.u32 %v1211, 16
    %v1596 = vrot.slane %v1594, 5
    %v1597 = vor.u32 %v1593, %v1596
    %v1598 = vrot.slane %v1597, 4
    %v1600 = vshll.u32 %v1212, 16
    %v1602 = vrot.slane %v1600, 5
    %v1603 = vsel %vm1301, %v1598, %v1602
    %v1604 = vshrl.u32 %v1212, 16
    %v1606 = vrot.slane %v1604, 4
    %v1607 = vor.u32 %v1606, %v1602
    %v1608 = vrot.slane %v1607, 4
    %v1610 = vshll.u32 %v1279, 16
    %v1612 = vrot.slane %v1610, 5
    %v1613 = vsel %vm1301, %v1608, %v1612
    %v1615 = vshrl.u32 %v1213, 16
    %v1617 = vrot.slane %v1615, 4
    %v1618 = vshll.u32 %v1213, 16
    %v1620 = vrot.slane %v1618, 5
    %v1621 = vor.u32 %v1617, %v1620
    %v1622 = vrot.slane %v1621, 4
    %v1624 = vshll.u32 %v1214, 16
    %v1626 = vrot.slane %v1624, 5
    %v1627 = vsel %vm1301, %v1622, %v1626
    %v1628 = vshrl.u32 %v1214, 16
    %v1630 = vrot.slane %v1628, 4
    %v1631 = vor.u32 %v1630, %v1626
    %v1632 = vrot.slane %v1631, 4
    %v1634 = vshll.u32 %v1280, 16
    %v1636 = vrot.slane %v1634, 5
    %v1637 = vsel %vm1301, %v1632, %v1636
    %v1639 = vshrl.u32 %v1215, 16
    %v1641 = vrot.slane %v1639, 4
    %v1642 = vshll.u32 %v1215, 16
    %v1644 = vrot.slane %v1642, 5
    %v1645 = vor.u32 %v1641, %v1644
    %v1646 = vrot.slane %v1645, 4
    %v1648 = vshll.u32 %v1216, 16
    %v1650 = vrot.slane %v1648, 5
    %v1651 = vsel %vm1301, %v1646, %v1650
    %v1652 = vshrl.u32 %v1216, 16
    %v1654 = vrot.slane %v1652, 4
    %v1655 = vor.u32 %v1654, %v1650
    %v1656 = vrot.slane %v1655, 4
    %v1658 = vshll.u32 %v1281, 16
    %v1660 = vrot.slane %v1658, 5
    %v1661 = vsel %vm1301, %v1656, %v1660
    %v1663 = vshrl.u32 %v1217, 16
    %v1665 = vrot.slane %v1663, 4
    %v1666 = vshll.u32 %v1217, 16
    %v1668 = vrot.slane %v1666, 5
    %v1669 = vor.u32 %v1665, %v1668
    %v1670 = vrot.slane %v1669, 4
    %v1672 = vshll.u32 %v1218, 16
    %v1674 = vrot.slane %v1672, 5
    %v1675 = vsel %vm1301, %v1670, %v1674
    %v1676 = vshrl.u32 %v1218, 16
    %v1678 = vrot.slane %v1676, 4
    %v1679 = vor.u32 %v1678, %v1674
    %v1680 = vrot.slane %v1679, 4
    %v1682 = vshll.u32 %v1282, 16
    %v1684 = vrot.slane %v1682, 5
    %v1685 = vsel %vm1301, %v1680, %v1684
    %v1687 = vshrl.u32 %v1219, 16
    %v1689 = vrot.slane %v1687, 4
    %v1690 = vshll.u32 %v1219, 16
    %v1692 = vrot.slane %v1690, 5
    %v1693 = vor.u32 %v1689, %v1692
    %v1694 = vrot.slane %v1693, 4
    %v1696 = vshll.u32 %v1220, 16
    %v1698 = vrot.slane %v1696, 5
    %v1699 = vsel %vm1301, %v1694, %v1698
    %v1700 = vshrl.u32 %v1220, 16
    %v1702 = vrot.slane %v1700, 4
    %v1703 = vor.u32 %v1702, %v1698
    %v1704 = vrot.slane %v1703, 4
    %v1706 = vshll.u32 %v1283, 16
    %v1708 = vrot.slane %v1706, 5
    %v1709 = vsel %vm1301, %v1704, %v1708
    %v1711 = vshrl.u32 %v1221, 16
    %v1713 = vrot.slane %v1711, 4
    %v1714 = vshll.u32 %v1221, 16
    %v1716 = vrot.slane %v1714, 5
    %v1717 = vor.u32 %v1713, %v1716
    %v1718 = vrot.slane %v1717, 4
    %v1720 = vshll.u32 %v1222, 16
    %v1722 = vrot.slane %v1720, 5
    %v1723 = vsel %vm1301, %v1718, %v1722
    %v1724 = vshrl.u32 %v1222, 16
    %v1726 = vrot.slane %v1724, 4
    %v1727 = vor.u32 %v1726, %v1722
    %v1728 = vrot.slane %v1727, 4
    %v1730 = vshll.u32 %v1284, 16
    %v1732 = vrot.slane %v1730, 5
    %v1733 = vsel %vm1301, %v1728, %v1732
    %v1735 = vshrl.u32 %v1223, 16
    %v1737 = vrot.slane %v1735, 4
    %v1738 = vshll.u32 %v1223, 16
    %v1740 = vrot.slane %v1738, 5
    %v1741 = vor.u32 %v1737, %v1740
    %v1742 = vrot.slane %v1741, 4
    %v1744 = vshll.u32 %v1224, 16
    %v1746 = vrot.slane %v1744, 5
    %v1747 = vsel %vm1301, %v1742, %v1746
    %v1748 = vshrl.u32 %v1224, 16
    %v1750 = vrot.slane %v1748, 4
    %v1751 = vor.u32 %v1750, %v1746
    %v1752 = vrot.slane %v1751, 4
    %v1754 = vshll.u32 %v1285, 16
    %v1756 = vrot.slane %v1754, 5
    %v1757 = vsel %vm1301, %v1752, %v1756
    %v1759 = vshrl.u32 %v1225, 16
    %v1761 = vrot.slane %v1759, 4
    %v1762 = vshll.u32 %v1225, 16
    %v1764 = vrot.slane %v1762, 5
    %v1765 = vor.u32 %v1761, %v1764
    %v1766 = vrot.slane %v1765, 4
    %v1768 = vshll.u32 %v1226, 16
    %v1770 = vrot.slane %v1768, 5
    %v1771 = vsel %vm1301, %v1766, %v1770
    %v1772 = vshrl.u32 %v1226, 16
    %v1774 = vrot.slane %v1772, 4
    %v1775 = vor.u32 %v1774, %v1770
    %v1776 = vrot.slane %v1775, 4
    %v1778 = vshll.u32 %v1286, 16
    %v1780 = vrot.slane %v1778, 5
    %v1781 = vsel %vm1301, %v1776, %v1780
    %v1783 = vshrl.u32 %v1227, 16
    %v1785 = vrot.slane %v1783, 4
    %v1786 = vshll.u32 %v1227, 16
    %v1788 = vrot.slane %v1786, 5
    %v1789 = vor.u32 %v1785, %v1788
    %v1790 = vrot.slane %v1789, 4
    %v1792 = vshll.u32 %v1228, 16
    %v1794 = vrot.slane %v1792, 5
    %v1795 = vsel %vm1301, %v1790, %v1794
    %v1796 = vshrl.u32 %v1228, 16
    %v1798 = vrot.slane %v1796, 4
    %v1799 = vor.u32 %v1798, %v1794
    %v1800 = vrot.slane %v1799, 4
    %v1802 = vshll.u32 %v1287, 16
    %v1804 = vrot.slane %v1802, 5
    %v1805 = vsel %vm1301, %v1800, %v1804
    %v1807 = vshrl.u32 %v1229, 16
    %v1809 = vrot.slane %v1807, 4
    %v1810 = vshll.u32 %v1229, 16
    %v1812 = vrot.slane %v1810, 5
    %v1813 = vor.u32 %v1809, %v1812
    %v1814 = vrot.slane %v1813, 4
    %v1816 = vshll.u32 %v1230, 16
    %v1818 = vrot.slane %v1816, 5
    %v1819 = vsel %vm1301, %v1814, %v1818
    %v1820 = vshrl.u32 %v1230, 16
    %v1822 = vrot.slane %v1820, 4
    %v1823 = vor.u32 %v1822, %v1818
    %v1824 = vrot.slane %v1823, 4
    %v1826 = vshll.u32 %v1288, 16
    %v1828 = vrot.slane %v1826, 5
    %v1829 = vsel %vm1301, %v1824, %v1828
    %v1831 = vshrl.u32 %v1231, 16
    %v1833 = vrot.slane %v1831, 4
    %v1834 = vshll.u32 %v1231, 16
    %v1836 = vrot.slane %v1834, 5
    %v1837 = vor.u32 %v1833, %v1836
    %v1838 = vrot.slane %v1837, 4
    %v1840 = vshll.u32 %v1232, 16
    %v1842 = vrot.slane %v1840, 5
    %v1843 = vsel %vm1301, %v1838, %v1842
    %v1844 = vshrl.u32 %v1232, 16
    %v1846 = vrot.slane %v1844, 4
    %v1847 = vor.u32 %v1846, %v1842
    %v1848 = vrot.slane %v1847, 4
    %v1850 = vshll.u32 %v1289, 16
    %v1852 = vrot.slane %v1850, 5
    %v1853 = vsel %vm1301, %v1848, %v1852
    %v1855 = vshrl.u32 %v1233, 16
    %v1857 = vrot.slane %v1855, 4
    %v1858 = vshll.u32 %v1233, 16
    %v1860 = vrot.slane %v1858, 5
    %v1861 = vor.u32 %v1857, %v1860
    %v1862 = vrot.slane %v1861, 4
    %v1864 = vshll.u32 %v1234, 16
    %v1866 = vrot.slane %v1864, 5
    %v1867 = vsel %vm1301, %v1862, %v1866
    %v1868 = vshrl.u32 %v1234, 16
    %v1870 = vrot.slane %v1868, 4
    %v1871 = vor.u32 %v1870, %v1866
    %v1872 = vrot.slane %v1871, 4
    %v1874 = vshll.u32 %v1290, 16
    %v1876 = vrot.slane %v1874, 5
    %v1877 = vsel %vm1301, %v1872, %v1876
    %v1879 = vshrl.u32 %v1235, 16
    %v1881 = vrot.slane %v1879, 4
    %v1882 = vshll.u32 %v1235, 16
    %v1884 = vrot.slane %v1882, 5
    %v1885 = vor.u32 %v1881, %v1884
    %v1886 = vrot.slane %v1885, 4
    %v1888 = vshll.u32 %v1236, 16
    %v1890 = vrot.slane %v1888, 5
    %v1891 = vsel %vm1301, %v1886, %v1890
    %v1892 = vshrl.u32 %v1236, 16
    %v1894 = vrot.slane %v1892, 4
    %v1895 = vor.u32 %v1894, %v1890
    %v1896 = vrot.slane %v1895, 4
    %v1898 = vshll.u32 %v1291, 16
    %v1900 = vrot.slane %v1898, 5
    %v1901 = vsel %vm1301, %v1896, %v1900
    %v1903 = vshrl.u32 %v1237, 16
    %v1905 = vrot.slane %v1903, 4
    %v1906 = vshll.u32 %v1237, 16
    %v1908 = vrot.slane %v1906, 5
    %v1909 = vor.u32 %v1905, %v1908
    %v1910 = vrot.slane %v1909, 4
    %v1912 = vshll.u32 %v1238, 16
    %v1914 = vrot.slane %v1912, 5
    %v1915 = vsel %vm1301, %v1910, %v1914
    %v1916 = vshrl.u32 %v1238, 16
    %v1918 = vrot.slane %v1916, 4
    %v1919 = vor.u32 %v1918, %v1914
    %v1920 = vrot.slane %v1919, 4
    %v1922 = vshll.u32 %v1292, 16
    %v1924 = vrot.slane %v1922, 5
    %v1925 = vsel %vm1301, %v1920, %v1924
    %v1927 = vshrl.u32 %v1239, 16
    %v1929 = vrot.slane %v1927, 4
    %v1930 = vshll.u32 %v1239, 16
    %v1932 = vrot.slane %v1930, 5
    %v1933 = vor.u32 %v1929, %v1932
    %v1934 = vrot.slane %v1933, 4
    %v1936 = vshll.u32 %v1240, 16
    %v1938 = vrot.slane %v1936, 5
    %v1939 = vsel %vm1301, %v1934, %v1938
    %v1940 = vshrl.u32 %v1240, 16
    %v1942 = vrot.slane %v1940, 4
    %v1943 = vor.u32 %v1942, %v1938
    %v1944 = vrot.slane %v1943, 4
    %v1946 = vshll.u32 %v1293, 16
    %v1948 = vrot.slane %v1946, 5
    %v1949 = vsel %vm1301, %v1944, %v1948
    %v1951 = vshrl.u32 %v1241, 16
    %v1953 = vrot.slane %v1951, 4
    %v1954 = vshll.u32 %v1241, 16
    %v1956 = vrot.slane %v1954, 5
    %v1957 = vor.u32 %v1953, %v1956
    %v1958 = vrot.slane %v1957, 4
    %v1960 = vshll.u32 %v1242, 16
    %v1962 = vrot.slane %v1960, 5
    %v1963 = vsel %vm1301, %v1958, %v1962
    %v1964 = vshrl.u32 %v1242, 16
    %v1966 = vrot.slane %v1964, 4
    %v1967 = vor.u32 %v1966, %v1962
    %v1968 = vrot.slane %v1967, 4
    %v1970 = vshll.u32 %v1294, 16
    %v1972 = vrot.slane %v1970, 5
    %v1973 = vsel %vm1301, %v1968, %v1972
    %v1975 = vshrl.u32 %v1243, 16
    %v1977 = vrot.slane %v1975, 4
    %v1978 = vshll.u32 %v1243, 16
    %v1980 = vrot.slane %v1978, 5
    %v1981 = vor.u32 %v1977, %v1980
    %v1982 = vrot.slane %v1981, 4
    %v1984 = vshll.u32 %v1244, 16
    %v1986 = vrot.slane %v1984, 5
    %v1987 = vsel %vm1301, %v1982, %v1986
    %v1988 = vshrl.u32 %v1244, 16
    %v1990 = vrot.slane %v1988, 4
    %v1991 = vor.u32 %v1990, %v1986
    %v1992 = vrot.slane %v1991, 4
    %v1994 = vshll.u32 %v1295, 16
    %v1996 = vrot.slane %v1994, 5
    %v1997 = vsel %vm1301, %v1992, %v1996
    %v1999 = vshrl.u32 %v1245, 16
    %v2001 = vrot.slane %v1999, 4
    %v2002 = vshll.u32 %v1245, 16
    %v2004 = vrot.slane %v2002, 5
    %v2005 = vor.u32 %v2001, %v2004
    %v2006 = vrot.slane %v2005, 4
    %v2008 = vshll.u32 %v1246, 16
    %v2010 = vrot.slane %v2008, 5
    %v2011 = vsel %vm1301, %v2006, %v2010
    %v2012 = vshrl.u32 %v1246, 16
    %v2014 = vrot.slane %v2012, 4
    %v2015 = vor.u32 %v2014, %v2010
    %v2016 = vrot.slane %v2015, 4
    %v2018 = vshll.u32 %v1296, 16
    %v2020 = vrot.slane %v2018, 5
    %v2021 = vsel %vm1301, %v2016, %v2020
    %v2023 = vshrl.u32 %v1247, 16
    %v2025 = vrot.slane %v2023, 4
    %v2026 = vshll.u32 %v1247, 16
    %v2028 = vrot.slane %v2026, 5
    %v2029 = vor.u32 %v2025, %v2028
    %v2030 = vrot.slane %v2029, 4
    %v2032 = vshll.u32 %v1248, 16
    %v2034 = vrot.slane %v2032, 5
    %v2035 = vsel %vm1301, %v2030, %v2034
    %v2036 = vshrl.u32 %v1248, 16
    %v2038 = vrot.slane %v2036, 4
    %v2039 = vor.u32 %v2038, %v2034
    %v2040 = vrot.slane %v2039, 4
    %v2042 = vshll.u32 %v1297, 16
    %v2044 = vrot.slane %v2042, 5
    %v2045 = vsel %vm1301, %v2040, %v2044
    %v2047 = vshrl.u32 %v1249, 16
    %v2049 = vrot.slane %v2047, 4
    %v2050 = vshll.u32 %v1249, 16
    %v2052 = vrot.slane %v2050, 5
    %v2053 = vor.u32 %v2049, %v2052
    %v2054 = vrot.slane %v2053, 4
    %v2056 = vshll.u32 %v1250, 16
    %v2058 = vrot.slane %v2056, 5
    %v2059 = vsel %vm1301, %v2054, %v2058
    %v2060 = vshrl.u32 %v1250, 16
    %v2062 = vrot.slane %v2060, 4
    %v2063 = vor.u32 %v2062, %v2058
    %v2064 = vrot.slane %v2063, 4
    %v2066 = vshll.u32 %v1298, 16
    %v2068 = vrot.slane %v2066, 5
    %v2069 = vsel %vm1301, %v2064, %v2068
    %v2070 = vld [vmem:[#allocation6 + $0x40] sm:$0xf]
    %v2071 = vld [vmem:[#allocation6 + $0x44] sm:$0xf]
    %v2072 = vld [vmem:[#allocation6 + $0x48] sm:$0xf]
    %v2073 = vld [vmem:[#allocation6 + $0x4c] sm:$0xf]
    %v2074 = vld [vmem:[#allocation6 + $0x50] sm:$0xf]
    %v2075 = vld [vmem:[#allocation6 + $0x54] sm:$0xf]
    %v2076 = vld [vmem:[#allocation6 + $0x58] sm:$0xf]
    %v2077 = vld [vmem:[#allocation6 + $0x5c] sm:$0xf]
    %v2078 = vld [vmem:[#allocation6 + $0x60] sm:$0xf]
    %v2079 = vld [vmem:[#allocation6 + $0x64] sm:$0xf]
    %v2080 = vld [vmem:[#allocation6 + $0x68] sm:$0xf]
    %v2081 = vld [vmem:[#allocation6 + $0x6c] sm:$0xf]
    %v2082 = vld [vmem:[#allocation6 + $0x70] sm:$0xf]
    %v2083 = vld [vmem:[#allocation6 + $0x74] sm:$0xf]
    %v2084 = vld [vmem:[#allocation6 + $0x78] sm:$0xf]
    %v2085 = vld [vmem:[#allocation6 + $0x7c] sm:$0xf]
    %v2086 = vunpack.c.l.b16 %v1315
    %v2087 = vunpack.c.l.b16 %v1325
    %v2088 = vunpack.c.l.b16 %v1339
    %v2089 = vunpack.c.l.b16 %v1349
    %v2090 = vunpack.c.l.b16 %v1363
    %v2091 = vunpack.c.l.b16 %v1373
    %v2092 = vunpack.c.l.b16 %v1387
    %v2093 = vunpack.c.l.b16 %v1397
    %v2094 = vunpack.c.l.b16 %v1411
    %v2095 = vunpack.c.l.b16 %v1421
    %v2096 = vunpack.c.l.b16 %v1435
    %v2097 = vunpack.c.l.b16 %v1445
    %v2098 = vunpack.c.l.b16 %v1459
    %v2099 = vunpack.c.l.b16 %v1469
    %v2100 = vunpack.c.l.b16 %v1483
    %v2101 = vunpack.c.l.b16 %v1493
    %v2102 = vunpack.c.l.b16 %v1507
    %v2103 = vunpack.c.l.b16 %v1517
    %v2104 = vunpack.c.l.b16 %v1531
    %v2105 = vunpack.c.l.b16 %v1541
    %v2106 = vunpack.c.l.b16 %v1555
    %v2107 = vunpack.c.l.b16 %v1565
    %v2108 = vunpack.c.l.b16 %v1579
    %v2109 = vunpack.c.l.b16 %v1589
    %v2110 = vunpack.c.l.b16 %v1603
    %v2111 = vunpack.c.l.b16 %v1613
    %v2112 = vunpack.c.l.b16 %v1627
    %v2113 = vunpack.c.l.b16 %v1637
    %v2114 = vunpack.c.l.b16 %v1651
    %v2115 = vunpack.c.l.b16 %v1661
    %v2116 = vunpack.c.l.b16 %v1675
    %v2117 = vunpack.c.l.b16 %v1685
    %v2118 = vunpack.c.l.b16 %v1699
    %v2119 = vunpack.c.l.b16 %v1709
    %v2120 = vunpack.c.l.b16 %v1723
    %v2121 = vunpack.c.l.b16 %v1733
    %v2122 = vunpack.c.l.b16 %v1747
    %v2123 = vunpack.c.l.b16 %v1757
    %v2124 = vunpack.c.l.b16 %v1771
    %v2125 = vunpack.c.l.b16 %v1781
    %v2126 = vunpack.c.l.b16 %v1795
    %v2127 = vunpack.c.l.b16 %v1805
    %v2128 = vunpack.c.l.b16 %v1819
    %v2129 = vunpack.c.l.b16 %v1829
    %v2130 = vunpack.c.l.b16 %v1843
    %v2131 = vunpack.c.l.b16 %v1853
    %v2132 = vunpack.c.l.b16 %v1867
    %v2133 = vunpack.c.l.b16 %v1877
    %v2134 = vunpack.c.l.b16 %v1891
    %v2135 = vunpack.c.l.b16 %v1901
    %v2136 = vunpack.c.l.b16 %v1915
    %v2137 = vunpack.c.l.b16 %v1925
    %v2138 = vunpack.c.l.b16 %v1939
    %v2139 = vunpack.c.l.b16 %v1949
    %v2140 = vunpack.c.l.b16 %v1963
    %v2141 = vunpack.c.l.b16 %v1973
    %v2142 = vunpack.c.l.b16 %v1987
    %v2143 = vunpack.c.l.b16 %v1997
    %v2144 = vunpack.c.l.b16 %v2011
    %v2145 = vunpack.c.l.b16 %v2021
    %v2146 = vunpack.c.l.b16 %v2035
    %v2147 = vunpack.c.l.b16 %v2045
    %v2148 = vunpack.c.l.b16 %v2059
    %v2149 = vunpack.c.l.b16 %v2069
    %v2150 = vpack.c.b16 %v2087, %v2086
    %v2151 = vpack.c.b16 %v2089, %v2088
    %v2152 = vpack.c.b16 %v2091, %v2090
    %v2153 = vpack.c.b16 %v2093, %v2092
    %v2154 = vpack.c.b16 %v2095, %v2094
    %v2155 = vpack.c.b16 %v2097, %v2096
    %v2156 = vpack.c.b16 %v2099, %v2098
    %v2157 = vpack.c.b16 %v2101, %v2100
    %v2158 = vpack.c.b16 %v2103, %v2102
    %v2159 = vpack.c.b16 %v2105, %v2104
    %v2160 = vpack.c.b16 %v2107, %v2106
    %v2161 = vpack.c.b16 %v2109, %v2108
    %v2162 = vpack.c.b16 %v2111, %v2110
    %v2163 = vpack.c.b16 %v2113, %v2112
    %v2164 = vpack.c.b16 %v2115, %v2114
    %v2165 = vpack.c.b16 %v2117, %v2116
    %v2166 = vpack.c.b16 %v2119, %v2118
    %v2167 = vpack.c.b16 %v2121, %v2120
    %v2168 = vpack.c.b16 %v2123, %v2122
    %v2169 = vpack.c.b16 %v2125, %v2124
    %v2170 = vpack.c.b16 %v2127, %v2126
    %v2171 = vpack.c.b16 %v2129, %v2128
    %v2172 = vpack.c.b16 %v2131, %v2130
    %v2173 = vpack.c.b16 %v2133, %v2132
    %v2174 = vpack.c.b16 %v2135, %v2134
    %v2175 = vpack.c.b16 %v2137, %v2136
    %v2176 = vpack.c.b16 %v2139, %v2138
    %v2177 = vpack.c.b16 %v2141, %v2140
    %v2178 = vpack.c.b16 %v2143, %v2142
    %v2179 = vpack.c.b16 %v2145, %v2144
    %v2180 = vpack.c.b16 %v2147, %v2146
    %v2181 = vpack.c.b16 %v2149, %v2148
    %v2230 = vunpack.c.l.b16 %v2070
    %v2231 = vunpack.c.l.b16 %v2071
    %v2232 = vunpack.c.l.b16 %v2072
    %v2233 = vunpack.c.l.b16 %v2073
    %v2234 = vunpack.c.l.b16 %v2074
    %v2235 = vunpack.c.l.b16 %v2075
    %v2236 = vunpack.c.l.b16 %v2076
    %v2237 = vunpack.c.l.b16 %v2077
    %v2238 = vunpack.c.l.b16 %v2078
    %v2239 = vunpack.c.l.b16 %v2079
    %v2240 = vunpack.c.l.b16 %v2080
    %v2241 = vunpack.c.l.b16 %v2081
    %v2242 = vunpack.c.l.b16 %v2082
    %v2243 = vunpack.c.l.b16 %v2083
    %v2244 = vunpack.c.l.b16 %v2084
    %v2245 = vunpack.c.l.b16 %v2085
    %v2246 = vpack.c.b16 %v2231, %v2230
    %v2247 = vpack.c.b16 %v2233, %v2232
    %v2248 = vpack.c.b16 %v2235, %v2234
    %v2249 = vpack.c.b16 %v2237, %v2236
    %v2250 = vpack.c.b16 %v2239, %v2238
    %v2251 = vpack.c.b16 %v2241, %v2240
    %v2252 = vpack.c.b16 %v2243, %v2242
    %v2253 = vpack.c.b16 %v2245, %v2244
    %2262 = vmatprep.subr.bf16.mxu0 0
    %2263 = vmatpush1.bf16.msra.mxu0 %v2246
    %2264 = vmatprep.subr.bf16.mxu0 0
    %2265 = vmatpush1.bf16.msra.mxu0 %v2247
    %2266 = vmatprep.subr.bf16.mxu0 0
    %2267 = vmatpush1.bf16.msra.mxu0 %v2248
    %2268 = vmatprep.subr.bf16.mxu0 0
    %2269 = vmatpush1.bf16.msra.mxu0 %v2249
    %2270 = vmatprep.subr.bf16.mxu0 0
    %2271 = vmatpush1.bf16.msra.mxu0 %v2250
    %2272 = vmatprep.subr.bf16.mxu0 0
    %2273 = vmatpush1.bf16.msra.mxu0 %v2251
    %2274 = vmatprep.subr.bf16.mxu0 0
    %2275 = vmatpush1.bf16.msra.mxu0 %v2252
    %2276 = vmatprep.subr.bf16.mxu0 0
    %2277 = vmatpush1.bf16.msra.mxu0 %v2253
    %2278 = vmatprep.subr.bf16.mxu0 0
    %2279 = vmatpush1.bf16.msra.mxu0 0
    %2280 = vmatprep.subr.bf16.mxu0 0
    %2281 = vmatpush1.bf16.msra.mxu0 0
    %2282 = vmatprep.subr.bf16.mxu0 0
    %2283 = vmatpush1.bf16.msra.mxu0 0
    %2284 = vmatprep.subr.bf16.mxu0 0
    %2285 = vmatpush1.bf16.msra.mxu0 0
    %2286 = vmatprep.subr.bf16.mxu0 0
    %2287 = vmatpush1.bf16.msra.mxu0 0
    %2288 = vmatprep.subr.bf16.mxu0 0
    %2289 = vmatpush1.bf16.msra.mxu0 0
    %2290 = vmatprep.subr.bf16.mxu0 0
    %2291 = vmatpush1.bf16.msra.mxu0 0
    %2292 = vmatprep.subr.bf16.mxu0 0
    %2293 = vmatpush1.bf16.msra.mxu0 0
    %2294 = vmatprep.mubr.bf16.mxu0 0
    %2295 = vmatmul.mubr.bf16.gmra.mrb[0].mxu0 %v2150
    %v2296 = vpop.f32.mrb[0].mxu0
    %v2297 = vadd.f32 0.0, %v2296
    %v2298 = vpop.f32.mrb[0].mxu0
    %v2299 = vpop.f32.mrb[0].mxu0
    %v2300 = vadd.f32 0.0, %v2299
    %v2301 = vpop.f32.mrb[0].mxu0
    %2302 = vmatprep.mubr.bf16.mxu0 0
    %2303 = vmatmul.mubr.bf16.gmra.mrb[0].mxu0 %v2151
    %v2304 = vpop.f32.mrb[0].mxu0
    %v2305 = vadd.f32 0.0, %v2304
    %v2306 = vpop.f32.mrb[0].mxu0
    %v2307 = vpop.f32.mrb[0].mxu0
    %v2308 = vadd.f32 0.0, %v2307
    %v2309 = vpop.f32.mrb[0].mxu0
    %2310 = vmatprep.mubr.bf16.mxu0 0
    %2311 = vmatmul.mubr.bf16.gmra.mrb[0].mxu0 %v2152
    %v2312 = vpop.f32.mrb[0].mxu0
    %v2313 = vadd.f32 0.0, %v2312
    %v2314 = vpop.f32.mrb[0].mxu0
    %v2315 = vpop.f32.mrb[0].mxu0
    %v2316 = vadd.f32 0.0, %v2315
    %v2317 = vpop.f32.mrb[0].mxu0
    %2318 = vmatprep.mubr.bf16.mxu0 0
    %2319 = vmatmul.mubr.bf16.gmra.mrb[0].mxu0 %v2153
    %v2320 = vpop.f32.mrb[0].mxu0
    %v2321 = vadd.f32 0.0, %v2320
    %v2322 = vpop.f32.mrb[0].mxu0
    %v2323 = vpop.f32.mrb[0].mxu0
    %v2324 = vadd.f32 0.0, %v2323
    %v2325 = vpop.f32.mrb[0].mxu0
    %2326 = vmatprep.mubr.bf16.mxu0 0
    %2327 = vmatmul.mubr.bf16.gmra.mrb[0].mxu0 %v2154
    %v2328 = vpop.f32.mrb[0].mxu0
    %v2329 = vadd.f32 0.0, %v2328
    %v2330 = vpop.f32.mrb[0].mxu0
    %v2331 = vpop.f32.mrb[0].mxu0
    %v2332 = vadd.f32 0.0, %v2331
    %v2333 = vpop.f32.mrb[0].mxu0
    %2334 = vmatprep.mubr.bf16.mxu0 0
    %2335 = vmatmul.mubr.bf16.gmra.mrb[0].mxu0 %v2155
    %v2336 = vpop.f32.mrb[0].mxu0
    %v2337 = vadd.f32 0.0, %v2336
    %v2338 = vpop.f32.mrb[0].mxu0
    %v2339 = vpop.f32.mrb[0].mxu0
    %v2340 = vadd.f32 0.0, %v2339
    %v2341 = vpop.f32.mrb[0].mxu0
    %2342 = vmatprep.mubr.bf16.mxu0 0
    %2343 = vmatmul.mubr.bf16.gmra.mrb[0].mxu0 %v2156
    %v2344 = vpop.f32.mrb[0].mxu0
    %v2345 = vadd.f32 0.0, %v2344
    %v2346 = vpop.f32.mrb[0].mxu0
    %v2347 = vpop.f32.mrb[0].mxu0
    %v2348 = vadd.f32 0.0, %v2347
    %v2349 = vpop.f32.mrb[0].mxu0
    %2350 = vmatprep.mubr.bf16.mxu0 0
    %2351 = vmatmul.mubr.bf16.gmra.mrb[0].mxu0 %v2157
    %v2352 = vpop.f32.mrb[0].mxu0
    %v2353 = vadd.f32 0.0, %v2352
    %v2354 = vpop.f32.mrb[0].mxu0
    %v2355 = vpop.f32.mrb[0].mxu0
    %v2356 = vadd.f32 0.0, %v2355
    %v2357 = vpop.f32.mrb[0].mxu0
    %2358 = vmatprep.mubr.bf16.mxu0 0
    %2359 = vmatmul.mubr.bf16.gmra.mrb[0].mxu0 %v2158
    %v2360 = vpop.f32.mrb[0].mxu0
    %v2361 = vadd.f32 0.0, %v2360
    %v2362 = vpop.f32.mrb[0].mxu0
    %v2363 = vpop.f32.mrb[0].mxu0
    %v2364 = vadd.f32 0.0, %v2363
    %v2365 = vpop.f32.mrb[0].mxu0
    %2366 = vmatprep.mubr.bf16.mxu0 0
    %2367 = vmatmul.mubr.bf16.gmra.mrb[0].mxu0 %v2159
    %v2368 = vpop.f32.mrb[0].mxu0
    %v2369 = vadd.f32 0.0, %v2368
    %v2370 = vpop.f32.mrb[0].mxu0
    %v2371 = vpop.f32.mrb[0].mxu0
    %v2372 = vadd.f32 0.0, %v2371
    %v2373 = vpop.f32.mrb[0].mxu0
    %2374 = vmatprep.mubr.bf16.mxu0 0
    %2375 = vmatmul.mubr.bf16.gmra.mrb[0].mxu0 %v2160
    %v2376 = vpop.f32.mrb[0].mxu0
    %v2377 = vadd.f32 0.0, %v2376
    %v2378 = vpop.f32.mrb[0].mxu0
    %v2379 = vpop.f32.mrb[0].mxu0
    %v2380 = vadd.f32 0.0, %v2379
    %v2381 = vpop.f32.mrb[0].mxu0
    %2382 = vmatprep.mubr.bf16.mxu0 0
    %2383 = vmatmul.mubr.bf16.gmra.mrb[0].mxu0 %v2161
    %v2384 = vpop.f32.mrb[0].mxu0
    %v2385 = vadd.f32 0.0, %v2384
    %v2386 = vpop.f32.mrb[0].mxu0
    %v2387 = vpop.f32.mrb[0].mxu0
    %v2388 = vadd.f32 0.0, %v2387
    %v2389 = vpop.f32.mrb[0].mxu0
    %2390 = vmatprep.mubr.bf16.mxu0 0
    %2391 = vmatmul.mubr.bf16.gmra.mrb[0].mxu0 %v2162
    %v2392 = vpop.f32.mrb[0].mxu0
    %v2393 = vadd.f32 0.0, %v2392
    %v2394 = vpop.f32.mrb[0].mxu0
    %v2395 = vpop.f32.mrb[0].mxu0
    %v2396 = vadd.f32 0.0, %v2395
    %v2397 = vpop.f32.mrb[0].mxu0
    %2398 = vmatprep.mubr.bf16.mxu0 0
    %2399 = vmatmul.mubr.bf16.gmra.mrb[0].mxu0 %v2163
    %v2400 = vpop.f32.mrb[0].mxu0
    %v2401 = vadd.f32 0.0, %v2400
    %v2402 = vpop.f32.mrb[0].mxu0
    %v2403 = vpop.f32.mrb[0].mxu0
    %v2404 = vadd.f32 0.0, %v2403
    %v2405 = vpop.f32.mrb[0].mxu0
    %2406 = vmatprep.mubr.bf16.mxu0 0
    %2407 = vmatmul.mubr.bf16.gmra.mrb[0].mxu0 %v2164
    %v2408 = vpop.f32.mrb[0].mxu0
    %v2409 = vadd.f32 0.0, %v2408
    %v2410 = vpop.f32.mrb[0].mxu0
    %v2411 = vpop.f32.mrb[0].mxu0
    %v2412 = vadd.f32 0.0, %v2411
    %v2413 = vpop.f32.mrb[0].mxu0
    %2414 = vmatprep.mubr.bf16.mxu0 0
    %2415 = vmatmul.mubr.bf16.gmra.mrb[0].mxu0 %v2165
    %v2416 = vpop.f32.mrb[0].mxu0
    %v2417 = vadd.f32 0.0, %v2416
    %v2418 = vpop.f32.mrb[0].mxu0
    %v2419 = vpop.f32.mrb[0].mxu0
    %v2420 = vadd.f32 0.0, %v2419
    %v2421 = vpop.f32.mrb[0].mxu0
    %2422 = vmatprep.mubr.bf16.mxu0 0
    %2423 = vmatmul.mubr.bf16.gmra.mrb[0].mxu0 %v2166
    %v2424 = vpop.f32.mrb[0].mxu0
    %v2425 = vadd.f32 0.0, %v2424
    %v2426 = vpop.f32.mrb[0].mxu0
    %v2427 = vpop.f32.mrb[0].mxu0
    %v2428 = vadd.f32 0.0, %v2427
    %v2429 = vpop.f32.mrb[0].mxu0
    %2430 = vmatprep.mubr.bf16.mxu0 0
    %2431 = vmatmul.mubr.bf16.gmra.mrb[0].mxu0 %v2167
    %v2432 = vpop.f32.mrb[0].mxu0
    %v2433 = vadd.f32 0.0, %v2432
    %v2434 = vpop.f32.mrb[0].mxu0
    %v2435 = vpop.f32.mrb[0].mxu0
    %v2436 = vadd.f32 0.0, %v2435
    %v2437 = vpop.f32.mrb[0].mxu0
    %2438 = vmatprep.mubr.bf16.mxu0 0
    %2439 = vmatmul.mubr.bf16.gmra.mrb[0].mxu0 %v2168
    %v2440 = vpop.f32.mrb[0].mxu0
    %v2441 = vadd.f32 0.0, %v2440
    %v2442 = vpop.f32.mrb[0].mxu0
    %v2443 = vpop.f32.mrb[0].mxu0
    %v2444 = vadd.f32 0.0, %v2443
    %v2445 = vpop.f32.mrb[0].mxu0
    %2446 = vmatprep.mubr.bf16.mxu0 0
    %2447 = vmatmul.mubr.bf16.gmra.mrb[0].mxu0 %v2169
    %v2448 = vpop.f32.mrb[0].mxu0
    %v2449 = vadd.f32 0.0, %v2448
    %v2450 = vpop.f32.mrb[0].mxu0
    %v2451 = vpop.f32.mrb[0].mxu0
    %v2452 = vadd.f32 0.0, %v2451
    %v2453 = vpop.f32.mrb[0].mxu0
    %2454 = vmatprep.mubr.bf16.mxu0 0
    %2455 = vmatmul.mubr.bf16.gmra.mrb[0].mxu0 %v2170
    %v2456 = vpop.f32.mrb[0].mxu0
    %v2457 = vadd.f32 0.0, %v2456
    %v2458 = vpop.f32.mrb[0].mxu0
    %v2459 = vpop.f32.mrb[0].mxu0
    %v2460 = vadd.f32 0.0, %v2459
    %v2461 = vpop.f32.mrb[0].mxu0
    %2462 = vmatprep.mubr.bf16.mxu0 0
    %2463 = vmatmul.mubr.bf16.gmra.mrb[0].mxu0 %v2171
    %v2464 = vpop.f32.mrb[0].mxu0
    %v2465 = vadd.f32 0.0, %v2464
    %v2466 = vpop.f32.mrb[0].mxu0
    %v2467 = vpop.f32.mrb[0].mxu0
    %v2468 = vadd.f32 0.0, %v2467
    %v2469 = vpop.f32.mrb[0].mxu0
    %2470 = vmatprep.mubr.bf16.mxu0 0
    %2471 = vmatmul.mubr.bf16.gmra.mrb[0].mxu0 %v2172
    %v2472 = vpop.f32.mrb[0].mxu0
    %v2473 = vadd.f32 0.0, %v2472
    %v2474 = vpop.f32.mrb[0].mxu0
    %v2475 = vpop.f32.mrb[0].mxu0
    %v2476 = vadd.f32 0.0, %v2475
    %v2477 = vpop.f32.mrb[0].mxu0
    %2478 = vmatprep.mubr.bf16.mxu0 0
    %2479 = vmatmul.mubr.bf16.gmra.mrb[0].mxu0 %v2173
    %v2480 = vpop.f32.mrb[0].mxu0
    %v2481 = vadd.f32 0.0, %v2480
    %v2482 = vpop.f32.mrb[0].mxu0
    %v2483 = vpop.f32.mrb[0].mxu0
    %v2484 = vadd.f32 0.0, %v2483
    %v2485 = vpop.f32.mrb[0].mxu0
    %2486 = vmatprep.mubr.bf16.mxu0 0
    %2487 = vmatmul.mubr.bf16.gmra.mrb[0].mxu0 %v2174
    %v2488 = vpop.f32.mrb[0].mxu0
    %v2489 = vadd.f32 0.0, %v2488
    %v2490 = vpop.f32.mrb[0].mxu0
    %v2491 = vpop.f32.mrb[0].mxu0
    %v2492 = vadd.f32 0.0, %v2491
    %v2493 = vpop.f32.mrb[0].mxu0
    %2494 = vmatprep.mubr.bf16.mxu0 0
    %2495 = vmatmul.mubr.bf16.gmra.mrb[0].mxu0 %v2175
    %v2496 = vpop.f32.mrb[0].mxu0
    %v2497 = vadd.f32 0.0, %v2496
    %v2498 = vpop.f32.mrb[0].mxu0
    %v2499 = vpop.f32.mrb[0].mxu0
    %v2500 = vadd.f32 0.0, %v2499
    %v2501 = vpop.f32.mrb[0].mxu0
    %2502 = vmatprep.mubr.bf16.mxu0 0
    %2503 = vmatmul.mubr.bf16.gmra.mrb[0].mxu0 %v2176
    %v2504 = vpop.f32.mrb[0].mxu0
    %v2505 = vadd.f32 0.0, %v2504
    %v2506 = vpop.f32.mrb[0].mxu0
    %v2507 = vpop.f32.mrb[0].mxu0
    %v2508 = vadd.f32 0.0, %v2507
    %v2509 = vpop.f32.mrb[0].mxu0
    %2510 = vmatprep.mubr.bf16.mxu0 0
    %2511 = vmatmul.mubr.bf16.gmra.mrb[0].mxu0 %v2177
    %v2512 = vpop.f32.mrb[0].mxu0
    %v2513 = vadd.f32 0.0, %v2512
    %v2514 = vpop.f32.mrb[0].mxu0
    %v2515 = vpop.f32.mrb[0].mxu0
    %v2516 = vadd.f32 0.0, %v2515
    %v2517 = vpop.f32.mrb[0].mxu0
    %2518 = vmatprep.mubr.bf16.mxu0 0
    %2519 = vmatmul.mubr.bf16.gmra.mrb[0].mxu0 %v2178
    %v2520 = vpop.f32.mrb[0].mxu0
    %v2521 = vadd.f32 0.0, %v2520
    %v2522 = vpop.f32.mrb[0].mxu0
    %v2523 = vpop.f32.mrb[0].mxu0
    %v2524 = vadd.f32 0.0, %v2523
    %v2525 = vpop.f32.mrb[0].mxu0
    %2526 = vmatprep.mubr.bf16.mxu0 0
    %2527 = vmatmul.mubr.bf16.gmra.mrb[0].mxu0 %v2179
    %v2528 = vpop.f32.mrb[0].mxu0
    %v2529 = vadd.f32 0.0, %v2528
    %v2530 = vpop.f32.mrb[0].mxu0
    %v2531 = vpop.f32.mrb[0].mxu0
    %v2532 = vadd.f32 0.0, %v2531
    %v2533 = vpop.f32.mrb[0].mxu0
    %2534 = vmatprep.mubr.bf16.mxu0 0
    %2535 = vmatmul.mubr.bf16.gmra.mrb[0].mxu0 %v2180
    %v2536 = vpop.f32.mrb[0].mxu0
    %v2537 = vadd.f32 0.0, %v2536
    %v2538 = vpop.f32.mrb[0].mxu0
    %v2539 = vpop.f32.mrb[0].mxu0
    %v2540 = vadd.f32 0.0, %v2539
    %v2541 = vpop.f32.mrb[0].mxu0
    %2542 = vmatprep.mubr.bf16.mxu0 0
    %2543 = vmatmul.mubr.bf16.gmra.mrb[0].mxu0 %v2181
    %v2544 = vpop.f32.mrb[0].mxu0
    %v2545 = vadd.f32 0.0, %v2544
    %v2546 = vpop.f32.mrb[0].mxu0
    %v2547 = vpop.f32.mrb[0].mxu0
    %v2548 = vadd.f32 0.0, %v2547
    %v2549 = vpop.f32.mrb[0].mxu0
    %2550 = vdwg.mxu0
    %v2615 = vunpack.c.l.b16 %v1187
    %v2616 = vunpack.c.l.b16 %v1188
    %v2617 = vunpack.c.l.b16 %v1189
    %v2618 = vunpack.c.l.b16 %v1190
    %v2619 = vunpack.c.l.b16 %v1191
    %v2620 = vunpack.c.l.b16 %v1192
    %v2621 = vunpack.c.l.b16 %v1193
    %v2622 = vunpack.c.l.b16 %v1194
    %v2623 = vunpack.c.l.b16 %v1195
    %v2624 = vunpack.c.l.b16 %v1196
    %v2625 = vunpack.c.l.b16 %v1197
    %v2626 = vunpack.c.l.b16 %v1198
    %v2627 = vunpack.c.l.b16 %v1199
    %v2628 = vunpack.c.l.b16 %v1200
    %v2629 = vunpack.c.l.b16 %v1201
    %v2630 = vunpack.c.l.b16 %v1202
    %v2631 = vunpack.c.l.b16 %v1203
    %v2632 = vunpack.c.l.b16 %v1204
    %v2633 = vunpack.c.l.b16 %v1205
    %v2634 = vunpack.c.l.b16 %v1206
    %v2635 = vunpack.c.l.b16 %v1207
    %v2636 = vunpack.c.l.b16 %v1208
    %v2637 = vunpack.c.l.b16 %v1209
    %v2638 = vunpack.c.l.b16 %v1210
    %v2639 = vunpack.c.l.b16 %v1211
    %v2640 = vunpack.c.l.b16 %v1212
    %v2641 = vunpack.c.l.b16 %v1213
    %v2642 = vunpack.c.l.b16 %v1214
    %v2643 = vunpack.c.l.b16 %v1215
    %v2644 = vunpack.c.l.b16 %v1216
    %v2645 = vunpack.c.l.b16 %v1217
    %v2646 = vunpack.c.l.b16 %v1218
    %v2647 = vunpack.c.l.b16 %v1219
    %v2648 = vunpack.c.l.b16 %v1220
    %v2649 = vunpack.c.l.b16 %v1221
    %v2650 = vunpack.c.l.b16 %v1222
    %v2651 = vunpack.c.l.b16 %v1223
    %v2652 = vunpack.c.l.b16 %v1224
    %v2653 = vunpack.c.l.b16 %v1225
    %v2654 = vunpack.c.l.b16 %v1226
    %v2655 = vunpack.c.l.b16 %v1227
    %v2656 = vunpack.c.l.b16 %v1228
    %v2657 = vunpack.c.l.b16 %v1229
    %v2658 = vunpack.c.l.b16 %v1230
    %v2659 = vunpack.c.l.b16 %v1231
    %v2660 = vunpack.c.l.b16 %v1232
    %v2661 = vunpack.c.l.b16 %v1233
    %v2662 = vunpack.c.l.b16 %v1234
    %v2663 = vunpack.c.l.b16 %v1235
    %v2664 = vunpack.c.l.b16 %v1236
    %v2665 = vunpack.c.l.b16 %v1237
    %v2666 = vunpack.c.l.b16 %v1238
    %v2667 = vunpack.c.l.b16 %v1239
    %v2668 = vunpack.c.l.b16 %v1240
    %v2669 = vunpack.c.l.b16 %v1241
    %v2670 = vunpack.c.l.b16 %v1242
    %v2671 = vunpack.c.l.b16 %v1243
    %v2672 = vunpack.c.l.b16 %v1244
    %v2673 = vunpack.c.l.b16 %v1245
    %v2674 = vunpack.c.l.b16 %v1246
    %v2675 = vunpack.c.l.b16 %v1247
    %v2676 = vunpack.c.l.b16 %v1248
    %v2677 = vunpack.c.l.b16 %v1249
    %v2678 = vunpack.c.l.b16 %v1250
    %v2679 = vpack.c.b16 %v2616, %v2615
    %v2680 = vpack.c.b16 %v2618, %v2617
    %v2681 = vpack.c.b16 %v2620, %v2619
    %v2682 = vpack.c.b16 %v2622, %v2621
    %v2683 = vpack.c.b16 %v2624, %v2623
    %v2684 = vpack.c.b16 %v2626, %v2625
    %v2685 = vpack.c.b16 %v2628, %v2627
    %v2686 = vpack.c.b16 %v2630, %v2629
    %v2687 = vpack.c.b16 %v2632, %v2631
    %v2688 = vpack.c.b16 %v2634, %v2633
    %v2689 = vpack.c.b16 %v2636, %v2635
    %v2690 = vpack.c.b16 %v2638, %v2637
    %v2691 = vpack.c.b16 %v2640, %v2639
    %v2692 = vpack.c.b16 %v2642, %v2641
    %v2693 = vpack.c.b16 %v2644, %v2643
    %v2694 = vpack.c.b16 %v2646, %v2645
    %v2695 = vpack.c.b16 %v2648, %v2647
    %v2696 = vpack.c.b16 %v2650, %v2649
    %v2697 = vpack.c.b16 %v2652, %v2651
    %v2698 = vpack.c.b16 %v2654, %v2653
    %v2699 = vpack.c.b16 %v2656, %v2655
    %v2700 = vpack.c.b16 %v2658, %v2657
    %v2701 = vpack.c.b16 %v2660, %v2659
    %v2702 = vpack.c.b16 %v2662, %v2661
    %v2703 = vpack.c.b16 %v2664, %v2663
    %v2704 = vpack.c.b16 %v2666, %v2665
    %v2705 = vpack.c.b16 %v2668, %v2667
    %v2706 = vpack.c.b16 %v2670, %v2669
    %v2707 = vpack.c.b16 %v2672, %v2671
    %v2708 = vpack.c.b16 %v2674, %v2673
    %v2709 = vpack.c.b16 %v2676, %v2675
    %v2710 = vpack.c.b16 %v2678, %v2677
    %v2759 = vunpack.c.l.b16 %v1251
    %v2760 = vunpack.c.l.b16 %v1252
    %v2761 = vunpack.c.l.b16 %v1253
    %v2762 = vunpack.c.l.b16 %v1254
    %v2763 = vunpack.c.l.b16 %v1255
    %v2764 = vunpack.c.l.b16 %v1256
    %v2765 = vunpack.c.l.b16 %v1257
    %v2766 = vunpack.c.l.b16 %v1258
    %v2767 = vunpack.c.l.b16 %v1259
    %v2768 = vunpack.c.l.b16 %v1260
    %v2769 = vunpack.c.l.b16 %v1261
    %v2770 = vunpack.c.l.b16 %v1262
    %v2771 = vunpack.c.l.b16 %v1263
    %v2772 = vunpack.c.l.b16 %v1264
    %v2773 = vunpack.c.l.b16 %v1265
    %v2774 = vunpack.c.l.b16 %v1266
    %v2775 = vpack.c.b16 %v2760, %v2759
    %v2776 = vpack.c.b16 %v2762, %v2761
    %v2777 = vpack.c.b16 %v2764, %v2763
    %v2778 = vpack.c.b16 %v2766, %v2765
    %v2779 = vpack.c.b16 %v2768, %v2767
    %v2780 = vpack.c.b16 %v2770, %v2769
    %v2781 = vpack.c.b16 %v2772, %v2771
    %v2782 = vpack.c.b16 %v2774, %v2773
    %2791 = vmatprep.subr.bf16.mxu0 0
    %2792 = vmatpush1.bf16.msra.mxu0 %v2775
    %2793 = vmatprep.subr.bf16.mxu0 0
    %2794 = vmatpush1.bf16.msra.mxu0 %v2776
    %2795 = vmatprep.subr.bf16.mxu0 0
    %2796 = vmatpush1.bf16.msra.mxu0 %v2777
    %2797 = vmatprep.subr.bf16.mxu0 0
    %2798 = vmatpush1.bf16.msra.mxu0 %v2778
    %2799 = vmatprep.subr.bf16.mxu0 0
    %2800 = vmatpush1.bf16.msra.mxu0 %v2779
    %2801 = vmatprep.subr.bf16.mxu0 0
    %2802 = vmatpush1.bf16.msra.mxu0 %v2780
    %2803 = vmatprep.subr.bf16.mxu0 0
    %2804 = vmatpush1.bf16.msra.mxu0 %v2781
    %2805 = vmatprep.subr.bf16.mxu0 0
    %2806 = vmatpush1.bf16.msra.mxu0 %v2782
    %2807 = vmatprep.subr.bf16.mxu0 0
    %2808 = vmatpush1.bf16.msra.mxu0 0
    %2809 = vmatprep.subr.bf16.mxu0 0
    %2810 = vmatpush1.bf16.msra.mxu0 0
    %2811 = vmatprep.subr.bf16.mxu0 0
    %2812 = vmatpush1.bf16.msra.mxu0 0
    %2813 = vmatprep.subr.bf16.mxu0 0
    %2814 = vmatpush1.bf16.msra.mxu0 0
    %2815 = vmatprep.subr.bf16.mxu0 0
    %2816 = vmatpush1.bf16.msra.mxu0 0
    %2817 = vmatprep.subr.bf16.mxu0 0
    %2818 = vmatpush1.bf16.msra.mxu0 0
    %2819 = vmatprep.subr.bf16.mxu0 0
    %2820 = vmatpush1.bf16.msra.mxu0 0
    %2821 = vmatprep.subr.bf16.mxu0 0
    %2822 = vmatpush1.bf16.msra.mxu0 0
    %2823 = vmatprep.mubr.bf16.mxu0 0
    %2824 = vmatmul.mubr.bf16.gmra.mrb[0].mxu0 %v2679
    %v2825 = vpop.f32.mrb[0].mxu0
    %v2826 = vadd.f32 %v2297, %v2825
    %v2827 = vpop.f32.mrb[0].mxu0
    %v2828 = vpop.f32.mrb[0].mxu0
    %v2829 = vadd.f32 %v2300, %v2828
    %v2830 = vpop.f32.mrb[0].mxu0
    %2831 = vmatprep.mubr.bf16.mxu0 0
    %2832 = vmatmul.mubr.bf16.gmra.mrb[0].mxu0 %v2680
    %v2833 = vpop.f32.mrb[0].mxu0
    %v2834 = vadd.f32 %v2305, %v2833
    %v2835 = vpop.f32.mrb[0].mxu0
    %v2836 = vpop.f32.mrb[0].mxu0
    %v2837 = vadd.f32 %v2308, %v2836
    %v2838 = vpop.f32.mrb[0].mxu0
    %2839 = vmatprep.mubr.bf16.mxu0 0
    %2840 = vmatmul.mubr.bf16.gmra.mrb[0].mxu0 %v2681
    %v2841 = vpop.f32.mrb[0].mxu0
    %v2842 = vadd.f32 %v2313, %v2841
    %v2843 = vpop.f32.mrb[0].mxu0
    %v2844 = vpop.f32.mrb[0].mxu0
    %v2845 = vadd.f32 %v2316, %v2844
    %v2846 = vpop.f32.mrb[0].mxu0
    %2847 = vmatprep.mubr.bf16.mxu0 0
    %2848 = vmatmul.mubr.bf16.gmra.mrb[0].mxu0 %v2682
    %v2849 = vpop.f32.mrb[0].mxu0
    %v2850 = vadd.f32 %v2321, %v2849
    %v2851 = vpop.f32.mrb[0].mxu0
    %v2852 = vpop.f32.mrb[0].mxu0
    %v2853 = vadd.f32 %v2324, %v2852
    %v2854 = vpop.f32.mrb[0].mxu0
    %2855 = vmatprep.mubr.bf16.mxu0 0
    %2856 = vmatmul.mubr.bf16.gmra.mrb[0].mxu0 %v2683
    %v2857 = vpop.f32.mrb[0].mxu0
    %v2858 = vadd.f32 %v2329, %v2857
    %v2859 = vpop.f32.mrb[0].mxu0
    %v2860 = vpop.f32.mrb[0].mxu0
    %v2861 = vadd.f32 %v2332, %v2860
    %v2862 = vpop.f32.mrb[0].mxu0
    %2863 = vmatprep.mubr.bf16.mxu0 0
    %2864 = vmatmul.mubr.bf16.gmra.mrb[0].mxu0 %v2684
    %v2865 = vpop.f32.mrb[0].mxu0
    %v2866 = vadd.f32 %v2337, %v2865
    %v2867 = vpop.f32.mrb[0].mxu0
    %v2868 = vpop.f32.mrb[0].mxu0
    %v2869 = vadd.f32 %v2340, %v2868
    %v2870 = vpop.f32.mrb[0].mxu0
    %2871 = vmatprep.mubr.bf16.mxu0 0
    %2872 = vmatmul.mubr.bf16.gmra.mrb[0].mxu0 %v2685
    %v2873 = vpop.f32.mrb[0].mxu0
    %v2874 = vadd.f32 %v2345, %v2873
    %v2875 = vpop.f32.mrb[0].mxu0
    %v2876 = vpop.f32.mrb[0].mxu0
    %v2877 = vadd.f32 %v2348, %v2876
    %v2878 = vpop.f32.mrb[0].mxu0
    %2879 = vmatprep.mubr.bf16.mxu0 0
    %2880 = vmatmul.mubr.bf16.gmra.mrb[0].mxu0 %v2686
    %v2881 = vpop.f32.mrb[0].mxu0
    %v2882 = vadd.f32 %v2353, %v2881
    %v2883 = vpop.f32.mrb[0].mxu0
    %v2884 = vpop.f32.mrb[0].mxu0
    %v2885 = vadd.f32 %v2356, %v2884
    %v2886 = vpop.f32.mrb[0].mxu0
    %2887 = vmatprep.mubr.bf16.mxu0 0
    %2888 = vmatmul.mubr.bf16.gmra.mrb[0].mxu0 %v2687
    %v2889 = vpop.f32.mrb[0].mxu0
    %v2890 = vadd.f32 %v2361, %v2889
    %v2891 = vpop.f32.mrb[0].mxu0
    %v2892 = vpop.f32.mrb[0].mxu0
    %v2893 = vadd.f32 %v2364, %v2892
    %v2894 = vpop.f32.mrb[0].mxu0
    %2895 = vmatprep.mubr.bf16.mxu0 0
    %2896 = vmatmul.mubr.bf16.gmra.mrb[0].mxu0 %v2688
    %v2897 = vpop.f32.mrb[0].mxu0
    %v2898 = vadd.f32 %v2369, %v2897
    %v2899 = vpop.f32.mrb[0].mxu0
    %v2900 = vpop.f32.mrb[0].mxu0
    %v2901 = vadd.f32 %v2372, %v2900
    %v2902 = vpop.f32.mrb[0].mxu0
    %2903 = vmatprep.mubr.bf16.mxu0 0
    %2904 = vmatmul.mubr.bf16.gmra.mrb[0].mxu0 %v2689
    %v2905 = vpop.f32.mrb[0].mxu0
    %v2906 = vadd.f32 %v2377, %v2905
    %v2907 = vpop.f32.mrb[0].mxu0
    %v2908 = vpop.f32.mrb[0].mxu0
    %v2909 = vadd.f32 %v2380, %v2908
    %v2910 = vpop.f32.mrb[0].mxu0
    %2911 = vmatprep.mubr.bf16.mxu0 0
    %2912 = vmatmul.mubr.bf16.gmra.mrb[0].mxu0 %v2690
    %v2913 = vpop.f32.mrb[0].mxu0
    %v2914 = vadd.f32 %v2385, %v2913
    %v2915 = vpop.f32.mrb[0].mxu0
    %v2916 = vpop.f32.mrb[0].mxu0
    %v2917 = vadd.f32 %v2388, %v2916
    %v2918 = vpop.f32.mrb[0].mxu0
    %2919 = vmatprep.mubr.bf16.mxu0 0
    %2920 = vmatmul.mubr.bf16.gmra.mrb[0].mxu0 %v2691
    %v2921 = vpop.f32.mrb[0].mxu0
    %v2922 = vadd.f32 %v2393, %v2921
    %v2923 = vpop.f32.mrb[0].mxu0
    %v2924 = vpop.f32.mrb[0].mxu0
    %v2925 = vadd.f32 %v2396, %v2924
    %v2926 = vpop.f32.mrb[0].mxu0
    %2927 = vmatprep.mubr.bf16.mxu0 0
    %2928 = vmatmul.mubr.bf16.gmra.mrb[0].mxu0 %v2692
    %v2929 = vpop.f32.mrb[0].mxu0
    %v2930 = vadd.f32 %v2401, %v2929
    %v2931 = vpop.f32.mrb[0].mxu0
    %v2932 = vpop.f32.mrb[0].mxu0
    %v2933 = vadd.f32 %v2404, %v2932
    %v2934 = vpop.f32.mrb[0].mxu0
    %2935 = vmatprep.mubr.bf16.mxu0 0
    %2936 = vmatmul.mubr.bf16.gmra.mrb[0].mxu0 %v2693
    %v2937 = vpop.f32.mrb[0].mxu0
    %v2938 = vadd.f32 %v2409, %v2937
    %v2939 = vpop.f32.mrb[0].mxu0
    %v2940 = vpop.f32.mrb[0].mxu0
    %v2941 = vadd.f32 %v2412, %v2940
    %v2942 = vpop.f32.mrb[0].mxu0
    %2943 = vmatprep.mubr.bf16.mxu0 0
    %2944 = vmatmul.mubr.bf16.gmra.mrb[0].mxu0 %v2694
    %v2945 = vpop.f32.mrb[0].mxu0
    %v2946 = vadd.f32 %v2417, %v2945
    %v2947 = vpop.f32.mrb[0].mxu0
    %v2948 = vpop.f32.mrb[0].mxu0
    %v2949 = vadd.f32 %v2420, %v2948
    %v2950 = vpop.f32.mrb[0].mxu0
    %2951 = vmatprep.mubr.bf16.mxu0 0
    %2952 = vmatmul.mubr.bf16.gmra.mrb[0].mxu0 %v2695
    %v2953 = vpop.f32.mrb[0].mxu0
    %v2954 = vadd.f32 %v2425, %v2953
    %v2955 = vpop.f32.mrb[0].mxu0
    %v2956 = vpop.f32.mrb[0].mxu0
    %v2957 = vadd.f32 %v2428, %v2956
    %v2958 = vpop.f32.mrb[0].mxu0
    %2959 = vmatprep.mubr.bf16.mxu0 0
    %2960 = vmatmul.mubr.bf16.gmra.mrb[0].mxu0 %v2696
    %v2961 = vpop.f32.mrb[0].mxu0
    %v2962 = vadd.f32 %v2433, %v2961
    %v2963 = vpop.f32.mrb[0].mxu0
    %v2964 = vpop.f32.mrb[0].mxu0
    %v2965 = vadd.f32 %v2436, %v2964
    %v2966 = vpop.f32.mrb[0].mxu0
    %2967 = vmatprep.mubr.bf16.mxu0 0
    %2968 = vmatmul.mubr.bf16.gmra.mrb[0].mxu0 %v2697
    %v2969 = vpop.f32.mrb[0].mxu0
    %v2970 = vadd.f32 %v2441, %v2969
    %v2971 = vpop.f32.mrb[0].mxu0
    %v2972 = vpop.f32.mrb[0].mxu0
    %v2973 = vadd.f32 %v2444, %v2972
    %v2974 = vpop.f32.mrb[0].mxu0
    %2975 = vmatprep.mubr.bf16.mxu0 0
    %2976 = vmatmul.mubr.bf16.gmra.mrb[0].mxu0 %v2698
    %v2977 = vpop.f32.mrb[0].mxu0
    %v2978 = vadd.f32 %v2449, %v2977
    %v2979 = vpop.f32.mrb[0].mxu0
    %v2980 = vpop.f32.mrb[0].mxu0
    %v2981 = vadd.f32 %v2452, %v2980
    %v2982 = vpop.f32.mrb[0].mxu0
    %2983 = vmatprep.mubr.bf16.mxu0 0
    %2984 = vmatmul.mubr.bf16.gmra.mrb[0].mxu0 %v2699
    %v2985 = vpop.f32.mrb[0].mxu0
    %v2986 = vadd.f32 %v2457, %v2985
    %v2987 = vpop.f32.mrb[0].mxu0
    %v2988 = vpop.f32.mrb[0].mxu0
    %v2989 = vadd.f32 %v2460, %v2988
    %v2990 = vpop.f32.mrb[0].mxu0
    %2991 = vmatprep.mubr.bf16.mxu0 0
    %2992 = vmatmul.mubr.bf16.gmra.mrb[0].mxu0 %v2700
    %v2993 = vpop.f32.mrb[0].mxu0
    %v2994 = vadd.f32 %v2465, %v2993
    %v2995 = vpop.f32.mrb[0].mxu0
    %v2996 = vpop.f32.mrb[0].mxu0
    %v2997 = vadd.f32 %v2468, %v2996
    %v2998 = vpop.f32.mrb[0].mxu0
    %2999 = vmatprep.mubr.bf16.mxu0 0
    %3000 = vmatmul.mubr.bf16.gmra.mrb[0].mxu0 %v2701
    %v3001 = vpop.f32.mrb[0].mxu0
    %v3002 = vadd.f32 %v2473, %v3001
    %v3003 = vpop.f32.mrb[0].mxu0
    %v3004 = vpop.f32.mrb[0].mxu0
    %v3005 = vadd.f32 %v2476, %v3004
    %v3006 = vpop.f32.mrb[0].mxu0
    %3007 = vmatprep.mubr.bf16.mxu0 0
    %3008 = vmatmul.mubr.bf16.gmra.mrb[0].mxu0 %v2702
    %v3009 = vpop.f32.mrb[0].mxu0
    %v3010 = vadd.f32 %v2481, %v3009
    %v3011 = vpop.f32.mrb[0].mxu0
    %v3012 = vpop.f32.mrb[0].mxu0
    %v3013 = vadd.f32 %v2484, %v3012
    %v3014 = vpop.f32.mrb[0].mxu0
    %3015 = vmatprep.mubr.bf16.mxu0 0
    %3016 = vmatmul.mubr.bf16.gmra.mrb[0].mxu0 %v2703
    %v3017 = vpop.f32.mrb[0].mxu0
    %v3018 = vadd.f32 %v2489, %v3017
    %v3019 = vpop.f32.mrb[0].mxu0
    %v3020 = vpop.f32.mrb[0].mxu0
    %v3021 = vadd.f32 %v2492, %v3020
    %v3022 = vpop.f32.mrb[0].mxu0
    %3023 = vmatprep.mubr.bf16.mxu0 0
    %3024 = vmatmul.mubr.bf16.gmra.mrb[0].mxu0 %v2704
    %v3025 = vpop.f32.mrb[0].mxu0
    %v3026 = vadd.f32 %v2497, %v3025
    %v3027 = vpop.f32.mrb[0].mxu0
    %v3028 = vpop.f32.mrb[0].mxu0
    %v3029 = vadd.f32 %v2500, %v3028
    %v3030 = vpop.f32.mrb[0].mxu0
    %3031 = vmatprep.mubr.bf16.mxu0 0
    %3032 = vmatmul.mubr.bf16.gmra.mrb[0].mxu0 %v2705
    %v3033 = vpop.f32.mrb[0].mxu0
    %v3034 = vadd.f32 %v2505, %v3033
    %v3035 = vpop.f32.mrb[0].mxu0
    %v3036 = vpop.f32.mrb[0].mxu0
    %v3037 = vadd.f32 %v2508, %v3036
    %v3038 = vpop.f32.mrb[0].mxu0
    %3039 = vmatprep.mubr.bf16.mxu0 0
    %3040 = vmatmul.mubr.bf16.gmra.mrb[0].mxu0 %v2706
    %v3041 = vpop.f32.mrb[0].mxu0
    %v3042 = vadd.f32 %v2513, %v3041
    %v3043 = vpop.f32.mrb[0].mxu0
    %v3044 = vpop.f32.mrb[0].mxu0
    %v3045 = vadd.f32 %v2516, %v3044
    %v3046 = vpop.f32.mrb[0].mxu0
    %3047 = vmatprep.mubr.bf16.mxu0 0
    %3048 = vmatmul.mubr.bf16.gmra.mrb[0].mxu0 %v2707
    %v3049 = vpop.f32.mrb[0].mxu0
    %v3050 = vadd.f32 %v2521, %v3049
    %v3051 = vpop.f32.mrb[0].mxu0
    %v3052 = vpop.f32.mrb[0].mxu0
    %v3053 = vadd.f32 %v2524, %v3052
    %v3054 = vpop.f32.mrb[0].mxu0
    %3055 = vmatprep.mubr.bf16.mxu0 0
    %3056 = vmatmul.mubr.bf16.gmra.mrb[0].mxu0 %v2708
    %v3057 = vpop.f32.mrb[0].mxu0
    %v3058 = vadd.f32 %v2529, %v3057
    %v3059 = vpop.f32.mrb[0].mxu0
    %v3060 = vpop.f32.mrb[0].mxu0
    %v3061 = vadd.f32 %v2532, %v3060
    %v3062 = vpop.f32.mrb[0].mxu0
    %3063 = vmatprep.mubr.bf16.mxu0 0
    %3064 = vmatmul.mubr.bf16.gmra.mrb[0].mxu0 %v2709
    %v3065 = vpop.f32.mrb[0].mxu0
    %v3066 = vadd.f32 %v2537, %v3065
    %v3067 = vpop.f32.mrb[0].mxu0
    %v3068 = vpop.f32.mrb[0].mxu0
    %v3069 = vadd.f32 %v2540, %v3068
    %v3070 = vpop.f32.mrb[0].mxu0
    %3071 = vmatprep.mubr.bf16.mxu0 0
    %3072 = vmatmul.mubr.bf16.gmra.mrb[0].mxu0 %v2710
    %v3073 = vpop.f32.mrb[0].mxu0
    %v3074 = vadd.f32 %v2545, %v3073
    %v3075 = vpop.f32.mrb[0].mxu0
    %v3076 = vpop.f32.mrb[0].mxu0
    %v3077 = vadd.f32 %v2548, %v3076
    %v3078 = vpop.f32.mrb[0].mxu0
    %3079 = vdwg.mxu0
    %v3080 = vld [vmem:[#allocation2] sm:$0xe]
    %v3081 = vld [vmem:[#allocation2 + $0xc] sm:$0xe]
    %v3082 = vld [vmem:[#allocation2 + $0x18] sm:$0xe]
    %v3083 = vld [vmem:[#allocation2 + $0x24] sm:$0xe]
    %v3084 = vld [vmem:[#allocation2 + $0x30] sm:$0xe]
    %v3085 = vld [vmem:[#allocation2 + $0x3c] sm:$0xe]
    %v3086 = vld [vmem:[#allocation2 + $0x48] sm:$0xe]
    %v3087 = vld [vmem:[#allocation2 + $0x54] sm:$0xe]
    %v3088 = vld [vmem:[#allocation2 + $0x60] sm:$0xe]
    %v3089 = vld [vmem:[#allocation2 + $0x6c] sm:$0xe]
    %v3090 = vld [vmem:[#allocation2 + $0x78] sm:$0xe]
    %v3091 = vld [vmem:[#allocation2 + $0x84] sm:$0xe]
    %v3092 = vld [vmem:[#allocation2 + $0x90] sm:$0xe]
    %v3093 = vld [vmem:[#allocation2 + $0x9c] sm:$0xe]
    %v3094 = vld [vmem:[#allocation2 + $0xa8] sm:$0xe]
    %v3095 = vld [vmem:[#allocation2 + $0xb4] sm:$0xe]
    %v3096 = vld [vmem:[#allocation2 + $0xd8] sm:$0xe]
    %v3097 = vld [vmem:[#allocation2 + $0xe4] sm:$0xe]
    %v3098 = vld [vmem:[#allocation2 + $0xf0] sm:$0xe]
    %v3099 = vld [vmem:[#allocation2 + $0xfc] sm:$0xe]
    %v3100 = vld [vmem:[#allocation2 + $0x108] sm:$0xe]
    %v3101 = vld [vmem:[#allocation2 + $0x114] sm:$0xe]
    %v3102 = vld [vmem:[#allocation2 + $0x120] sm:$0xe]
    %v3103 = vld [vmem:[#allocation2 + $0x12c] sm:$0xe]
    %v3104 = vld [vmem:[#allocation2 + $0x138] sm:$0xe]
    %v3105 = vld [vmem:[#allocation2 + $0x144] sm:$0xe]
    %v3106 = vld [vmem:[#allocation2 + $0x150] sm:$0xe]
    %v3107 = vld [vmem:[#allocation2 + $0x15c] sm:$0xe]
    %v3108 = vld [vmem:[#allocation2 + $0x168] sm:$0xe]
    %v3109 = vld [vmem:[#allocation2 + $0x174] sm:$0xe]
    %v3110 = vld [vmem:[#allocation2 + $0x180] sm:$0xe]
    %v3111 = vld [vmem:[#allocation2 + $0x18c] sm:$0xe]
    %vm3176 = vcmask 1042432
    %vm3177 = vcmask 1046532
    %vm3178 = vmor %vm3176, %vm3177
    %v3179 = vrot.slane %v3080, 5
    %v3180 = vrot.slane %v3179, 4
    %v3181 = vrot.slane %v1188, 5
    %v3182 = vsel %vm3178, %v3180, %v3181
    %v3183 = vrot.slane %v3181, 4
    %v3184 = vrot.slane %v1267, 5
    %v3185 = vsel %vm3178, %v3183, %v3184
    %v3186 = vrot.slane %v3081, 5
    %v3187 = vrot.slane %v3186, 4
    %v3188 = vrot.slane %v1190, 5
    %v3189 = vsel %vm3178, %v3187, %v3188
    %v3190 = vrot.slane %v3188, 4
    %v3191 = vrot.slane %v1268, 5
    %v3192 = vsel %vm3178, %v3190, %v3191
    %v3193 = vrot.slane %v3082, 5
    %v3194 = vrot.slane %v3193, 4
    %v3195 = vrot.slane %v1192, 5
    %v3196 = vsel %vm3178, %v3194, %v3195
    %v3197 = vrot.slane %v3195, 4
    %v3198 = vrot.slane %v1269, 5
    %v3199 = vsel %vm3178, %v3197, %v3198
    %v3200 = vrot.slane %v3083, 5
    %v3201 = vrot.slane %v3200, 4
    %v3202 = vrot.slane %v1194, 5
    %v3203 = vsel %vm3178, %v3201, %v3202
    %v3204 = vrot.slane %v3202, 4
    %v3205 = vrot.slane %v1270, 5
    %v3206 = vsel %vm3178, %v3204, %v3205
    %v3207 = vrot.slane %v3084, 5
    %v3208 = vrot.slane %v3207, 4
    %v3209 = vrot.slane %v1196, 5
    %v3210 = vsel %vm3178, %v3208, %v3209
    %v3211 = vrot.slane %v3209, 4
    %v3212 = vrot.slane %v1271, 5
    %v3213 = vsel %vm3178, %v3211, %v3212
    %v3214 = vrot.slane %v3085, 5
    %v3215 = vrot.slane %v3214, 4
    %v3216 = vrot.slane %v1198, 5
    %v3217 = vsel %vm3178, %v3215, %v3216
    %v3218 = vrot.slane %v3216, 4
    %v3219 = vrot.slane %v1272, 5
    %v3220 = vsel %vm3178, %v3218, %v3219
    %v3221 = vrot.slane %v3086, 5
    %v3222 = vrot.slane %v3221, 4
    %v3223 = vrot.slane %v1200, 5
    %v3224 = vsel %vm3178, %v3222, %v3223
    %v3225 = vrot.slane %v3223, 4
    %v3226 = vrot.slane %v1273, 5
    %v3227 = vsel %vm3178, %v3225, %v3226
    %v3228 = vrot.slane %v3087, 5
    %v3229 = vrot.slane %v3228, 4
    %v3230 = vrot.slane %v1202, 5
    %v3231 = vsel %vm3178, %v3229, %v3230
    %v3232 = vrot.slane %v3230, 4
    %v3233 = vrot.slane %v1274, 5
    %v3234 = vsel %vm3178, %v3232, %v3233
    %v3235 = vrot.slane %v3088, 5
    %v3236 = vrot.slane %v3235, 4
    %v3237 = vrot.slane %v1204, 5
    %v3238 = vsel %vm3178, %v3236, %v3237
    %v3239 = vrot.slane %v3237, 4
    %v3240 = vrot.slane %v1275, 5
    %v3241 = vsel %vm3178, %v3239, %v3240
    %v3242 = vrot.slane %v3089, 5
    %v3243 = vrot.slane %v3242, 4
    %v3244 = vrot.slane %v1206, 5
    %v3245 = vsel %vm3178, %v3243, %v3244
    %v3246 = vrot.slane %v3244, 4
    %v3247 = vrot.slane %v1276, 5
    %v3248 = vsel %vm3178, %v3246, %v3247
    %v3249 = vrot.slane %v3090, 5
    %v3250 = vrot.slane %v3249, 4
    %v3251 = vrot.slane %v1208, 5
    %v3252 = vsel %vm3178, %v3250, %v3251
    %v3253 = vrot.slane %v3251, 4
    %v3254 = vrot.slane %v1277, 5
    %v3255 = vsel %vm3178, %v3253, %v3254
    %v3256 = vrot.slane %v3091, 5
    %v3257 = vrot.slane %v3256, 4
    %v3258 = vrot.slane %v1210, 5
    %v3259 = vsel %vm3178, %v3257, %v3258
    %v3260 = vrot.slane %v3258, 4
    %v3261 = vrot.slane %v1278, 5
    %v3262 = vsel %vm3178, %v3260, %v3261
    %v3263 = vrot.slane %v3092, 5
    %v3264 = vrot.slane %v3263, 4
    %v3265 = vrot.slane %v1212, 5
    %v3266 = vsel %vm3178, %v3264, %v3265
    %v3267 = vrot.slane %v3265, 4
    %v3268 = vrot.slane %v1279, 5
    %v3269 = vsel %vm3178, %v3267, %v3268
    %v3270 = vrot.slane %v3093, 5
    %v3271 = vrot.slane %v3270, 4
    %v3272 = vrot.slane %v1214, 5
    %v3273 = vsel %vm3178, %v3271, %v3272
    %v3274 = vrot.slane %v3272, 4
    %v3275 = vrot.slane %v1280, 5
    %v3276 = vsel %vm3178, %v3274, %v3275
    %v3277 = vrot.slane %v3094, 5
    %v3278 = vrot.slane %v3277, 4
    %v3279 = vrot.slane %v1216, 5
    %v3280 = vsel %vm3178, %v3278, %v3279
    %v3281 = vrot.slane %v3279, 4
    %v3282 = vrot.slane %v1281, 5
    %v3283 = vsel %vm3178, %v3281, %v3282
    %v3284 = vrot.slane %v3095, 5
    %v3285 = vrot.slane %v3284, 4
    %v3286 = vrot.slane %v1218, 5
    %v3287 = vsel %vm3178, %v3285, %v3286
    %v3288 = vrot.slane %v3286, 4
    %v3289 = vrot.slane %v1282, 5
    %v3290 = vsel %vm3178, %v3288, %v3289
    %v3291 = vrot.slane %v3096, 5
    %v3292 = vrot.slane %v3291, 4
    %v3293 = vrot.slane %v1220, 5
    %v3294 = vsel %vm3178, %v3292, %v3293
    %v3295 = vrot.slane %v3293, 4
    %v3296 = vrot.slane %v1283, 5
    %v3297 = vsel %vm3178, %v3295, %v3296
    %v3298 = vrot.slane %v3097, 5
    %v3299 = vrot.slane %v3298, 4
    %v3300 = vrot.slane %v1222, 5
    %v3301 = vsel %vm3178, %v3299, %v3300
    %v3302 = vrot.slane %v3300, 4
    %v3303 = vrot.slane %v1284, 5
    %v3304 = vsel %vm3178, %v3302, %v3303
    %v3305 = vrot.slane %v3098, 5
    %v3306 = vrot.slane %v3305, 4
    %v3307 = vrot.slane %v1224, 5
    %v3308 = vsel %vm3178, %v3306, %v3307
    %v3309 = vrot.slane %v3307, 4
    %v3310 = vrot.slane %v1285, 5
    %v3311 = vsel %vm3178, %v3309, %v3310
    %v3312 = vrot.slane %v3099, 5
    %v3313 = vrot.slane %v3312, 4
    %v3314 = vrot.slane %v1226, 5
    %v3315 = vsel %vm3178, %v3313, %v3314
    %v3316 = vrot.slane %v3314, 4
    %v3317 = vrot.slane %v1286, 5
    %v3318 = vsel %vm3178, %v3316, %v3317
    %v3319 = vrot.slane %v3100, 5
    %v3320 = vrot.slane %v3319, 4
    %v3321 = vrot.slane %v1228, 5
    %v3322 = vsel %vm3178, %v3320, %v3321
    %v3323 = vrot.slane %v3321, 4
    %v3324 = vrot.slane %v1287, 5
    %v3325 = vsel %vm3178, %v3323, %v3324
    %v3326 = vrot.slane %v3101, 5
    %v3327 = vrot.slane %v3326, 4
    %v3328 = vrot.slane %v1230, 5
    %v3329 = vsel %vm3178, %v3327, %v3328
    %v3330 = vrot.slane %v3328, 4
    %v3331 = vrot.slane %v1288, 5
    %v3332 = vsel %vm3178, %v3330, %v3331
    %v3333 = vrot.slane %v3102, 5
    %v3334 = vrot.slane %v3333, 4
    %v3335 = vrot.slane %v1232, 5
    %v3336 = vsel %vm3178, %v3334, %v3335
    %v3337 = vrot.slane %v3335, 4
    %v3338 = vrot.slane %v1289, 5
    %v3339 = vsel %vm3178, %v3337, %v3338
    %v3340 = vrot.slane %v3103, 5
    %v3341 = vrot.slane %v3340, 4
    %v3342 = vrot.slane %v1234, 5
    %v3343 = vsel %vm3178, %v3341, %v3342
    %v3344 = vrot.slane %v3342, 4
    %v3345 = vrot.slane %v1290, 5
    %v3346 = vsel %vm3178, %v3344, %v3345
    %v3347 = vrot.slane %v3104, 5
    %v3348 = vrot.slane %v3347, 4
    %v3349 = vrot.slane %v1236, 5
    %v3350 = vsel %vm3178, %v3348, %v3349
    %v3351 = vrot.slane %v3349, 4
    %v3352 = vrot.slane %v1291, 5
    %v3353 = vsel %vm3178, %v3351, %v3352
    %v3354 = vrot.slane %v3105, 5
    %v3355 = vrot.slane %v3354, 4
    %v3356 = vrot.slane %v1238, 5
    %v3357 = vsel %vm3178, %v3355, %v3356
    %v3358 = vrot.slane %v3356, 4
    %v3359 = vrot.slane %v1292, 5
    %v3360 = vsel %vm3178, %v3358, %v3359
    %v3361 = vrot.slane %v3106, 5
    %v3362 = vrot.slane %v3361, 4
    %v3363 = vrot.slane %v1240, 5
    %v3364 = vsel %vm3178, %v3362, %v3363
    %v3365 = vrot.slane %v3363, 4
    %v3366 = vrot.slane %v1293, 5
    %v3367 = vsel %vm3178, %v3365, %v3366
    %v3368 = vrot.slane %v3107, 5
    %v3369 = vrot.slane %v3368, 4
    %v3370 = vrot.slane %v1242, 5
    %v3371 = vsel %vm3178, %v3369, %v3370
    %v3372 = vrot.slane %v3370, 4
    %v3373 = vrot.slane %v1294, 5
    %v3374 = vsel %vm3178, %v3372, %v3373
    %v3375 = vrot.slane %v3108, 5
    %v3376 = vrot.slane %v3375, 4
    %v3377 = vrot.slane %v1244, 5
    %v3378 = vsel %vm3178, %v3376, %v3377
    %v3379 = vrot.slane %v3377, 4
    %v3380 = vrot.slane %v1295, 5
    %v3381 = vsel %vm3178, %v3379, %v3380
    %v3382 = vrot.slane %v3109, 5
    %v3383 = vrot.slane %v3382, 4
    %v3384 = vrot.slane %v1246, 5
    %v3385 = vsel %vm3178, %v3383, %v3384
    %v3386 = vrot.slane %v3384, 4
    %v3387 = vrot.slane %v1296, 5
    %v3388 = vsel %vm3178, %v3386, %v3387
    %v3389 = vrot.slane %v3110, 5
    %v3390 = vrot.slane %v3389, 4
    %v3391 = vrot.slane %v1248, 5
    %v3392 = vsel %vm3178, %v3390, %v3391
    %v3393 = vrot.slane %v3391, 4
    %v3394 = vrot.slane %v1297, 5
    %v3395 = vsel %vm3178, %v3393, %v3394
    %v3396 = vrot.slane %v3111, 5
    %v3397 = vrot.slane %v3396, 4
    %v3398 = vrot.slane %v1250, 5
    %v3399 = vsel %vm3178, %v3397, %v3398
    %v3400 = vrot.slane %v3398, 4
    %v3401 = vrot.slane %v1298, 5
    %v3402 = vsel %vm3178, %v3400, %v3401
    %v3403 = vld [vmem:[#allocation6 + $0x80] sm:$0xf]
    %v3404 = vld [vmem:[#allocation6 + $0x84] sm:$0xf]
    %v3405 = vld [vmem:[#allocation6 + $0x88] sm:$0xf]
    %v3406 = vld [vmem:[#allocation6 + $0x8c] sm:$0xf]
    %v3407 = vld [vmem:[#allocation6 + $0x90] sm:$0xf]
    %v3408 = vld [vmem:[#allocation6 + $0x94] sm:$0xf]
    %v3409 = vld [vmem:[#allocation6 + $0x98] sm:$0xf]
    %v3410 = vld [vmem:[#allocation6 + $0x9c] sm:$0xf]
    %v3411 = vld [vmem:[#allocation6 + $0xa0] sm:$0xf]
    %v3412 = vld [vmem:[#allocation6 + $0xa4] sm:$0xf]
    %v3413 = vld [vmem:[#allocation6 + $0xa8] sm:$0xf]
    %v3414 = vld [vmem:[#allocation6 + $0xac] sm:$0xf]
    %v3415 = vld [vmem:[#allocation6 + $0xb0] sm:$0xf]
    %v3416 = vld [vmem:[#allocation6 + $0xb4] sm:$0xf]
    %v3417 = vld [vmem:[#allocation6 + $0xb8] sm:$0xf]
    %v3418 = vld [vmem:[#allocation6 + $0xbc] sm:$0xf]
    %v3419 = vunpack.c.l.b16 %v3182
    %v3420 = vunpack.c.l.b16 %v3185
    %v3421 = vunpack.c.l.b16 %v3189
    %v3422 = vunpack.c.l.b16 %v3192
    %v3423 = vunpack.c.l.b16 %v3196
    %v3424 = vunpack.c.l.b16 %v3199
    %v3425 = vunpack.c.l.b16 %v3203
    %v3426 = vunpack.c.l.b16 %v3206
    %v3427 = vunpack.c.l.b16 %v3210
    %v3428 = vunpack.c.l.b16 %v3213
    %v3429 = vunpack.c.l.b16 %v3217
    %v3430 = vunpack.c.l.b16 %v3220
    %v3431 = vunpack.c.l.b16 %v3224
    %v3432 = vunpack.c.l.b16 %v3227
    %v3433 = vunpack.c.l.b16 %v3231
    %v3434 = vunpack.c.l.b16 %v3234
    %v3435 = vunpack.c.l.b16 %v3238
    %v3436 = vunpack.c.l.b16 %v3241
    %v3437 = vunpack.c.l.b16 %v3245
    %v3438 = vunpack.c.l.b16 %v3248
    %v3439 = vunpack.c.l.b16 %v3252
    %v3440 = vunpack.c.l.b16 %v3255
    %v3441 = vunpack.c.l.b16 %v3259
    %v3442 = vunpack.c.l.b16 %v3262
    %v3443 = vunpack.c.l.b16 %v3266
    %v3444 = vunpack.c.l.b16 %v3269
    %v3445 = vunpack.c.l.b16 %v3273
    %v3446 = vunpack.c.l.b16 %v3276
    %v3447 = vunpack.c.l.b16 %v3280
    %v3448 = vunpack.c.l.b16 %v3283
    %v3449 = vunpack.c.l.b16 %v3287
    %v3450 = vunpack.c.l.b16 %v3290
    %v3451 = vunpack.c.l.b16 %v3294
    %v3452 = vunpack.c.l.b16 %v3297
    %v3453 = vunpack.c.l.b16 %v3301
    %v3454 = vunpack.c.l.b16 %v3304
    %v3455 = vunpack.c.l.b16 %v3308
    %v3456 = vunpack.c.l.b16 %v3311
    %v3457 = vunpack.c.l.b16 %v3315
    %v3458 = vunpack.c.l.b16 %v3318
    %v3459 = vunpack.c.l.b16 %v3322
    %v3460 = vunpack.c.l.b16 %v3325
    %v3461 = vunpack.c.l.b16 %v3329
    %v3462 = vunpack.c.l.b16 %v3332
    %v3463 = vunpack.c.l.b16 %v3336
    %v3464 = vunpack.c.l.b16 %v3339
    %v3465 = vunpack.c.l.b16 %v3343
    %v3466 = vunpack.c.l.b16 %v3346
    %v3467 = vunpack.c.l.b16 %v3350
    %v3468 = vunpack.c.l.b16 %v3353
    %v3469 = vunpack.c.l.b16 %v3357
    %v3470 = vunpack.c.l.b16 %v3360
    %v3471 = vunpack.c.l.b16 %v3364
    %v3472 = vunpack.c.l.b16 %v3367
    %v3473 = vunpack.c.l.b16 %v3371
    %v3474 = vunpack.c.l.b16 %v3374
    %v3475 = vunpack.c.l.b16 %v3378
    %v3476 = vunpack.c.l.b16 %v3381
    %v3477 = vunpack.c.l.b16 %v3385
    %v3478 = vunpack.c.l.b16 %v3388
    %v3479 = vunpack.c.l.b16 %v3392
    %v3480 = vunpack.c.l.b16 %v3395
    %v3481 = vunpack.c.l.b16 %v3399
    %v3482 = vunpack.c.l.b16 %v3402
    %v3483 = vpack.c.b16 %v3420, %v3419
    %v3484 = vpack.c.b16 %v3422, %v3421
    %v3485 = vpack.c.b16 %v3424, %v3423
    %v3486 = vpack.c.b16 %v3426, %v3425
    %v3487 = vpack.c.b16 %v3428, %v3427
    %v3488 = vpack.c.b16 %v3430, %v3429
    %v3489 = vpack.c.b16 %v3432, %v3431
    %v3490 = vpack.c.b16 %v3434, %v3433
    %v3491 = vpack.c.b16 %v3436, %v3435
    %v3492 = vpack.c.b16 %v3438, %v3437
    %v3493 = vpack.c.b16 %v3440, %v3439
    %v3494 = vpack.c.b16 %v3442, %v3441
    %v3495 = vpack.c.b16 %v3444, %v3443
    %v3496 = vpack.c.b16 %v3446, %v3445
    %v3497 = vpack.c.b16 %v3448, %v3447
    %v3498 = vpack.c.b16 %v3450, %v3449
    %v3499 = vpack.c.b16 %v3452, %v3451
    %v3500 = vpack.c.b16 %v3454, %v3453
    %v3501 = vpack.c.b16 %v3456, %v3455
    %v3502 = vpack.c.b16 %v3458, %v3457
    %v3503 = vpack.c.b16 %v3460, %v3459
    %v3504 = vpack.c.b16 %v3462, %v3461
    %v3505 = vpack.c.b16 %v3464, %v3463
    %v3506 = vpack.c.b16 %v3466, %v3465
    %v3507 = vpack.c.b16 %v3468, %v3467
    %v3508 = vpack.c.b16 %v3470, %v3469
    %v3509 = vpack.c.b16 %v3472, %v3471
    %v3510 = vpack.c.b16 %v3474, %v3473
    %v3511 = vpack.c.b16 %v3476, %v3475
    %v3512 = vpack.c.b16 %v3478, %v3477
    %v3513 = vpack.c.b16 %v3480, %v3479
    %v3514 = vpack.c.b16 %v3482, %v3481
    %v3563 = vunpack.c.l.b16 %v3403
    %v3564 = vunpack.c.l.b16 %v3404
    %v3565 = vunpack.c.l.b16 %v3405
    %v3566 = vunpack.c.l.b16 %v3406
    %v3567 = vunpack.c.l.b16 %v3407
    %v3568 = vunpack.c.l.b16 %v3408
    %v3569 = vunpack.c.l.b16 %v3409
    %v3570 = vunpack.c.l.b16 %v3410
    %v3571 = vunpack.c.l.b16 %v3411
    %v3572 = vunpack.c.l.b16 %v3412
    %v3573 = vunpack.c.l.b16 %v3413
    %v3574 = vunpack.c.l.b16 %v3414
    %v3575 = vunpack.c.l.b16 %v3415
    %v3576 = vunpack.c.l.b16 %v3416
    %v3577 = vunpack.c.l.b16 %v3417
    %v3578 = vunpack.c.l.b16 %v3418
    %v3579 = vpack.c.b16 %v3564, %v3563
    %v3580 = vpack.c.b16 %v3566, %v3565
    %v3581 = vpack.c.b16 %v3568, %v3567
    %v3582 = vpack.c.b16 %v3570, %v3569
    %v3583 = vpack.c.b16 %v3572, %v3571
    %v3584 = vpack.c.b16 %v3574, %v3573
    %v3585 = vpack.c.b16 %v3576, %v3575
    %v3586 = vpack.c.b16 %v3578, %v3577
    %3595 = vmatprep.subr.bf16.mxu0 0
    %3596 = vmatpush1.bf16.msra.mxu0 %v3579
    %3597 = vmatprep.subr.bf16.mxu0 0
    %3598 = vmatpush1.bf16.msra.mxu0 %v3580
    %3599 = vmatprep.subr.bf16.mxu0 0
    %3600 = vmatpush1.bf16.msra.mxu0 %v3581
    %3601 = vmatprep.subr.bf16.mxu0 0
    %3602 = vmatpush1.bf16.msra.mxu0 %v3582
    %3603 = vmatprep.subr.bf16.mxu0 0
    %3604 = vmatpush1.bf16.msra.mxu0 %v3583
    %3605 = vmatprep.subr.bf16.mxu0 0
    %3606 = vmatpush1.bf16.msra.mxu0 %v3584
    %3607 = vmatprep.subr.bf16.mxu0 0
    %3608 = vmatpush1.bf16.msra.mxu0 %v3585
    %3609 = vmatprep.subr.bf16.mxu0 0
    %3610 = vmatpush1.bf16.msra.mxu0 %v3586
    %3611 = vmatprep.subr.bf16.mxu0 0
    %3612 = vmatpush1.bf16.msra.mxu0 0
    %3613 = vmatprep.subr.bf16.mxu0 0
    %3614 = vmatpush1.bf16.msra.mxu0 0
    %3615 = vmatprep.subr.bf16.mxu0 0
    %3616 = vmatpush1.bf16.msra.mxu0 0
    %3617 = vmatprep.subr.bf16.mxu0 0
    %3618 = vmatpush1.bf16.msra.mxu0 0
    %3619 = vmatprep.subr.bf16.mxu0 0
    %3620 = vmatpush1.bf16.msra.mxu0 0
    %3621 = vmatprep.subr.bf16.mxu0 0
    %3622 = vmatpush1.bf16.msra.mxu0 0
    %3623 = vmatprep.subr.bf16.mxu0 0
    %3624 = vmatpush1.bf16.msra.mxu0 0
    %3625 = vmatprep.subr.bf16.mxu0 0
    %3626 = vmatpush1.bf16.msra.mxu0 0
    %3627 = vmatprep.mubr.bf16.mxu0 0
    %3628 = vmatmul.mubr.bf16.gmra.mrb[0].mxu0 %v3483
    %v3629 = vpop.f32.mrb[0].mxu0
    %v3630 = vadd.f32 0.0, %v3629
    %v3631 = vpop.f32.mrb[0].mxu0
    %v3632 = vpop.f32.mrb[0].mxu0
    %v3633 = vadd.f32 0.0, %v3632
    %v3634 = vpop.f32.mrb[0].mxu0
    %3635 = vmatprep.mubr.bf16.mxu0 0
    %3636 = vmatmul.mubr.bf16.gmra.mrb[0].mxu0 %v3484
    %v3637 = vpop.f32.mrb[0].mxu0
    %v3638 = vadd.f32 0.0, %v3637
    %v3639 = vpop.f32.mrb[0].mxu0
    %v3640 = vpop.f32.mrb[0].mxu0
    %v3641 = vadd.f32 0.0, %v3640
    %v3642 = vpop.f32.mrb[0].mxu0
    %3643 = vmatprep.mubr.bf16.mxu0 0
    %3644 = vmatmul.mubr.bf16.gmra.mrb[0].mxu0 %v3485
    %v3645 = vpop.f32.mrb[0].mxu0
    %v3646 = vadd.f32 0.0, %v3645
    %v3647 = vpop.f32.mrb[0].mxu0
    %v3648 = vpop.f32.mrb[0].mxu0
    %v3649 = vadd.f32 0.0, %v3648
    %v3650 = vpop.f32.mrb[0].mxu0
    %3651 = vmatprep.mubr.bf16.mxu0 0
    %3652 = vmatmul.mubr.bf16.gmra.mrb[0].mxu0 %v3486
    %v3653 = vpop.f32.mrb[0].mxu0
    %v3654 = vadd.f32 0.0, %v3653
    %v3655 = vpop.f32.mrb[0].mxu0
    %v3656 = vpop.f32.mrb[0].mxu0
    %v3657 = vadd.f32 0.0, %v3656
    %v3658 = vpop.f32.mrb[0].mxu0
    %3659 = vmatprep.mubr.bf16.mxu0 0
    %3660 = vmatmul.mubr.bf16.gmra.mrb[0].mxu0 %v3487
    %v3661 = vpop.f32.mrb[0].mxu0
    %v3662 = vadd.f32 0.0, %v3661
    %v3663 = vpop.f32.mrb[0].mxu0
    %v3664 = vpop.f32.mrb[0].mxu0
    %v3665 = vadd.f32 0.0, %v3664
    %v3666 = vpop.f32.mrb[0].mxu0
    %3667 = vmatprep.mubr.bf16.mxu0 0
    %3668 = vmatmul.mubr.bf16.gmra.mrb[0].mxu0 %v3488
    %v3669 = vpop.f32.mrb[0].mxu0
    %v3670 = vadd.f32 0.0, %v3669
    %v3671 = vpop.f32.mrb[0].mxu0
    %v3672 = vpop.f32.mrb[0].mxu0
    %v3673 = vadd.f32 0.0, %v3672
    %v3674 = vpop.f32.mrb[0].mxu0
    %3675 = vmatprep.mubr.bf16.mxu0 0
    %3676 = vmatmul.mubr.bf16.gmra.mrb[0].mxu0 %v3489
    %v3677 = vpop.f32.mrb[0].mxu0
    %v3678 = vadd.f32 0.0, %v3677
    %v3679 = vpop.f32.mrb[0].mxu0
    %v3680 = vpop.f32.mrb[0].mxu0
    %v3681 = vadd.f32 0.0, %v3680
    %v3682 = vpop.f32.mrb[0].mxu0
    %3683 = vmatprep.mubr.bf16.mxu0 0
    %3684 = vmatmul.mubr.bf16.gmra.mrb[0].mxu0 %v3490
    %v3685 = vpop.f32.mrb[0].mxu0
    %v3686 = vadd.f32 0.0, %v3685
    %v3687 = vpop.f32.mrb[0].mxu0
    %v3688 = vpop.f32.mrb[0].mxu0
    %v3689 = vadd.f32 0.0, %v3688
    %v3690 = vpop.f32.mrb[0].mxu0
    %3691 = vmatprep.mubr.bf16.mxu0 0
    %3692 = vmatmul.mubr.bf16.gmra.mrb[0].mxu0 %v3491
    %v3693 = vpop.f32.mrb[0].mxu0
    %v3694 = vadd.f32 0.0, %v3693
    %v3695 = vpop.f32.mrb[0].mxu0
    %v3696 = vpop.f32.mrb[0].mxu0
    %v3697 = vadd.f32 0.0, %v3696
    %v3698 = vpop.f32.mrb[0].mxu0
    %3699 = vmatprep.mubr.bf16.mxu0 0
    %3700 = vmatmul.mubr.bf16.gmra.mrb[0].mxu0 %v3492
    %v3701 = vpop.f32.mrb[0].mxu0
    %v3702 = vadd.f32 0.0, %v3701
    %v3703 = vpop.f32.mrb[0].mxu0
    %v3704 = vpop.f32.mrb[0].mxu0
    %v3705 = vadd.f32 0.0, %v3704
    %v3706 = vpop.f32.mrb[0].mxu0
    %3707 = vmatprep.mubr.bf16.mxu0 0
    %3708 = vmatmul.mubr.bf16.gmra.mrb[0].mxu0 %v3493
    %v3709 = vpop.f32.mrb[0].mxu0
    %v3710 = vadd.f32 0.0, %v3709
    %v3711 = vpop.f32.mrb[0].mxu0
    %v3712 = vpop.f32.mrb[0].mxu0
    %v3713 = vadd.f32 0.0, %v3712
    %v3714 = vpop.f32.mrb[0].mxu0
    %3715 = vmatprep.mubr.bf16.mxu0 0
    %3716 = vmatmul.mubr.bf16.gmra.mrb[0].mxu0 %v3494
    %v3717 = vpop.f32.mrb[0].mxu0
    %v3718 = vadd.f32 0.0, %v3717
    %v3719 = vpop.f32.mrb[0].mxu0
    %v3720 = vpop.f32.mrb[0].mxu0
    %v3721 = vadd.f32 0.0, %v3720
    %v3722 = vpop.f32.mrb[0].mxu0
    %3723 = vmatprep.mubr.bf16.mxu0 0
    %3724 = vmatmul.mubr.bf16.gmra.mrb[0].mxu0 %v3495
    %v3725 = vpop.f32.mrb[0].mxu0
    %v3726 = vadd.f32 0.0, %v3725
    %v3727 = vpop.f32.mrb[0].mxu0
    %v3728 = vpop.f32.mrb[0].mxu0
    %v3729 = vadd.f32 0.0, %v3728
    %v3730 = vpop.f32.mrb[0].mxu0
    %3731 = vmatprep.mubr.bf16.mxu0 0
    %3732 = vmatmul.mubr.bf16.gmra.mrb[0].mxu0 %v3496
    %v3733 = vpop.f32.mrb[0].mxu0
    %v3734 = vadd.f32 0.0, %v3733
    %v3735 = vpop.f32.mrb[0].mxu0
    %v3736 = vpop.f32.mrb[0].mxu0
    %v3737 = vadd.f32 0.0, %v3736
    %v3738 = vpop.f32.mrb[0].mxu0
    %3739 = vmatprep.mubr.bf16.mxu0 0
    %3740 = vmatmul.mubr.bf16.gmra.mrb[0].mxu0 %v3497
    %v3741 = vpop.f32.mrb[0].mxu0
    %v3742 = vadd.f32 0.0, %v3741
    %v3743 = vpop.f32.mrb[0].mxu0
    %v3744 = vpop.f32.mrb[0].mxu0
    %v3745 = vadd.f32 0.0, %v3744
    %v3746 = vpop.f32.mrb[0].mxu0
    %3747 = vmatprep.mubr.bf16.mxu0 0
    %3748 = vmatmul.mubr.bf16.gmra.mrb[0].mxu0 %v3498
    %v3749 = vpop.f32.mrb[0].mxu0
    %v3750 = vadd.f32 0.0, %v3749
    %v3751 = vpop.f32.mrb[0].mxu0
    %v3752 = vpop.f32.mrb[0].mxu0
    %v3753 = vadd.f32 0.0, %v3752
    %v3754 = vpop.f32.mrb[0].mxu0
    %3755 = vmatprep.mubr.bf16.mxu0 0
    %3756 = vmatmul.mubr.bf16.gmra.mrb[0].mxu0 %v3499
    %v3757 = vpop.f32.mrb[0].mxu0
    %v3758 = vadd.f32 0.0, %v3757
    %v3759 = vpop.f32.mrb[0].mxu0
    %v3760 = vpop.f32.mrb[0].mxu0
    %v3761 = vadd.f32 0.0, %v3760
    %v3762 = vpop.f32.mrb[0].mxu0
    %3763 = vmatprep.mubr.bf16.mxu0 0
    %3764 = vmatmul.mubr.bf16.gmra.mrb[0].mxu0 %v3500
    %v3765 = vpop.f32.mrb[0].mxu0
    %v3766 = vadd.f32 0.0, %v3765
    %v3767 = vpop.f32.mrb[0].mxu0
    %v3768 = vpop.f32.mrb[0].mxu0
    %v3769 = vadd.f32 0.0, %v3768
    %v3770 = vpop.f32.mrb[0].mxu0
    %3771 = vmatprep.mubr.bf16.mxu0 0
    %3772 = vmatmul.mubr.bf16.gmra.mrb[0].mxu0 %v3501
    %v3773 = vpop.f32.mrb[0].mxu0
    %v3774 = vadd.f32 0.0, %v3773
    %v3775 = vpop.f32.mrb[0].mxu0
    %v3776 = vpop.f32.mrb[0].mxu0
    %v3777 = vadd.f32 0.0, %v3776
    %v3778 = vpop.f32.mrb[0].mxu0
    %3779 = vmatprep.mubr.bf16.mxu0 0
    %3780 = vmatmul.mubr.bf16.gmra.mrb[0].mxu0 %v3502
    %v3781 = vpop.f32.mrb[0].mxu0
    %v3782 = vadd.f32 0.0, %v3781
    %v3783 = vpop.f32.mrb[0].mxu0
    %v3784 = vpop.f32.mrb[0].mxu0
    %v3785 = vadd.f32 0.0, %v3784
    %v3786 = vpop.f32.mrb[0].mxu0
    %3787 = vmatprep.mubr.bf16.mxu0 0
    %3788 = vmatmul.mubr.bf16.gmra.mrb[0].mxu0 %v3503
    %v3789 = vpop.f32.mrb[0].mxu0
    %v3790 = vadd.f32 0.0, %v3789
    %v3791 = vpop.f32.mrb[0].mxu0
    %v3792 = vpop.f32.mrb[0].mxu0
    %v3793 = vadd.f32 0.0, %v3792
    %v3794 = vpop.f32.mrb[0].mxu0
    %3795 = vmatprep.mubr.bf16.mxu0 0
    %3796 = vmatmul.mubr.bf16.gmra.mrb[0].mxu0 %v3504
    %v3797 = vpop.f32.mrb[0].mxu0
    %v3798 = vadd.f32 0.0, %v3797
    %v3799 = vpop.f32.mrb[0].mxu0
    %v3800 = vpop.f32.mrb[0].mxu0
    %v3801 = vadd.f32 0.0, %v3800
    %v3802 = vpop.f32.mrb[0].mxu0
    %3803 = vmatprep.mubr.bf16.mxu0 0
    %3804 = vmatmul.mubr.bf16.gmra.mrb[0].mxu0 %v3505
    %v3805 = vpop.f32.mrb[0].mxu0
    %v3806 = vadd.f32 0.0, %v3805
    %v3807 = vpop.f32.mrb[0].mxu0
    %v3808 = vpop.f32.mrb[0].mxu0
    %v3809 = vadd.f32 0.0, %v3808
    %v3810 = vpop.f32.mrb[0].mxu0
    %3811 = vmatprep.mubr.bf16.mxu0 0
    %3812 = vmatmul.mubr.bf16.gmra.mrb[0].mxu0 %v3506
    %v3813 = vpop.f32.mrb[0].mxu0
    %v3814 = vadd.f32 0.0, %v3813
    %v3815 = vpop.f32.mrb[0].mxu0
    %v3816 = vpop.f32.mrb[0].mxu0
    %v3817 = vadd.f32 0.0, %v3816
    %v3818 = vpop.f32.mrb[0].mxu0
    %3819 = vmatprep.mubr.bf16.mxu0 0
    %3820 = vmatmul.mubr.bf16.gmra.mrb[0].mxu0 %v3507
    %v3821 = vpop.f32.mrb[0].mxu0
    %v3822 = vadd.f32 0.0, %v3821
    %v3823 = vpop.f32.mrb[0].mxu0
    %v3824 = vpop.f32.mrb[0].mxu0
    %v3825 = vadd.f32 0.0, %v3824
    %v3826 = vpop.f32.mrb[0].mxu0
    %3827 = vmatprep.mubr.bf16.mxu0 0
    %3828 = vmatmul.mubr.bf16.gmra.mrb[0].mxu0 %v3508
    %v3829 = vpop.f32.mrb[0].mxu0
    %v3830 = vadd.f32 0.0, %v3829
    %v3831 = vpop.f32.mrb[0].mxu0
    %v3832 = vpop.f32.mrb[0].mxu0
    %v3833 = vadd.f32 0.0, %v3832
    %v3834 = vpop.f32.mrb[0].mxu0
    %3835 = vmatprep.mubr.bf16.mxu0 0
    %3836 = vmatmul.mubr.bf16.gmra.mrb[0].mxu0 %v3509
    %v3837 = vpop.f32.mrb[0].mxu0
    %v3838 = vadd.f32 0.0, %v3837
    %v3839 = vpop.f32.mrb[0].mxu0
    %v3840 = vpop.f32.mrb[0].mxu0
    %v3841 = vadd.f32 0.0, %v3840
    %v3842 = vpop.f32.mrb[0].mxu0
    %3843 = vmatprep.mubr.bf16.mxu0 0
    %3844 = vmatmul.mubr.bf16.gmra.mrb[0].mxu0 %v3510
    %v3845 = vpop.f32.mrb[0].mxu0
    %v3846 = vadd.f32 0.0, %v3845
    %v3847 = vpop.f32.mrb[0].mxu0
    %v3848 = vpop.f32.mrb[0].mxu0
    %v3849 = vadd.f32 0.0, %v3848
    %v3850 = vpop.f32.mrb[0].mxu0
    %3851 = vmatprep.mubr.bf16.mxu0 0
    %3852 = vmatmul.mubr.bf16.gmra.mrb[0].mxu0 %v3511
    %v3853 = vpop.f32.mrb[0].mxu0
    %v3854 = vadd.f32 0.0, %v3853
    %v3855 = vpop.f32.mrb[0].mxu0
    %v3856 = vpop.f32.mrb[0].mxu0
    %v3857 = vadd.f32 0.0, %v3856
    %v3858 = vpop.f32.mrb[0].mxu0
    %3859 = vmatprep.mubr.bf16.mxu0 0
    %3860 = vmatmul.mubr.bf16.gmra.mrb[0].mxu0 %v3512
    %v3861 = vpop.f32.mrb[0].mxu0
    %v3862 = vadd.f32 0.0, %v3861
    %v3863 = vpop.f32.mrb[0].mxu0
    %v3864 = vpop.f32.mrb[0].mxu0
    %v3865 = vadd.f32 0.0, %v3864
    %v3866 = vpop.f32.mrb[0].mxu0
    %3867 = vmatprep.mubr.bf16.mxu0 0
    %3868 = vmatmul.mubr.bf16.gmra.mrb[0].mxu0 %v3513
    %v3869 = vpop.f32.mrb[0].mxu0
    %v3870 = vadd.f32 0.0, %v3869
    %v3871 = vpop.f32.mrb[0].mxu0
    %v3872 = vpop.f32.mrb[0].mxu0
    %v3873 = vadd.f32 0.0, %v3872
    %v3874 = vpop.f32.mrb[0].mxu0
    %3875 = vmatprep.mubr.bf16.mxu0 0
    %3876 = vmatmul.mubr.bf16.gmra.mrb[0].mxu0 %v3514
    %v3877 = vpop.f32.mrb[0].mxu0
    %v3878 = vadd.f32 0.0, %v3877
    %v3879 = vpop.f32.mrb[0].mxu0
    %v3880 = vpop.f32.mrb[0].mxu0
    %v3881 = vadd.f32 0.0, %v3880
    %v3882 = vpop.f32.mrb[0].mxu0
    %3883 = vdwg.mxu0
    %v3884 = vadd.f32 %v2826, %v3630
    %v3885 = vadd.f32 %v2829, %v3633
    %v3886 = vadd.f32 %v2834, %v3638
    %v3887 = vadd.f32 %v2837, %v3641
    %v3888 = vadd.f32 %v2842, %v3646
    %v3889 = vadd.f32 %v2845, %v3649
    %v3890 = vadd.f32 %v2850, %v3654
    %v3891 = vadd.f32 %v2853, %v3657
    %v3892 = vadd.f32 %v2858, %v3662
    %v3893 = vadd.f32 %v2861, %v3665
    %v3894 = vadd.f32 %v2866, %v3670
    %v3895 = vadd.f32 %v2869, %v3673
    %v3896 = vadd.f32 %v2874, %v3678
    %v3897 = vadd.f32 %v2877, %v3681
    %v3898 = vadd.f32 %v2882, %v3686
    %v3899 = vadd.f32 %v2885, %v3689
    %v3900 = vadd.f32 %v2890, %v3694
    %v3901 = vadd.f32 %v2893, %v3697
    %v3902 = vadd.f32 %v2898, %v3702
    %v3903 = vadd.f32 %v2901, %v3705
    %v3904 = vadd.f32 %v2906, %v3710
    %v3905 = vadd.f32 %v2909, %v3713
    %v3906 = vadd.f32 %v2914, %v3718
    %v3907 = vadd.f32 %v2917, %v3721
    %v3908 = vadd.f32 %v2922, %v3726
    %v3909 = vadd.f32 %v2925, %v3729
    %v3910 = vadd.f32 %v2930, %v3734
    %v3911 = vadd.f32 %v2933, %v3737
    %v3912 = vadd.f32 %v2938, %v3742
    %v3913 = vadd.f32 %v2941, %v3745
    %v3914 = vadd.f32 %v2946, %v3750
    %v3915 = vadd.f32 %v2949, %v3753
    %v3916 = vadd.f32 %v2954, %v3758
    %v3917 = vadd.f32 %v2957, %v3761
    %v3918 = vadd.f32 %v2962, %v3766
    %v3919 = vadd.f32 %v2965, %v3769
    %v3920 = vadd.f32 %v2970, %v3774
    %v3921 = vadd.f32 %v2973, %v3777
    %v3922 = vadd.f32 %v2978, %v3782
    %v3923 = vadd.f32 %v2981, %v3785
    %v3924 = vadd.f32 %v2986, %v3790
    %v3925 = vadd.f32 %v2989, %v3793
    %v3926 = vadd.f32 %v2994, %v3798
    %v3927 = vadd.f32 %v2997, %v3801
    %v3928 = vadd.f32 %v3002, %v3806
    %v3929 = vadd.f32 %v3005, %v3809
    %v3930 = vadd.f32 %v3010, %v3814
    %v3931 = vadd.f32 %v3013, %v3817
    %v3932 = vadd.f32 %v3018, %v3822
    %v3933 = vadd.f32 %v3021, %v3825
    %v3934 = vadd.f32 %v3026, %v3830
    %v3935 = vadd.f32 %v3029, %v3833
    %v3936 = vadd.f32 %v3034, %v3838
    %v3937 = vadd.f32 %v3037, %v3841
    %v3938 = vadd.f32 %v3042, %v3846
    %v3939 = vadd.f32 %v3045, %v3849
    %v3940 = vadd.f32 %v3050, %v3854
    %v3941 = vadd.f32 %v3053, %v3857
    %v3942 = vadd.f32 %v3058, %v3862
    %v3943 = vadd.f32 %v3061, %v3865
    %v3944 = vadd.f32 %v3066, %v3870
    %v3945 = vadd.f32 %v3069, %v3873
    %v3946 = vadd.f32 %v3074, %v3878
    %v3947 = vadd.f32 %v3077, %v3881
    %v3948 = vld [vmem:[%s121] sm:$0xf]
    %v3949 = vld [vmem:[%s121 + $0x4] sm:$0xf]
    %v3950 = vld [vmem:[%s121 + $0xc] sm:$0xf]
    %v3951 = vld [vmem:[%s121 + $0x10] sm:$0xf]
    %v3952 = vld [vmem:[%s121 + $0x18] sm:$0xf]
    %v3953 = vld [vmem:[%s121 + $0x1c] sm:$0xf]
    %v3954 = vld [vmem:[%s121 + $0x24] sm:$0xf]
    %v3955 = vld [vmem:[%s121 + $0x28] sm:$0xf]
    %v3956 = vld [vmem:[%s121 + $0x30] sm:$0xf]
    %v3957 = vld [vmem:[%s121 + $0x34] sm:$0xf]
    %v3958 = vld [vmem:[%s121 + $0x3c] sm:$0xf]
    %v3959 = vld [vmem:[%s121 + $0x40] sm:$0xf]
    %v3960 = vld [vmem:[%s121 + $0x48] sm:$0xf]
    %v3961 = vld [vmem:[%s121 + $0x4c] sm:$0xf]
    %v3962 = vld [vmem:[%s121 + $0x54] sm:$0xf]
    %v3963 = vld [vmem:[%s121 + $0x58] sm:$0xf]
    %v3964 = vld [vmem:[%s121 + $0x60] sm:$0xf]
    %v3965 = vld [vmem:[%s121 + $0x64] sm:$0xf]
    %v3966 = vld [vmem:[%s121 + $0x6c] sm:$0xf]
    %v3967 = vld [vmem:[%s121 + $0x70] sm:$0xf]
    %v3968 = vld [vmem:[%s121 + $0x78] sm:$0xf]
    %v3969 = vld [vmem:[%s121 + $0x7c] sm:$0xf]
    %v3970 = vld [vmem:[%s121 + $0x84] sm:$0xf]
    %v3971 = vld [vmem:[%s121 + $0x88] sm:$0xf]
    %v3972 = vld [vmem:[%s121 + $0x90] sm:$0xf]
    %v3973 = vld [vmem:[%s121 + $0x94] sm:$0xf]
    %v3974 = vld [vmem:[%s121 + $0x9c] sm:$0xf]
    %v3975 = vld [vmem:[%s121 + $0xa0] sm:$0xf]
    %v3976 = vld [vmem:[%s121 + $0xa8] sm:$0xf]
    %v3977 = vld [vmem:[%s121 + $0xac] sm:$0xf]
    %v3978 = vld [vmem:[%s121 + $0xb4] sm:$0xf]
    %v3979 = vld [vmem:[%s121 + $0xb8] sm:$0xf]
    %v3980 = vld [vmem:[%s121 + $0xd8] sm:$0xf]
    %v3981 = vld [vmem:[%s121 + $0xdc] sm:$0xf]
    %v3982 = vld [vmem:[%s121 + $0xe4] sm:$0xf]
    %v3983 = vld [vmem:[%s121 + $0xe8] sm:$0xf]
    %v3984 = vld [vmem:[%s121 + $0xf0] sm:$0xf]
    %v3985 = vld [vmem:[%s121 + $0xf4] sm:$0xf]
    %v3986 = vld [vmem:[%s121 + $0xfc] sm:$0xf]
    %v3987 = vld [vmem:[%s121 + $0x100] sm:$0xf]
    %v3988 = vld [vmem:[%s121 + $0x108] sm:$0xf]
    %v3989 = vld [vmem:[%s121 + $0x10c] sm:$0xf]
    %v3990 = vld [vmem:[%s121 + $0x114] sm:$0xf]
    %v3991 = vld [vmem:[%s121 + $0x118] sm:$0xf]
    %v3992 = vld [vmem:[%s121 + $0x120] sm:$0xf]
    %v3993 = vld [vmem:[%s121 + $0x124] sm:$0xf]
    %v3994 = vld [vmem:[%s121 + $0x12c] sm:$0xf]
    %v3995 = vld [vmem:[%s121 + $0x130] sm:$0xf]
    %v3996 = vld [vmem:[%s121 + $0x138] sm:$0xf]
    %v3997 = vld [vmem:[%s121 + $0x13c] sm:$0xf]
    %v3998 = vld [vmem:[%s121 + $0x144] sm:$0xf]
    %v3999 = vld [vmem:[%s121 + $0x148] sm:$0xf]
    %v4000 = vld [vmem:[%s121 + $0x150] sm:$0xf]
    %v4001 = vld [vmem:[%s121 + $0x154] sm:$0xf]
    %v4002 = vld [vmem:[%s121 + $0x15c] sm:$0xf]
    %v4003 = vld [vmem:[%s121 + $0x160] sm:$0xf]
    %v4004 = vld [vmem:[%s121 + $0x168] sm:$0xf]
    %v4005 = vld [vmem:[%s121 + $0x16c] sm:$0xf]
    %v4006 = vld [vmem:[%s121 + $0x174] sm:$0xf]
    %v4007 = vld [vmem:[%s121 + $0x178] sm:$0xf]
    %v4008 = vld [vmem:[%s121 + $0x180] sm:$0xf]
    %v4009 = vld [vmem:[%s121 + $0x184] sm:$0xf]
    %v4010 = vld [vmem:[%s121 + $0x18c] sm:$0xf]
    %v4011 = vld [vmem:[%s121 + $0x190] sm:$0xf]
    %v4012 = vld [vmem:[#allocation6 + $0xc0] sm:$0xf]
    %v4013 = vld [vmem:[#allocation6 + $0xc4] sm:$0xf]
    %v4014 = vld [vmem:[#allocation6 + $0xc8] sm:$0xf]
    %v4015 = vld [vmem:[#allocation6 + $0xcc] sm:$0xf]
    %v4016 = vld [vmem:[#allocation6 + $0xd0] sm:$0xf]
    %v4017 = vld [vmem:[#allocation6 + $0xd4] sm:$0xf]
    %v4018 = vld [vmem:[#allocation6 + $0xd8] sm:$0xf]
    %v4019 = vld [vmem:[#allocation6 + $0xdc] sm:$0xf]
    %v4020 = vld [vmem:[#allocation6 + $0xe0] sm:$0xf]
    %v4021 = vld [vmem:[#allocation6 + $0xe4] sm:$0xf]
    %v4022 = vld [vmem:[#allocation6 + $0xe8] sm:$0xf]
    %v4023 = vld [vmem:[#allocation6 + $0xec] sm:$0xf]
    %v4024 = vld [vmem:[#allocation6 + $0xf0] sm:$0xf]
    %v4025 = vld [vmem:[#allocation6 + $0xf4] sm:$0xf]
    %v4026 = vld [vmem:[#allocation6 + $0xf8] sm:$0xf]
    %v4027 = vld [vmem:[#allocation6 + $0xfc] sm:$0xf]
    %v4092 = vunpack.c.l.b16 %v3948
    %v4093 = vunpack.c.l.b16 %v3949
    %v4094 = vunpack.c.l.b16 %v3950
    %v4095 = vunpack.c.l.b16 %v3951
    %v4096 = vunpack.c.l.b16 %v3952
    %v4097 = vunpack.c.l.b16 %v3953
    %v4098 = vunpack.c.l.b16 %v3954
    %v4099 = vunpack.c.l.b16 %v3955
    %v4100 = vunpack.c.l.b16 %v3956
    %v4101 = vunpack.c.l.b16 %v3957
    %v4102 = vunpack.c.l.b16 %v3958
    %v4103 = vunpack.c.l.b16 %v3959
    %v4104 = vunpack.c.l.b16 %v3960
    %v4105 = vunpack.c.l.b16 %v3961
    %v4106 = vunpack.c.l.b16 %v3962
    %v4107 = vunpack.c.l.b16 %v3963
    %v4108 = vunpack.c.l.b16 %v3964
    %v4109 = vunpack.c.l.b16 %v3965
    %v4110 = vunpack.c.l.b16 %v3966
    %v4111 = vunpack.c.l.b16 %v3967
    %v4112 = vunpack.c.l.b16 %v3968
    %v4113 = vunpack.c.l.b16 %v3969
    %v4114 = vunpack.c.l.b16 %v3970
    %v4115 = vunpack.c.l.b16 %v3971
    %v4116 = vunpack.c.l.b16 %v3972
    %v4117 = vunpack.c.l.b16 %v3973
    %v4118 = vunpack.c.l.b16 %v3974
    %v4119 = vunpack.c.l.b16 %v3975
    %v4120 = vunpack.c.l.b16 %v3976
    %v4121 = vunpack.c.l.b16 %v3977
    %v4122 = vunpack.c.l.b16 %v3978
    %v4123 = vunpack.c.l.b16 %v3979
    %v4124 = vunpack.c.l.b16 %v3980
    %v4125 = vunpack.c.l.b16 %v3981
    %v4126 = vunpack.c.l.b16 %v3982
    %v4127 = vunpack.c.l.b16 %v3983
    %v4128 = vunpack.c.l.b16 %v3984
    %v4129 = vunpack.c.l.b16 %v3985
    %v4130 = vunpack.c.l.b16 %v3986
    %v4131 = vunpack.c.l.b16 %v3987
    %v4132 = vunpack.c.l.b16 %v3988
    %v4133 = vunpack.c.l.b16 %v3989
    %v4134 = vunpack.c.l.b16 %v3990
    %v4135 = vunpack.c.l.b16 %v3991
    %v4136 = vunpack.c.l.b16 %v3992
    %v4137 = vunpack.c.l.b16 %v3993
    %v4138 = vunpack.c.l.b16 %v3994
    %v4139 = vunpack.c.l.b16 %v3995
    %v4140 = vunpack.c.l.b16 %v3996
    %v4141 = vunpack.c.l.b16 %v3997
    %v4142 = vunpack.c.l.b16 %v3998
    %v4143 = vunpack.c.l.b16 %v3999
    %v4144 = vunpack.c.l.b16 %v4000
    %v4145 = vunpack.c.l.b16 %v4001
    %v4146 = vunpack.c.l.b16 %v4002
    %v4147 = vunpack.c.l.b16 %v4003
    %v4148 = vunpack.c.l.b16 %v4004
    %v4149 = vunpack.c.l.b16 %v4005
    %v4150 = vunpack.c.l.b16 %v4006
    %v4151 = vunpack.c.l.b16 %v4007
    %v4152 = vunpack.c.l.b16 %v4008
    %v4153 = vunpack.c.l.b16 %v4009
    %v4154 = vunpack.c.l.b16 %v4010
    %v4155 = vunpack.c.l.b16 %v4011
    %v4156 = vpack.c.b16 %v4093, %v4092
    %v4157 = vpack.c.b16 %v4095, %v4094
    %v4158 = vpack.c.b16 %v4097, %v4096
    %v4159 = vpack.c.b16 %v4099, %v4098
    %v4160 = vpack.c.b16 %v4101, %v4100
    %v4161 = vpack.c.b16 %v4103, %v4102
    %v4162 = vpack.c.b16 %v4105, %v4104
    %v4163 = vpack.c.b16 %v4107, %v4106
    %v4164 = vpack.c.b16 %v4109, %v4108
    %v4165 = vpack.c.b16 %v4111, %v4110
    %v4166 = vpack.c.b16 %v4113, %v4112
    %v4167 = vpack.c.b16 %v4115, %v4114
    %v4168 = vpack.c.b16 %v4117, %v4116
    %v4169 = vpack.c.b16 %v4119, %v4118
    %v4170 = vpack.c.b16 %v4121, %v4120
    %v4171 = vpack.c.b16 %v4123, %v4122
    %v4172 = vpack.c.b16 %v4125, %v4124
    %v4173 = vpack.c.b16 %v4127, %v4126
    %v4174 = vpack.c.b16 %v4129, %v4128
    %v4175 = vpack.c.b16 %v4131, %v4130
    %v4176 = vpack.c.b16 %v4133, %v4132
    %v4177 = vpack.c.b16 %v4135, %v4134
    %v4178 = vpack.c.b16 %v4137, %v4136
    %v4179 = vpack.c.b16 %v4139, %v4138
    %v4180 = vpack.c.b16 %v4141, %v4140
    %v4181 = vpack.c.b16 %v4143, %v4142
    %v4182 = vpack.c.b16 %v4145, %v4144
    %v4183 = vpack.c.b16 %v4147, %v4146
    %v4184 = vpack.c.b16 %v4149, %v4148
    %v4185 = vpack.c.b16 %v4151, %v4150
    %v4186 = vpack.c.b16 %v4153, %v4152
    %v4187 = vpack.c.b16 %v4155, %v4154
    %v4236 = vunpack.c.l.b16 %v4012
    %v4237 = vunpack.c.l.b16 %v4013
    %v4238 = vunpack.c.l.b16 %v4014
    %v4239 = vunpack.c.l.b16 %v4015
    %v4240 = vunpack.c.l.b16 %v4016
    %v4241 = vunpack.c.l.b16 %v4017
    %v4242 = vunpack.c.l.b16 %v4018
    %v4243 = vunpack.c.l.b16 %v4019
    %v4244 = vunpack.c.l.b16 %v4020
    %v4245 = vunpack.c.l.b16 %v4021
    %v4246 = vunpack.c.l.b16 %v4022
    %v4247 = vunpack.c.l.b16 %v4023
    %v4248 = vunpack.c.l.b16 %v4024
    %v4249 = vunpack.c.l.b16 %v4025
    %v4250 = vunpack.c.l.b16 %v4026
    %v4251 = vunpack.c.l.b16 %v4027
    %v4252 = vpack.c.b16 %v4237, %v4236
    %v4253 = vpack.c.b16 %v4239, %v4238
    %v4254 = vpack.c.b16 %v4241, %v4240
    %v4255 = vpack.c.b16 %v4243, %v4242
    %v4256 = vpack.c.b16 %v4245, %v4244
    %v4257 = vpack.c.b16 %v4247, %v4246
    %v4258 = vpack.c.b16 %v4249, %v4248
    %v4259 = vpack.c.b16 %v4251, %v4250
    %4268 = vmatprep.subr.bf16.mxu0 0
    %4269 = vmatpush1.bf16.msra.mxu0 %v4252
    %4270 = vmatprep.subr.bf16.mxu0 0
    %4271 = vmatpush1.bf16.msra.mxu0 %v4253
    %4272 = vmatprep.subr.bf16.mxu0 0
    %4273 = vmatpush1.bf16.msra.mxu0 %v4254
    %4274 = vmatprep.subr.bf16.mxu0 0
    %4275 = vmatpush1.bf16.msra.mxu0 %v4255
    %4276 = vmatprep.subr.bf16.mxu0 0
    %4277 = vmatpush1.bf16.msra.mxu0 %v4256
    %4278 = vmatprep.subr.bf16.mxu0 0
    %4279 = vmatpush1.bf16.msra.mxu0 %v4257
    %4280 = vmatprep.subr.bf16.mxu0 0
    %4281 = vmatpush1.bf16.msra.mxu0 %v4258
    %4282 = vmatprep.subr.bf16.mxu0 0
    %4283 = vmatpush1.bf16.msra.mxu0 %v4259
    %4284 = vmatprep.subr.bf16.mxu0 0
    %4285 = vmatpush1.bf16.msra.mxu0 0
    %4286 = vmatprep.subr.bf16.mxu0 0
    %4287 = vmatpush1.bf16.msra.mxu0 0
    %4288 = vmatprep.subr.bf16.mxu0 0
    %4289 = vmatpush1.bf16.msra.mxu0 0
    %4290 = vmatprep.subr.bf16.mxu0 0
    %4291 = vmatpush1.bf16.msra.mxu0 0
    %4292 = vmatprep.subr.bf16.mxu0 0
    %4293 = vmatpush1.bf16.msra.mxu0 0
    %4294 = vmatprep.subr.bf16.mxu0 0
    %4295 = vmatpush1.bf16.msra.mxu0 0
    %4296 = vmatprep.subr.bf16.mxu0 0
    %4297 = vmatpush1.bf16.msra.mxu0 0
    %4298 = vmatprep.subr.bf16.mxu0 0
    %4299 = vmatpush1.bf16.msra.mxu0 0
    %4300 = vmatprep.mubr.bf16.mxu0 0
    %4301 = vmatmul.mubr.bf16.gmra.mrb[0].mxu0 %v4156
    %v4302 = vpop.f32.mrb[0].mxu0
    %v4303 = vadd.f32 0.0, %v4302
    %v4304 = vpop.f32.mrb[0].mxu0
    %v4305 = vpop.f32.mrb[0].mxu0
    %v4306 = vadd.f32 0.0, %v4305
    %v4307 = vpop.f32.mrb[0].mxu0
    %4308 = vmatprep.mubr.bf16.mxu0 0
    %4309 = vmatmul.mubr.bf16.gmra.mrb[0].mxu0 %v4157
    %v4310 = vpop.f32.mrb[0].mxu0
    %v4311 = vadd.f32 0.0, %v4310
    %v4312 = vpop.f32.mrb[0].mxu0
    %v4313 = vpop.f32.mrb[0].mxu0
    %v4314 = vadd.f32 0.0, %v4313
    %v4315 = vpop.f32.mrb[0].mxu0
    %4316 = vmatprep.mubr.bf16.mxu0 0
    %4317 = vmatmul.mubr.bf16.gmra.mrb[0].mxu0 %v4158
    %v4318 = vpop.f32.mrb[0].mxu0
    %v4319 = vadd.f32 0.0, %v4318
    %v4320 = vpop.f32.mrb[0].mxu0
    %v4321 = vpop.f32.mrb[0].mxu0
    %v4322 = vadd.f32 0.0, %v4321
    %v4323 = vpop.f32.mrb[0].mxu0
    %4324 = vmatprep.mubr.bf16.mxu0 0
    %4325 = vmatmul.mubr.bf16.gmra.mrb[0].mxu0 %v4159
    %v4326 = vpop.f32.mrb[0].mxu0
    %v4327 = vadd.f32 0.0, %v4326
    %v4328 = vpop.f32.mrb[0].mxu0
    %v4329 = vpop.f32.mrb[0].mxu0
    %v4330 = vadd.f32 0.0, %v4329
    %v4331 = vpop.f32.mrb[0].mxu0
    %4332 = vmatprep.mubr.bf16.mxu0 0
    %4333 = vmatmul.mubr.bf16.gmra.mrb[0].mxu0 %v4160
    %v4334 = vpop.f32.mrb[0].mxu0
    %v4335 = vadd.f32 0.0, %v4334
    %v4336 = vpop.f32.mrb[0].mxu0
    %v4337 = vpop.f32.mrb[0].mxu0
    %v4338 = vadd.f32 0.0, %v4337
    %v4339 = vpop.f32.mrb[0].mxu0
    %4340 = vmatprep.mubr.bf16.mxu0 0
    %4341 = vmatmul.mubr.bf16.gmra.mrb[0].mxu0 %v4161
    %v4342 = vpop.f32.mrb[0].mxu0
    %v4343 = vadd.f32 0.0, %v4342
    %v4344 = vpop.f32.mrb[0].mxu0
    %v4345 = vpop.f32.mrb[0].mxu0
    %v4346 = vadd.f32 0.0, %v4345
    %v4347 = vpop.f32.mrb[0].mxu0
    %4348 = vmatprep.mubr.bf16.mxu0 0
    %4349 = vmatmul.mubr.bf16.gmra.mrb[0].mxu0 %v4162
    %v4350 = vpop.f32.mrb[0].mxu0
    %v4351 = vadd.f32 0.0, %v4350
    %v4352 = vpop.f32.mrb[0].mxu0
    %v4353 = vpop.f32.mrb[0].mxu0
    %v4354 = vadd.f32 0.0, %v4353
    %v4355 = vpop.f32.mrb[0].mxu0
    %4356 = vmatprep.mubr.bf16.mxu0 0
    %4357 = vmatmul.mubr.bf16.gmra.mrb[0].mxu0 %v4163
    %v4358 = vpop.f32.mrb[0].mxu0
    %v4359 = vadd.f32 0.0, %v4358
    %v4360 = vpop.f32.mrb[0].mxu0
    %v4361 = vpop.f32.mrb[0].mxu0
    %v4362 = vadd.f32 0.0, %v4361
    %v4363 = vpop.f32.mrb[0].mxu0
    %4364 = vmatprep.mubr.bf16.mxu0 0
    %4365 = vmatmul.mubr.bf16.gmra.mrb[0].mxu0 %v4164
    %v4366 = vpop.f32.mrb[0].mxu0
    %v4367 = vadd.f32 0.0, %v4366
    %v4368 = vpop.f32.mrb[0].mxu0
    %v4369 = vpop.f32.mrb[0].mxu0
    %v4370 = vadd.f32 0.0, %v4369
    %v4371 = vpop.f32.mrb[0].mxu0
    %4372 = vmatprep.mubr.bf16.mxu0 0
    %4373 = vmatmul.mubr.bf16.gmra.mrb[0].mxu0 %v4165
    %v4374 = vpop.f32.mrb[0].mxu0
    %v4375 = vadd.f32 0.0, %v4374
    %v4376 = vpop.f32.mrb[0].mxu0
    %v4377 = vpop.f32.mrb[0].mxu0
    %v4378 = vadd.f32 0.0, %v4377
    %v4379 = vpop.f32.mrb[0].mxu0
    %4380 = vmatprep.mubr.bf16.mxu0 0
    %4381 = vmatmul.mubr.bf16.gmra.mrb[0].mxu0 %v4166
    %v4382 = vpop.f32.mrb[0].mxu0
    %v4383 = vadd.f32 0.0, %v4382
    %v4384 = vpop.f32.mrb[0].mxu0
    %v4385 = vpop.f32.mrb[0].mxu0
    %v4386 = vadd.f32 0.0, %v4385
    %v4387 = vpop.f32.mrb[0].mxu0
    %4388 = vmatprep.mubr.bf16.mxu0 0
    %4389 = vmatmul.mubr.bf16.gmra.mrb[0].mxu0 %v4167
    %v4390 = vpop.f32.mrb[0].mxu0
    %v4391 = vadd.f32 0.0, %v4390
    %v4392 = vpop.f32.mrb[0].mxu0
    %v4393 = vpop.f32.mrb[0].mxu0
    %v4394 = vadd.f32 0.0, %v4393
    %v4395 = vpop.f32.mrb[0].mxu0
    %4396 = vmatprep.mubr.bf16.mxu0 0
    %4397 = vmatmul.mubr.bf16.gmra.mrb[0].mxu0 %v4168
    %v4398 = vpop.f32.mrb[0].mxu0
    %v4399 = vadd.f32 0.0, %v4398
    %v4400 = vpop.f32.mrb[0].mxu0
    %v4401 = vpop.f32.mrb[0].mxu0
    %v4402 = vadd.f32 0.0, %v4401
    %v4403 = vpop.f32.mrb[0].mxu0
    %4404 = vmatprep.mubr.bf16.mxu0 0
    %4405 = vmatmul.mubr.bf16.gmra.mrb[0].mxu0 %v4169
    %v4406 = vpop.f32.mrb[0].mxu0
    %v4407 = vadd.f32 0.0, %v4406
    %v4408 = vpop.f32.mrb[0].mxu0
    %v4409 = vpop.f32.mrb[0].mxu0
    %v4410 = vadd.f32 0.0, %v4409
    %v4411 = vpop.f32.mrb[0].mxu0
    %4412 = vmatprep.mubr.bf16.mxu0 0
    %4413 = vmatmul.mubr.bf16.gmra.mrb[0].mxu0 %v4170
    %v4414 = vpop.f32.mrb[0].mxu0
    %v4415 = vadd.f32 0.0, %v4414
    %v4416 = vpop.f32.mrb[0].mxu0
    %v4417 = vpop.f32.mrb[0].mxu0
    %v4418 = vadd.f32 0.0, %v4417
    %v4419 = vpop.f32.mrb[0].mxu0
    %4420 = vmatprep.mubr.bf16.mxu0 0
    %4421 = vmatmul.mubr.bf16.gmra.mrb[0].mxu0 %v4171
    %v4422 = vpop.f32.mrb[0].mxu0
    %v4423 = vadd.f32 0.0, %v4422
    %v4424 = vpop.f32.mrb[0].mxu0
    %v4425 = vpop.f32.mrb[0].mxu0
    %v4426 = vadd.f32 0.0, %v4425
    %v4427 = vpop.f32.mrb[0].mxu0
    %4428 = vmatprep.mubr.bf16.mxu0 0
    %4429 = vmatmul.mubr.bf16.gmra.mrb[0].mxu0 %v4172
    %v4430 = vpop.f32.mrb[0].mxu0
    %v4431 = vadd.f32 0.0, %v4430
    %v4432 = vpop.f32.mrb[0].mxu0
    %v4433 = vpop.f32.mrb[0].mxu0
    %v4434 = vadd.f32 0.0, %v4433
    %v4435 = vpop.f32.mrb[0].mxu0
    %4436 = vmatprep.mubr.bf16.mxu0 0
    %4437 = vmatmul.mubr.bf16.gmra.mrb[0].mxu0 %v4173
    %v4438 = vpop.f32.mrb[0].mxu0
    %v4439 = vadd.f32 0.0, %v4438
    %v4440 = vpop.f32.mrb[0].mxu0
    %v4441 = vpop.f32.mrb[0].mxu0
    %v4442 = vadd.f32 0.0, %v4441
    %v4443 = vpop.f32.mrb[0].mxu0
    %4444 = vmatprep.mubr.bf16.mxu0 0
    %4445 = vmatmul.mubr.bf16.gmra.mrb[0].mxu0 %v4174
    %v4446 = vpop.f32.mrb[0].mxu0
    %v4447 = vadd.f32 0.0, %v4446
    %v4448 = vpop.f32.mrb[0].mxu0
    %v4449 = vpop.f32.mrb[0].mxu0
    %v4450 = vadd.f32 0.0, %v4449
    %v4451 = vpop.f32.mrb[0].mxu0
    %4452 = vmatprep.mubr.bf16.mxu0 0
    %4453 = vmatmul.mubr.bf16.gmra.mrb[0].mxu0 %v4175
    %v4454 = vpop.f32.mrb[0].mxu0
    %v4455 = vadd.f32 0.0, %v4454
    %v4456 = vpop.f32.mrb[0].mxu0
    %v4457 = vpop.f32.mrb[0].mxu0
    %v4458 = vadd.f32 0.0, %v4457
    %v4459 = vpop.f32.mrb[0].mxu0
    %4460 = vmatprep.mubr.bf16.mxu0 0
    %4461 = vmatmul.mubr.bf16.gmra.mrb[0].mxu0 %v4176
    %v4462 = vpop.f32.mrb[0].mxu0
    %v4463 = vadd.f32 0.0, %v4462
    %v4464 = vpop.f32.mrb[0].mxu0
    %v4465 = vpop.f32.mrb[0].mxu0
    %v4466 = vadd.f32 0.0, %v4465
    %v4467 = vpop.f32.mrb[0].mxu0
    %4468 = vmatprep.mubr.bf16.mxu0 0
    %4469 = vmatmul.mubr.bf16.gmra.mrb[0].mxu0 %v4177
    %v4470 = vpop.f32.mrb[0].mxu0
    %v4471 = vadd.f32 0.0, %v4470
    %v4472 = vpop.f32.mrb[0].mxu0
    %v4473 = vpop.f32.mrb[0].mxu0
    %v4474 = vadd.f32 0.0, %v4473
    %v4475 = vpop.f32.mrb[0].mxu0
    %4476 = vmatprep.mubr.bf16.mxu0 0
    %4477 = vmatmul.mubr.bf16.gmra.mrb[0].mxu0 %v4178
    %v4478 = vpop.f32.mrb[0].mxu0
    %v4479 = vadd.f32 0.0, %v4478
    %v4480 = vpop.f32.mrb[0].mxu0
    %v4481 = vpop.f32.mrb[0].mxu0
    %v4482 = vadd.f32 0.0, %v4481
    %v4483 = vpop.f32.mrb[0].mxu0
    %4484 = vmatprep.mubr.bf16.mxu0 0
    %4485 = vmatmul.mubr.bf16.gmra.mrb[0].mxu0 %v4179
    %v4486 = vpop.f32.mrb[0].mxu0
    %v4487 = vadd.f32 0.0, %v4486
    %v4488 = vpop.f32.mrb[0].mxu0
    %v4489 = vpop.f32.mrb[0].mxu0
    %v4490 = vadd.f32 0.0, %v4489
    %v4491 = vpop.f32.mrb[0].mxu0
    %4492 = vmatprep.mubr.bf16.mxu0 0
    %4493 = vmatmul.mubr.bf16.gmra.mrb[0].mxu0 %v4180
    %v4494 = vpop.f32.mrb[0].mxu0
    %v4495 = vadd.f32 0.0, %v4494
    %v4496 = vpop.f32.mrb[0].mxu0
    %v4497 = vpop.f32.mrb[0].mxu0
    %v4498 = vadd.f32 0.0, %v4497
    %v4499 = vpop.f32.mrb[0].mxu0
    %4500 = vmatprep.mubr.bf16.mxu0 0
    %4501 = vmatmul.mubr.bf16.gmra.mrb[0].mxu0 %v4181
    %v4502 = vpop.f32.mrb[0].mxu0
    %v4503 = vadd.f32 0.0, %v4502
    %v4504 = vpop.f32.mrb[0].mxu0
    %v4505 = vpop.f32.mrb[0].mxu0
    %v4506 = vadd.f32 0.0, %v4505
    %v4507 = vpop.f32.mrb[0].mxu0
    %4508 = vmatprep.mubr.bf16.mxu0 0
    %4509 = vmatmul.mubr.bf16.gmra.mrb[0].mxu0 %v4182
    %v4510 = vpop.f32.mrb[0].mxu0
    %v4511 = vadd.f32 0.0, %v4510
    %v4512 = vpop.f32.mrb[0].mxu0
    %v4513 = vpop.f32.mrb[0].mxu0
    %v4514 = vadd.f32 0.0, %v4513
    %v4515 = vpop.f32.mrb[0].mxu0
    %4516 = vmatprep.mubr.bf16.mxu0 0
    %4517 = vmatmul.mubr.bf16.gmra.mrb[0].mxu0 %v4183
    %v4518 = vpop.f32.mrb[0].mxu0
    %v4519 = vadd.f32 0.0, %v4518
    %v4520 = vpop.f32.mrb[0].mxu0
    %v4521 = vpop.f32.mrb[0].mxu0
    %v4522 = vadd.f32 0.0, %v4521
    %v4523 = vpop.f32.mrb[0].mxu0
    %4524 = vmatprep.mubr.bf16.mxu0 0
    %4525 = vmatmul.mubr.bf16.gmra.mrb[0].mxu0 %v4184
    %v4526 = vpop.f32.mrb[0].mxu0
    %v4527 = vadd.f32 0.0, %v4526
    %v4528 = vpop.f32.mrb[0].mxu0
    %v4529 = vpop.f32.mrb[0].mxu0
    %v4530 = vadd.f32 0.0, %v4529
    %v4531 = vpop.f32.mrb[0].mxu0
    %4532 = vmatprep.mubr.bf16.mxu0 0
    %4533 = vmatmul.mubr.bf16.gmra.mrb[0].mxu0 %v4185
    %v4534 = vpop.f32.mrb[0].mxu0
    %v4535 = vadd.f32 0.0, %v4534
    %v4536 = vpop.f32.mrb[0].mxu0
    %v4537 = vpop.f32.mrb[0].mxu0
    %v4538 = vadd.f32 0.0, %v4537
    %v4539 = vpop.f32.mrb[0].mxu0
    %4540 = vmatprep.mubr.bf16.mxu0 0
    %4541 = vmatmul.mubr.bf16.gmra.mrb[0].mxu0 %v4186
    %v4542 = vpop.f32.mrb[0].mxu0
    %v4543 = vadd.f32 0.0, %v4542
    %v4544 = vpop.f32.mrb[0].mxu0
    %v4545 = vpop.f32.mrb[0].mxu0
    %v4546 = vadd.f32 0.0, %v4545
    %v4547 = vpop.f32.mrb[0].mxu0
    %4548 = vmatprep.mubr.bf16.mxu0 0
    %4549 = vmatmul.mubr.bf16.gmra.mrb[0].mxu0 %v4187
    %v4550 = vpop.f32.mrb[0].mxu0
    %v4551 = vadd.f32 0.0, %v4550
    %v4552 = vpop.f32.mrb[0].mxu0
    %v4553 = vpop.f32.mrb[0].mxu0
    %v4554 = vadd.f32 0.0, %v4553
    %v4555 = vpop.f32.mrb[0].mxu0
    %4556 = vdwg.mxu0
    %v4557 = vadd.f32 %v3884, %v4303
    %v4558 = vadd.f32 %v3885, %v4306
    %v4559 = vadd.f32 %v3886, %v4311
    %v4560 = vadd.f32 %v3887, %v4314
    %v4561 = vadd.f32 %v3888, %v4319
    %v4562 = vadd.f32 %v3889, %v4322
    %v4563 = vadd.f32 %v3890, %v4327
    %v4564 = vadd.f32 %v3891, %v4330
    %v4565 = vadd.f32 %v3892, %v4335
    %v4566 = vadd.f32 %v3893, %v4338
    %v4567 = vadd.f32 %v3894, %v4343
    %v4568 = vadd.f32 %v3895, %v4346
    %v4569 = vadd.f32 %v3896, %v4351
    %v4570 = vadd.f32 %v3897, %v4354
    %v4571 = vadd.f32 %v3898, %v4359
    %v4572 = vadd.f32 %v3899, %v4362
    %v4573 = vadd.f32 %v3900, %v4367
    %v4574 = vadd.f32 %v3901, %v4370
    %v4575 = vadd.f32 %v3902, %v4375
    %v4576 = vadd.f32 %v3903, %v4378
    %v4577 = vadd.f32 %v3904, %v4383
    %v4578 = vadd.f32 %v3905, %v4386
    %v4579 = vadd.f32 %v3906, %v4391
    %v4580 = vadd.f32 %v3907, %v4394
    %v4581 = vadd.f32 %v3908, %v4399
    %v4582 = vadd.f32 %v3909, %v4402
    %v4583 = vadd.f32 %v3910, %v4407
    %v4584 = vadd.f32 %v3911, %v4410
    %v4585 = vadd.f32 %v3912, %v4415
    %v4586 = vadd.f32 %v3913, %v4418
    %v4587 = vadd.f32 %v3914, %v4423
    %v4588 = vadd.f32 %v3915, %v4426
    %v4589 = vadd.f32 %v3916, %v4431
    %v4590 = vadd.f32 %v3917, %v4434
    %v4591 = vadd.f32 %v3918, %v4439
    %v4592 = vadd.f32 %v3919, %v4442
    %v4593 = vadd.f32 %v3920, %v4447
    %v4594 = vadd.f32 %v3921, %v4450
    %v4595 = vadd.f32 %v3922, %v4455
    %v4596 = vadd.f32 %v3923, %v4458
    %v4597 = vadd.f32 %v3924, %v4463
    %v4598 = vadd.f32 %v3925, %v4466
    %v4599 = vadd.f32 %v3926, %v4471
    %v4600 = vadd.f32 %v3927, %v4474
    %v4601 = vadd.f32 %v3928, %v4479
    %v4602 = vadd.f32 %v3929, %v4482
    %v4603 = vadd.f32 %v3930, %v4487
    %v4604 = vadd.f32 %v3931, %v4490
    %v4605 = vadd.f32 %v3932, %v4495
    %v4606 = vadd.f32 %v3933, %v4498
    %v4607 = vadd.f32 %v3934, %v4503
    %v4608 = vadd.f32 %v3935, %v4506
    %v4609 = vadd.f32 %v3936, %v4511
    %v4610 = vadd.f32 %v3937, %v4514
    %v4611 = vadd.f32 %v3938, %v4519
    %v4612 = vadd.f32 %v3939, %v4522
    %v4613 = vadd.f32 %v3940, %v4527
    %v4614 = vadd.f32 %v3941, %v4530
    %v4615 = vadd.f32 %v3942, %v4535
    %v4616 = vadd.f32 %v3943, %v4538
    %v4617 = vadd.f32 %v3944, %v4543
    %v4618 = vadd.f32 %v3945, %v4546
    %v4619 = vadd.f32 %v3946, %v4551
    %v4620 = vadd.f32 %v3947, %v4554
    %v4621 = vld [vmem:[%s121] sm:$0xf]
    %v4622 = vld [vmem:[%s121 + $0x4] sm:$0xf]
    %v4623 = vld [vmem:[%s121 + $0x8] sm:$0x1]
    %v4624 = vld [vmem:[%s121 + $0xc] sm:$0xf]
    %v4625 = vld [vmem:[%s121 + $0x10] sm:$0xf]
    %v4626 = vld [vmem:[%s121 + $0x14] sm:$0x1]
    %v4627 = vld [vmem:[%s121 + $0x18] sm:$0xf]
    %v4628 = vld [vmem:[%s121 + $0x1c] sm:$0xf]
    %v4629 = vld [vmem:[%s121 + $0x20] sm:$0x1]
    %v4630 = vld [vmem:[%s121 + $0x24] sm:$0xf]
    %v4631 = vld [vmem:[%s121 + $0x28] sm:$0xf]
    %v4632 = vld [vmem:[%s121 + $0x2c] sm:$0x1]
    %v4633 = vld [vmem:[%s121 + $0x30] sm:$0xf]
    %v4634 = vld [vmem:[%s121 + $0x34] sm:$0xf]
    %v4635 = vld [vmem:[%s121 + $0x38] sm:$0x1]
    %v4636 = vld [vmem:[%s121 + $0x3c] sm:$0xf]
    %v4637 = vld [vmem:[%s121 + $0x40] sm:$0xf]
    %v4638 = vld [vmem:[%s121 + $0x44] sm:$0x1]
    %v4639 = vld [vmem:[%s121 + $0x48] sm:$0xf]
    %v4640 = vld [vmem:[%s121 + $0x4c] sm:$0xf]
    %v4641 = vld [vmem:[%s121 + $0x50] sm:$0x1]
    %v4642 = vld [vmem:[%s121 + $0x54] sm:$0xf]
    %v4643 = vld [vmem:[%s121 + $0x58] sm:$0xf]
    %v4644 = vld [vmem:[%s121 + $0x5c] sm:$0x1]
    %v4645 = vld [vmem:[%s121 + $0x60] sm:$0xf]
    %v4646 = vld [vmem:[%s121 + $0x64] sm:$0xf]
    %v4647 = vld [vmem:[%s121 + $0x68] sm:$0x1]
    %v4648 = vld [vmem:[%s121 + $0x6c] sm:$0xf]
    %v4649 = vld [vmem:[%s121 + $0x70] sm:$0xf]
    %v4650 = vld [vmem:[%s121 + $0x74] sm:$0x1]
    %v4651 = vld [vmem:[%s121 + $0x78] sm:$0xf]
    %v4652 = vld [vmem:[%s121 + $0x7c] sm:$0xf]
    %v4653 = vld [vmem:[%s121 + $0x80] sm:$0x1]
    %v4654 = vld [vmem:[%s121 + $0x84] sm:$0xf]
    %v4655 = vld [vmem:[%s121 + $0x88] sm:$0xf]
    %v4656 = vld [vmem:[%s121 + $0x8c] sm:$0x1]
    %v4657 = vld [vmem:[%s121 + $0x90] sm:$0xf]
    %v4658 = vld [vmem:[%s121 + $0x94] sm:$0xf]
    %v4659 = vld [vmem:[%s121 + $0x98] sm:$0x1]
    %v4660 = vld [vmem:[%s121 + $0x9c] sm:$0xf]
    %v4661 = vld [vmem:[%s121 + $0xa0] sm:$0xf]
    %v4662 = vld [vmem:[%s121 + $0xa4] sm:$0x1]
    %v4663 = vld [vmem:[%s121 + $0xa8] sm:$0xf]
    %v4664 = vld [vmem:[%s121 + $0xac] sm:$0xf]
    %v4665 = vld [vmem:[%s121 + $0xb0] sm:$0x1]
    %v4666 = vld [vmem:[%s121 + $0xb4] sm:$0xf]
    %v4667 = vld [vmem:[%s121 + $0xb8] sm:$0xf]
    %v4668 = vld [vmem:[%s121 + $0xbc] sm:$0x1]
    %v4669 = vld [vmem:[%s121 + $0xd8] sm:$0xf]
    %v4670 = vld [vmem:[%s121 + $0xdc] sm:$0xf]
    %v4671 = vld [vmem:[%s121 + $0xe0] sm:$0x1]
    %v4672 = vld [vmem:[%s121 + $0xe4] sm:$0xf]
    %v4673 = vld [vmem:[%s121 + $0xe8] sm:$0xf]
    %v4674 = vld [vmem:[%s121 + $0xec] sm:$0x1]
    %v4675 = vld [vmem:[%s121 + $0xf0] sm:$0xf]
    %v4676 = vld [vmem:[%s121 + $0xf4] sm:$0xf]
    %v4677 = vld [vmem:[%s121 + $0xf8] sm:$0x1]
    %v4678 = vld [vmem:[%s121 + $0xfc] sm:$0xf]
    %v4679 = vld [vmem:[%s121 + $0x100] sm:$0xf]
    %v4680 = vld [vmem:[%s121 + $0x104] sm:$0x1]
    %v4681 = vld [vmem:[%s121 + $0x108] sm:$0xf]
    %v4682 = vld [vmem:[%s121 + $0x10c] sm:$0xf]
    %v4683 = vld [vmem:[%s121 + $0x110] sm:$0x1]
    %v4684 = vld [vmem:[%s121 + $0x114] sm:$0xf]
    %v4685 = vld [vmem:[%s121 + $0x118] sm:$0xf]
    %v4686 = vld [vmem:[%s121 + $0x11c] sm:$0x1]
    %v4687 = vld [vmem:[%s121 + $0x120] sm:$0xf]
    %v4688 = vld [vmem:[%s121 + $0x124] sm:$0xf]
    %v4689 = vld [vmem:[%s121 + $0x128] sm:$0x1]
    %v4690 = vld [vmem:[%s121 + $0x12c] sm:$0xf]
    %v4691 = vld [vmem:[%s121 + $0x130] sm:$0xf]
    %v4692 = vld [vmem:[%s121 + $0x134] sm:$0x1]
    %v4693 = vld [vmem:[%s121 + $0x138] sm:$0xf]
    %v4694 = vld [vmem:[%s121 + $0x13c] sm:$0xf]
    %v4695 = vld [vmem:[%s121 + $0x140] sm:$0x1]
    %v4696 = vld [vmem:[%s121 + $0x144] sm:$0xf]
    %v4697 = vld [vmem:[%s121 + $0x148] sm:$0xf]
    %v4698 = vld [vmem:[%s121 + $0x14c] sm:$0x1]
    %v4699 = vld [vmem:[%s121 + $0x150] sm:$0xf]
    %v4700 = vld [vmem:[%s121 + $0x154] sm:$0xf]
    %v4701 = vld [vmem:[%s121 + $0x158] sm:$0x1]
    %v4702 = vld [vmem:[%s121 + $0x15c] sm:$0xf]
    %v4703 = vld [vmem:[%s121 + $0x160] sm:$0xf]
    %v4704 = vld [vmem:[%s121 + $0x164] sm:$0x1]
    %v4705 = vld [vmem:[%s121 + $0x168] sm:$0xf]
    %v4706 = vld [vmem:[%s121 + $0x16c] sm:$0xf]
    %v4707 = vld [vmem:[%s121 + $0x170] sm:$0x1]
    %v4708 = vld [vmem:[%s121 + $0x174] sm:$0xf]
    %v4709 = vld [vmem:[%s121 + $0x178] sm:$0xf]
    %v4710 = vld [vmem:[%s121 + $0x17c] sm:$0x1]
    %v4711 = vld [vmem:[%s121 + $0x180] sm:$0xf]
    %v4712 = vld [vmem:[%s121 + $0x184] sm:$0xf]
    %v4713 = vld [vmem:[%s121 + $0x188] sm:$0x1]
    %v4714 = vld [vmem:[%s121 + $0x18c] sm:$0xf]
    %v4715 = vld [vmem:[%s121 + $0x190] sm:$0xf]
    %v4716 = vld [vmem:[%s121 + $0x194] sm:$0x1]
    %v4718 = vshrl.u32 %v4621, 16
    %v4720 = vrot.slane %v4718, 4
    %v4721 = vshll.u32 %v4621, 16
    %v4723 = vrot.slane %v4721, 5
    %v4724 = vor.u32 %v4720, %v4723
    %v4725 = vrot.slane %v4724, 4
    %v4727 = vshll.u32 %v4622, 16
    %v4729 = vrot.slane %v4727, 5
    %v4730 = vsel %vm1301, %v4725, %v4729
    %v4731 = vshrl.u32 %v4622, 16
    %v4733 = vrot.slane %v4731, 4
    %v4734 = vor.u32 %v4733, %v4729
    %v4735 = vrot.slane %v4734, 4
    %v4737 = vshll.u32 %v4623, 16
    %v4739 = vrot.slane %v4737, 5
    %v4740 = vsel %vm1301, %v4735, %v4739
    %v4742 = vshrl.u32 %v4624, 16
    %v4744 = vrot.slane %v4742, 4
    %v4745 = vshll.u32 %v4624, 16
    %v4747 = vrot.slane %v4745, 5
    %v4748 = vor.u32 %v4744, %v4747
    %v4749 = vrot.slane %v4748, 4
    %v4751 = vshll.u32 %v4625, 16
    %v4753 = vrot.slane %v4751, 5
    %v4754 = vsel %vm1301, %v4749, %v4753
    %v4755 = vshrl.u32 %v4625, 16
    %v4757 = vrot.slane %v4755, 4
    %v4758 = vor.u32 %v4757, %v4753
    %v4759 = vrot.slane %v4758, 4
    %v4761 = vshll.u32 %v4626, 16
    %v4763 = vrot.slane %v4761, 5
    %v4764 = vsel %vm1301, %v4759, %v4763
    %v4766 = vshrl.u32 %v4627, 16
    %v4768 = vrot.slane %v4766, 4
    %v4769 = vshll.u32 %v4627, 16
    %v4771 = vrot.slane %v4769, 5
    %v4772 = vor.u32 %v4768, %v4771
    %v4773 = vrot.slane %v4772, 4
    %v4775 = vshll.u32 %v4628, 16
    %v4777 = vrot.slane %v4775, 5
    %v4778 = vsel %vm1301, %v4773, %v4777
    %v4779 = vshrl.u32 %v4628, 16
    %v4781 = vrot.slane %v4779, 4
    %v4782 = vor.u32 %v4781, %v4777
    %v4783 = vrot.slane %v4782, 4
    %v4785 = vshll.u32 %v4629, 16
    %v4787 = vrot.slane %v4785, 5
    %v4788 = vsel %vm1301, %v4783, %v4787
    %v4790 = vshrl.u32 %v4630, 16
    %v4792 = vrot.slane %v4790, 4
    %v4793 = vshll.u32 %v4630, 16
    %v4795 = vrot.slane %v4793, 5
    %v4796 = vor.u32 %v4792, %v4795
    %v4797 = vrot.slane %v4796, 4
    %v4799 = vshll.u32 %v4631, 16
    %v4801 = vrot.slane %v4799, 5
    %v4802 = vsel %vm1301, %v4797, %v4801
    %v4803 = vshrl.u32 %v4631, 16
    %v4805 = vrot.slane %v4803, 4
    %v4806 = vor.u32 %v4805, %v4801
    %v4807 = vrot.slane %v4806, 4
    %v4809 = vshll.u32 %v4632, 16
    %v4811 = vrot.slane %v4809, 5
    %v4812 = vsel %vm1301, %v4807, %v4811
    %v4814 = vshrl.u32 %v4633, 16
    %v4816 = vrot.slane %v4814, 4
    %v4817 = vshll.u32 %v4633, 16
    %v4819 = vrot.slane %v4817, 5
    %v4820 = vor.u32 %v4816, %v4819
    %v4821 = vrot.slane %v4820, 4
    %v4823 = vshll.u32 %v4634, 16
    %v4825 = vrot.slane %v4823, 5
    %v4826 = vsel %vm1301, %v4821, %v4825
    %v4827 = vshrl.u32 %v4634, 16
    %v4829 = vrot.slane %v4827, 4
    %v4830 = vor.u32 %v4829, %v4825
    %v4831 = vrot.slane %v4830, 4
    %v4833 = vshll.u32 %v4635, 16
    %v4835 = vrot.slane %v4833, 5
    %v4836 = vsel %vm1301, %v4831, %v4835
    %v4838 = vshrl.u32 %v4636, 16
    %v4840 = vrot.slane %v4838, 4
    %v4841 = vshll.u32 %v4636, 16
    %v4843 = vrot.slane %v4841, 5
    %v4844 = vor.u32 %v4840, %v4843
    %v4845 = vrot.slane %v4844, 4
    %v4847 = vshll.u32 %v4637, 16
    %v4849 = vrot.slane %v4847, 5
    %v4850 = vsel %vm1301, %v4845, %v4849
    %v4851 = vshrl.u32 %v4637, 16
    %v4853 = vrot.slane %v4851, 4
    %v4854 = vor.u32 %v4853, %v4849
    %v4855 = vrot.slane %v4854, 4
    %v4857 = vshll.u32 %v4638, 16
    %v4859 = vrot.slane %v4857, 5
    %v4860 = vsel %vm1301, %v4855, %v4859
    %v4862 = vshrl.u32 %v4639, 16
    %v4864 = vrot.slane %v4862, 4
    %v4865 = vshll.u32 %v4639, 16
    %v4867 = vrot.slane %v4865, 5
    %v4868 = vor.u32 %v4864, %v4867
    %v4869 = vrot.slane %v4868, 4
    %v4871 = vshll.u32 %v4640, 16
    %v4873 = vrot.slane %v4871, 5
    %v4874 = vsel %vm1301, %v4869, %v4873
    %v4875 = vshrl.u32 %v4640, 16
    %v4877 = vrot.slane %v4875, 4
    %v4878 = vor.u32 %v4877, %v4873
    %v4879 = vrot.slane %v4878, 4
    %v4881 = vshll.u32 %v4641, 16
    %v4883 = vrot.slane %v4881, 5
    %v4884 = vsel %vm1301, %v4879, %v4883
    %v4886 = vshrl.u32 %v4642, 16
    %v4888 = vrot.slane %v4886, 4
    %v4889 = vshll.u32 %v4642, 16
    %v4891 = vrot.slane %v4889, 5
    %v4892 = vor.u32 %v4888, %v4891
    %v4893 = vrot.slane %v4892, 4
    %v4895 = vshll.u32 %v4643, 16
    %v4897 = vrot.slane %v4895, 5
    %v4898 = vsel %vm1301, %v4893, %v4897
    %v4899 = vshrl.u32 %v4643, 16
    %v4901 = vrot.slane %v4899, 4
    %v4902 = vor.u32 %v4901, %v4897
    %v4903 = vrot.slane %v4902, 4
    %v4905 = vshll.u32 %v4644, 16
    %v4907 = vrot.slane %v4905, 5
    %v4908 = vsel %vm1301, %v4903, %v4907
    %v4910 = vshrl.u32 %v4645, 16
    %v4912 = vrot.slane %v4910, 4
    %v4913 = vshll.u32 %v4645, 16
    %v4915 = vrot.slane %v4913, 5
    %v4916 = vor.u32 %v4912, %v4915
    %v4917 = vrot.slane %v4916, 4
    %v4919 = vshll.u32 %v4646, 16
    %v4921 = vrot.slane %v4919, 5
    %v4922 = vsel %vm1301, %v4917, %v4921
    %v4923 = vshrl.u32 %v4646, 16
    %v4925 = vrot.slane %v4923, 4
    %v4926 = vor.u32 %v4925, %v4921
    %v4927 = vrot.slane %v4926, 4
    %v4929 = vshll.u32 %v4647, 16
    %v4931 = vrot.slane %v4929, 5
    %v4932 = vsel %vm1301, %v4927, %v4931
    %v4934 = vshrl.u32 %v4648, 16
    %v4936 = vrot.slane %v4934, 4
    %v4937 = vshll.u32 %v4648, 16
    %v4939 = vrot.slane %v4937, 5
    %v4940 = vor.u32 %v4936, %v4939
    %v4941 = vrot.slane %v4940, 4
    %v4943 = vshll.u32 %v4649, 16
    %v4945 = vrot.slane %v4943, 5
    %v4946 = vsel %vm1301, %v4941, %v4945
    %v4947 = vshrl.u32 %v4649, 16
    %v4949 = vrot.slane %v4947, 4
    %v4950 = vor.u32 %v4949, %v4945
    %v4951 = vrot.slane %v4950, 4
    %v4953 = vshll.u32 %v4650, 16
    %v4955 = vrot.slane %v4953, 5
    %v4956 = vsel %vm1301, %v4951, %v4955
    %v4958 = vshrl.u32 %v4651, 16
    %v4960 = vrot.slane %v4958, 4
    %v4961 = vshll.u32 %v4651, 16
    %v4963 = vrot.slane %v4961, 5
    %v4964 = vor.u32 %v4960, %v4963
    %v4965 = vrot.slane %v4964, 4
    %v4967 = vshll.u32 %v4652, 16
    %v4969 = vrot.slane %v4967, 5
    %v4970 = vsel %vm1301, %v4965, %v4969
    %v4971 = vshrl.u32 %v4652, 16
    %v4973 = vrot.slane %v4971, 4
    %v4974 = vor.u32 %v4973, %v4969
    %v4975 = vrot.slane %v4974, 4
    %v4977 = vshll.u32 %v4653, 16
    %v4979 = vrot.slane %v4977, 5
    %v4980 = vsel %vm1301, %v4975, %v4979
    %v4982 = vshrl.u32 %v4654, 16
    %v4984 = vrot.slane %v4982, 4
    %v4985 = vshll.u32 %v4654, 16
    %v4987 = vrot.slane %v4985, 5
    %v4988 = vor.u32 %v4984, %v4987
    %v4989 = vrot.slane %v4988, 4
    %v4991 = vshll.u32 %v4655, 16
    %v4993 = vrot.slane %v4991, 5
    %v4994 = vsel %vm1301, %v4989, %v4993
    %v4995 = vshrl.u32 %v4655, 16
    %v4997 = vrot.slane %v4995, 4
    %v4998 = vor.u32 %v4997, %v4993
    %v4999 = vrot.slane %v4998, 4
    %v5001 = vshll.u32 %v4656, 16
    %v5003 = vrot.slane %v5001, 5
    %v5004 = vsel %vm1301, %v4999, %v5003
    %v5006 = vshrl.u32 %v4657, 16
    %v5008 = vrot.slane %v5006, 4
    %v5009 = vshll.u32 %v4657, 16
    %v5011 = vrot.slane %v5009, 5
    %v5012 = vor.u32 %v5008, %v5011
    %v5013 = vrot.slane %v5012, 4
    %v5015 = vshll.u32 %v4658, 16
    %v5017 = vrot.slane %v5015, 5
    %v5018 = vsel %vm1301, %v5013, %v5017
    %v5019 = vshrl.u32 %v4658, 16
    %v5021 = vrot.slane %v5019, 4
    %v5022 = vor.u32 %v5021, %v5017
    %v5023 = vrot.slane %v5022, 4
    %v5025 = vshll.u32 %v4659, 16
    %v5027 = vrot.slane %v5025, 5
    %v5028 = vsel %vm1301, %v5023, %v5027
    %v5030 = vshrl.u32 %v4660, 16
    %v5032 = vrot.slane %v5030, 4
    %v5033 = vshll.u32 %v4660, 16
    %v5035 = vrot.slane %v5033, 5
    %v5036 = vor.u32 %v5032, %v5035
    %v5037 = vrot.slane %v5036, 4
    %v5039 = vshll.u32 %v4661, 16
    %v5041 = vrot.slane %v5039, 5
    %v5042 = vsel %vm1301, %v5037, %v5041
    %v5043 = vshrl.u32 %v4661, 16
    %v5045 = vrot.slane %v5043, 4
    %v5046 = vor.u32 %v5045, %v5041
    %v5047 = vrot.slane %v5046, 4
    %v5049 = vshll.u32 %v4662, 16
    %v5051 = vrot.slane %v5049, 5
    %v5052 = vsel %vm1301, %v5047, %v5051
    %v5054 = vshrl.u32 %v4663, 16
    %v5056 = vrot.slane %v5054, 4
    %v5057 = vshll.u32 %v4663, 16
    %v5059 = vrot.slane %v5057, 5
    %v5060 = vor.u32 %v5056, %v5059
    %v5061 = vrot.slane %v5060, 4
    %v5063 = vshll.u32 %v4664, 16
    %v5065 = vrot.slane %v5063, 5
    %v5066 = vsel %vm1301, %v5061, %v5065
    %v5067 = vshrl.u32 %v4664, 16
    %v5069 = vrot.slane %v5067, 4
    %v5070 = vor.u32 %v5069, %v5065
    %v5071 = vrot.slane %v5070, 4
    %v5073 = vshll.u32 %v4665, 16
    %v5075 = vrot.slane %v5073, 5
    %v5076 = vsel %vm1301, %v5071, %v5075
    %v5078 = vshrl.u32 %v4666, 16
    %v5080 = vrot.slane %v5078, 4
    %v5081 = vshll.u32 %v4666, 16
    %v5083 = vrot.slane %v5081, 5
    %v5084 = vor.u32 %v5080, %v5083
    %v5085 = vrot.slane %v5084, 4
    %v5087 = vshll.u32 %v4667, 16
    %v5089 = vrot.slane %v5087, 5
    %v5090 = vsel %vm1301, %v5085, %v5089
    %v5091 = vshrl.u32 %v4667, 16
    %v5093 = vrot.slane %v5091, 4
    %v5094 = vor.u32 %v5093, %v5089
    %v5095 = vrot.slane %v5094, 4
    %v5097 = vshll.u32 %v4668, 16
    %v5099 = vrot.slane %v5097, 5
    %v5100 = vsel %vm1301, %v5095, %v5099
    %v5102 = vshrl.u32 %v4669, 16
    %v5104 = vrot.slane %v5102, 4
    %v5105 = vshll.u32 %v4669, 16
    %v5107 = vrot.slane %v5105, 5
    %v5108 = vor.u32 %v5104, %v5107
    %v5109 = vrot.slane %v5108, 4
    %v5111 = vshll.u32 %v4670, 16
    %v5113 = vrot.slane %v5111, 5
    %v5114 = vsel %vm1301, %v5109, %v5113
    %v5115 = vshrl.u32 %v4670, 16
    %v5117 = vrot.slane %v5115, 4
    %v5118 = vor.u32 %v5117, %v5113
    %v5119 = vrot.slane %v5118, 4
    %v5121 = vshll.u32 %v4671, 16
    %v5123 = vrot.slane %v5121, 5
    %v5124 = vsel %vm1301, %v5119, %v5123
    %v5126 = vshrl.u32 %v4672, 16
    %v5128 = vrot.slane %v5126, 4
    %v5129 = vshll.u32 %v4672, 16
    %v5131 = vrot.slane %v5129, 5
    %v5132 = vor.u32 %v5128, %v5131
    %v5133 = vrot.slane %v5132, 4
    %v5135 = vshll.u32 %v4673, 16
    %v5137 = vrot.slane %v5135, 5
    %v5138 = vsel %vm1301, %v5133, %v5137
    %v5139 = vshrl.u32 %v4673, 16
    %v5141 = vrot.slane %v5139, 4
    %v5142 = vor.u32 %v5141, %v5137
    %v5143 = vrot.slane %v5142, 4
    %v5145 = vshll.u32 %v4674, 16
    %v5147 = vrot.slane %v5145, 5
    %v5148 = vsel %vm1301, %v5143, %v5147
    %v5150 = vshrl.u32 %v4675, 16
    %v5152 = vrot.slane %v5150, 4
    %v5153 = vshll.u32 %v4675, 16
    %v5155 = vrot.slane %v5153, 5
    %v5156 = vor.u32 %v5152, %v5155
    %v5157 = vrot.slane %v5156, 4
    %v5159 = vshll.u32 %v4676, 16
    %v5161 = vrot.slane %v5159, 5
    %v5162 = vsel %vm1301, %v5157, %v5161
    %v5163 = vshrl.u32 %v4676, 16
    %v5165 = vrot.slane %v5163, 4
    %v5166 = vor.u32 %v5165, %v5161
    %v5167 = vrot.slane %v5166, 4
    %v5169 = vshll.u32 %v4677, 16
    %v5171 = vrot.slane %v5169, 5
    %v5172 = vsel %vm1301, %v5167, %v5171
    %v5174 = vshrl.u32 %v4678, 16
    %v5176 = vrot.slane %v5174, 4
    %v5177 = vshll.u32 %v4678, 16
    %v5179 = vrot.slane %v5177, 5
    %v5180 = vor.u32 %v5176, %v5179
    %v5181 = vrot.slane %v5180, 4
    %v5183 = vshll.u32 %v4679, 16
    %v5185 = vrot.slane %v5183, 5
    %v5186 = vsel %vm1301, %v5181, %v5185
    %v5187 = vshrl.u32 %v4679, 16
    %v5189 = vrot.slane %v5187, 4
    %v5190 = vor.u32 %v5189, %v5185
    %v5191 = vrot.slane %v5190, 4
    %v5193 = vshll.u32 %v4680, 16
    %v5195 = vrot.slane %v5193, 5
    %v5196 = vsel %vm1301, %v5191, %v5195
    %v5198 = vshrl.u32 %v4681, 16
    %v5200 = vrot.slane %v5198, 4
    %v5201 = vshll.u32 %v4681, 16
    %v5203 = vrot.slane %v5201, 5
    %v5204 = vor.u32 %v5200, %v5203
    %v5205 = vrot.slane %v5204, 4
    %v5207 = vshll.u32 %v4682, 16
    %v5209 = vrot.slane %v5207, 5
    %v5210 = vsel %vm1301, %v5205, %v5209
    %v5211 = vshrl.u32 %v4682, 16
    %v5213 = vrot.slane %v5211, 4
    %v5214 = vor.u32 %v5213, %v5209
    %v5215 = vrot.slane %v5214, 4
    %v5217 = vshll.u32 %v4683, 16
    %v5219 = vrot.slane %v5217, 5
    %v5220 = vsel %vm1301, %v5215, %v5219
    %v5222 = vshrl.u32 %v4684, 16
    %v5224 = vrot.slane %v5222, 4
    %v5225 = vshll.u32 %v4684, 16
    %v5227 = vrot.slane %v5225, 5
    %v5228 = vor.u32 %v5224, %v5227
    %v5229 = vrot.slane %v5228, 4
    %v5231 = vshll.u32 %v4685, 16
    %v5233 = vrot.slane %v5231, 5
    %v5234 = vsel %vm1301, %v5229, %v5233
    %v5235 = vshrl.u32 %v4685, 16
    %v5237 = vrot.slane %v5235, 4
    %v5238 = vor.u32 %v5237, %v5233
    %v5239 = vrot.slane %v5238, 4
    %v5241 = vshll.u32 %v4686, 16
    %v5243 = vrot.slane %v5241, 5
    %v5244 = vsel %vm1301, %v5239, %v5243
    %v5246 = vshrl.u32 %v4687, 16
    %v5248 = vrot.slane %v5246, 4
    %v5249 = vshll.u32 %v4687, 16
    %v5251 = vrot.slane %v5249, 5
    %v5252 = vor.u32 %v5248, %v5251
    %v5253 = vrot.slane %v5252, 4
    %v5255 = vshll.u32 %v4688, 16
    %v5257 = vrot.slane %v5255, 5
    %v5258 = vsel %vm1301, %v5253, %v5257
    %v5259 = vshrl.u32 %v4688, 16
    %v5261 = vrot.slane %v5259, 4
    %v5262 = vor.u32 %v5261, %v5257
    %v5263 = vrot.slane %v5262, 4
    %v5265 = vshll.u32 %v4689, 16
    %v5267 = vrot.slane %v5265, 5
    %v5268 = vsel %vm1301, %v5263, %v5267
    %v5270 = vshrl.u32 %v4690, 16
    %v5272 = vrot.slane %v5270, 4
    %v5273 = vshll.u32 %v4690, 16
    %v5275 = vrot.slane %v5273, 5
    %v5276 = vor.u32 %v5272, %v5275
    %v5277 = vrot.slane %v5276, 4
    %v5279 = vshll.u32 %v4691, 16
    %v5281 = vrot.slane %v5279, 5
    %v5282 = vsel %vm1301, %v5277, %v5281
    %v5283 = vshrl.u32 %v4691, 16
    %v5285 = vrot.slane %v5283, 4
    %v5286 = vor.u32 %v5285, %v5281
    %v5287 = vrot.slane %v5286, 4
    %v5289 = vshll.u32 %v4692, 16
    %v5291 = vrot.slane %v5289, 5
    %v5292 = vsel %vm1301, %v5287, %v5291
    %v5294 = vshrl.u32 %v4693, 16
    %v5296 = vrot.slane %v5294, 4
    %v5297 = vshll.u32 %v4693, 16
    %v5299 = vrot.slane %v5297, 5
    %v5300 = vor.u32 %v5296, %v5299
    %v5301 = vrot.slane %v5300, 4
    %v5303 = vshll.u32 %v4694, 16
    %v5305 = vrot.slane %v5303, 5
    %v5306 = vsel %vm1301, %v5301, %v5305
    %v5307 = vshrl.u32 %v4694, 16
    %v5309 = vrot.slane %v5307, 4
    %v5310 = vor.u32 %v5309, %v5305
    %v5311 = vrot.slane %v5310, 4
    %v5313 = vshll.u32 %v4695, 16
    %v5315 = vrot.slane %v5313, 5
    %v5316 = vsel %vm1301, %v5311, %v5315
    %v5318 = vshrl.u32 %v4696, 16
    %v5320 = vrot.slane %v5318, 4
    %v5321 = vshll.u32 %v4696, 16
    %v5323 = vrot.slane %v5321, 5
    %v5324 = vor.u32 %v5320, %v5323
    %v5325 = vrot.slane %v5324, 4
    %v5327 = vshll.u32 %v4697, 16
    %v5329 = vrot.slane %v5327, 5
    %v5330 = vsel %vm1301, %v5325, %v5329
    %v5331 = vshrl.u32 %v4697, 16
    %v5333 = vrot.slane %v5331, 4
    %v5334 = vor.u32 %v5333, %v5329
    %v5335 = vrot.slane %v5334, 4
    %v5337 = vshll.u32 %v4698, 16
    %v5339 = vrot.slane %v5337, 5
    %v5340 = vsel %vm1301, %v5335, %v5339
    %v5342 = vshrl.u32 %v4699, 16
    %v5344 = vrot.slane %v5342, 4
    %v5345 = vshll.u32 %v4699, 16
    %v5347 = vrot.slane %v5345, 5
    %v5348 = vor.u32 %v5344, %v5347
    %v5349 = vrot.slane %v5348, 4
    %v5351 = vshll.u32 %v4700, 16
    %v5353 = vrot.slane %v5351, 5
    %v5354 = vsel %vm1301, %v5349, %v5353
    %v5355 = vshrl.u32 %v4700, 16
    %v5357 = vrot.slane %v5355, 4
    %v5358 = vor.u32 %v5357, %v5353
    %v5359 = vrot.slane %v5358, 4
    %v5361 = vshll.u32 %v4701, 16
    %v5363 = vrot.slane %v5361, 5
    %v5364 = vsel %vm1301, %v5359, %v5363
    %v5366 = vshrl.u32 %v4702, 16
    %v5368 = vrot.slane %v5366, 4
    %v5369 = vshll.u32 %v4702, 16
    %v5371 = vrot.slane %v5369, 5
    %v5372 = vor.u32 %v5368, %v5371
    %v5373 = vrot.slane %v5372, 4
    %v5375 = vshll.u32 %v4703, 16
    %v5377 = vrot.slane %v5375, 5
    %v5378 = vsel %vm1301, %v5373, %v5377
    %v5379 = vshrl.u32 %v4703, 16
    %v5381 = vrot.slane %v5379, 4
    %v5382 = vor.u32 %v5381, %v5377
    %v5383 = vrot.slane %v5382, 4
    %v5385 = vshll.u32 %v4704, 16
    %v5387 = vrot.slane %v5385, 5
    %v5388 = vsel %vm1301, %v5383, %v5387
    %v5390 = vshrl.u32 %v4705, 16
    %v5392 = vrot.slane %v5390, 4
    %v5393 = vshll.u32 %v4705, 16
    %v5395 = vrot.slane %v5393, 5
    %v5396 = vor.u32 %v5392, %v5395
    %v5397 = vrot.slane %v5396, 4
    %v5399 = vshll.u32 %v4706, 16
    %v5401 = vrot.slane %v5399, 5
    %v5402 = vsel %vm1301, %v5397, %v5401
    %v5403 = vshrl.u32 %v4706, 16
    %v5405 = vrot.slane %v5403, 4
    %v5406 = vor.u32 %v5405, %v5401
    %v5407 = vrot.slane %v5406, 4
    %v5409 = vshll.u32 %v4707, 16
    %v5411 = vrot.slane %v5409, 5
    %v5412 = vsel %vm1301, %v5407, %v5411
    %v5414 = vshrl.u32 %v4708, 16
    %v5416 = vrot.slane %v5414, 4
    %v5417 = vshll.u32 %v4708, 16
    %v5419 = vrot.slane %v5417, 5
    %v5420 = vor.u32 %v5416, %v5419
    %v5421 = vrot.slane %v5420, 4
    %v5423 = vshll.u32 %v4709, 16
    %v5425 = vrot.slane %v5423, 5
    %v5426 = vsel %vm1301, %v5421, %v5425
    %v5427 = vshrl.u32 %v4709, 16
    %v5429 = vrot.slane %v5427, 4
    %v5430 = vor.u32 %v5429, %v5425
    %v5431 = vrot.slane %v5430, 4
    %v5433 = vshll.u32 %v4710, 16
    %v5435 = vrot.slane %v5433, 5
    %v5436 = vsel %vm1301, %v5431, %v5435
    %v5438 = vshrl.u32 %v4711, 16
    %v5440 = vrot.slane %v5438, 4
    %v5441 = vshll.u32 %v4711, 16
    %v5443 = vrot.slane %v5441, 5
    %v5444 = vor.u32 %v5440, %v5443
    %v5445 = vrot.slane %v5444, 4
    %v5447 = vshll.u32 %v4712, 16
    %v5449 = vrot.slane %v5447, 5
    %v5450 = vsel %vm1301, %v5445, %v5449
    %v5451 = vshrl.u32 %v4712, 16
    %v5453 = vrot.slane %v5451, 4
    %v5454 = vor.u32 %v5453, %v5449
    %v5455 = vrot.slane %v5454, 4
    %v5457 = vshll.u32 %v4713, 16
    %v5459 = vrot.slane %v5457, 5
    %v5460 = vsel %vm1301, %v5455, %v5459
    %v5462 = vshrl.u32 %v4714, 16
    %v5464 = vrot.slane %v5462, 4
    %v5465 = vshll.u32 %v4714, 16
    %v5467 = vrot.slane %v5465, 5
    %v5468 = vor.u32 %v5464, %v5467
    %v5469 = vrot.slane %v5468, 4
    %v5471 = vshll.u32 %v4715, 16
    %v5473 = vrot.slane %v5471, 5
    %v5474 = vsel %vm1301, %v5469, %v5473
    %v5475 = vshrl.u32 %v4715, 16
    %v5477 = vrot.slane %v5475, 4
    %v5478 = vor.u32 %v5477, %v5473
    %v5479 = vrot.slane %v5478, 4
    %v5481 = vshll.u32 %v4716, 16
    %v5483 = vrot.slane %v5481, 5
    %v5484 = vsel %vm1301, %v5479, %v5483
    %v5485 = vld [vmem:[#allocation6 + $0x100] sm:$0xf]
    %v5486 = vld [vmem:[#allocation6 + $0x104] sm:$0xf]
    %v5487 = vld [vmem:[#allocation6 + $0x108] sm:$0xf]
    %v5488 = vld [vmem:[#allocation6 + $0x10c] sm:$0xf]
    %v5489 = vld [vmem:[#allocation6 + $0x110] sm:$0xf]
    %v5490 = vld [vmem:[#allocation6 + $0x114] sm:$0xf]
    %v5491 = vld [vmem:[#allocation6 + $0x118] sm:$0xf]
    %v5492 = vld [vmem:[#allocation6 + $0x11c] sm:$0xf]
    %v5493 = vld [vmem:[#allocation6 + $0x120] sm:$0xf]
    %v5494 = vld [vmem:[#allocation6 + $0x124] sm:$0xf]
    %v5495 = vld [vmem:[#allocation6 + $0x128] sm:$0xf]
    %v5496 = vld [vmem:[#allocation6 + $0x12c] sm:$0xf]
    %v5497 = vld [vmem:[#allocation6 + $0x130] sm:$0xf]
    %v5498 = vld [vmem:[#allocation6 + $0x134] sm:$0xf]
    %v5499 = vld [vmem:[#allocation6 + $0x138] sm:$0xf]
    %v5500 = vld [vmem:[#allocation6 + $0x13c] sm:$0xf]
    %v5501 = vunpack.c.l.b16 %v4730
    %v5502 = vunpack.c.l.b16 %v4740
    %v5503 = vunpack.c.l.b16 %v4754
    %v5504 = vunpack.c.l.b16 %v4764
    %v5505 = vunpack.c.l.b16 %v4778
    %v5506 = vunpack.c.l.b16 %v4788
    %v5507 = vunpack.c.l.b16 %v4802
    %v5508 = vunpack.c.l.b16 %v4812
    %v5509 = vunpack.c.l.b16 %v4826
    %v5510 = vunpack.c.l.b16 %v4836
    %v5511 = vunpack.c.l.b16 %v4850
    %v5512 = vunpack.c.l.b16 %v4860
    %v5513 = vunpack.c.l.b16 %v4874
    %v5514 = vunpack.c.l.b16 %v4884
    %v5515 = vunpack.c.l.b16 %v4898
    %v5516 = vunpack.c.l.b16 %v4908
    %v5517 = vunpack.c.l.b16 %v4922
    %v5518 = vunpack.c.l.b16 %v4932
    %v5519 = vunpack.c.l.b16 %v4946
    %v5520 = vunpack.c.l.b16 %v4956
    %v5521 = vunpack.c.l.b16 %v4970
    %v5522 = vunpack.c.l.b16 %v4980
    %v5523 = vunpack.c.l.b16 %v4994
    %v5524 = vunpack.c.l.b16 %v5004
    %v5525 = vunpack.c.l.b16 %v5018
    %v5526 = vunpack.c.l.b16 %v5028
    %v5527 = vunpack.c.l.b16 %v5042
    %v5528 = vunpack.c.l.b16 %v5052
    %v5529 = vunpack.c.l.b16 %v5066
    %v5530 = vunpack.c.l.b16 %v5076
    %v5531 = vunpack.c.l.b16 %v5090
    %v5532 = vunpack.c.l.b16 %v5100
    %v5533 = vunpack.c.l.b16 %v5114
    %v5534 = vunpack.c.l.b16 %v5124
    %v5535 = vunpack.c.l.b16 %v5138
    %v5536 = vunpack.c.l.b16 %v5148
    %v5537 = vunpack.c.l.b16 %v5162
    %v5538 = vunpack.c.l.b16 %v5172
    %v5539 = vunpack.c.l.b16 %v5186
    %v5540 = vunpack.c.l.b16 %v5196
    %v5541 = vunpack.c.l.b16 %v5210
    %v5542 = vunpack.c.l.b16 %v5220
    %v5543 = vunpack.c.l.b16 %v5234
    %v5544 = vunpack.c.l.b16 %v5244
    %v5545 = vunpack.c.l.b16 %v5258
    %v5546 = vunpack.c.l.b16 %v5268
    %v5547 = vunpack.c.l.b16 %v5282
    %v5548 = vunpack.c.l.b16 %v5292
    %v5549 = vunpack.c.l.b16 %v5306
    %v5550 = vunpack.c.l.b16 %v5316
    %v5551 = vunpack.c.l.b16 %v5330
    %v5552 = vunpack.c.l.b16 %v5340
    %v5553 = vunpack.c.l.b16 %v5354
    %v5554 = vunpack.c.l.b16 %v5364
    %v5555 = vunpack.c.l.b16 %v5378
    %v5556 = vunpack.c.l.b16 %v5388
    %v5557 = vunpack.c.l.b16 %v5402
    %v5558 = vunpack.c.l.b16 %v5412
    %v5559 = vunpack.c.l.b16 %v5426
    %v5560 = vunpack.c.l.b16 %v5436
    %v5561 = vunpack.c.l.b16 %v5450
    %v5562 = vunpack.c.l.b16 %v5460
    %v5563 = vunpack.c.l.b16 %v5474
    %v5564 = vunpack.c.l.b16 %v5484
    %v5565 = vpack.c.b16 %v5502, %v5501
    %v5566 = vpack.c.b16 %v5504, %v5503
    %v5567 = vpack.c.b16 %v5506, %v5505
    %v5568 = vpack.c.b16 %v5508, %v5507
    %v5569 = vpack.c.b16 %v5510, %v5509
    %v5570 = vpack.c.b16 %v5512, %v5511
    %v5571 = vpack.c.b16 %v5514, %v5513
    %v5572 = vpack.c.b16 %v5516, %v5515
    %v5573 = vpack.c.b16 %v5518, %v5517
    %v5574 = vpack.c.b16 %v5520, %v5519
    %v5575 = vpack.c.b16 %v5522, %v5521
    %v5576 = vpack.c.b16 %v5524, %v5523
    %v5577 = vpack.c.b16 %v5526, %v5525
    %v5578 = vpack.c.b16 %v5528, %v5527
    %v5579 = vpack.c.b16 %v5530, %v5529
    %v5580 = vpack.c.b16 %v5532, %v5531
    %v5581 = vpack.c.b16 %v5534, %v5533
    %v5582 = vpack.c.b16 %v5536, %v5535
    %v5583 = vpack.c.b16 %v5538, %v5537
    %v5584 = vpack.c.b16 %v5540, %v5539
    %v5585 = vpack.c.b16 %v5542, %v5541
    %v5586 = vpack.c.b16 %v5544, %v5543
    %v5587 = vpack.c.b16 %v5546, %v5545
    %v5588 = vpack.c.b16 %v5548, %v5547
    %v5589 = vpack.c.b16 %v5550, %v5549
    %v5590 = vpack.c.b16 %v5552, %v5551
    %v5591 = vpack.c.b16 %v5554, %v5553
    %v5592 = vpack.c.b16 %v5556, %v5555
    %v5593 = vpack.c.b16 %v5558, %v5557
    %v5594 = vpack.c.b16 %v5560, %v5559
    %v5595 = vpack.c.b16 %v5562, %v5561
    %v5596 = vpack.c.b16 %v5564, %v5563
    %v5645 = vunpack.c.l.b16 %v5485
    %v5646 = vunpack.c.l.b16 %v5486
    %v5647 = vunpack.c.l.b16 %v5487
    %v5648 = vunpack.c.l.b16 %v5488
    %v5649 = vunpack.c.l.b16 %v5489
    %v5650 = vunpack.c.l.b16 %v5490
    %v5651 = vunpack.c.l.b16 %v5491
    %v5652 = vunpack.c.l.b16 %v5492
    %v5653 = vunpack.c.l.b16 %v5493
    %v5654 = vunpack.c.l.b16 %v5494
    %v5655 = vunpack.c.l.b16 %v5495
    %v5656 = vunpack.c.l.b16 %v5496
    %v5657 = vunpack.c.l.b16 %v5497
    %v5658 = vunpack.c.l.b16 %v5498
    %v5659 = vunpack.c.l.b16 %v5499
    %v5660 = vunpack.c.l.b16 %v5500
    %v5661 = vpack.c.b16 %v5646, %v5645
    %v5662 = vpack.c.b16 %v5648, %v5647
    %v5663 = vpack.c.b16 %v5650, %v5649
    %v5664 = vpack.c.b16 %v5652, %v5651
    %v5665 = vpack.c.b16 %v5654, %v5653
    %v5666 = vpack.c.b16 %v5656, %v5655
    %v5667 = vpack.c.b16 %v5658, %v5657
    %v5668 = vpack.c.b16 %v5660, %v5659
    %5677 = vmatprep.subr.bf16.mxu0 0
    %5678 = vmatpush1.bf16.msra.mxu0 %v5661
    %5679 = vmatprep.subr.bf16.mxu0 0
    %5680 = vmatpush1.bf16.msra.mxu0 %v5662
    %5681 = vmatprep.subr.bf16.mxu0 0
    %5682 = vmatpush1.bf16.msra.mxu0 %v5663
    %5683 = vmatprep.subr.bf16.mxu0 0
    %5684 = vmatpush1.bf16.msra.mxu0 %v5664
    %5685 = vmatprep.subr.bf16.mxu0 0
    %5686 = vmatpush1.bf16.msra.mxu0 %v5665
    %5687 = vmatprep.subr.bf16.mxu0 0
    %5688 = vmatpush1.bf16.msra.mxu0 %v5666
    %5689 = vmatprep.subr.bf16.mxu0 0
    %5690 = vmatpush1.bf16.msra.mxu0 %v5667
    %5691 = vmatprep.subr.bf16.mxu0 0
    %5692 = vmatpush1.bf16.msra.mxu0 %v5668
    %5693 = vmatprep.subr.bf16.mxu0 0
    %5694 = vmatpush1.bf16.msra.mxu0 0
    %5695 = vmatprep.subr.bf16.mxu0 0
    %5696 = vmatpush1.bf16.msra.mxu0 0
    %5697 = vmatprep.subr.bf16.mxu0 0
    %5698 = vmatpush1.bf16.msra.mxu0 0
    %5699 = vmatprep.subr.bf16.mxu0 0
    %5700 = vmatpush1.bf16.msra.mxu0 0
    %5701 = vmatprep.subr.bf16.mxu0 0
    %5702 = vmatpush1.bf16.msra.mxu0 0
    %5703 = vmatprep.subr.bf16.mxu0 0
    %5704 = vmatpush1.bf16.msra.mxu0 0
    %5705 = vmatprep.subr.bf16.mxu0 0
    %5706 = vmatpush1.bf16.msra.mxu0 0
    %5707 = vmatprep.subr.bf16.mxu0 0
    %5708 = vmatpush1.bf16.msra.mxu0 0
    %5709 = vmatprep.mubr.bf16.mxu0 0
    %5710 = vmatmul.mubr.bf16.gmra.mrb[0].mxu0 %v5565
    %v5711 = vpop.f32.mrb[0].mxu0
    %v5712 = vadd.f32 0.0, %v5711
    %v5713 = vpop.f32.mrb[0].mxu0
    %v5714 = vpop.f32.mrb[0].mxu0
    %v5715 = vadd.f32 0.0, %v5714
    %v5716 = vpop.f32.mrb[0].mxu0
    %5717 = vmatprep.mubr.bf16.mxu0 0
    %5718 = vmatmul.mubr.bf16.gmra.mrb[0].mxu0 %v5566
    %v5719 = vpop.f32.mrb[0].mxu0
    %v5720 = vadd.f32 0.0, %v5719
    %v5721 = vpop.f32.mrb[0].mxu0
    %v5722 = vpop.f32.mrb[0].mxu0
    %v5723 = vadd.f32 0.0, %v5722
    %v5724 = vpop.f32.mrb[0].mxu0
    %5725 = vmatprep.mubr.bf16.mxu0 0
    %5726 = vmatmul.mubr.bf16.gmra.mrb[0].mxu0 %v5567
    %v5727 = vpop.f32.mrb[0].mxu0
    %v5728 = vadd.f32 0.0, %v5727
    %v5729 = vpop.f32.mrb[0].mxu0
    %v5730 = vpop.f32.mrb[0].mxu0
    %v5731 = vadd.f32 0.0, %v5730
    %v5732 = vpop.f32.mrb[0].mxu0
    %5733 = vmatprep.mubr.bf16.mxu0 0
    %5734 = vmatmul.mubr.bf16.gmra.mrb[0].mxu0 %v5568
    %v5735 = vpop.f32.mrb[0].mxu0
    %v5736 = vadd.f32 0.0, %v5735
    %v5737 = vpop.f32.mrb[0].mxu0
    %v5738 = vpop.f32.mrb[0].mxu0
    %v5739 = vadd.f32 0.0, %v5738
    %v5740 = vpop.f32.mrb[0].mxu0
    %5741 = vmatprep.mubr.bf16.mxu0 0
    %5742 = vmatmul.mubr.bf16.gmra.mrb[0].mxu0 %v5569
    %v5743 = vpop.f32.mrb[0].mxu0
    %v5744 = vadd.f32 0.0, %v5743
    %v5745 = vpop.f32.mrb[0].mxu0
    %v5746 = vpop.f32.mrb[0].mxu0
    %v5747 = vadd.f32 0.0, %v5746
    %v5748 = vpop.f32.mrb[0].mxu0
    %5749 = vmatprep.mubr.bf16.mxu0 0
    %5750 = vmatmul.mubr.bf16.gmra.mrb[0].mxu0 %v5570
    %v5751 = vpop.f32.mrb[0].mxu0
    %v5752 = vadd.f32 0.0, %v5751
    %v5753 = vpop.f32.mrb[0].mxu0
    %v5754 = vpop.f32.mrb[0].mxu0
    %v5755 = vadd.f32 0.0, %v5754
    %v5756 = vpop.f32.mrb[0].mxu0
    %5757 = vmatprep.mubr.bf16.mxu0 0
    %5758 = vmatmul.mubr.bf16.gmra.mrb[0].mxu0 %v5571
    %v5759 = vpop.f32.mrb[0].mxu0
    %v5760 = vadd.f32 0.0, %v5759
    %v5761 = vpop.f32.mrb[0].mxu0
    %v5762 = vpop.f32.mrb[0].mxu0
    %v5763 = vadd.f32 0.0, %v5762
    %v5764 = vpop.f32.mrb[0].mxu0
    %5765 = vmatprep.mubr.bf16.mxu0 0
    %5766 = vmatmul.mubr.bf16.gmra.mrb[0].mxu0 %v5572
    %v5767 = vpop.f32.mrb[0].mxu0
    %v5768 = vadd.f32 0.0, %v5767
    %v5769 = vpop.f32.mrb[0].mxu0
    %v5770 = vpop.f32.mrb[0].mxu0
    %v5771 = vadd.f32 0.0, %v5770
    %v5772 = vpop.f32.mrb[0].mxu0
    %5773 = vmatprep.mubr.bf16.mxu0 0
    %5774 = vmatmul.mubr.bf16.gmra.mrb[0].mxu0 %v5573
    %v5775 = vpop.f32.mrb[0].mxu0
    %v5776 = vadd.f32 0.0, %v5775
    %v5777 = vpop.f32.mrb[0].mxu0
    %v5778 = vpop.f32.mrb[0].mxu0
    %v5779 = vadd.f32 0.0, %v5778
    %v5780 = vpop.f32.mrb[0].mxu0
    %5781 = vmatprep.mubr.bf16.mxu0 0
    %5782 = vmatmul.mubr.bf16.gmra.mrb[0].mxu0 %v5574
    %v5783 = vpop.f32.mrb[0].mxu0
    %v5784 = vadd.f32 0.0, %v5783
    %v5785 = vpop.f32.mrb[0].mxu0
    %v5786 = vpop.f32.mrb[0].mxu0
    %v5787 = vadd.f32 0.0, %v5786
    %v5788 = vpop.f32.mrb[0].mxu0
    %5789 = vmatprep.mubr.bf16.mxu0 0
    %5790 = vmatmul.mubr.bf16.gmra.mrb[0].mxu0 %v5575
    %v5791 = vpop.f32.mrb[0].mxu0
    %v5792 = vadd.f32 0.0, %v5791
    %v5793 = vpop.f32.mrb[0].mxu0
    %v5794 = vpop.f32.mrb[0].mxu0
    %v5795 = vadd.f32 0.0, %v5794
    %v5796 = vpop.f32.mrb[0].mxu0
    %5797 = vmatprep.mubr.bf16.mxu0 0
    %5798 = vmatmul.mubr.bf16.gmra.mrb[0].mxu0 %v5576
    %v5799 = vpop.f32.mrb[0].mxu0
    %v5800 = vadd.f32 0.0, %v5799
    %v5801 = vpop.f32.mrb[0].mxu0
    %v5802 = vpop.f32.mrb[0].mxu0
    %v5803 = vadd.f32 0.0, %v5802
    %v5804 = vpop.f32.mrb[0].mxu0
    %5805 = vmatprep.mubr.bf16.mxu0 0
    %5806 = vmatmul.mubr.bf16.gmra.mrb[0].mxu0 %v5577
    %v5807 = vpop.f32.mrb[0].mxu0
    %v5808 = vadd.f32 0.0, %v5807
    %v5809 = vpop.f32.mrb[0].mxu0
    %v5810 = vpop.f32.mrb[0].mxu0
    %v5811 = vadd.f32 0.0, %v5810
    %v5812 = vpop.f32.mrb[0].mxu0
    %5813 = vmatprep.mubr.bf16.mxu0 0
    %5814 = vmatmul.mubr.bf16.gmra.mrb[0].mxu0 %v5578
    %v5815 = vpop.f32.mrb[0].mxu0
    %v5816 = vadd.f32 0.0, %v5815
    %v5817 = vpop.f32.mrb[0].mxu0
    %v5818 = vpop.f32.mrb[0].mxu0
    %v5819 = vadd.f32 0.0, %v5818
    %v5820 = vpop.f32.mrb[0].mxu0
    %5821 = vmatprep.mubr.bf16.mxu0 0
    %5822 = vmatmul.mubr.bf16.gmra.mrb[0].mxu0 %v5579
    %v5823 = vpop.f32.mrb[0].mxu0
    %v5824 = vadd.f32 0.0, %v5823
    %v5825 = vpop.f32.mrb[0].mxu0
    %v5826 = vpop.f32.mrb[0].mxu0
    %v5827 = vadd.f32 0.0, %v5826
    %v5828 = vpop.f32.mrb[0].mxu0
    %5829 = vmatprep.mubr.bf16.mxu0 0
    %5830 = vmatmul.mubr.bf16.gmra.mrb[0].mxu0 %v5580
    %v5831 = vpop.f32.mrb[0].mxu0
    %v5832 = vadd.f32 0.0, %v5831
    %v5833 = vpop.f32.mrb[0].mxu0
    %v5834 = vpop.f32.mrb[0].mxu0
    %v5835 = vadd.f32 0.0, %v5834
    %v5836 = vpop.f32.mrb[0].mxu0
    %5837 = vmatprep.mubr.bf16.mxu0 0
    %5838 = vmatmul.mubr.bf16.gmra.mrb[0].mxu0 %v5581
    %v5839 = vpop.f32.mrb[0].mxu0
    %v5840 = vadd.f32 0.0, %v5839
    %v5841 = vpop.f32.mrb[0].mxu0
    %v5842 = vpop.f32.mrb[0].mxu0
    %v5843 = vadd.f32 0.0, %v5842
    %v5844 = vpop.f32.mrb[0].mxu0
    %5845 = vmatprep.mubr.bf16.mxu0 0
    %5846 = vmatmul.mubr.bf16.gmra.mrb[0].mxu0 %v5582
    %v5847 = vpop.f32.mrb[0].mxu0
    %v5848 = vadd.f32 0.0, %v5847
    %v5849 = vpop.f32.mrb[0].mxu0
    %v5850 = vpop.f32.mrb[0].mxu0
    %v5851 = vadd.f32 0.0, %v5850
    %v5852 = vpop.f32.mrb[0].mxu0
    %5853 = vmatprep.mubr.bf16.mxu0 0
    %5854 = vmatmul.mubr.bf16.gmra.mrb[0].mxu0 %v5583
    %v5855 = vpop.f32.mrb[0].mxu0
    %v5856 = vadd.f32 0.0, %v5855
    %v5857 = vpop.f32.mrb[0].mxu0
    %v5858 = vpop.f32.mrb[0].mxu0
    %v5859 = vadd.f32 0.0, %v5858
    %v5860 = vpop.f32.mrb[0].mxu0
    %5861 = vmatprep.mubr.bf16.mxu0 0
    %5862 = vmatmul.mubr.bf16.gmra.mrb[0].mxu0 %v5584
    %v5863 = vpop.f32.mrb[0].mxu0
    %v5864 = vadd.f32 0.0, %v5863
    %v5865 = vpop.f32.mrb[0].mxu0
    %v5866 = vpop.f32.mrb[0].mxu0
    %v5867 = vadd.f32 0.0, %v5866
    %v5868 = vpop.f32.mrb[0].mxu0
    %5869 = vmatprep.mubr.bf16.mxu0 0
    %5870 = vmatmul.mubr.bf16.gmra.mrb[0].mxu0 %v5585
    %v5871 = vpop.f32.mrb[0].mxu0
    %v5872 = vadd.f32 0.0, %v5871
    %v5873 = vpop.f32.mrb[0].mxu0
    %v5874 = vpop.f32.mrb[0].mxu0
    %v5875 = vadd.f32 0.0, %v5874
    %v5876 = vpop.f32.mrb[0].mxu0
    %5877 = vmatprep.mubr.bf16.mxu0 0
    %5878 = vmatmul.mubr.bf16.gmra.mrb[0].mxu0 %v5586
    %v5879 = vpop.f32.mrb[0].mxu0
    %v5880 = vadd.f32 0.0, %v5879
    %v5881 = vpop.f32.mrb[0].mxu0
    %v5882 = vpop.f32.mrb[0].mxu0
    %v5883 = vadd.f32 0.0, %v5882
    %v5884 = vpop.f32.mrb[0].mxu0
    %5885 = vmatprep.mubr.bf16.mxu0 0
    %5886 = vmatmul.mubr.bf16.gmra.mrb[0].mxu0 %v5587
    %v5887 = vpop.f32.mrb[0].mxu0
    %v5888 = vadd.f32 0.0, %v5887
    %v5889 = vpop.f32.mrb[0].mxu0
    %v5890 = vpop.f32.mrb[0].mxu0
    %v5891 = vadd.f32 0.0, %v5890
    %v5892 = vpop.f32.mrb[0].mxu0
    %5893 = vmatprep.mubr.bf16.mxu0 0
    %5894 = vmatmul.mubr.bf16.gmra.mrb[0].mxu0 %v5588
    %v5895 = vpop.f32.mrb[0].mxu0
    %v5896 = vadd.f32 0.0, %v5895
    %v5897 = vpop.f32.mrb[0].mxu0
    %v5898 = vpop.f32.mrb[0].mxu0
    %v5899 = vadd.f32 0.0, %v5898
    %v5900 = vpop.f32.mrb[0].mxu0
    %5901 = vmatprep.mubr.bf16.mxu0 0
    %5902 = vmatmul.mubr.bf16.gmra.mrb[0].mxu0 %v5589
    %v5903 = vpop.f32.mrb[0].mxu0
    %v5904 = vadd.f32 0.0, %v5903
    %v5905 = vpop.f32.mrb[0].mxu0
    %v5906 = vpop.f32.mrb[0].mxu0
    %v5907 = vadd.f32 0.0, %v5906
    %v5908 = vpop.f32.mrb[0].mxu0
    %5909 = vmatprep.mubr.bf16.mxu0 0
    %5910 = vmatmul.mubr.bf16.gmra.mrb[0].mxu0 %v5590
    %v5911 = vpop.f32.mrb[0].mxu0
    %v5912 = vadd.f32 0.0, %v5911
    %v5913 = vpop.f32.mrb[0].mxu0
    %v5914 = vpop.f32.mrb[0].mxu0
    %v5915 = vadd.f32 0.0, %v5914
    %v5916 = vpop.f32.mrb[0].mxu0
    %5917 = vmatprep.mubr.bf16.mxu0 0
    %5918 = vmatmul.mubr.bf16.gmra.mrb[0].mxu0 %v5591
    %v5919 = vpop.f32.mrb[0].mxu0
    %v5920 = vadd.f32 0.0, %v5919
    %v5921 = vpop.f32.mrb[0].mxu0
    %v5922 = vpop.f32.mrb[0].mxu0
    %v5923 = vadd.f32 0.0, %v5922
    %v5924 = vpop.f32.mrb[0].mxu0
    %5925 = vmatprep.mubr.bf16.mxu0 0
    %5926 = vmatmul.mubr.bf16.gmra.mrb[0].mxu0 %v5592
    %v5927 = vpop.f32.mrb[0].mxu0
    %v5928 = vadd.f32 0.0, %v5927
    %v5929 = vpop.f32.mrb[0].mxu0
    %v5930 = vpop.f32.mrb[0].mxu0
    %v5931 = vadd.f32 0.0, %v5930
    %v5932 = vpop.f32.mrb[0].mxu0
    %5933 = vmatprep.mubr.bf16.mxu0 0
    %5934 = vmatmul.mubr.bf16.gmra.mrb[0].mxu0 %v5593
    %v5935 = vpop.f32.mrb[0].mxu0
    %v5936 = vadd.f32 0.0, %v5935
    %v5937 = vpop.f32.mrb[0].mxu0
    %v5938 = vpop.f32.mrb[0].mxu0
    %v5939 = vadd.f32 0.0, %v5938
    %v5940 = vpop.f32.mrb[0].mxu0
    %5941 = vmatprep.mubr.bf16.mxu0 0
    %5942 = vmatmul.mubr.bf16.gmra.mrb[0].mxu0 %v5594
    %v5943 = vpop.f32.mrb[0].mxu0
    %v5944 = vadd.f32 0.0, %v5943
    %v5945 = vpop.f32.mrb[0].mxu0
    %v5946 = vpop.f32.mrb[0].mxu0
    %v5947 = vadd.f32 0.0, %v5946
    %v5948 = vpop.f32.mrb[0].mxu0
    %5949 = vmatprep.mubr.bf16.mxu0 0
    %5950 = vmatmul.mubr.bf16.gmra.mrb[0].mxu0 %v5595
    %v5951 = vpop.f32.mrb[0].mxu0
    %v5952 = vadd.f32 0.0, %v5951
    %v5953 = vpop.f32.mrb[0].mxu0
    %v5954 = vpop.f32.mrb[0].mxu0
    %v5955 = vadd.f32 0.0, %v5954
    %v5956 = vpop.f32.mrb[0].mxu0
    %5957 = vmatprep.mubr.bf16.mxu0 0
    %5958 = vmatmul.mubr.bf16.gmra.mrb[0].mxu0 %v5596
    %v5959 = vpop.f32.mrb[0].mxu0
    %v5960 = vadd.f32 0.0, %v5959
    %v5961 = vpop.f32.mrb[0].mxu0
    %v5962 = vpop.f32.mrb[0].mxu0
    %v5963 = vadd.f32 0.0, %v5962
    %v5964 = vpop.f32.mrb[0].mxu0
    %5965 = vdwg.mxu0
    %v5966 = vadd.f32 %v4557, %v5712
    %v5967 = vadd.f32 %v4558, %v5715
    %v5968 = vadd.f32 %v4559, %v5720
    %v5969 = vadd.f32 %v4560, %v5723
    %v5970 = vadd.f32 %v4561, %v5728
    %v5971 = vadd.f32 %v4562, %v5731
    %v5972 = vadd.f32 %v4563, %v5736
    %v5973 = vadd.f32 %v4564, %v5739
    %v5974 = vadd.f32 %v4565, %v5744
    %v5975 = vadd.f32 %v4566, %v5747
    %v5976 = vadd.f32 %v4567, %v5752
    %v5977 = vadd.f32 %v4568, %v5755
    %v5978 = vadd.f32 %v4569, %v5760
    %v5979 = vadd.f32 %v4570, %v5763
    %v5980 = vadd.f32 %v4571, %v5768
    %v5981 = vadd.f32 %v4572, %v5771
    %v5982 = vadd.f32 %v4573, %v5776
    %v5983 = vadd.f32 %v4574, %v5779
    %v5984 = vadd.f32 %v4575, %v5784
    %v5985 = vadd.f32 %v4576, %v5787
    %v5986 = vadd.f32 %v4577, %v5792
    %v5987 = vadd.f32 %v4578, %v5795
    %v5988 = vadd.f32 %v4579, %v5800
    %v5989 = vadd.f32 %v4580, %v5803
    %v5990 = vadd.f32 %v4581, %v5808
    %v5991 = vadd.f32 %v4582, %v5811
    %v5992 = vadd.f32 %v4583, %v5816
    %v5993 = vadd.f32 %v4584, %v5819
    %v5994 = vadd.f32 %v4585, %v5824
    %v5995 = vadd.f32 %v4586, %v5827
    %v5996 = vadd.f32 %v4587, %v5832
    %v5997 = vadd.f32 %v4588, %v5835
    %v5998 = vadd.f32 %v4589, %v5840
    %v5999 = vadd.f32 %v4590, %v5843
    %v6000 = vadd.f32 %v4591, %v5848
    %v6001 = vadd.f32 %v4592, %v5851
    %v6002 = vadd.f32 %v4593, %v5856
    %v6003 = vadd.f32 %v4594, %v5859
    %v6004 = vadd.f32 %v4595, %v5864
    %v6005 = vadd.f32 %v4596, %v5867
    %v6006 = vadd.f32 %v4597, %v5872
    %v6007 = vadd.f32 %v4598, %v5875
    %v6008 = vadd.f32 %v4599, %v5880
    %v6009 = vadd.f32 %v4600, %v5883
    %v6010 = vadd.f32 %v4601, %v5888
    %v6011 = vadd.f32 %v4602, %v5891
    %v6012 = vadd.f32 %v4603, %v5896
    %v6013 = vadd.f32 %v4604, %v5899
    %v6014 = vadd.f32 %v4605, %v5904
    %v6015 = vadd.f32 %v4606, %v5907
    %v6016 = vadd.f32 %v4607, %v5912
    %v6017 = vadd.f32 %v4608, %v5915
    %v6018 = vadd.f32 %v4609, %v5920
    %v6019 = vadd.f32 %v4610, %v5923
    %v6020 = vadd.f32 %v4611, %v5928
    %v6021 = vadd.f32 %v4612, %v5931
    %v6022 = vadd.f32 %v4613, %v5936
    %v6023 = vadd.f32 %v4614, %v5939
    %v6024 = vadd.f32 %v4615, %v5944
    %v6025 = vadd.f32 %v4616, %v5947
    %v6026 = vadd.f32 %v4617, %v5952
    %v6027 = vadd.f32 %v4618, %v5955
    %v6028 = vadd.f32 %v4619, %v5960
    %v6029 = vadd.f32 %v4620, %v5963
    %v6030 = vld [vmem:[%s121] sm:$0xe]
    %v6031 = vld [vmem:[%s121 + $0xc] sm:$0xe]
    %v6032 = vld [vmem:[%s121 + $0x18] sm:$0xe]
    %v6033 = vld [vmem:[%s121 + $0x24] sm:$0xe]
    %v6034 = vld [vmem:[%s121 + $0x30] sm:$0xe]
    %v6035 = vld [vmem:[%s121 + $0x3c] sm:$0xe]
    %v6036 = vld [vmem:[%s121 + $0x48] sm:$0xe]
    %v6037 = vld [vmem:[%s121 + $0x54] sm:$0xe]
    %v6038 = vld [vmem:[%s121 + $0x60] sm:$0xe]
    %v6039 = vld [vmem:[%s121 + $0x6c] sm:$0xe]
    %v6040 = vld [vmem:[%s121 + $0x78] sm:$0xe]
    %v6041 = vld [vmem:[%s121 + $0x84] sm:$0xe]
    %v6042 = vld [vmem:[%s121 + $0x90] sm:$0xe]
    %v6043 = vld [vmem:[%s121 + $0x9c] sm:$0xe]
    %v6044 = vld [vmem:[%s121 + $0xa8] sm:$0xe]
    %v6045 = vld [vmem:[%s121 + $0xb4] sm:$0xe]
    %v6046 = vld [vmem:[%s121 + $0xd8] sm:$0xe]
    %v6047 = vld [vmem:[%s121 + $0xe4] sm:$0xe]
    %v6048 = vld [vmem:[%s121 + $0xf0] sm:$0xe]
    %v6049 = vld [vmem:[%s121 + $0xfc] sm:$0xe]
    %v6050 = vld [vmem:[%s121 + $0x108] sm:$0xe]
    %v6051 = vld [vmem:[%s121 + $0x114] sm:$0xe]
    %v6052 = vld [vmem:[%s121 + $0x120] sm:$0xe]
    %v6053 = vld [vmem:[%s121 + $0x12c] sm:$0xe]
    %v6054 = vld [vmem:[%s121 + $0x138] sm:$0xe]
    %v6055 = vld [vmem:[%s121 + $0x144] sm:$0xe]
    %v6056 = vld [vmem:[%s121 + $0x150] sm:$0xe]
    %v6057 = vld [vmem:[%s121 + $0x15c] sm:$0xe]
    %v6058 = vld [vmem:[%s121 + $0x168] sm:$0xe]
    %v6059 = vld [vmem:[%s121 + $0x174] sm:$0xe]
    %v6060 = vld [vmem:[%s121 + $0x180] sm:$0xe]
    %v6061 = vld [vmem:[%s121 + $0x18c] sm:$0xe]
    %v6158 = vrot.slane %v6030, 5
    %v6159 = vrot.slane %v6158, 4
    %v6160 = vrot.slane %v4622, 5
    %v6161 = vsel %vm3178, %v6159, %v6160
    %v6162 = vrot.slane %v6160, 4
    %v6163 = vrot.slane %v4623, 5
    %v6164 = vsel %vm3178, %v6162, %v6163
    %v6165 = vrot.slane %v6031, 5
    %v6166 = vrot.slane %v6165, 4
    %v6167 = vrot.slane %v4625, 5
    %v6168 = vsel %vm3178, %v6166, %v6167
    %v6169 = vrot.slane %v6167, 4
    %v6170 = vrot.slane %v4626, 5
    %v6171 = vsel %vm3178, %v6169, %v6170
    %v6172 = vrot.slane %v6032, 5
    %v6173 = vrot.slane %v6172, 4
    %v6174 = vrot.slane %v4628, 5
    %v6175 = vsel %vm3178, %v6173, %v6174
    %v6176 = vrot.slane %v6174, 4
    %v6177 = vrot.slane %v4629, 5
    %v6178 = vsel %vm3178, %v6176, %v6177
    %v6179 = vrot.slane %v6033, 5
    %v6180 = vrot.slane %v6179, 4
    %v6181 = vrot.slane %v4631, 5
    %v6182 = vsel %vm3178, %v6180, %v6181
    %v6183 = vrot.slane %v6181, 4
    %v6184 = vrot.slane %v4632, 5
    %v6185 = vsel %vm3178, %v6183, %v6184
    %v6186 = vrot.slane %v6034, 5
    %v6187 = vrot.slane %v6186, 4
    %v6188 = vrot.slane %v4634, 5
    %v6189 = vsel %vm3178, %v6187, %v6188
    %v6190 = vrot.slane %v6188, 4
    %v6191 = vrot.slane %v4635, 5
    %v6192 = vsel %vm3178, %v6190, %v6191
    %v6193 = vrot.slane %v6035, 5
    %v6194 = vrot.slane %v6193, 4
    %v6195 = vrot.slane %v4637, 5
    %v6196 = vsel %vm3178, %v6194, %v6195
    %v6197 = vrot.slane %v6195, 4
    %v6198 = vrot.slane %v4638, 5
    %v6199 = vsel %vm3178, %v6197, %v6198
    %v6200 = vrot.slane %v6036, 5
    %v6201 = vrot.slane %v6200, 4
    %v6202 = vrot.slane %v4640, 5
    %v6203 = vsel %vm3178, %v6201, %v6202
    %v6204 = vrot.slane %v6202, 4
    %v6205 = vrot.slane %v4641, 5
    %v6206 = vsel %vm3178, %v6204, %v6205
    %v6207 = vrot.slane %v6037, 5
    %v6208 = vrot.slane %v6207, 4
    %v6209 = vrot.slane %v4643, 5
    %v6210 = vsel %vm3178, %v6208, %v6209
    %v6211 = vrot.slane %v6209, 4
    %v6212 = vrot.slane %v4644, 5
    %v6213 = vsel %vm3178, %v6211, %v6212
    %v6214 = vrot.slane %v6038, 5
    %v6215 = vrot.slane %v6214, 4
    %v6216 = vrot.slane %v4646, 5
    %v6217 = vsel %vm3178, %v6215, %v6216
    %v6218 = vrot.slane %v6216, 4
    %v6219 = vrot.slane %v4647, 5
    %v6220 = vsel %vm3178, %v6218, %v6219
    %v6221 = vrot.slane %v6039, 5
    %v6222 = vrot.slane %v6221, 4
    %v6223 = vrot.slane %v4649, 5
    %v6224 = vsel %vm3178, %v6222, %v6223
    %v6225 = vrot.slane %v6223, 4
    %v6226 = vrot.slane %v4650, 5
    %v6227 = vsel %vm3178, %v6225, %v6226
    %v6228 = vrot.slane %v6040, 5
    %v6229 = vrot.slane %v6228, 4
    %v6230 = vrot.slane %v4652, 5
    %v6231 = vsel %vm3178, %v6229, %v6230
    %v6232 = vrot.slane %v6230, 4
    %v6233 = vrot.slane %v4653, 5
    %v6234 = vsel %vm3178, %v6232, %v6233
    %v6235 = vrot.slane %v6041, 5
    %v6236 = vrot.slane %v6235, 4
    %v6237 = vrot.slane %v4655, 5
    %v6238 = vsel %vm3178, %v6236, %v6237
    %v6239 = vrot.slane %v6237, 4
    %v6240 = vrot.slane %v4656, 5
    %v6241 = vsel %vm3178, %v6239, %v6240
    %v6242 = vrot.slane %v6042, 5
    %v6243 = vrot.slane %v6242, 4
    %v6244 = vrot.slane %v4658, 5
    %v6245 = vsel %vm3178, %v6243, %v6244
    %v6246 = vrot.slane %v6244, 4
    %v6247 = vrot.slane %v4659, 5
    %v6248 = vsel %vm3178, %v6246, %v6247
    %v6249 = vrot.slane %v6043, 5
    %v6250 = vrot.slane %v6249, 4
    %v6251 = vrot.slane %v4661, 5
    %v6252 = vsel %vm3178, %v6250, %v6251
    %v6253 = vrot.slane %v6251, 4
    %v6254 = vrot.slane %v4662, 5
    %v6255 = vsel %vm3178, %v6253, %v6254
    %v6256 = vrot.slane %v6044, 5
    %v6257 = vrot.slane %v6256, 4
    %v6258 = vrot.slane %v4664, 5
    %v6259 = vsel %vm3178, %v6257, %v6258
    %v6260 = vrot.slane %v6258, 4
    %v6261 = vrot.slane %v4665, 5
    %v6262 = vsel %vm3178, %v6260, %v6261
    %v6263 = vrot.slane %v6045, 5
    %v6264 = vrot.slane %v6263, 4
    %v6265 = vrot.slane %v4667, 5
    %v6266 = vsel %vm3178, %v6264, %v6265
    %v6267 = vrot.slane %v6265, 4
    %v6268 = vrot.slane %v4668, 5
    %v6269 = vsel %vm3178, %v6267, %v6268
    %v6270 = vrot.slane %v6046, 5
    %v6271 = vrot.slane %v6270, 4
    %v6272 = vrot.slane %v4670, 5
    %v6273 = vsel %vm3178, %v6271, %v6272
    %v6274 = vrot.slane %v6272, 4
    %v6275 = vrot.slane %v4671, 5
    %v6276 = vsel %vm3178, %v6274, %v6275
    %v6277 = vrot.slane %v6047, 5
    %v6278 = vrot.slane %v6277, 4
    %v6279 = vrot.slane %v4673, 5
    %v6280 = vsel %vm3178, %v6278, %v6279
    %v6281 = vrot.slane %v6279, 4
    %v6282 = vrot.slane %v4674, 5
    %v6283 = vsel %vm3178, %v6281, %v6282
    %v6284 = vrot.slane %v6048, 5
    %v6285 = vrot.slane %v6284, 4
    %v6286 = vrot.slane %v4676, 5
    %v6287 = vsel %vm3178, %v6285, %v6286
    %v6288 = vrot.slane %v6286, 4
    %v6289 = vrot.slane %v4677, 5
    %v6290 = vsel %vm3178, %v6288, %v6289
    %v6291 = vrot.slane %v6049, 5
    %v6292 = vrot.slane %v6291, 4
    %v6293 = vrot.slane %v4679, 5
    %v6294 = vsel %vm3178, %v6292, %v6293
    %v6295 = vrot.slane %v6293, 4
    %v6296 = vrot.slane %v4680, 5
    %v6297 = vsel %vm3178, %v6295, %v6296
    %v6298 = vrot.slane %v6050, 5
    %v6299 = vrot.slane %v6298, 4
    %v6300 = vrot.slane %v4682, 5
    %v6301 = vsel %vm3178, %v6299, %v6300
    %v6302 = vrot.slane %v6300, 4
    %v6303 = vrot.slane %v4683, 5
    %v6304 = vsel %vm3178, %v6302, %v6303
    %v6305 = vrot.slane %v6051, 5
    %v6306 = vrot.slane %v6305, 4
    %v6307 = vrot.slane %v4685, 5
    %v6308 = vsel %vm3178, %v6306, %v6307
    %v6309 = vrot.slane %v6307, 4
    %v6310 = vrot.slane %v4686, 5
    %v6311 = vsel %vm3178, %v6309, %v6310
    %v6312 = vrot.slane %v6052, 5
    %v6313 = vrot.slane %v6312, 4
    %v6314 = vrot.slane %v4688, 5
    %v6315 = vsel %vm3178, %v6313, %v6314
    %v6316 = vrot.slane %v6314, 4
    %v6317 = vrot.slane %v4689, 5
    %v6318 = vsel %vm3178, %v6316, %v6317
    %v6319 = vrot.slane %v6053, 5
    %v6320 = vrot.slane %v6319, 4
    %v6321 = vrot.slane %v4691, 5
    %v6322 = vsel %vm3178, %v6320, %v6321
    %v6323 = vrot.slane %v6321, 4
    %v6324 = vrot.slane %v4692, 5
    %v6325 = vsel %vm3178, %v6323, %v6324
    %v6326 = vrot.slane %v6054, 5
    %v6327 = vrot.slane %v6326, 4
    %v6328 = vrot.slane %v4694, 5
    %v6329 = vsel %vm3178, %v6327, %v6328
    %v6330 = vrot.slane %v6328, 4
    %v6331 = vrot.slane %v4695, 5
    %v6332 = vsel %vm3178, %v6330, %v6331
    %v6333 = vrot.slane %v6055, 5
    %v6334 = vrot.slane %v6333, 4
    %v6335 = vrot.slane %v4697, 5
    %v6336 = vsel %vm3178, %v6334, %v6335
    %v6337 = vrot.slane %v6335, 4
    %v6338 = vrot.slane %v4698, 5
    %v6339 = vsel %vm3178, %v6337, %v6338
    %v6340 = vrot.slane %v6056, 5
    %v6341 = vrot.slane %v6340, 4
    %v6342 = vrot.slane %v4700, 5
    %v6343 = vsel %vm3178, %v6341, %v6342
    %v6344 = vrot.slane %v6342, 4
    %v6345 = vrot.slane %v4701, 5
    %v6346 = vsel %vm3178, %v6344, %v6345
    %v6347 = vrot.slane %v6057, 5
    %v6348 = vrot.slane %v6347, 4
    %v6349 = vrot.slane %v4703, 5
    %v6350 = vsel %vm3178, %v6348, %v6349
    %v6351 = vrot.slane %v6349, 4
    %v6352 = vrot.slane %v4704, 5
    %v6353 = vsel %vm3178, %v6351, %v6352
    %v6354 = vrot.slane %v6058, 5
    %v6355 = vrot.slane %v6354, 4
    %v6356 = vrot.slane %v4706, 5
    %v6357 = vsel %vm3178, %v6355, %v6356
    %v6358 = vrot.slane %v6356, 4
    %v6359 = vrot.slane %v4707, 5
    %v6360 = vsel %vm3178, %v6358, %v6359
    %v6361 = vrot.slane %v6059, 5
    %v6362 = vrot.slane %v6361, 4
    %v6363 = vrot.slane %v4709, 5
    %v6364 = vsel %vm3178, %v6362, %v6363
    %v6365 = vrot.slane %v6363, 4
    %v6366 = vrot.slane %v4710, 5
    %v6367 = vsel %vm3178, %v6365, %v6366
    %v6368 = vrot.slane %v6060, 5
    %v6369 = vrot.slane %v6368, 4
    %v6370 = vrot.slane %v4712, 5
    %v6371 = vsel %vm3178, %v6369, %v6370
    %v6372 = vrot.slane %v6370, 4
    %v6373 = vrot.slane %v4713, 5
    %v6374 = vsel %vm3178, %v6372, %v6373
    %v6375 = vrot.slane %v6061, 5
    %v6376 = vrot.slane %v6375, 4
    %v6377 = vrot.slane %v4715, 5
    %v6378 = vsel %vm3178, %v6376, %v6377
    %v6379 = vrot.slane %v6377, 4
    %v6380 = vrot.slane %v4716, 5
    %v6381 = vsel %vm3178, %v6379, %v6380
    %v6382 = vld [vmem:[#allocation6 + $0x140] sm:$0xf]
    %v6383 = vld [vmem:[#allocation6 + $0x144] sm:$0xf]
    %v6384 = vld [vmem:[#allocation6 + $0x148] sm:$0xf]
    %v6385 = vld [vmem:[#allocation6 + $0x14c] sm:$0xf]
    %v6386 = vld [vmem:[#allocation6 + $0x150] sm:$0xf]
    %v6387 = vld [vmem:[#allocation6 + $0x154] sm:$0xf]
    %v6388 = vld [vmem:[#allocation6 + $0x158] sm:$0xf]
    %v6389 = vld [vmem:[#allocation6 + $0x15c] sm:$0xf]
    %v6390 = vld [vmem:[#allocation6 + $0x160] sm:$0xf]
    %v6391 = vld [vmem:[#allocation6 + $0x164] sm:$0xf]
    %v6392 = vld [vmem:[#allocation6 + $0x168] sm:$0xf]
    %v6393 = vld [vmem:[#allocation6 + $0x16c] sm:$0xf]
    %v6394 = vld [vmem:[#allocation6 + $0x170] sm:$0xf]
    %v6395 = vld [vmem:[#allocation6 + $0x174] sm:$0xf]
    %v6396 = vld [vmem:[#allocation6 + $0x178] sm:$0xf]
    %v6397 = vld [vmem:[#allocation6 + $0x17c] sm:$0xf]
    %v6398 = vunpack.c.l.b16 %v6161
    %v6399 = vunpack.c.l.b16 %v6164
    %v6400 = vunpack.c.l.b16 %v6168
    %v6401 = vunpack.c.l.b16 %v6171
    %v6402 = vunpack.c.l.b16 %v6175
    %v6403 = vunpack.c.l.b16 %v6178
    %v6404 = vunpack.c.l.b16 %v6182
    %v6405 = vunpack.c.l.b16 %v6185
    %v6406 = vunpack.c.l.b16 %v6189
    %v6407 = vunpack.c.l.b16 %v6192
    %v6408 = vunpack.c.l.b16 %v6196
    %v6409 = vunpack.c.l.b16 %v6199
    %v6410 = vunpack.c.l.b16 %v6203
    %v6411 = vunpack.c.l.b16 %v6206
    %v6412 = vunpack.c.l.b16 %v6210
    %v6413 = vunpack.c.l.b16 %v6213
    %v6414 = vunpack.c.l.b16 %v6217
    %v6415 = vunpack.c.l.b16 %v6220
    %v6416 = vunpack.c.l.b16 %v6224
    %v6417 = vunpack.c.l.b16 %v6227
    %v6418 = vunpack.c.l.b16 %v6231
    %v6419 = vunpack.c.l.b16 %v6234
    %v6420 = vunpack.c.l.b16 %v6238
    %v6421 = vunpack.c.l.b16 %v6241
    %v6422 = vunpack.c.l.b16 %v6245
    %v6423 = vunpack.c.l.b16 %v6248
    %v6424 = vunpack.c.l.b16 %v6252
    %v6425 = vunpack.c.l.b16 %v6255
    %v6426 = vunpack.c.l.b16 %v6259
    %v6427 = vunpack.c.l.b16 %v6262
    %v6428 = vunpack.c.l.b16 %v6266
    %v6429 = vunpack.c.l.b16 %v6269
    %v6430 = vunpack.c.l.b16 %v6273
    %v6431 = vunpack.c.l.b16 %v6276
    %v6432 = vunpack.c.l.b16 %v6280
    %v6433 = vunpack.c.l.b16 %v6283
    %v6434 = vunpack.c.l.b16 %v6287
    %v6435 = vunpack.c.l.b16 %v6290
    %v6436 = vunpack.c.l.b16 %v6294
    %v6437 = vunpack.c.l.b16 %v6297
    %v6438 = vunpack.c.l.b16 %v6301
    %v6439 = vunpack.c.l.b16 %v6304
    %v6440 = vunpack.c.l.b16 %v6308
    %v6441 = vunpack.c.l.b16 %v6311
    %v6442 = vunpack.c.l.b16 %v6315
    %v6443 = vunpack.c.l.b16 %v6318
    %v6444 = vunpack.c.l.b16 %v6322
    %v6445 = vunpack.c.l.b16 %v6325
    %v6446 = vunpack.c.l.b16 %v6329
    %v6447 = vunpack.c.l.b16 %v6332
    %v6448 = vunpack.c.l.b16 %v6336
    %v6449 = vunpack.c.l.b16 %v6339
    %v6450 = vunpack.c.l.b16 %v6343
    %v6451 = vunpack.c.l.b16 %v6346
    %v6452 = vunpack.c.l.b16 %v6350
    %v6453 = vunpack.c.l.b16 %v6353
    %v6454 = vunpack.c.l.b16 %v6357
    %v6455 = vunpack.c.l.b16 %v6360
    %v6456 = vunpack.c.l.b16 %v6364
    %v6457 = vunpack.c.l.b16 %v6367
    %v6458 = vunpack.c.l.b16 %v6371
    %v6459 = vunpack.c.l.b16 %v6374
    %v6460 = vunpack.c.l.b16 %v6378
    %v6461 = vunpack.c.l.b16 %v6381
    %v6462 = vpack.c.b16 %v6399, %v6398
    %v6463 = vpack.c.b16 %v6401, %v6400
    %v6464 = vpack.c.b16 %v6403, %v6402
    %v6465 = vpack.c.b16 %v6405, %v6404
    %v6466 = vpack.c.b16 %v6407, %v6406
    %v6467 = vpack.c.b16 %v6409, %v6408
    %v6468 = vpack.c.b16 %v6411, %v6410
    %v6469 = vpack.c.b16 %v6413, %v6412
    %v6470 = vpack.c.b16 %v6415, %v6414
    %v6471 = vpack.c.b16 %v6417, %v6416
    %v6472 = vpack.c.b16 %v6419, %v6418
    %v6473 = vpack.c.b16 %v6421, %v6420
    %v6474 = vpack.c.b16 %v6423, %v6422
    %v6475 = vpack.c.b16 %v6425, %v6424
    %v6476 = vpack.c.b16 %v6427, %v6426
    %v6477 = vpack.c.b16 %v6429, %v6428
    %v6478 = vpack.c.b16 %v6431, %v6430
    %v6479 = vpack.c.b16 %v6433, %v6432
    %v6480 = vpack.c.b16 %v6435, %v6434
    %v6481 = vpack.c.b16 %v6437, %v6436
    %v6482 = vpack.c.b16 %v6439, %v6438
    %v6483 = vpack.c.b16 %v6441, %v6440
    %v6484 = vpack.c.b16 %v6443, %v6442
    %v6485 = vpack.c.b16 %v6445, %v6444
    %v6486 = vpack.c.b16 %v6447, %v6446
    %v6487 = vpack.c.b16 %v6449, %v6448
    %v6488 = vpack.c.b16 %v6451, %v6450
    %v6489 = vpack.c.b16 %v6453, %v6452
    %v6490 = vpack.c.b16 %v6455, %v6454
    %v6491 = vpack.c.b16 %v6457, %v6456
    %v6492 = vpack.c.b16 %v6459, %v6458
    %v6493 = vpack.c.b16 %v6461, %v6460
    %v6542 = vunpack.c.l.b16 %v6382
    %v6543 = vunpack.c.l.b16 %v6383
    %v6544 = vunpack.c.l.b16 %v6384
    %v6545 = vunpack.c.l.b16 %v6385
    %v6546 = vunpack.c.l.b16 %v6386
    %v6547 = vunpack.c.l.b16 %v6387
    %v6548 = vunpack.c.l.b16 %v6388
    %v6549 = vunpack.c.l.b16 %v6389
    %v6550 = vunpack.c.l.b16 %v6390
    %v6551 = vunpack.c.l.b16 %v6391
    %v6552 = vunpack.c.l.b16 %v6392
    %v6553 = vunpack.c.l.b16 %v6393
    %v6554 = vunpack.c.l.b16 %v6394
    %v6555 = vunpack.c.l.b16 %v6395
    %v6556 = vunpack.c.l.b16 %v6396
    %v6557 = vunpack.c.l.b16 %v6397
    %v6558 = vpack.c.b16 %v6543, %v6542
    %v6559 = vpack.c.b16 %v6545, %v6544
    %v6560 = vpack.c.b16 %v6547, %v6546
    %v6561 = vpack.c.b16 %v6549, %v6548
    %v6562 = vpack.c.b16 %v6551, %v6550
    %v6563 = vpack.c.b16 %v6553, %v6552
    %v6564 = vpack.c.b16 %v6555, %v6554
    %v6565 = vpack.c.b16 %v6557, %v6556
    %6574 = vmatprep.subr.bf16.mxu0 0
    %6575 = vmatpush1.bf16.msra.mxu0 %v6558
    %6576 = vmatprep.subr.bf16.mxu0 0
    %6577 = vmatpush1.bf16.msra.mxu0 %v6559
    %6578 = vmatprep.subr.bf16.mxu0 0
    %6579 = vmatpush1.bf16.msra.mxu0 %v6560
    %6580 = vmatprep.subr.bf16.mxu0 0
    %6581 = vmatpush1.bf16.msra.mxu0 %v6561
    %6582 = vmatprep.subr.bf16.mxu0 0
    %6583 = vmatpush1.bf16.msra.mxu0 %v6562
    %6584 = vmatprep.subr.bf16.mxu0 0
    %6585 = vmatpush1.bf16.msra.mxu0 %v6563
    %6586 = vmatprep.subr.bf16.mxu0 0
    %6587 = vmatpush1.bf16.msra.mxu0 %v6564
    %6588 = vmatprep.subr.bf16.mxu0 0
    %6589 = vmatpush1.bf16.msra.mxu0 %v6565
    %6590 = vmatprep.subr.bf16.mxu0 0
    %6591 = vmatpush1.bf16.msra.mxu0 0
    %6592 = vmatprep.subr.bf16.mxu0 0
    %6593 = vmatpush1.bf16.msra.mxu0 0
    %6594 = vmatprep.subr.bf16.mxu0 0
    %6595 = vmatpush1.bf16.msra.mxu0 0
    %6596 = vmatprep.subr.bf16.mxu0 0
    %6597 = vmatpush1.bf16.msra.mxu0 0
    %6598 = vmatprep.subr.bf16.mxu0 0
    %6599 = vmatpush1.bf16.msra.mxu0 0
    %6600 = vmatprep.subr.bf16.mxu0 0
    %6601 = vmatpush1.bf16.msra.mxu0 0
    %6602 = vmatprep.subr.bf16.mxu0 0
    %6603 = vmatpush1.bf16.msra.mxu0 0
    %6604 = vmatprep.subr.bf16.mxu0 0
    %6605 = vmatpush1.bf16.msra.mxu0 0
    %6606 = vmatprep.mubr.bf16.mxu0 0
    %6607 = vmatmul.mubr.bf16.gmra.mrb[0].mxu0 %v6462
    %v6608 = vpop.f32.mrb[0].mxu0
    %v6609 = vadd.f32 0.0, %v6608
    %v6610 = vpop.f32.mrb[0].mxu0
    %v6611 = vpop.f32.mrb[0].mxu0
    %v6612 = vadd.f32 0.0, %v6611
    %v6613 = vpop.f32.mrb[0].mxu0
    %6614 = vmatprep.mubr.bf16.mxu0 0
    %6615 = vmatmul.mubr.bf16.gmra.mrb[0].mxu0 %v6463
    %v6616 = vpop.f32.mrb[0].mxu0
    %v6617 = vadd.f32 0.0, %v6616
    %v6618 = vpop.f32.mrb[0].mxu0
    %v6619 = vpop.f32.mrb[0].mxu0
    %v6620 = vadd.f32 0.0, %v6619
    %v6621 = vpop.f32.mrb[0].mxu0
    %6622 = vmatprep.mubr.bf16.mxu0 0
    %6623 = vmatmul.mubr.bf16.gmra.mrb[0].mxu0 %v6464
    %v6624 = vpop.f32.mrb[0].mxu0
    %v6625 = vadd.f32 0.0, %v6624
    %v6626 = vpop.f32.mrb[0].mxu0
    %v6627 = vpop.f32.mrb[0].mxu0
    %v6628 = vadd.f32 0.0, %v6627
    %v6629 = vpop.f32.mrb[0].mxu0
    %6630 = vmatprep.mubr.bf16.mxu0 0
    %6631 = vmatmul.mubr.bf16.gmra.mrb[0].mxu0 %v6465
    %v6632 = vpop.f32.mrb[0].mxu0
    %v6633 = vadd.f32 0.0, %v6632
    %v6634 = vpop.f32.mrb[0].mxu0
    %v6635 = vpop.f32.mrb[0].mxu0
    %v6636 = vadd.f32 0.0, %v6635
    %v6637 = vpop.f32.mrb[0].mxu0
    %6638 = vmatprep.mubr.bf16.mxu0 0
    %6639 = vmatmul.mubr.bf16.gmra.mrb[0].mxu0 %v6466
    %v6640 = vpop.f32.mrb[0].mxu0
    %v6641 = vadd.f32 0.0, %v6640
    %v6642 = vpop.f32.mrb[0].mxu0
    %v6643 = vpop.f32.mrb[0].mxu0
    %v6644 = vadd.f32 0.0, %v6643
    %v6645 = vpop.f32.mrb[0].mxu0
    %6646 = vmatprep.mubr.bf16.mxu0 0
    %6647 = vmatmul.mubr.bf16.gmra.mrb[0].mxu0 %v6467
    %v6648 = vpop.f32.mrb[0].mxu0
    %v6649 = vadd.f32 0.0, %v6648
    %v6650 = vpop.f32.mrb[0].mxu0
    %v6651 = vpop.f32.mrb[0].mxu0
    %v6652 = vadd.f32 0.0, %v6651
    %v6653 = vpop.f32.mrb[0].mxu0
    %6654 = vmatprep.mubr.bf16.mxu0 0
    %6655 = vmatmul.mubr.bf16.gmra.mrb[0].mxu0 %v6468
    %v6656 = vpop.f32.mrb[0].mxu0
    %v6657 = vadd.f32 0.0, %v6656
    %v6658 = vpop.f32.mrb[0].mxu0
    %v6659 = vpop.f32.mrb[0].mxu0
    %v6660 = vadd.f32 0.0, %v6659
    %v6661 = vpop.f32.mrb[0].mxu0
    %6662 = vmatprep.mubr.bf16.mxu0 0
    %6663 = vmatmul.mubr.bf16.gmra.mrb[0].mxu0 %v6469
    %v6664 = vpop.f32.mrb[0].mxu0
    %v6665 = vadd.f32 0.0, %v6664
    %v6666 = vpop.f32.mrb[0].mxu0
    %v6667 = vpop.f32.mrb[0].mxu0
    %v6668 = vadd.f32 0.0, %v6667
    %v6669 = vpop.f32.mrb[0].mxu0
    %6670 = vmatprep.mubr.bf16.mxu0 0
    %6671 = vmatmul.mubr.bf16.gmra.mrb[0].mxu0 %v6470
    %v6672 = vpop.f32.mrb[0].mxu0
    %v6673 = vadd.f32 0.0, %v6672
    %v6674 = vpop.f32.mrb[0].mxu0
    %v6675 = vpop.f32.mrb[0].mxu0
    %v6676 = vadd.f32 0.0, %v6675
    %v6677 = vpop.f32.mrb[0].mxu0
    %6678 = vmatprep.mubr.bf16.mxu0 0
    %6679 = vmatmul.mubr.bf16.gmra.mrb[0].mxu0 %v6471
    %v6680 = vpop.f32.mrb[0].mxu0
    %v6681 = vadd.f32 0.0, %v6680
    %v6682 = vpop.f32.mrb[0].mxu0
    %v6683 = vpop.f32.mrb[0].mxu0
    %v6684 = vadd.f32 0.0, %v6683
    %v6685 = vpop.f32.mrb[0].mxu0
    %6686 = vmatprep.mubr.bf16.mxu0 0
    %6687 = vmatmul.mubr.bf16.gmra.mrb[0].mxu0 %v6472
    %v6688 = vpop.f32.mrb[0].mxu0
    %v6689 = vadd.f32 0.0, %v6688
    %v6690 = vpop.f32.mrb[0].mxu0
    %v6691 = vpop.f32.mrb[0].mxu0
    %v6692 = vadd.f32 0.0, %v6691
    %v6693 = vpop.f32.mrb[0].mxu0
    %6694 = vmatprep.mubr.bf16.mxu0 0
    %6695 = vmatmul.mubr.bf16.gmra.mrb[0].mxu0 %v6473
    %v6696 = vpop.f32.mrb[0].mxu0
    %v6697 = vadd.f32 0.0, %v6696
    %v6698 = vpop.f32.mrb[0].mxu0
    %v6699 = vpop.f32.mrb[0].mxu0
    %v6700 = vadd.f32 0.0, %v6699
    %v6701 = vpop.f32.mrb[0].mxu0
    %6702 = vmatprep.mubr.bf16.mxu0 0
    %6703 = vmatmul.mubr.bf16.gmra.mrb[0].mxu0 %v6474
    %v6704 = vpop.f32.mrb[0].mxu0
    %v6705 = vadd.f32 0.0, %v6704
    %v6706 = vpop.f32.mrb[0].mxu0
    %v6707 = vpop.f32.mrb[0].mxu0
    %v6708 = vadd.f32 0.0, %v6707
    %v6709 = vpop.f32.mrb[0].mxu0
    %6710 = vmatprep.mubr.bf16.mxu0 0
    %6711 = vmatmul.mubr.bf16.gmra.mrb[0].mxu0 %v6475
    %v6712 = vpop.f32.mrb[0].mxu0
    %v6713 = vadd.f32 0.0, %v6712
    %v6714 = vpop.f32.mrb[0].mxu0
    %v6715 = vpop.f32.mrb[0].mxu0
    %v6716 = vadd.f32 0.0, %v6715
    %v6717 = vpop.f32.mrb[0].mxu0
    %6718 = vmatprep.mubr.bf16.mxu0 0
    %6719 = vmatmul.mubr.bf16.gmra.mrb[0].mxu0 %v6476
    %v6720 = vpop.f32.mrb[0].mxu0
    %v6721 = vadd.f32 0.0, %v6720
    %v6722 = vpop.f32.mrb[0].mxu0
    %v6723 = vpop.f32.mrb[0].mxu0
    %v6724 = vadd.f32 0.0, %v6723
    %v6725 = vpop.f32.mrb[0].mxu0
    %6726 = vmatprep.mubr.bf16.mxu0 0
    %6727 = vmatmul.mubr.bf16.gmra.mrb[0].mxu0 %v6477
    %v6728 = vpop.f32.mrb[0].mxu0
    %v6729 = vadd.f32 0.0, %v6728
    %v6730 = vpop.f32.mrb[0].mxu0
    %v6731 = vpop.f32.mrb[0].mxu0
    %v6732 = vadd.f32 0.0, %v6731
    %v6733 = vpop.f32.mrb[0].mxu0
    %6734 = vmatprep.mubr.bf16.mxu0 0
    %6735 = vmatmul.mubr.bf16.gmra.mrb[0].mxu0 %v6478
    %v6736 = vpop.f32.mrb[0].mxu0
    %v6737 = vadd.f32 0.0, %v6736
    %v6738 = vpop.f32.mrb[0].mxu0
    %v6739 = vpop.f32.mrb[0].mxu0
    %v6740 = vadd.f32 0.0, %v6739
    %v6741 = vpop.f32.mrb[0].mxu0
    %6742 = vmatprep.mubr.bf16.mxu0 0
    %6743 = vmatmul.mubr.bf16.gmra.mrb[0].mxu0 %v6479
    %v6744 = vpop.f32.mrb[0].mxu0
    %v6745 = vadd.f32 0.0, %v6744
    %v6746 = vpop.f32.mrb[0].mxu0
    %v6747 = vpop.f32.mrb[0].mxu0
    %v6748 = vadd.f32 0.0, %v6747
    %v6749 = vpop.f32.mrb[0].mxu0
    %6750 = vmatprep.mubr.bf16.mxu0 0
    %6751 = vmatmul.mubr.bf16.gmra.mrb[0].mxu0 %v6480
    %v6752 = vpop.f32.mrb[0].mxu0
    %v6753 = vadd.f32 0.0, %v6752
    %v6754 = vpop.f32.mrb[0].mxu0
    %v6755 = vpop.f32.mrb[0].mxu0
    %v6756 = vadd.f32 0.0, %v6755
    %v6757 = vpop.f32.mrb[0].mxu0
    %6758 = vmatprep.mubr.bf16.mxu0 0
    %6759 = vmatmul.mubr.bf16.gmra.mrb[0].mxu0 %v6481
    %v6760 = vpop.f32.mrb[0].mxu0
    %v6761 = vadd.f32 0.0, %v6760
    %v6762 = vpop.f32.mrb[0].mxu0
    %v6763 = vpop.f32.mrb[0].mxu0
    %v6764 = vadd.f32 0.0, %v6763
    %v6765 = vpop.f32.mrb[0].mxu0
    %6766 = vmatprep.mubr.bf16.mxu0 0
    %6767 = vmatmul.mubr.bf16.gmra.mrb[0].mxu0 %v6482
    %v6768 = vpop.f32.mrb[0].mxu0
    %v6769 = vadd.f32 0.0, %v6768
    %v6770 = vpop.f32.mrb[0].mxu0
    %v6771 = vpop.f32.mrb[0].mxu0
    %v6772 = vadd.f32 0.0, %v6771
    %v6773 = vpop.f32.mrb[0].mxu0
    %6774 = vmatprep.mubr.bf16.mxu0 0
    %6775 = vmatmul.mubr.bf16.gmra.mrb[0].mxu0 %v6483
    %v6776 = vpop.f32.mrb[0].mxu0
    %v6777 = vadd.f32 0.0, %v6776
    %v6778 = vpop.f32.mrb[0].mxu0
    %v6779 = vpop.f32.mrb[0].mxu0
    %v6780 = vadd.f32 0.0, %v6779
    %v6781 = vpop.f32.mrb[0].mxu0
    %6782 = vmatprep.mubr.bf16.mxu0 0
    %6783 = vmatmul.mubr.bf16.gmra.mrb[0].mxu0 %v6484
    %v6784 = vpop.f32.mrb[0].mxu0
    %v6785 = vadd.f32 0.0, %v6784
    %v6786 = vpop.f32.mrb[0].mxu0
    %v6787 = vpop.f32.mrb[0].mxu0
    %v6788 = vadd.f32 0.0, %v6787
    %v6789 = vpop.f32.mrb[0].mxu0
    %6790 = vmatprep.mubr.bf16.mxu0 0
    %6791 = vmatmul.mubr.bf16.gmra.mrb[0].mxu0 %v6485
    %v6792 = vpop.f32.mrb[0].mxu0
    %v6793 = vadd.f32 0.0, %v6792
    %v6794 = vpop.f32.mrb[0].mxu0
    %v6795 = vpop.f32.mrb[0].mxu0
    %v6796 = vadd.f32 0.0, %v6795
    %v6797 = vpop.f32.mrb[0].mxu0
    %6798 = vmatprep.mubr.bf16.mxu0 0
    %6799 = vmatmul.mubr.bf16.gmra.mrb[0].mxu0 %v6486
    %v6800 = vpop.f32.mrb[0].mxu0
    %v6801 = vadd.f32 0.0, %v6800
    %v6802 = vpop.f32.mrb[0].mxu0
    %v6803 = vpop.f32.mrb[0].mxu0
    %v6804 = vadd.f32 0.0, %v6803
    %v6805 = vpop.f32.mrb[0].mxu0
    %6806 = vmatprep.mubr.bf16.mxu0 0
    %6807 = vmatmul.mubr.bf16.gmra.mrb[0].mxu0 %v6487
    %v6808 = vpop.f32.mrb[0].mxu0
    %v6809 = vadd.f32 0.0, %v6808
    %v6810 = vpop.f32.mrb[0].mxu0
    %v6811 = vpop.f32.mrb[0].mxu0
    %v6812 = vadd.f32 0.0, %v6811
    %v6813 = vpop.f32.mrb[0].mxu0
    %6814 = vmatprep.mubr.bf16.mxu0 0
    %6815 = vmatmul.mubr.bf16.gmra.mrb[0].mxu0 %v6488
    %v6816 = vpop.f32.mrb[0].mxu0
    %v6817 = vadd.f32 0.0, %v6816
    %v6818 = vpop.f32.mrb[0].mxu0
    %v6819 = vpop.f32.mrb[0].mxu0
    %v6820 = vadd.f32 0.0, %v6819
    %v6821 = vpop.f32.mrb[0].mxu0
    %6822 = vmatprep.mubr.bf16.mxu0 0
    %6823 = vmatmul.mubr.bf16.gmra.mrb[0].mxu0 %v6489
    %v6824 = vpop.f32.mrb[0].mxu0
    %v6825 = vadd.f32 0.0, %v6824
    %v6826 = vpop.f32.mrb[0].mxu0
    %v6827 = vpop.f32.mrb[0].mxu0
    %v6828 = vadd.f32 0.0, %v6827
    %v6829 = vpop.f32.mrb[0].mxu0
    %6830 = vmatprep.mubr.bf16.mxu0 0
    %6831 = vmatmul.mubr.bf16.gmra.mrb[0].mxu0 %v6490
    %v6832 = vpop.f32.mrb[0].mxu0
    %v6833 = vadd.f32 0.0, %v6832
    %v6834 = vpop.f32.mrb[0].mxu0
    %v6835 = vpop.f32.mrb[0].mxu0
    %v6836 = vadd.f32 0.0, %v6835
    %v6837 = vpop.f32.mrb[0].mxu0
    %6838 = vmatprep.mubr.bf16.mxu0 0
    %6839 = vmatmul.mubr.bf16.gmra.mrb[0].mxu0 %v6491
    %v6840 = vpop.f32.mrb[0].mxu0
    %v6841 = vadd.f32 0.0, %v6840
    %v6842 = vpop.f32.mrb[0].mxu0
    %v6843 = vpop.f32.mrb[0].mxu0
    %v6844 = vadd.f32 0.0, %v6843
    %v6845 = vpop.f32.mrb[0].mxu0
    %6846 = vmatprep.mubr.bf16.mxu0 0
    %6847 = vmatmul.mubr.bf16.gmra.mrb[0].mxu0 %v6492
    %v6848 = vpop.f32.mrb[0].mxu0
    %v6849 = vadd.f32 0.0, %v6848
    %v6850 = vpop.f32.mrb[0].mxu0
    %v6851 = vpop.f32.mrb[0].mxu0
    %v6852 = vadd.f32 0.0, %v6851
    %v6853 = vpop.f32.mrb[0].mxu0
    %6854 = vmatprep.mubr.bf16.mxu0 0
    %6855 = vmatmul.mubr.bf16.gmra.mrb[0].mxu0 %v6493
    %v6856 = vpop.f32.mrb[0].mxu0
    %v6857 = vadd.f32 0.0, %v6856
    %v6858 = vpop.f32.mrb[0].mxu0
    %v6859 = vpop.f32.mrb[0].mxu0
    %v6860 = vadd.f32 0.0, %v6859
    %v6861 = vpop.f32.mrb[0].mxu0
    %6862 = vdwg.mxu0
    %v6863 = vadd.f32 %v5966, %v6609
    %v6864 = vadd.f32 %v5967, %v6612
    %v6865 = vadd.f32 %v5968, %v6617
    %v6866 = vadd.f32 %v5969, %v6620
    %v6867 = vadd.f32 %v5970, %v6625
    %v6868 = vadd.f32 %v5971, %v6628
    %v6869 = vadd.f32 %v5972, %v6633
    %v6870 = vadd.f32 %v5973, %v6636
    %v6871 = vadd.f32 %v5974, %v6641
    %v6872 = vadd.f32 %v5975, %v6644
    %v6873 = vadd.f32 %v5976, %v6649
    %v6874 = vadd.f32 %v5977, %v6652
    %v6875 = vadd.f32 %v5978, %v6657
    %v6876 = vadd.f32 %v5979, %v6660
    %v6877 = vadd.f32 %v5980, %v6665
    %v6878 = vadd.f32 %v5981, %v6668
    %v6879 = vadd.f32 %v5982, %v6673
    %v6880 = vadd.f32 %v5983, %v6676
    %v6881 = vadd.f32 %v5984, %v6681
    %v6882 = vadd.f32 %v5985, %v6684
    %v6883 = vadd.f32 %v5986, %v6689
    %v6884 = vadd.f32 %v5987, %v6692
    %v6885 = vadd.f32 %v5988, %v6697
    %v6886 = vadd.f32 %v5989, %v6700
    %v6887 = vadd.f32 %v5990, %v6705
    %v6888 = vadd.f32 %v5991, %v6708
    %v6889 = vadd.f32 %v5992, %v6713
    %v6890 = vadd.f32 %v5993, %v6716
    %v6891 = vadd.f32 %v5994, %v6721
    %v6892 = vadd.f32 %v5995, %v6724
    %v6893 = vadd.f32 %v5996, %v6729
    %v6894 = vadd.f32 %v5997, %v6732
    %v6895 = vadd.f32 %v5998, %v6737
    %v6896 = vadd.f32 %v5999, %v6740
    %v6897 = vadd.f32 %v6000, %v6745
    %v6898 = vadd.f32 %v6001, %v6748
    %v6899 = vadd.f32 %v6002, %v6753
    %v6900 = vadd.f32 %v6003, %v6756
    %v6901 = vadd.f32 %v6004, %v6761
    %v6902 = vadd.f32 %v6005, %v6764
    %v6903 = vadd.f32 %v6006, %v6769
    %v6904 = vadd.f32 %v6007, %v6772
    %v6905 = vadd.f32 %v6008, %v6777
    %v6906 = vadd.f32 %v6009, %v6780
    %v6907 = vadd.f32 %v6010, %v6785
    %v6908 = vadd.f32 %v6011, %v6788
    %v6909 = vadd.f32 %v6012, %v6793
    %v6910 = vadd.f32 %v6013, %v6796
    %v6911 = vadd.f32 %v6014, %v6801
    %v6912 = vadd.f32 %v6015, %v6804
    %v6913 = vadd.f32 %v6016, %v6809
    %v6914 = vadd.f32 %v6017, %v6812
    %v6915 = vadd.f32 %v6018, %v6817
    %v6916 = vadd.f32 %v6019, %v6820
    %v6917 = vadd.f32 %v6020, %v6825
    %v6918 = vadd.f32 %v6021, %v6828
    %v6919 = vadd.f32 %v6022, %v6833
    %v6920 = vadd.f32 %v6023, %v6836
    %v6921 = vadd.f32 %v6024, %v6841
    %v6922 = vadd.f32 %v6025, %v6844
    %v6923 = vadd.f32 %v6026, %v6849
    %v6924 = vadd.f32 %v6027, %v6852
    %v6925 = vadd.f32 %v6028, %v6857
    %v6926 = vadd.f32 %v6029, %v6860
    %s6927 = scalar_lea.vmem [#allocation2], 24
    %v6928 = vld [vmem:[%s6927] sm:$0xf]
    %v6929 = vld [vmem:[%s6927 + $0x4] sm:$0xf]
    %v6930 = vld [vmem:[%s6927 + $0xc] sm:$0xf]
    %v6931 = vld [vmem:[%s6927 + $0x10] sm:$0xf]
    %v6932 = vld [vmem:[%s6927 + $0x18] sm:$0xf]
    %v6933 = vld [vmem:[%s6927 + $0x1c] sm:$0xf]
    %v6934 = vld [vmem:[%s6927 + $0x24] sm:$0xf]
    %v6935 = vld [vmem:[%s6927 + $0x28] sm:$0xf]
    %v6936 = vld [vmem:[%s6927 + $0x30] sm:$0xf]
    %v6937 = vld [vmem:[%s6927 + $0x34] sm:$0xf]
    %v6938 = vld [vmem:[%s6927 + $0x3c] sm:$0xf]
    %v6939 = vld [vmem:[%s6927 + $0x40] sm:$0xf]
    %v6940 = vld [vmem:[%s6927 + $0x48] sm:$0xf]
    %v6941 = vld [vmem:[%s6927 + $0x4c] sm:$0xf]
    %v6942 = vld [vmem:[%s6927 + $0x54] sm:$0xf]
    %v6943 = vld [vmem:[%s6927 + $0x58] sm:$0xf]
    %v6944 = vld [vmem:[%s6927 + $0x60] sm:$0xf]
    %v6945 = vld [vmem:[%s6927 + $0x64] sm:$0xf]
    %v6946 = vld [vmem:[%s6927 + $0x6c] sm:$0xf]
    %v6947 = vld [vmem:[%s6927 + $0x70] sm:$0xf]
    %v6948 = vld [vmem:[%s6927 + $0x78] sm:$0xf]
    %v6949 = vld [vmem:[%s6927 + $0x7c] sm:$0xf]
    %v6950 = vld [vmem:[%s6927 + $0x84] sm:$0xf]
    %v6951 = vld [vmem:[%s6927 + $0x88] sm:$0xf]
    %v6952 = vld [vmem:[%s6927 + $0x90] sm:$0xf]
    %v6953 = vld [vmem:[%s6927 + $0x94] sm:$0xf]
    %v6954 = vld [vmem:[%s6927 + $0x9c] sm:$0xf]
    %v6955 = vld [vmem:[%s6927 + $0xa0] sm:$0xf]
    %v6956 = vld [vmem:[%s6927 + $0xa8] sm:$0xf]
    %v6957 = vld [vmem:[%s6927 + $0xac] sm:$0xf]
    %v6958 = vld [vmem:[%s6927 + $0xb4] sm:$0xf]
    %v6959 = vld [vmem:[%s6927 + $0xb8] sm:$0xf]
    %v6960 = vld [vmem:[%s6927 + $0xd8] sm:$0xf]
    %v6961 = vld [vmem:[%s6927 + $0xdc] sm:$0xf]
    %v6962 = vld [vmem:[%s6927 + $0xe4] sm:$0xf]
    %v6963 = vld [vmem:[%s6927 + $0xe8] sm:$0xf]
    %v6964 = vld [vmem:[%s6927 + $0xf0] sm:$0xf]
    %v6965 = vld [vmem:[%s6927 + $0xf4] sm:$0xf]
    %v6966 = vld [vmem:[%s6927 + $0xfc] sm:$0xf]
    %v6967 = vld [vmem:[%s6927 + $0x100] sm:$0xf]
    %v6968 = vld [vmem:[%s6927 + $0x108] sm:$0xf]
    %v6969 = vld [vmem:[%s6927 + $0x10c] sm:$0xf]
    %v6970 = vld [vmem:[%s6927 + $0x114] sm:$0xf]
    %v6971 = vld [vmem:[%s6927 + $0x118] sm:$0xf]
    %v6972 = vld [vmem:[%s6927 + $0x120] sm:$0xf]
    %v6973 = vld [vmem:[%s6927 + $0x124] sm:$0xf]
    %v6974 = vld [vmem:[%s6927 + $0x12c] sm:$0xf]
    %v6975 = vld [vmem:[%s6927 + $0x130] sm:$0xf]
    %v6976 = vld [vmem:[%s6927 + $0x138] sm:$0xf]
    %v6977 = vld [vmem:[%s6927 + $0x13c] sm:$0xf]
    %v6978 = vld [vmem:[%s6927 + $0x144] sm:$0xf]
    %v6979 = vld [vmem:[%s6927 + $0x148] sm:$0xf]
    %v6980 = vld [vmem:[%s6927 + $0x150] sm:$0xf]
    %v6981 = vld [vmem:[%s6927 + $0x154] sm:$0xf]
    %v6982 = vld [vmem:[%s6927 + $0x15c] sm:$0xf]
    %v6983 = vld [vmem:[%s6927 + $0x160] sm:$0xf]
    %v6984 = vld [vmem:[%s6927 + $0x168] sm:$0xf]
    %v6985 = vld [vmem:[%s6927 + $0x16c] sm:$0xf]
    %v6986 = vld [vmem:[%s6927 + $0x174] sm:$0xf]
    %v6987 = vld [vmem:[%s6927 + $0x178] sm:$0xf]
    %v6988 = vld [vmem:[%s6927 + $0x180] sm:$0xf]
    %v6989 = vld [vmem:[%s6927 + $0x184] sm:$0xf]
    %v6990 = vld [vmem:[%s6927 + $0x18c] sm:$0xf]
    %v6991 = vld [vmem:[%s6927 + $0x190] sm:$0xf]
    %v6992 = vld [vmem:[#allocation6 + $0x180] sm:$0xf]
    %v6993 = vld [vmem:[#allocation6 + $0x184] sm:$0xf]
    %v6994 = vld [vmem:[#allocation6 + $0x188] sm:$0xf]
    %v6995 = vld [vmem:[#allocation6 + $0x18c] sm:$0xf]
    %v6996 = vld [vmem:[#allocation6 + $0x190] sm:$0xf]
    %v6997 = vld [vmem:[#allocation6 + $0x194] sm:$0xf]
    %v6998 = vld [vmem:[#allocation6 + $0x198] sm:$0xf]
    %v6999 = vld [vmem:[#allocation6 + $0x19c] sm:$0xf]
    %v7000 = vld [vmem:[#allocation6 + $0x1a0] sm:$0xf]
    %v7001 = vld [vmem:[#allocation6 + $0x1a4] sm:$0xf]
    %v7002 = vld [vmem:[#allocation6 + $0x1a8] sm:$0xf]
    %v7003 = vld [vmem:[#allocation6 + $0x1ac] sm:$0xf]
    %v7004 = vld [vmem:[#allocation6 + $0x1b0] sm:$0xf]
    %v7005 = vld [vmem:[#allocation6 + $0x1b4] sm:$0xf]
    %v7006 = vld [vmem:[#allocation6 + $0x1b8] sm:$0xf]
    %v7007 = vld [vmem:[#allocation6 + $0x1bc] sm:$0xf]
    %v7072 = vunpack.c.l.b16 %v6928
    %v7073 = vunpack.c.l.b16 %v6929
    %v7074 = vunpack.c.l.b16 %v6930
    %v7075 = vunpack.c.l.b16 %v6931
    %v7076 = vunpack.c.l.b16 %v6932
    %v7077 = vunpack.c.l.b16 %v6933
    %v7078 = vunpack.c.l.b16 %v6934
    %v7079 = vunpack.c.l.b16 %v6935
    %v7080 = vunpack.c.l.b16 %v6936
    %v7081 = vunpack.c.l.b16 %v6937
    %v7082 = vunpack.c.l.b16 %v6938
    %v7083 = vunpack.c.l.b16 %v6939
    %v7084 = vunpack.c.l.b16 %v6940
    %v7085 = vunpack.c.l.b16 %v6941
    %v7086 = vunpack.c.l.b16 %v6942
    %v7087 = vunpack.c.l.b16 %v6943
    %v7088 = vunpack.c.l.b16 %v6944
    %v7089 = vunpack.c.l.b16 %v6945
    %v7090 = vunpack.c.l.b16 %v6946
    %v7091 = vunpack.c.l.b16 %v6947
    %v7092 = vunpack.c.l.b16 %v6948
    %v7093 = vunpack.c.l.b16 %v6949
    %v7094 = vunpack.c.l.b16 %v6950
    %v7095 = vunpack.c.l.b16 %v6951
    %v7096 = vunpack.c.l.b16 %v6952
    %v7097 = vunpack.c.l.b16 %v6953
    %v7098 = vunpack.c.l.b16 %v6954
    %v7099 = vunpack.c.l.b16 %v6955
    %v7100 = vunpack.c.l.b16 %v6956
    %v7101 = vunpack.c.l.b16 %v6957
    %v7102 = vunpack.c.l.b16 %v6958
    %v7103 = vunpack.c.l.b16 %v6959
    %v7104 = vunpack.c.l.b16 %v6960
    %v7105 = vunpack.c.l.b16 %v6961
    %v7106 = vunpack.c.l.b16 %v6962
    %v7107 = vunpack.c.l.b16 %v6963
    %v7108 = vunpack.c.l.b16 %v6964
    %v7109 = vunpack.c.l.b16 %v6965
    %v7110 = vunpack.c.l.b16 %v6966
    %v7111 = vunpack.c.l.b16 %v6967
    %v7112 = vunpack.c.l.b16 %v6968
    %v7113 = vunpack.c.l.b16 %v6969
    %v7114 = vunpack.c.l.b16 %v6970
    %v7115 = vunpack.c.l.b16 %v6971
    %v7116 = vunpack.c.l.b16 %v6972
    %v7117 = vunpack.c.l.b16 %v6973
    %v7118 = vunpack.c.l.b16 %v6974
    %v7119 = vunpack.c.l.b16 %v6975
    %v7120 = vunpack.c.l.b16 %v6976
    %v7121 = vunpack.c.l.b16 %v6977
    %v7122 = vunpack.c.l.b16 %v6978
    %v7123 = vunpack.c.l.b16 %v6979
    %v7124 = vunpack.c.l.b16 %v6980
    %v7125 = vunpack.c.l.b16 %v6981
    %v7126 = vunpack.c.l.b16 %v6982
    %v7127 = vunpack.c.l.b16 %v6983
    %v7128 = vunpack.c.l.b16 %v6984
    %v7129 = vunpack.c.l.b16 %v6985
    %v7130 = vunpack.c.l.b16 %v6986
    %v7131 = vunpack.c.l.b16 %v6987
    %v7132 = vunpack.c.l.b16 %v6988
    %v7133 = vunpack.c.l.b16 %v6989
    %v7134 = vunpack.c.l.b16 %v6990
    %v7135 = vunpack.c.l.b16 %v6991
    %v7136 = vpack.c.b16 %v7073, %v7072
    %v7137 = vpack.c.b16 %v7075, %v7074
    %v7138 = vpack.c.b16 %v7077, %v7076
    %v7139 = vpack.c.b16 %v7079, %v7078
    %v7140 = vpack.c.b16 %v7081, %v7080
    %v7141 = vpack.c.b16 %v7083, %v7082
    %v7142 = vpack.c.b16 %v7085, %v7084
    %v7143 = vpack.c.b16 %v7087, %v7086
    %v7144 = vpack.c.b16 %v7089, %v7088
    %v7145 = vpack.c.b16 %v7091, %v7090
    %v7146 = vpack.c.b16 %v7093, %v7092
    %v7147 = vpack.c.b16 %v7095, %v7094
    %v7148 = vpack.c.b16 %v7097, %v7096
    %v7149 = vpack.c.b16 %v7099, %v7098
    %v7150 = vpack.c.b16 %v7101, %v7100
    %v7151 = vpack.c.b16 %v7103, %v7102
    %v7152 = vpack.c.b16 %v7105, %v7104
    %v7153 = vpack.c.b16 %v7107, %v7106
    %v7154 = vpack.c.b16 %v7109, %v7108
    %v7155 = vpack.c.b16 %v7111, %v7110
    %v7156 = vpack.c.b16 %v7113, %v7112
    %v7157 = vpack.c.b16 %v7115, %v7114
    %v7158 = vpack.c.b16 %v7117, %v7116
    %v7159 = vpack.c.b16 %v7119, %v7118
    %v7160 = vpack.c.b16 %v7121, %v7120
    %v7161 = vpack.c.b16 %v7123, %v7122
    %v7162 = vpack.c.b16 %v7125, %v7124
    %v7163 = vpack.c.b16 %v7127, %v7126
    %v7164 = vpack.c.b16 %v7129, %v7128
    %v7165 = vpack.c.b16 %v7131, %v7130
    %v7166 = vpack.c.b16 %v7133, %v7132
    %v7167 = vpack.c.b16 %v7135, %v7134
    %v7216 = vunpack.c.l.b16 %v6992
    %v7217 = vunpack.c.l.b16 %v6993
    %v7218 = vunpack.c.l.b16 %v6994
    %v7219 = vunpack.c.l.b16 %v6995
    %v7220 = vunpack.c.l.b16 %v6996
    %v7221 = vunpack.c.l.b16 %v6997
    %v7222 = vunpack.c.l.b16 %v6998
    %v7223 = vunpack.c.l.b16 %v6999
    %v7224 = vunpack.c.l.b16 %v7000
    %v7225 = vunpack.c.l.b16 %v7001
    %v7226 = vunpack.c.l.b16 %v7002
    %v7227 = vunpack.c.l.b16 %v7003
    %v7228 = vunpack.c.l.b16 %v7004
    %v7229 = vunpack.c.l.b16 %v7005
    %v7230 = vunpack.c.l.b16 %v7006
    %v7231 = vunpack.c.l.b16 %v7007
    %v7232 = vpack.c.b16 %v7217, %v7216
    %v7233 = vpack.c.b16 %v7219, %v7218
    %v7234 = vpack.c.b16 %v7221, %v7220
    %v7235 = vpack.c.b16 %v7223, %v7222
    %v7236 = vpack.c.b16 %v7225, %v7224
    %v7237 = vpack.c.b16 %v7227, %v7226
    %v7238 = vpack.c.b16 %v7229, %v7228
    %v7239 = vpack.c.b16 %v7231, %v7230
    %7248 = vmatprep.subr.bf16.mxu0 0
    %7249 = vmatpush1.bf16.msra.mxu0 %v7232
    %7250 = vmatprep.subr.bf16.mxu0 0
    %7251 = vmatpush1.bf16.msra.mxu0 %v7233
    %7252 = vmatprep.subr.bf16.mxu0 0
    %7253 = vmatpush1.bf16.msra.mxu0 %v7234
    %7254 = vmatprep.subr.bf16.mxu0 0
    %7255 = vmatpush1.bf16.msra.mxu0 %v7235
    %7256 = vmatprep.subr.bf16.mxu0 0
    %7257 = vmatpush1.bf16.msra.mxu0 %v7236
    %7258 = vmatprep.subr.bf16.mxu0 0
    %7259 = vmatpush1.bf16.msra.mxu0 %v7237
    %7260 = vmatprep.subr.bf16.mxu0 0
    %7261 = vmatpush1.bf16.msra.mxu0 %v7238
    %7262 = vmatprep.subr.bf16.mxu0 0
    %7263 = vmatpush1.bf16.msra.mxu0 %v7239
    %7264 = vmatprep.subr.bf16.mxu0 0
    %7265 = vmatpush1.bf16.msra.mxu0 0
    %7266 = vmatprep.subr.bf16.mxu0 0
    %7267 = vmatpush1.bf16.msra.mxu0 0
    %7268 = vmatprep.subr.bf16.mxu0 0
    %7269 = vmatpush1.bf16.msra.mxu0 0
    %7270 = vmatprep.subr.bf16.mxu0 0
    %7271 = vmatpush1.bf16.msra.mxu0 0
    %7272 = vmatprep.subr.bf16.mxu0 0
    %7273 = vmatpush1.bf16.msra.mxu0 0
    %7274 = vmatprep.subr.bf16.mxu0 0
    %7275 = vmatpush1.bf16.msra.mxu0 0
    %7276 = vmatprep.subr.bf16.mxu0 0
    %7277 = vmatpush1.bf16.msra.mxu0 0
    %7278 = vmatprep.subr.bf16.mxu0 0
    %7279 = vmatpush1.bf16.msra.mxu0 0
    %7280 = vmatprep.mubr.bf16.mxu0 0
    %7281 = vmatmul.mubr.bf16.gmra.mrb[0].mxu0 %v7136
    %v7282 = vpop.f32.mrb[0].mxu0
    %v7283 = vadd.f32 0.0, %v7282
    %v7284 = vpop.f32.mrb[0].mxu0
    %v7285 = vpop.f32.mrb[0].mxu0
    %v7286 = vadd.f32 0.0, %v7285
    %v7287 = vpop.f32.mrb[0].mxu0
    %7288 = vmatprep.mubr.bf16.mxu0 0
    %7289 = vmatmul.mubr.bf16.gmra.mrb[0].mxu0 %v7137
    %v7290 = vpop.f32.mrb[0].mxu0
    %v7291 = vadd.f32 0.0, %v7290
    %v7292 = vpop.f32.mrb[0].mxu0
    %v7293 = vpop.f32.mrb[0].mxu0
    %v7294 = vadd.f32 0.0, %v7293
    %v7295 = vpop.f32.mrb[0].mxu0
    %7296 = vmatprep.mubr.bf16.mxu0 0
    %7297 = vmatmul.mubr.bf16.gmra.mrb[0].mxu0 %v7138
    %v7298 = vpop.f32.mrb[0].mxu0
    %v7299 = vadd.f32 0.0, %v7298
    %v7300 = vpop.f32.mrb[0].mxu0
    %v7301 = vpop.f32.mrb[0].mxu0
    %v7302 = vadd.f32 0.0, %v7301
    %v7303 = vpop.f32.mrb[0].mxu0
    %7304 = vmatprep.mubr.bf16.mxu0 0
    %7305 = vmatmul.mubr.bf16.gmra.mrb[0].mxu0 %v7139
    %v7306 = vpop.f32.mrb[0].mxu0
    %v7307 = vadd.f32 0.0, %v7306
    %v7308 = vpop.f32.mrb[0].mxu0
    %v7309 = vpop.f32.mrb[0].mxu0
    %v7310 = vadd.f32 0.0, %v7309
    %v7311 = vpop.f32.mrb[0].mxu0
    %7312 = vmatprep.mubr.bf16.mxu0 0
    %7313 = vmatmul.mubr.bf16.gmra.mrb[0].mxu0 %v7140
    %v7314 = vpop.f32.mrb[0].mxu0
    %v7315 = vadd.f32 0.0, %v7314
    %v7316 = vpop.f32.mrb[0].mxu0
    %v7317 = vpop.f32.mrb[0].mxu0
    %v7318 = vadd.f32 0.0, %v7317
    %v7319 = vpop.f32.mrb[0].mxu0
    %7320 = vmatprep.mubr.bf16.mxu0 0
    %7321 = vmatmul.mubr.bf16.gmra.mrb[0].mxu0 %v7141
    %v7322 = vpop.f32.mrb[0].mxu0
    %v7323 = vadd.f32 0.0, %v7322
    %v7324 = vpop.f32.mrb[0].mxu0
    %v7325 = vpop.f32.mrb[0].mxu0
    %v7326 = vadd.f32 0.0, %v7325
    %v7327 = vpop.f32.mrb[0].mxu0
    %7328 = vmatprep.mubr.bf16.mxu0 0
    %7329 = vmatmul.mubr.bf16.gmra.mrb[0].mxu0 %v7142
    %v7330 = vpop.f32.mrb[0].mxu0
    %v7331 = vadd.f32 0.0, %v7330
    %v7332 = vpop.f32.mrb[0].mxu0
    %v7333 = vpop.f32.mrb[0].mxu0
    %v7334 = vadd.f32 0.0, %v7333
    %v7335 = vpop.f32.mrb[0].mxu0
    %7336 = vmatprep.mubr.bf16.mxu0 0
    %7337 = vmatmul.mubr.bf16.gmra.mrb[0].mxu0 %v7143
    %v7338 = vpop.f32.mrb[0].mxu0
    %v7339 = vadd.f32 0.0, %v7338
    %v7340 = vpop.f32.mrb[0].mxu0
    %v7341 = vpop.f32.mrb[0].mxu0
    %v7342 = vadd.f32 0.0, %v7341
    %v7343 = vpop.f32.mrb[0].mxu0
    %7344 = vmatprep.mubr.bf16.mxu0 0
    %7345 = vmatmul.mubr.bf16.gmra.mrb[0].mxu0 %v7144
    %v7346 = vpop.f32.mrb[0].mxu0
    %v7347 = vadd.f32 0.0, %v7346
    %v7348 = vpop.f32.mrb[0].mxu0
    %v7349 = vpop.f32.mrb[0].mxu0
    %v7350 = vadd.f32 0.0, %v7349
    %v7351 = vpop.f32.mrb[0].mxu0
    %7352 = vmatprep.mubr.bf16.mxu0 0
    %7353 = vmatmul.mubr.bf16.gmra.mrb[0].mxu0 %v7145
    %v7354 = vpop.f32.mrb[0].mxu0
    %v7355 = vadd.f32 0.0, %v7354
    %v7356 = vpop.f32.mrb[0].mxu0
    %v7357 = vpop.f32.mrb[0].mxu0
    %v7358 = vadd.f32 0.0, %v7357
    %v7359 = vpop.f32.mrb[0].mxu0
    %7360 = vmatprep.mubr.bf16.mxu0 0
    %7361 = vmatmul.mubr.bf16.gmra.mrb[0].mxu0 %v7146
    %v7362 = vpop.f32.mrb[0].mxu0
    %v7363 = vadd.f32 0.0, %v7362
    %v7364 = vpop.f32.mrb[0].mxu0
    %v7365 = vpop.f32.mrb[0].mxu0
    %v7366 = vadd.f32 0.0, %v7365
    %v7367 = vpop.f32.mrb[0].mxu0
    %7368 = vmatprep.mubr.bf16.mxu0 0
    %7369 = vmatmul.mubr.bf16.gmra.mrb[0].mxu0 %v7147
    %v7370 = vpop.f32.mrb[0].mxu0
    %v7371 = vadd.f32 0.0, %v7370
    %v7372 = vpop.f32.mrb[0].mxu0
    %v7373 = vpop.f32.mrb[0].mxu0
    %v7374 = vadd.f32 0.0, %v7373
    %v7375 = vpop.f32.mrb[0].mxu0
    %7376 = vmatprep.mubr.bf16.mxu0 0
    %7377 = vmatmul.mubr.bf16.gmra.mrb[0].mxu0 %v7148
    %v7378 = vpop.f32.mrb[0].mxu0
    %v7379 = vadd.f32 0.0, %v7378
    %v7380 = vpop.f32.mrb[0].mxu0
    %v7381 = vpop.f32.mrb[0].mxu0
    %v7382 = vadd.f32 0.0, %v7381
    %v7383 = vpop.f32.mrb[0].mxu0
    %7384 = vmatprep.mubr.bf16.mxu0 0
    %7385 = vmatmul.mubr.bf16.gmra.mrb[0].mxu0 %v7149
    %v7386 = vpop.f32.mrb[0].mxu0
    %v7387 = vadd.f32 0.0, %v7386
    %v7388 = vpop.f32.mrb[0].mxu0
    %v7389 = vpop.f32.mrb[0].mxu0
    %v7390 = vadd.f32 0.0, %v7389
    %v7391 = vpop.f32.mrb[0].mxu0
    %7392 = vmatprep.mubr.bf16.mxu0 0
    %7393 = vmatmul.mubr.bf16.gmra.mrb[0].mxu0 %v7150
    %v7394 = vpop.f32.mrb[0].mxu0
    %v7395 = vadd.f32 0.0, %v7394
    %v7396 = vpop.f32.mrb[0].mxu0
    %v7397 = vpop.f32.mrb[0].mxu0
    %v7398 = vadd.f32 0.0, %v7397
    %v7399 = vpop.f32.mrb[0].mxu0
    %7400 = vmatprep.mubr.bf16.mxu0 0
    %7401 = vmatmul.mubr.bf16.gmra.mrb[0].mxu0 %v7151
    %v7402 = vpop.f32.mrb[0].mxu0
    %v7403 = vadd.f32 0.0, %v7402
    %v7404 = vpop.f32.mrb[0].mxu0
    %v7405 = vpop.f32.mrb[0].mxu0
    %v7406 = vadd.f32 0.0, %v7405
    %v7407 = vpop.f32.mrb[0].mxu0
    %7408 = vmatprep.mubr.bf16.mxu0 0
    %7409 = vmatmul.mubr.bf16.gmra.mrb[0].mxu0 %v7152
    %v7410 = vpop.f32.mrb[0].mxu0
    %v7411 = vadd.f32 0.0, %v7410
    %v7412 = vpop.f32.mrb[0].mxu0
    %v7413 = vpop.f32.mrb[0].mxu0
    %v7414 = vadd.f32 0.0, %v7413
    %v7415 = vpop.f32.mrb[0].mxu0
    %7416 = vmatprep.mubr.bf16.mxu0 0
    %7417 = vmatmul.mubr.bf16.gmra.mrb[0].mxu0 %v7153
    %v7418 = vpop.f32.mrb[0].mxu0
    %v7419 = vadd.f32 0.0, %v7418
    %v7420 = vpop.f32.mrb[0].mxu0
    %v7421 = vpop.f32.mrb[0].mxu0
    %v7422 = vadd.f32 0.0, %v7421
    %v7423 = vpop.f32.mrb[0].mxu0
    %7424 = vmatprep.mubr.bf16.mxu0 0
    %7425 = vmatmul.mubr.bf16.gmra.mrb[0].mxu0 %v7154
    %v7426 = vpop.f32.mrb[0].mxu0
    %v7427 = vadd.f32 0.0, %v7426
    %v7428 = vpop.f32.mrb[0].mxu0
    %v7429 = vpop.f32.mrb[0].mxu0
    %v7430 = vadd.f32 0.0, %v7429
    %v7431 = vpop.f32.mrb[0].mxu0
    %7432 = vmatprep.mubr.bf16.mxu0 0
    %7433 = vmatmul.mubr.bf16.gmra.mrb[0].mxu0 %v7155
    %v7434 = vpop.f32.mrb[0].mxu0
    %v7435 = vadd.f32 0.0, %v7434
    %v7436 = vpop.f32.mrb[0].mxu0
    %v7437 = vpop.f32.mrb[0].mxu0
    %v7438 = vadd.f32 0.0, %v7437
    %v7439 = vpop.f32.mrb[0].mxu0
    %7440 = vmatprep.mubr.bf16.mxu0 0
    %7441 = vmatmul.mubr.bf16.gmra.mrb[0].mxu0 %v7156
    %v7442 = vpop.f32.mrb[0].mxu0
    %v7443 = vadd.f32 0.0, %v7442
    %v7444 = vpop.f32.mrb[0].mxu0
    %v7445 = vpop.f32.mrb[0].mxu0
    %v7446 = vadd.f32 0.0, %v7445
    %v7447 = vpop.f32.mrb[0].mxu0
    %7448 = vmatprep.mubr.bf16.mxu0 0
    %7449 = vmatmul.mubr.bf16.gmra.mrb[0].mxu0 %v7157
    %v7450 = vpop.f32.mrb[0].mxu0
    %v7451 = vadd.f32 0.0, %v7450
    %v7452 = vpop.f32.mrb[0].mxu0
    %v7453 = vpop.f32.mrb[0].mxu0
    %v7454 = vadd.f32 0.0, %v7453
    %v7455 = vpop.f32.mrb[0].mxu0
    %7456 = vmatprep.mubr.bf16.mxu0 0
    %7457 = vmatmul.mubr.bf16.gmra.mrb[0].mxu0 %v7158
    %v7458 = vpop.f32.mrb[0].mxu0
    %v7459 = vadd.f32 0.0, %v7458
    %v7460 = vpop.f32.mrb[0].mxu0
    %v7461 = vpop.f32.mrb[0].mxu0
    %v7462 = vadd.f32 0.0, %v7461
    %v7463 = vpop.f32.mrb[0].mxu0
    %7464 = vmatprep.mubr.bf16.mxu0 0
    %7465 = vmatmul.mubr.bf16.gmra.mrb[0].mxu0 %v7159
    %v7466 = vpop.f32.mrb[0].mxu0
    %v7467 = vadd.f32 0.0, %v7466
    %v7468 = vpop.f32.mrb[0].mxu0
    %v7469 = vpop.f32.mrb[0].mxu0
    %v7470 = vadd.f32 0.0, %v7469
    %v7471 = vpop.f32.mrb[0].mxu0
    %7472 = vmatprep.mubr.bf16.mxu0 0
    %7473 = vmatmul.mubr.bf16.gmra.mrb[0].mxu0 %v7160
    %v7474 = vpop.f32.mrb[0].mxu0
    %v7475 = vadd.f32 0.0, %v7474
    %v7476 = vpop.f32.mrb[0].mxu0
    %v7477 = vpop.f32.mrb[0].mxu0
    %v7478 = vadd.f32 0.0, %v7477
    %v7479 = vpop.f32.mrb[0].mxu0
    %7480 = vmatprep.mubr.bf16.mxu0 0
    %7481 = vmatmul.mubr.bf16.gmra.mrb[0].mxu0 %v7161
    %v7482 = vpop.f32.mrb[0].mxu0
    %v7483 = vadd.f32 0.0, %v7482
    %v7484 = vpop.f32.mrb[0].mxu0
    %v7485 = vpop.f32.mrb[0].mxu0
    %v7486 = vadd.f32 0.0, %v7485
    %v7487 = vpop.f32.mrb[0].mxu0
    %7488 = vmatprep.mubr.bf16.mxu0 0
    %7489 = vmatmul.mubr.bf16.gmra.mrb[0].mxu0 %v7162
    %v7490 = vpop.f32.mrb[0].mxu0
    %v7491 = vadd.f32 0.0, %v7490
    %v7492 = vpop.f32.mrb[0].mxu0
    %v7493 = vpop.f32.mrb[0].mxu0
    %v7494 = vadd.f32 0.0, %v7493
    %v7495 = vpop.f32.mrb[0].mxu0
    %7496 = vmatprep.mubr.bf16.mxu0 0
    %7497 = vmatmul.mubr.bf16.gmra.mrb[0].mxu0 %v7163
    %v7498 = vpop.f32.mrb[0].mxu0
    %v7499 = vadd.f32 0.0, %v7498
    %v7500 = vpop.f32.mrb[0].mxu0
    %v7501 = vpop.f32.mrb[0].mxu0
    %v7502 = vadd.f32 0.0, %v7501
    %v7503 = vpop.f32.mrb[0].mxu0
    %7504 = vmatprep.mubr.bf16.mxu0 0
    %7505 = vmatmul.mubr.bf16.gmra.mrb[0].mxu0 %v7164
    %v7506 = vpop.f32.mrb[0].mxu0
    %v7507 = vadd.f32 0.0, %v7506
    %v7508 = vpop.f32.mrb[0].mxu0
    %v7509 = vpop.f32.mrb[0].mxu0
    %v7510 = vadd.f32 0.0, %v7509
    %v7511 = vpop.f32.mrb[0].mxu0
    %7512 = vmatprep.mubr.bf16.mxu0 0
    %7513 = vmatmul.mubr.bf16.gmra.mrb[0].mxu0 %v7165
    %v7514 = vpop.f32.mrb[0].mxu0
    %v7515 = vadd.f32 0.0, %v7514
    %v7516 = vpop.f32.mrb[0].mxu0
    %v7517 = vpop.f32.mrb[0].mxu0
    %v7518 = vadd.f32 0.0, %v7517
    %v7519 = vpop.f32.mrb[0].mxu0
    %7520 = vmatprep.mubr.bf16.mxu0 0
    %7521 = vmatmul.mubr.bf16.gmra.mrb[0].mxu0 %v7166
    %v7522 = vpop.f32.mrb[0].mxu0
    %v7523 = vadd.f32 0.0, %v7522
    %v7524 = vpop.f32.mrb[0].mxu0
    %v7525 = vpop.f32.mrb[0].mxu0
    %v7526 = vadd.f32 0.0, %v7525
    %v7527 = vpop.f32.mrb[0].mxu0
    %7528 = vmatprep.mubr.bf16.mxu0 0
    %7529 = vmatmul.mubr.bf16.gmra.mrb[0].mxu0 %v7167
    %v7530 = vpop.f32.mrb[0].mxu0
    %v7531 = vadd.f32 0.0, %v7530
    %v7532 = vpop.f32.mrb[0].mxu0
    %v7533 = vpop.f32.mrb[0].mxu0
    %v7534 = vadd.f32 0.0, %v7533
    %v7535 = vpop.f32.mrb[0].mxu0
    %7536 = vdwg.mxu0
    %v7537 = vadd.f32 %v6863, %v7283
    %v7538 = vadd.f32 %v6864, %v7286
    %v7539 = vadd.f32 %v6865, %v7291
    %v7540 = vadd.f32 %v6866, %v7294
    %v7541 = vadd.f32 %v6867, %v7299
    %v7542 = vadd.f32 %v6868, %v7302
    %v7543 = vadd.f32 %v6869, %v7307
    %v7544 = vadd.f32 %v6870, %v7310
    %v7545 = vadd.f32 %v6871, %v7315
    %v7546 = vadd.f32 %v6872, %v7318
    %v7547 = vadd.f32 %v6873, %v7323
    %v7548 = vadd.f32 %v6874, %v7326
    %v7549 = vadd.f32 %v6875, %v7331
    %v7550 = vadd.f32 %v6876, %v7334
    %v7551 = vadd.f32 %v6877, %v7339
    %v7552 = vadd.f32 %v6878, %v7342
    %v7553 = vadd.f32 %v6879, %v7347
    %v7554 = vadd.f32 %v6880, %v7350
    %v7555 = vadd.f32 %v6881, %v7355
    %v7556 = vadd.f32 %v6882, %v7358
    %v7557 = vadd.f32 %v6883, %v7363
    %v7558 = vadd.f32 %v6884, %v7366
    %v7559 = vadd.f32 %v6885, %v7371
    %v7560 = vadd.f32 %v6886, %v7374
    %v7561 = vadd.f32 %v6887, %v7379
    %v7562 = vadd.f32 %v6888, %v7382
    %v7563 = vadd.f32 %v6889, %v7387
    %v7564 = vadd.f32 %v6890, %v7390
    %v7565 = vadd.f32 %v6891, %v7395
    %v7566 = vadd.f32 %v6892, %v7398
    %v7567 = vadd.f32 %v6893, %v7403
    %v7568 = vadd.f32 %v6894, %v7406
    %v7569 = vadd.f32 %v6895, %v7411
    %v7570 = vadd.f32 %v6896, %v7414
    %v7571 = vadd.f32 %v6897, %v7419
    %v7572 = vadd.f32 %v6898, %v7422
    %v7573 = vadd.f32 %v6899, %v7427
    %v7574 = vadd.f32 %v6900, %v7430
    %v7575 = vadd.f32 %v6901, %v7435
    %v7576 = vadd.f32 %v6902, %v7438
    %v7577 = vadd.f32 %v6903, %v7443
    %v7578 = vadd.f32 %v6904, %v7446
    %v7579 = vadd.f32 %v6905, %v7451
    %v7580 = vadd.f32 %v6906, %v7454
    %v7581 = vadd.f32 %v6907, %v7459
    %v7582 = vadd.f32 %v6908, %v7462
    %v7583 = vadd.f32 %v6909, %v7467
    %v7584 = vadd.f32 %v6910, %v7470
    %v7585 = vadd.f32 %v6911, %v7475
    %v7586 = vadd.f32 %v6912, %v7478
    %v7587 = vadd.f32 %v6913, %v7483
    %v7588 = vadd.f32 %v6914, %v7486
    %v7589 = vadd.f32 %v6915, %v7491
    %v7590 = vadd.f32 %v6916, %v7494
    %v7591 = vadd.f32 %v6917, %v7499
    %v7592 = vadd.f32 %v6918, %v7502
    %v7593 = vadd.f32 %v6919, %v7507
    %v7594 = vadd.f32 %v6920, %v7510
    %v7595 = vadd.f32 %v6921, %v7515
    %v7596 = vadd.f32 %v6922, %v7518
    %v7597 = vadd.f32 %v6923, %v7523
    %v7598 = vadd.f32 %v6924, %v7526
    %v7599 = vadd.f32 %v6925, %v7531
    %v7600 = vadd.f32 %v6926, %v7534
    %v7601 = vld [vmem:[%s6927] sm:$0xf]
    %v7602 = vld [vmem:[%s6927 + $0x4] sm:$0xf]
    %v7603 = vld [vmem:[%s6927 + $0x8] sm:$0x1]
    %v7604 = vld [vmem:[%s6927 + $0xc] sm:$0xf]
    %v7605 = vld [vmem:[%s6927 + $0x10] sm:$0xf]
    %v7606 = vld [vmem:[%s6927 + $0x14] sm:$0x1]
    %v7607 = vld [vmem:[%s6927 + $0x18] sm:$0xf]
    %v7608 = vld [vmem:[%s6927 + $0x1c] sm:$0xf]
    %v7609 = vld [vmem:[%s6927 + $0x20] sm:$0x1]
    %v7610 = vld [vmem:[%s6927 + $0x24] sm:$0xf]
    %v7611 = vld [vmem:[%s6927 + $0x28] sm:$0xf]
    %v7612 = vld [vmem:[%s6927 + $0x2c] sm:$0x1]
    %v7613 = vld [vmem:[%s6927 + $0x30] sm:$0xf]
    %v7614 = vld [vmem:[%s6927 + $0x34] sm:$0xf]
    %v7615 = vld [vmem:[%s6927 + $0x38] sm:$0x1]
    %v7616 = vld [vmem:[%s6927 + $0x3c] sm:$0xf]
    %v7617 = vld [vmem:[%s6927 + $0x40] sm:$0xf]
    %v7618 = vld [vmem:[%s6927 + $0x44] sm:$0x1]
    %v7619 = vld [vmem:[%s6927 + $0x48] sm:$0xf]
    %v7620 = vld [vmem:[%s6927 + $0x4c] sm:$0xf]
    %v7621 = vld [vmem:[%s6927 + $0x50] sm:$0x1]
    %v7622 = vld [vmem:[%s6927 + $0x54] sm:$0xf]
    %v7623 = vld [vmem:[%s6927 + $0x58] sm:$0xf]
    %v7624 = vld [vmem:[%s6927 + $0x5c] sm:$0x1]
    %v7625 = vld [vmem:[%s6927 + $0x60] sm:$0xf]
    %v7626 = vld [vmem:[%s6927 + $0x64] sm:$0xf]
    %v7627 = vld [vmem:[%s6927 + $0x68] sm:$0x1]
    %v7628 = vld [vmem:[%s6927 + $0x6c] sm:$0xf]
    %v7629 = vld [vmem:[%s6927 + $0x70] sm:$0xf]
    %v7630 = vld [vmem:[%s6927 + $0x74] sm:$0x1]
    %v7631 = vld [vmem:[%s6927 + $0x78] sm:$0xf]
    %v7632 = vld [vmem:[%s6927 + $0x7c] sm:$0xf]
    %v7633 = vld [vmem:[%s6927 + $0x80] sm:$0x1]
    %v7634 = vld [vmem:[%s6927 + $0x84] sm:$0xf]
    %v7635 = vld [vmem:[%s6927 + $0x88] sm:$0xf]
    %v7636 = vld [vmem:[%s6927 + $0x8c] sm:$0x1]
    %v7637 = vld [vmem:[%s6927 + $0x90] sm:$0xf]
    %v7638 = vld [vmem:[%s6927 + $0x94] sm:$0xf]
    %v7639 = vld [vmem:[%s6927 + $0x98] sm:$0x1]
    %v7640 = vld [vmem:[%s6927 + $0x9c] sm:$0xf]
    %v7641 = vld [vmem:[%s6927 + $0xa0] sm:$0xf]
    %v7642 = vld [vmem:[%s6927 + $0xa4] sm:$0x1]
    %v7643 = vld [vmem:[%s6927 + $0xa8] sm:$0xf]
    %v7644 = vld [vmem:[%s6927 + $0xac] sm:$0xf]
    %v7645 = vld [vmem:[%s6927 + $0xb0] sm:$0x1]
    %v7646 = vld [vmem:[%s6927 + $0xb4] sm:$0xf]
    %v7647 = vld [vmem:[%s6927 + $0xb8] sm:$0xf]
    %v7648 = vld [vmem:[%s6927 + $0xbc] sm:$0x1]
    %v7649 = vld [vmem:[%s6927 + $0xd8] sm:$0xf]
    %v7650 = vld [vmem:[%s6927 + $0xdc] sm:$0xf]
    %v7651 = vld [vmem:[%s6927 + $0xe0] sm:$0x1]
    %v7652 = vld [vmem:[%s6927 + $0xe4] sm:$0xf]
    %v7653 = vld [vmem:[%s6927 + $0xe8] sm:$0xf]
    %v7654 = vld [vmem:[%s6927 + $0xec] sm:$0x1]
    %v7655 = vld [vmem:[%s6927 + $0xf0] sm:$0xf]
    %v7656 = vld [vmem:[%s6927 + $0xf4] sm:$0xf]
    %v7657 = vld [vmem:[%s6927 + $0xf8] sm:$0x1]
    %v7658 = vld [vmem:[%s6927 + $0xfc] sm:$0xf]
    %v7659 = vld [vmem:[%s6927 + $0x100] sm:$0xf]
    %v7660 = vld [vmem:[%s6927 + $0x104] sm:$0x1]
    %v7661 = vld [vmem:[%s6927 + $0x108] sm:$0xf]
    %v7662 = vld [vmem:[%s6927 + $0x10c] sm:$0xf]
    %v7663 = vld [vmem:[%s6927 + $0x110] sm:$0x1]
    %v7664 = vld [vmem:[%s6927 + $0x114] sm:$0xf]
    %v7665 = vld [vmem:[%s6927 + $0x118] sm:$0xf]
    %v7666 = vld [vmem:[%s6927 + $0x11c] sm:$0x1]
    %v7667 = vld [vmem:[%s6927 + $0x120] sm:$0xf]
    %v7668 = vld [vmem:[%s6927 + $0x124] sm:$0xf]
    %v7669 = vld [vmem:[%s6927 + $0x128] sm:$0x1]
    %v7670 = vld [vmem:[%s6927 + $0x12c] sm:$0xf]
    %v7671 = vld [vmem:[%s6927 + $0x130] sm:$0xf]
    %v7672 = vld [vmem:[%s6927 + $0x134] sm:$0x1]
    %v7673 = vld [vmem:[%s6927 + $0x138] sm:$0xf]
    %v7674 = vld [vmem:[%s6927 + $0x13c] sm:$0xf]
    %v7675 = vld [vmem:[%s6927 + $0x140] sm:$0x1]
    %v7676 = vld [vmem:[%s6927 + $0x144] sm:$0xf]
    %v7677 = vld [vmem:[%s6927 + $0x148] sm:$0xf]
    %v7678 = vld [vmem:[%s6927 + $0x14c] sm:$0x1]
    %v7679 = vld [vmem:[%s6927 + $0x150] sm:$0xf]
    %v7680 = vld [vmem:[%s6927 + $0x154] sm:$0xf]
    %v7681 = vld [vmem:[%s6927 + $0x158] sm:$0x1]
    %v7682 = vld [vmem:[%s6927 + $0x15c] sm:$0xf]
    %v7683 = vld [vmem:[%s6927 + $0x160] sm:$0xf]
    %v7684 = vld [vmem:[%s6927 + $0x164] sm:$0x1]
    %v7685 = vld [vmem:[%s6927 + $0x168] sm:$0xf]
    %v7686 = vld [vmem:[%s6927 + $0x16c] sm:$0xf]
    %v7687 = vld [vmem:[%s6927 + $0x170] sm:$0x1]
    %v7688 = vld [vmem:[%s6927 + $0x174] sm:$0xf]
    %v7689 = vld [vmem:[%s6927 + $0x178] sm:$0xf]
    %v7690 = vld [vmem:[%s6927 + $0x17c] sm:$0x1]
    %v7691 = vld [vmem:[%s6927 + $0x180] sm:$0xf]
    %v7692 = vld [vmem:[%s6927 + $0x184] sm:$0xf]
    %v7693 = vld [vmem:[%s6927 + $0x188] sm:$0x1]
    %v7694 = vld [vmem:[%s6927 + $0x18c] sm:$0xf]
    %v7695 = vld [vmem:[%s6927 + $0x190] sm:$0xf]
    %v7696 = vld [vmem:[%s6927 + $0x194] sm:$0x1]
    %v7698 = vshrl.u32 %v7601, 16
    %v7700 = vrot.slane %v7698, 4
    %v7701 = vshll.u32 %v7601, 16
    %v7703 = vrot.slane %v7701, 5
    %v7704 = vor.u32 %v7700, %v7703
    %v7705 = vrot.slane %v7704, 4
    %v7707 = vshll.u32 %v7602, 16
    %v7709 = vrot.slane %v7707, 5
    %v7710 = vsel %vm1301, %v7705, %v7709
    %v7711 = vshrl.u32 %v7602, 16
    %v7713 = vrot.slane %v7711, 4
    %v7714 = vor.u32 %v7713, %v7709
    %v7715 = vrot.slane %v7714, 4
    %v7717 = vshll.u32 %v7603, 16
    %v7719 = vrot.slane %v7717, 5
    %v7720 = vsel %vm1301, %v7715, %v7719
    %v7722 = vshrl.u32 %v7604, 16
    %v7724 = vrot.slane %v7722, 4
    %v7725 = vshll.u32 %v7604, 16
    %v7727 = vrot.slane %v7725, 5
    %v7728 = vor.u32 %v7724, %v7727
    %v7729 = vrot.slane %v7728, 4
    %v7731 = vshll.u32 %v7605, 16
    %v7733 = vrot.slane %v7731, 5
    %v7734 = vsel %vm1301, %v7729, %v7733
    %v7735 = vshrl.u32 %v7605, 16
    %v7737 = vrot.slane %v7735, 4
    %v7738 = vor.u32 %v7737, %v7733
    %v7739 = vrot.slane %v7738, 4
    %v7741 = vshll.u32 %v7606, 16
    %v7743 = vrot.slane %v7741, 5
    %v7744 = vsel %vm1301, %v7739, %v7743
    %v7746 = vshrl.u32 %v7607, 16
    %v7748 = vrot.slane %v7746, 4
    %v7749 = vshll.u32 %v7607, 16
    %v7751 = vrot.slane %v7749, 5
    %v7752 = vor.u32 %v7748, %v7751
    %v7753 = vrot.slane %v7752, 4
    %v7755 = vshll.u32 %v7608, 16
    %v7757 = vrot.slane %v7755, 5
    %v7758 = vsel %vm1301, %v7753, %v7757
    %v7759 = vshrl.u32 %v7608, 16
    %v7761 = vrot.slane %v7759, 4
    %v7762 = vor.u32 %v7761, %v7757
    %v7763 = vrot.slane %v7762, 4
    %v7765 = vshll.u32 %v7609, 16
    %v7767 = vrot.slane %v7765, 5
    %v7768 = vsel %vm1301, %v7763, %v7767
    %v7770 = vshrl.u32 %v7610, 16
    %v7772 = vrot.slane %v7770, 4
    %v7773 = vshll.u32 %v7610, 16
    %v7775 = vrot.slane %v7773, 5
    %v7776 = vor.u32 %v7772, %v7775
    %v7777 = vrot.slane %v7776, 4
    %v7779 = vshll.u32 %v7611, 16
    %v7781 = vrot.slane %v7779, 5
    %v7782 = vsel %vm1301, %v7777, %v7781
    %v7783 = vshrl.u32 %v7611, 16
    %v7785 = vrot.slane %v7783, 4
    %v7786 = vor.u32 %v7785, %v7781
    %v7787 = vrot.slane %v7786, 4
    %v7789 = vshll.u32 %v7612, 16
    %v7791 = vrot.slane %v7789, 5
    %v7792 = vsel %vm1301, %v7787, %v7791
    %v7794 = vshrl.u32 %v7613, 16
    %v7796 = vrot.slane %v7794, 4
    %v7797 = vshll.u32 %v7613, 16
    %v7799 = vrot.slane %v7797, 5
    %v7800 = vor.u32 %v7796, %v7799
    %v7801 = vrot.slane %v7800, 4
    %v7803 = vshll.u32 %v7614, 16
    %v7805 = vrot.slane %v7803, 5
    %v7806 = vsel %vm1301, %v7801, %v7805
    %v7807 = vshrl.u32 %v7614, 16
    %v7809 = vrot.slane %v7807, 4
    %v7810 = vor.u32 %v7809, %v7805
    %v7811 = vrot.slane %v7810, 4
    %v7813 = vshll.u32 %v7615, 16
    %v7815 = vrot.slane %v7813, 5
    %v7816 = vsel %vm1301, %v7811, %v7815
    %v7818 = vshrl.u32 %v7616, 16
    %v7820 = vrot.slane %v7818, 4
    %v7821 = vshll.u32 %v7616, 16
    %v7823 = vrot.slane %v7821, 5
    %v7824 = vor.u32 %v7820, %v7823
    %v7825 = vrot.slane %v7824, 4
    %v7827 = vshll.u32 %v7617, 16
    %v7829 = vrot.slane %v7827, 5
    %v7830 = vsel %vm1301, %v7825, %v7829
    %v7831 = vshrl.u32 %v7617, 16
    %v7833 = vrot.slane %v7831, 4
    %v7834 = vor.u32 %v7833, %v7829
    %v7835 = vrot.slane %v7834, 4
    %v7837 = vshll.u32 %v7618, 16
    %v7839 = vrot.slane %v7837, 5
    %v7840 = vsel %vm1301, %v7835, %v7839
    %v7842 = vshrl.u32 %v7619, 16
    %v7844 = vrot.slane %v7842, 4
    %v7845 = vshll.u32 %v7619, 16
    %v7847 = vrot.slane %v7845, 5
    %v7848 = vor.u32 %v7844, %v7847
    %v7849 = vrot.slane %v7848, 4
    %v7851 = vshll.u32 %v7620, 16
    %v7853 = vrot.slane %v7851, 5
    %v7854 = vsel %vm1301, %v7849, %v7853
    %v7855 = vshrl.u32 %v7620, 16
    %v7857 = vrot.slane %v7855, 4
    %v7858 = vor.u32 %v7857, %v7853
    %v7859 = vrot.slane %v7858, 4
    %v7861 = vshll.u32 %v7621, 16
    %v7863 = vrot.slane %v7861, 5
    %v7864 = vsel %vm1301, %v7859, %v7863
    %v7866 = vshrl.u32 %v7622, 16
    %v7868 = vrot.slane %v7866, 4
    %v7869 = vshll.u32 %v7622, 16
    %v7871 = vrot.slane %v7869, 5
    %v7872 = vor.u32 %v7868, %v7871
    %v7873 = vrot.slane %v7872, 4
    %v7875 = vshll.u32 %v7623, 16
    %v7877 = vrot.slane %v7875, 5
    %v7878 = vsel %vm1301, %v7873, %v7877
    %v7879 = vshrl.u32 %v7623, 16
    %v7881 = vrot.slane %v7879, 4
    %v7882 = vor.u32 %v7881, %v7877
    %v7883 = vrot.slane %v7882, 4
    %v7885 = vshll.u32 %v7624, 16
    %v7887 = vrot.slane %v7885, 5
    %v7888 = vsel %vm1301, %v7883, %v7887
    %v7890 = vshrl.u32 %v7625, 16
    %v7892 = vrot.slane %v7890, 4
    %v7893 = vshll.u32 %v7625, 16
    %v7895 = vrot.slane %v7893, 5
    %v7896 = vor.u32 %v7892, %v7895
    %v7897 = vrot.slane %v7896, 4
    %v7899 = vshll.u32 %v7626, 16
    %v7901 = vrot.slane %v7899, 5
    %v7902 = vsel %vm1301, %v7897, %v7901
    %v7903 = vshrl.u32 %v7626, 16
    %v7905 = vrot.slane %v7903, 4
    %v7906 = vor.u32 %v7905, %v7901
    %v7907 = vrot.slane %v7906, 4
    %v7909 = vshll.u32 %v7627, 16
    %v7911 = vrot.slane %v7909, 5
    %v7912 = vsel %vm1301, %v7907, %v7911
    %v7914 = vshrl.u32 %v7628, 16
    %v7916 = vrot.slane %v7914, 4
    %v7917 = vshll.u32 %v7628, 16
    %v7919 = vrot.slane %v7917, 5
    %v7920 = vor.u32 %v7916, %v7919
    %v7921 = vrot.slane %v7920, 4
    %v7923 = vshll.u32 %v7629, 16
    %v7925 = vrot.slane %v7923, 5
    %v7926 = vsel %vm1301, %v7921, %v7925
    %v7927 = vshrl.u32 %v7629, 16
    %v7929 = vrot.slane %v7927, 4
    %v7930 = vor.u32 %v7929, %v7925
    %v7931 = vrot.slane %v7930, 4
    %v7933 = vshll.u32 %v7630, 16
    %v7935 = vrot.slane %v7933, 5
    %v7936 = vsel %vm1301, %v7931, %v7935
    %v7938 = vshrl.u32 %v7631, 16
    %v7940 = vrot.slane %v7938, 4
    %v7941 = vshll.u32 %v7631, 16
    %v7943 = vrot.slane %v7941, 5
    %v7944 = vor.u32 %v7940, %v7943
    %v7945 = vrot.slane %v7944, 4
    %v7947 = vshll.u32 %v7632, 16
    %v7949 = vrot.slane %v7947, 5
    %v7950 = vsel %vm1301, %v7945, %v7949
    %v7951 = vshrl.u32 %v7632, 16
    %v7953 = vrot.slane %v7951, 4
    %v7954 = vor.u32 %v7953, %v7949
    %v7955 = vrot.slane %v7954, 4
    %v7957 = vshll.u32 %v7633, 16
    %v7959 = vrot.slane %v7957, 5
    %v7960 = vsel %vm1301, %v7955, %v7959
    %v7962 = vshrl.u32 %v7634, 16
    %v7964 = vrot.slane %v7962, 4
    %v7965 = vshll.u32 %v7634, 16
    %v7967 = vrot.slane %v7965, 5
    %v7968 = vor.u32 %v7964, %v7967
    %v7969 = vrot.slane %v7968, 4
    %v7971 = vshll.u32 %v7635, 16
    %v7973 = vrot.slane %v7971, 5
    %v7974 = vsel %vm1301, %v7969, %v7973
    %v7975 = vshrl.u32 %v7635, 16
    %v7977 = vrot.slane %v7975, 4
    %v7978 = vor.u32 %v7977, %v7973
    %v7979 = vrot.slane %v7978, 4
    %v7981 = vshll.u32 %v7636, 16
    %v7983 = vrot.slane %v7981, 5
    %v7984 = vsel %vm1301, %v7979, %v7983
    %v7986 = vshrl.u32 %v7637, 16
    %v7988 = vrot.slane %v7986, 4
    %v7989 = vshll.u32 %v7637, 16
    %v7991 = vrot.slane %v7989, 5
    %v7992 = vor.u32 %v7988, %v7991
    %v7993 = vrot.slane %v7992, 4
    %v7995 = vshll.u32 %v7638, 16
    %v7997 = vrot.slane %v7995, 5
    %v7998 = vsel %vm1301, %v7993, %v7997
    %v7999 = vshrl.u32 %v7638, 16
    %v8001 = vrot.slane %v7999, 4
    %v8002 = vor.u32 %v8001, %v7997
    %v8003 = vrot.slane %v8002, 4
    %v8005 = vshll.u32 %v7639, 16
    %v8007 = vrot.slane %v8005, 5
    %v8008 = vsel %vm1301, %v8003, %v8007
    %v8010 = vshrl.u32 %v7640, 16
    %v8012 = vrot.slane %v8010, 4
    %v8013 = vshll.u32 %v7640, 16
    %v8015 = vrot.slane %v8013, 5
    %v8016 = vor.u32 %v8012, %v8015
    %v8017 = vrot.slane %v8016, 4
    %v8019 = vshll.u32 %v7641, 16
    %v8021 = vrot.slane %v8019, 5
    %v8022 = vsel %vm1301, %v8017, %v8021
    %v8023 = vshrl.u32 %v7641, 16
    %v8025 = vrot.slane %v8023, 4
    %v8026 = vor.u32 %v8025, %v8021
    %v8027 = vrot.slane %v8026, 4
    %v8029 = vshll.u32 %v7642, 16
    %v8031 = vrot.slane %v8029, 5
    %v8032 = vsel %vm1301, %v8027, %v8031
    %v8034 = vshrl.u32 %v7643, 16
    %v8036 = vrot.slane %v8034, 4
    %v8037 = vshll.u32 %v7643, 16
    %v8039 = vrot.slane %v8037, 5
    %v8040 = vor.u32 %v8036, %v8039
    %v8041 = vrot.slane %v8040, 4
    %v8043 = vshll.u32 %v7644, 16
    %v8045 = vrot.slane %v8043, 5
    %v8046 = vsel %vm1301, %v8041, %v8045
    %v8047 = vshrl.u32 %v7644, 16
    %v8049 = vrot.slane %v8047, 4
    %v8050 = vor.u32 %v8049, %v8045
    %v8051 = vrot.slane %v8050, 4
    %v8053 = vshll.u32 %v7645, 16
    %v8055 = vrot.slane %v8053, 5
    %v8056 = vsel %vm1301, %v8051, %v8055
    %v8058 = vshrl.u32 %v7646, 16
    %v8060 = vrot.slane %v8058, 4
    %v8061 = vshll.u32 %v7646, 16
    %v8063 = vrot.slane %v8061, 5
    %v8064 = vor.u32 %v8060, %v8063
    %v8065 = vrot.slane %v8064, 4
    %v8067 = vshll.u32 %v7647, 16
    %v8069 = vrot.slane %v8067, 5
    %v8070 = vsel %vm1301, %v8065, %v8069
    %v8071 = vshrl.u32 %v7647, 16
    %v8073 = vrot.slane %v8071, 4
    %v8074 = vor.u32 %v8073, %v8069
    %v8075 = vrot.slane %v8074, 4
    %v8077 = vshll.u32 %v7648, 16
    %v8079 = vrot.slane %v8077, 5
    %v8080 = vsel %vm1301, %v8075, %v8079
    %v8082 = vshrl.u32 %v7649, 16
    %v8084 = vrot.slane %v8082, 4
    %v8085 = vshll.u32 %v7649, 16
    %v8087 = vrot.slane %v8085, 5
    %v8088 = vor.u32 %v8084, %v8087
    %v8089 = vrot.slane %v8088, 4
    %v8091 = vshll.u32 %v7650, 16
    %v8093 = vrot.slane %v8091, 5
    %v8094 = vsel %vm1301, %v8089, %v8093
    %v8095 = vshrl.u32 %v7650, 16
    %v8097 = vrot.slane %v8095, 4
    %v8098 = vor.u32 %v8097, %v8093
    %v8099 = vrot.slane %v8098, 4
    %v8101 = vshll.u32 %v7651, 16
    %v8103 = vrot.slane %v8101, 5
    %v8104 = vsel %vm1301, %v8099, %v8103
    %v8106 = vshrl.u32 %v7652, 16
    %v8108 = vrot.slane %v8106, 4
    %v8109 = vshll.u32 %v7652, 16
    %v8111 = vrot.slane %v8109, 5
    %v8112 = vor.u32 %v8108, %v8111
    %v8113 = vrot.slane %v8112, 4
    %v8115 = vshll.u32 %v7653, 16
    %v8117 = vrot.slane %v8115, 5
    %v8118 = vsel %vm1301, %v8113, %v8117
    %v8119 = vshrl.u32 %v7653, 16
    %v8121 = vrot.slane %v8119, 4
    %v8122 = vor.u32 %v8121, %v8117
    %v8123 = vrot.slane %v8122, 4
    %v8125 = vshll.u32 %v7654, 16
    %v8127 = vrot.slane %v8125, 5
    %v8128 = vsel %vm1301, %v8123, %v8127
    %v8130 = vshrl.u32 %v7655, 16
    %v8132 = vrot.slane %v8130, 4
    %v8133 = vshll.u32 %v7655, 16
    %v8135 = vrot.slane %v8133, 5
    %v8136 = vor.u32 %v8132, %v8135
    %v8137 = vrot.slane %v8136, 4
    %v8139 = vshll.u32 %v7656, 16
    %v8141 = vrot.slane %v8139, 5
    %v8142 = vsel %vm1301, %v8137, %v8141
    %v8143 = vshrl.u32 %v7656, 16
    %v8145 = vrot.slane %v8143, 4
    %v8146 = vor.u32 %v8145, %v8141
    %v8147 = vrot.slane %v8146, 4
    %v8149 = vshll.u32 %v7657, 16
    %v8151 = vrot.slane %v8149, 5
    %v8152 = vsel %vm1301, %v8147, %v8151
    %v8154 = vshrl.u32 %v7658, 16
    %v8156 = vrot.slane %v8154, 4
    %v8157 = vshll.u32 %v7658, 16
    %v8159 = vrot.slane %v8157, 5
    %v8160 = vor.u32 %v8156, %v8159
    %v8161 = vrot.slane %v8160, 4
    %v8163 = vshll.u32 %v7659, 16
    %v8165 = vrot.slane %v8163, 5
    %v8166 = vsel %vm1301, %v8161, %v8165
    %v8167 = vshrl.u32 %v7659, 16
    %v8169 = vrot.slane %v8167, 4
    %v8170 = vor.u32 %v8169, %v8165
    %v8171 = vrot.slane %v8170, 4
    %v8173 = vshll.u32 %v7660, 16
    %v8175 = vrot.slane %v8173, 5
    %v8176 = vsel %vm1301, %v8171, %v8175
    %v8178 = vshrl.u32 %v7661, 16
    %v8180 = vrot.slane %v8178, 4
    %v8181 = vshll.u32 %v7661, 16
    %v8183 = vrot.slane %v8181, 5
    %v8184 = vor.u32 %v8180, %v8183
    %v8185 = vrot.slane %v8184, 4
    %v8187 = vshll.u32 %v7662, 16
    %v8189 = vrot.slane %v8187, 5
    %v8190 = vsel %vm1301, %v8185, %v8189
    %v8191 = vshrl.u32 %v7662, 16
    %v8193 = vrot.slane %v8191, 4
    %v8194 = vor.u32 %v8193, %v8189
    %v8195 = vrot.slane %v8194, 4
    %v8197 = vshll.u32 %v7663, 16
    %v8199 = vrot.slane %v8197, 5
    %v8200 = vsel %vm1301, %v8195, %v8199
    %v8202 = vshrl.u32 %v7664, 16
    %v8204 = vrot.slane %v8202, 4
    %v8205 = vshll.u32 %v7664, 16
    %v8207 = vrot.slane %v8205, 5
    %v8208 = vor.u32 %v8204, %v8207
    %v8209 = vrot.slane %v8208, 4
    %v8211 = vshll.u32 %v7665, 16
    %v8213 = vrot.slane %v8211, 5
    %v8214 = vsel %vm1301, %v8209, %v8213
    %v8215 = vshrl.u32 %v7665, 16
    %v8217 = vrot.slane %v8215, 4
    %v8218 = vor.u32 %v8217, %v8213
    %v8219 = vrot.slane %v8218, 4
    %v8221 = vshll.u32 %v7666, 16
    %v8223 = vrot.slane %v8221, 5
    %v8224 = vsel %vm1301, %v8219, %v8223
    %v8226 = vshrl.u32 %v7667, 16
    %v8228 = vrot.slane %v8226, 4
    %v8229 = vshll.u32 %v7667, 16
    %v8231 = vrot.slane %v8229, 5
    %v8232 = vor.u32 %v8228, %v8231
    %v8233 = vrot.slane %v8232, 4
    %v8235 = vshll.u32 %v7668, 16
    %v8237 = vrot.slane %v8235, 5
    %v8238 = vsel %vm1301, %v8233, %v8237
    %v8239 = vshrl.u32 %v7668, 16
    %v8241 = vrot.slane %v8239, 4
    %v8242 = vor.u32 %v8241, %v8237
    %v8243 = vrot.slane %v8242, 4
    %v8245 = vshll.u32 %v7669, 16
    %v8247 = vrot.slane %v8245, 5
    %v8248 = vsel %vm1301, %v8243, %v8247
    %v8250 = vshrl.u32 %v7670, 16
    %v8252 = vrot.slane %v8250, 4
    %v8253 = vshll.u32 %v7670, 16
    %v8255 = vrot.slane %v8253, 5
    %v8256 = vor.u32 %v8252, %v8255
    %v8257 = vrot.slane %v8256, 4
    %v8259 = vshll.u32 %v7671, 16
    %v8261 = vrot.slane %v8259, 5
    %v8262 = vsel %vm1301, %v8257, %v8261
    %v8263 = vshrl.u32 %v7671, 16
    %v8265 = vrot.slane %v8263, 4
    %v8266 = vor.u32 %v8265, %v8261
    %v8267 = vrot.slane %v8266, 4
    %v8269 = vshll.u32 %v7672, 16
    %v8271 = vrot.slane %v8269, 5
    %v8272 = vsel %vm1301, %v8267, %v8271
    %v8274 = vshrl.u32 %v7673, 16
    %v8276 = vrot.slane %v8274, 4
    %v8277 = vshll.u32 %v7673, 16
    %v8279 = vrot.slane %v8277, 5
    %v8280 = vor.u32 %v8276, %v8279
    %v8281 = vrot.slane %v8280, 4
    %v8283 = vshll.u32 %v7674, 16
    %v8285 = vrot.slane %v8283, 5
    %v8286 = vsel %vm1301, %v8281, %v8285
    %v8287 = vshrl.u32 %v7674, 16
    %v8289 = vrot.slane %v8287, 4
    %v8290 = vor.u32 %v8289, %v8285
    %v8291 = vrot.slane %v8290, 4
    %v8293 = vshll.u32 %v7675, 16
    %v8295 = vrot.slane %v8293, 5
    %v8296 = vsel %vm1301, %v8291, %v8295
    %v8298 = vshrl.u32 %v7676, 16
    %v8300 = vrot.slane %v8298, 4
    %v8301 = vshll.u32 %v7676, 16
    %v8303 = vrot.slane %v8301, 5
    %v8304 = vor.u32 %v8300, %v8303
    %v8305 = vrot.slane %v8304, 4
    %v8307 = vshll.u32 %v7677, 16
    %v8309 = vrot.slane %v8307, 5
    %v8310 = vsel %vm1301, %v8305, %v8309
    %v8311 = vshrl.u32 %v7677, 16
    %v8313 = vrot.slane %v8311, 4
    %v8314 = vor.u32 %v8313, %v8309
    %v8315 = vrot.slane %v8314, 4
    %v8317 = vshll.u32 %v7678, 16
    %v8319 = vrot.slane %v8317, 5
    %v8320 = vsel %vm1301, %v8315, %v8319
    %v8322 = vshrl.u32 %v7679, 16
    %v8324 = vrot.slane %v8322, 4
    %v8325 = vshll.u32 %v7679, 16
    %v8327 = vrot.slane %v8325, 5
    %v8328 = vor.u32 %v8324, %v8327
    %v8329 = vrot.slane %v8328, 4
    %v8331 = vshll.u32 %v7680, 16
    %v8333 = vrot.slane %v8331, 5
    %v8334 = vsel %vm1301, %v8329, %v8333
    %v8335 = vshrl.u32 %v7680, 16
    %v8337 = vrot.slane %v8335, 4
    %v8338 = vor.u32 %v8337, %v8333
    %v8339 = vrot.slane %v8338, 4
    %v8341 = vshll.u32 %v7681, 16
    %v8343 = vrot.slane %v8341, 5
    %v8344 = vsel %vm1301, %v8339, %v8343
    %v8346 = vshrl.u32 %v7682, 16
    %v8348 = vrot.slane %v8346, 4
    %v8349 = vshll.u32 %v7682, 16
    %v8351 = vrot.slane %v8349, 5
    %v8352 = vor.u32 %v8348, %v8351
    %v8353 = vrot.slane %v8352, 4
    %v8355 = vshll.u32 %v7683, 16
    %v8357 = vrot.slane %v8355, 5
    %v8358 = vsel %vm1301, %v8353, %v8357
    %v8359 = vshrl.u32 %v7683, 16
    %v8361 = vrot.slane %v8359, 4
    %v8362 = vor.u32 %v8361, %v8357
    %v8363 = vrot.slane %v8362, 4
    %v8365 = vshll.u32 %v7684, 16
    %v8367 = vrot.slane %v8365, 5
    %v8368 = vsel %vm1301, %v8363, %v8367
    %v8370 = vshrl.u32 %v7685, 16
    %v8372 = vrot.slane %v8370, 4
    %v8373 = vshll.u32 %v7685, 16
    %v8375 = vrot.slane %v8373, 5
    %v8376 = vor.u32 %v8372, %v8375
    %v8377 = vrot.slane %v8376, 4
    %v8379 = vshll.u32 %v7686, 16
    %v8381 = vrot.slane %v8379, 5
    %v8382 = vsel %vm1301, %v8377, %v8381
    %v8383 = vshrl.u32 %v7686, 16
    %v8385 = vrot.slane %v8383, 4
    %v8386 = vor.u32 %v8385, %v8381
    %v8387 = vrot.slane %v8386, 4
    %v8389 = vshll.u32 %v7687, 16
    %v8391 = vrot.slane %v8389, 5
    %v8392 = vsel %vm1301, %v8387, %v8391
    %v8394 = vshrl.u32 %v7688, 16
    %v8396 = vrot.slane %v8394, 4
    %v8397 = vshll.u32 %v7688, 16
    %v8399 = vrot.slane %v8397, 5
    %v8400 = vor.u32 %v8396, %v8399
    %v8401 = vrot.slane %v8400, 4
    %v8403 = vshll.u32 %v7689, 16
    %v8405 = vrot.slane %v8403, 5
    %v8406 = vsel %vm1301, %v8401, %v8405
    %v8407 = vshrl.u32 %v7689, 16
    %v8409 = vrot.slane %v8407, 4
    %v8410 = vor.u32 %v8409, %v8405
    %v8411 = vrot.slane %v8410, 4
    %v8413 = vshll.u32 %v7690, 16
    %v8415 = vrot.slane %v8413, 5
    %v8416 = vsel %vm1301, %v8411, %v8415
    %v8418 = vshrl.u32 %v7691, 16
    %v8420 = vrot.slane %v8418, 4
    %v8421 = vshll.u32 %v7691, 16
    %v8423 = vrot.slane %v8421, 5
    %v8424 = vor.u32 %v8420, %v8423
    %v8425 = vrot.slane %v8424, 4
    %v8427 = vshll.u32 %v7692, 16
    %v8429 = vrot.slane %v8427, 5
    %v8430 = vsel %vm1301, %v8425, %v8429
    %v8431 = vshrl.u32 %v7692, 16
    %v8433 = vrot.slane %v8431, 4
    %v8434 = vor.u32 %v8433, %v8429
    %v8435 = vrot.slane %v8434, 4
    %v8437 = vshll.u32 %v7693, 16
    %v8439 = vrot.slane %v8437, 5
    %v8440 = vsel %vm1301, %v8435, %v8439
    %v8442 = vshrl.u32 %v7694, 16
    %v8444 = vrot.slane %v8442, 4
    %v8445 = vshll.u32 %v7694, 16
    %v8447 = vrot.slane %v8445, 5
    %v8448 = vor.u32 %v8444, %v8447
    %v8449 = vrot.slane %v8448, 4
    %v8451 = vshll.u32 %v7695, 16
    %v8453 = vrot.slane %v8451, 5
    %v8454 = vsel %vm1301, %v8449, %v8453
    %v8455 = vshrl.u32 %v7695, 16
    %v8457 = vrot.slane %v8455, 4
    %v8458 = vor.u32 %v8457, %v8453
    %v8459 = vrot.slane %v8458, 4
    %v8461 = vshll.u32 %v7696, 16
    %v8463 = vrot.slane %v8461, 5
    %v8464 = vsel %vm1301, %v8459, %v8463
    %v8465 = vld [vmem:[#allocation6 + $0x1c0] sm:$0xf]
    %v8466 = vld [vmem:[#allocation6 + $0x1c4] sm:$0xf]
    %v8467 = vld [vmem:[#allocation6 + $0x1c8] sm:$0xf]
    %v8468 = vld [vmem:[#allocation6 + $0x1cc] sm:$0xf]
    %v8469 = vld [vmem:[#allocation6 + $0x1d0] sm:$0xf]
    %v8470 = vld [vmem:[#allocation6 + $0x1d4] sm:$0xf]
    %v8471 = vld [vmem:[#allocation6 + $0x1d8] sm:$0xf]
    %v8472 = vld [vmem:[#allocation6 + $0x1dc] sm:$0xf]
    %v8473 = vld [vmem:[#allocation6 + $0x1e0] sm:$0xf]
    %v8474 = vld [vmem:[#allocation6 + $0x1e4] sm:$0xf]
    %v8475 = vld [vmem:[#allocation6 + $0x1e8] sm:$0xf]
    %v8476 = vld [vmem:[#allocation6 + $0x1ec] sm:$0xf]
    %v8477 = vld [vmem:[#allocation6 + $0x1f0] sm:$0xf]
    %v8478 = vld [vmem:[#allocation6 + $0x1f4] sm:$0xf]
    %v8479 = vld [vmem:[#allocation6 + $0x1f8] sm:$0xf]
    %v8480 = vld [vmem:[#allocation6 + $0x1fc] sm:$0xf]
    %v8481 = vunpack.c.l.b16 %v7710
    %v8482 = vunpack.c.l.b16 %v7720
    %v8483 = vunpack.c.l.b16 %v7734
    %v8484 = vunpack.c.l.b16 %v7744
    %v8485 = vunpack.c.l.b16 %v7758
    %v8486 = vunpack.c.l.b16 %v7768
    %v8487 = vunpack.c.l.b16 %v7782
    %v8488 = vunpack.c.l.b16 %v7792
    %v8489 = vunpack.c.l.b16 %v7806
    %v8490 = vunpack.c.l.b16 %v7816
    %v8491 = vunpack.c.l.b16 %v7830
    %v8492 = vunpack.c.l.b16 %v7840
    %v8493 = vunpack.c.l.b16 %v7854
    %v8494 = vunpack.c.l.b16 %v7864
    %v8495 = vunpack.c.l.b16 %v7878
    %v8496 = vunpack.c.l.b16 %v7888
    %v8497 = vunpack.c.l.b16 %v7902
    %v8498 = vunpack.c.l.b16 %v7912
    %v8499 = vunpack.c.l.b16 %v7926
    %v8500 = vunpack.c.l.b16 %v7936
    %v8501 = vunpack.c.l.b16 %v7950
    %v8502 = vunpack.c.l.b16 %v7960
    %v8503 = vunpack.c.l.b16 %v7974
    %v8504 = vunpack.c.l.b16 %v7984
    %v8505 = vunpack.c.l.b16 %v7998
    %v8506 = vunpack.c.l.b16 %v8008
    %v8507 = vunpack.c.l.b16 %v8022
    %v8508 = vunpack.c.l.b16 %v8032
    %v8509 = vunpack.c.l.b16 %v8046
    %v8510 = vunpack.c.l.b16 %v8056
    %v8511 = vunpack.c.l.b16 %v8070
    %v8512 = vunpack.c.l.b16 %v8080
    %v8513 = vunpack.c.l.b16 %v8094
    %v8514 = vunpack.c.l.b16 %v8104
    %v8515 = vunpack.c.l.b16 %v8118
    %v8516 = vunpack.c.l.b16 %v8128
    %v8517 = vunpack.c.l.b16 %v8142
    %v8518 = vunpack.c.l.b16 %v8152
    %v8519 = vunpack.c.l.b16 %v8166
    %v8520 = vunpack.c.l.b16 %v8176
    %v8521 = vunpack.c.l.b16 %v8190
    %v8522 = vunpack.c.l.b16 %v8200
    %v8523 = vunpack.c.l.b16 %v8214
    %v8524 = vunpack.c.l.b16 %v8224
    %v8525 = vunpack.c.l.b16 %v8238
    %v8526 = vunpack.c.l.b16 %v8248
    %v8527 = vunpack.c.l.b16 %v8262
    %v8528 = vunpack.c.l.b16 %v8272
    %v8529 = vunpack.c.l.b16 %v8286
    %v8530 = vunpack.c.l.b16 %v8296
    %v8531 = vunpack.c.l.b16 %v8310
    %v8532 = vunpack.c.l.b16 %v8320
    %v8533 = vunpack.c.l.b16 %v8334
    %v8534 = vunpack.c.l.b16 %v8344
    %v8535 = vunpack.c.l.b16 %v8358
    %v8536 = vunpack.c.l.b16 %v8368
    %v8537 = vunpack.c.l.b16 %v8382
    %v8538 = vunpack.c.l.b16 %v8392
    %v8539 = vunpack.c.l.b16 %v8406
    %v8540 = vunpack.c.l.b16 %v8416
    %v8541 = vunpack.c.l.b16 %v8430
    %v8542 = vunpack.c.l.b16 %v8440
    %v8543 = vunpack.c.l.b16 %v8454
    %v8544 = vunpack.c.l.b16 %v8464
    %v8545 = vpack.c.b16 %v8482, %v8481
    %v8546 = vpack.c.b16 %v8484, %v8483
    %v8547 = vpack.c.b16 %v8486, %v8485
    %v8548 = vpack.c.b16 %v8488, %v8487
    %v8549 = vpack.c.b16 %v8490, %v8489
    %v8550 = vpack.c.b16 %v8492, %v8491
    %v8551 = vpack.c.b16 %v8494, %v8493
    %v8552 = vpack.c.b16 %v8496, %v8495
    %v8553 = vpack.c.b16 %v8498, %v8497
    %v8554 = vpack.c.b16 %v8500, %v8499
    %v8555 = vpack.c.b16 %v8502, %v8501
    %v8556 = vpack.c.b16 %v8504, %v8503
    %v8557 = vpack.c.b16 %v8506, %v8505
    %v8558 = vpack.c.b16 %v8508, %v8507
    %v8559 = vpack.c.b16 %v8510, %v8509
    %v8560 = vpack.c.b16 %v8512, %v8511
    %v8561 = vpack.c.b16 %v8514, %v8513
    %v8562 = vpack.c.b16 %v8516, %v8515
    %v8563 = vpack.c.b16 %v8518, %v8517
    %v8564 = vpack.c.b16 %v8520, %v8519
    %v8565 = vpack.c.b16 %v8522, %v8521
    %v8566 = vpack.c.b16 %v8524, %v8523
    %v8567 = vpack.c.b16 %v8526, %v8525
    %v8568 = vpack.c.b16 %v8528, %v8527
    %v8569 = vpack.c.b16 %v8530, %v8529
    %v8570 = vpack.c.b16 %v8532, %v8531
    %v8571 = vpack.c.b16 %v8534, %v8533
    %v8572 = vpack.c.b16 %v8536, %v8535
    %v8573 = vpack.c.b16 %v8538, %v8537
    %v8574 = vpack.c.b16 %v8540, %v8539
    %v8575 = vpack.c.b16 %v8542, %v8541
    %v8576 = vpack.c.b16 %v8544, %v8543
    %v8625 = vunpack.c.l.b16 %v8465
    %v8626 = vunpack.c.l.b16 %v8466
    %v8627 = vunpack.c.l.b16 %v8467
    %v8628 = vunpack.c.l.b16 %v8468
    %v8629 = vunpack.c.l.b16 %v8469
    %v8630 = vunpack.c.l.b16 %v8470
    %v8631 = vunpack.c.l.b16 %v8471
    %v8632 = vunpack.c.l.b16 %v8472
    %v8633 = vunpack.c.l.b16 %v8473
    %v8634 = vunpack.c.l.b16 %v8474
    %v8635 = vunpack.c.l.b16 %v8475
    %v8636 = vunpack.c.l.b16 %v8476
    %v8637 = vunpack.c.l.b16 %v8477
    %v8638 = vunpack.c.l.b16 %v8478
    %v8639 = vunpack.c.l.b16 %v8479
    %v8640 = vunpack.c.l.b16 %v8480
    %v8641 = vpack.c.b16 %v8626, %v8625
    %v8642 = vpack.c.b16 %v8628, %v8627
    %v8643 = vpack.c.b16 %v8630, %v8629
    %v8644 = vpack.c.b16 %v8632, %v8631
    %v8645 = vpack.c.b16 %v8634, %v8633
    %v8646 = vpack.c.b16 %v8636, %v8635
    %v8647 = vpack.c.b16 %v8638, %v8637
    %v8648 = vpack.c.b16 %v8640, %v8639
    %8657 = vmatprep.subr.bf16.mxu0 0
    %8658 = vmatpush1.bf16.msra.mxu0 %v8641
    %8659 = vmatprep.subr.bf16.mxu0 0
    %8660 = vmatpush1.bf16.msra.mxu0 %v8642
    %8661 = vmatprep.subr.bf16.mxu0 0
    %8662 = vmatpush1.bf16.msra.mxu0 %v8643
    %8663 = vmatprep.subr.bf16.mxu0 0
    %8664 = vmatpush1.bf16.msra.mxu0 %v8644
    %8665 = vmatprep.subr.bf16.mxu0 0
    %8666 = vmatpush1.bf16.msra.mxu0 %v8645
    %8667 = vmatprep.subr.bf16.mxu0 0
    %8668 = vmatpush1.bf16.msra.mxu0 %v8646
    %8669 = vmatprep.subr.bf16.mxu0 0
    %8670 = vmatpush1.bf16.msra.mxu0 %v8647
    %8671 = vmatprep.subr.bf16.mxu0 0
    %8672 = vmatpush1.bf16.msra.mxu0 %v8648
    %8673 = vmatprep.subr.bf16.mxu0 0
    %8674 = vmatpush1.bf16.msra.mxu0 0
    %8675 = vmatprep.subr.bf16.mxu0 0
    %8676 = vmatpush1.bf16.msra.mxu0 0
    %8677 = vmatprep.subr.bf16.mxu0 0
    %8678 = vmatpush1.bf16.msra.mxu0 0
    %8679 = vmatprep.subr.bf16.mxu0 0
    %8680 = vmatpush1.bf16.msra.mxu0 0
    %8681 = vmatprep.subr.bf16.mxu0 0
    %8682 = vmatpush1.bf16.msra.mxu0 0
    %8683 = vmatprep.subr.bf16.mxu0 0
    %8684 = vmatpush1.bf16.msra.mxu0 0
    %8685 = vmatprep.subr.bf16.mxu0 0
    %8686 = vmatpush1.bf16.msra.mxu0 0
    %8687 = vmatprep.subr.bf16.mxu0 0
    %8688 = vmatpush1.bf16.msra.mxu0 0
    %8689 = vmatprep.mubr.bf16.mxu0 0
    %8690 = vmatmul.mubr.bf16.gmra.mrb[0].mxu0 %v8545
    %v8691 = vpop.f32.mrb[0].mxu0
    %v8692 = vadd.f32 0.0, %v8691
    %v8693 = vpop.f32.mrb[0].mxu0
    %v8694 = vpop.f32.mrb[0].mxu0
    %v8695 = vadd.f32 0.0, %v8694
    %v8696 = vpop.f32.mrb[0].mxu0
    %8697 = vmatprep.mubr.bf16.mxu0 0
    %8698 = vmatmul.mubr.bf16.gmra.mrb[0].mxu0 %v8546
    %v8699 = vpop.f32.mrb[0].mxu0
    %v8700 = vadd.f32 0.0, %v8699
    %v8701 = vpop.f32.mrb[0].mxu0
    %v8702 = vpop.f32.mrb[0].mxu0
    %v8703 = vadd.f32 0.0, %v8702
    %v8704 = vpop.f32.mrb[0].mxu0
    %8705 = vmatprep.mubr.bf16.mxu0 0
    %8706 = vmatmul.mubr.bf16.gmra.mrb[0].mxu0 %v8547
    %v8707 = vpop.f32.mrb[0].mxu0
    %v8708 = vadd.f32 0.0, %v8707
    %v8709 = vpop.f32.mrb[0].mxu0
    %v8710 = vpop.f32.mrb[0].mxu0
    %v8711 = vadd.f32 0.0, %v8710
    %v8712 = vpop.f32.mrb[0].mxu0
    %8713 = vmatprep.mubr.bf16.mxu0 0
    %8714 = vmatmul.mubr.bf16.gmra.mrb[0].mxu0 %v8548
    %v8715 = vpop.f32.mrb[0].mxu0
    %v8716 = vadd.f32 0.0, %v8715
    %v8717 = vpop.f32.mrb[0].mxu0
    %v8718 = vpop.f32.mrb[0].mxu0
    %v8719 = vadd.f32 0.0, %v8718
    %v8720 = vpop.f32.mrb[0].mxu0
    %8721 = vmatprep.mubr.bf16.mxu0 0
    %8722 = vmatmul.mubr.bf16.gmra.mrb[0].mxu0 %v8549
    %v8723 = vpop.f32.mrb[0].mxu0
    %v8724 = vadd.f32 0.0, %v8723
    %v8725 = vpop.f32.mrb[0].mxu0
    %v8726 = vpop.f32.mrb[0].mxu0
    %v8727 = vadd.f32 0.0, %v8726
    %v8728 = vpop.f32.mrb[0].mxu0
    %8729 = vmatprep.mubr.bf16.mxu0 0
    %8730 = vmatmul.mubr.bf16.gmra.mrb[0].mxu0 %v8550
    %v8731 = vpop.f32.mrb[0].mxu0
    %v8732 = vadd.f32 0.0, %v8731
    %v8733 = vpop.f32.mrb[0].mxu0
    %v8734 = vpop.f32.mrb[0].mxu0
    %v8735 = vadd.f32 0.0, %v8734
    %v8736 = vpop.f32.mrb[0].mxu0
    %8737 = vmatprep.mubr.bf16.mxu0 0
    %8738 = vmatmul.mubr.bf16.gmra.mrb[0].mxu0 %v8551
    %v8739 = vpop.f32.mrb[0].mxu0
    %v8740 = vadd.f32 0.0, %v8739
    %v8741 = vpop.f32.mrb[0].mxu0
    %v8742 = vpop.f32.mrb[0].mxu0
    %v8743 = vadd.f32 0.0, %v8742
    %v8744 = vpop.f32.mrb[0].mxu0
    %8745 = vmatprep.mubr.bf16.mxu0 0
    %8746 = vmatmul.mubr.bf16.gmra.mrb[0].mxu0 %v8552
    %v8747 = vpop.f32.mrb[0].mxu0
    %v8748 = vadd.f32 0.0, %v8747
    %v8749 = vpop.f32.mrb[0].mxu0
    %v8750 = vpop.f32.mrb[0].mxu0
    %v8751 = vadd.f32 0.0, %v8750
    %v8752 = vpop.f32.mrb[0].mxu0
    %8753 = vmatprep.mubr.bf16.mxu0 0
    %8754 = vmatmul.mubr.bf16.gmra.mrb[0].mxu0 %v8553
    %v8755 = vpop.f32.mrb[0].mxu0
    %v8756 = vadd.f32 0.0, %v8755
    %v8757 = vpop.f32.mrb[0].mxu0
    %v8758 = vpop.f32.mrb[0].mxu0
    %v8759 = vadd.f32 0.0, %v8758
    %v8760 = vpop.f32.mrb[0].mxu0
    %8761 = vmatprep.mubr.bf16.mxu0 0
    %8762 = vmatmul.mubr.bf16.gmra.mrb[0].mxu0 %v8554
    %v8763 = vpop.f32.mrb[0].mxu0
    %v8764 = vadd.f32 0.0, %v8763
    %v8765 = vpop.f32.mrb[0].mxu0
    %v8766 = vpop.f32.mrb[0].mxu0
    %v8767 = vadd.f32 0.0, %v8766
    %v8768 = vpop.f32.mrb[0].mxu0
    %8769 = vmatprep.mubr.bf16.mxu0 0
    %8770 = vmatmul.mubr.bf16.gmra.mrb[0].mxu0 %v8555
    %v8771 = vpop.f32.mrb[0].mxu0
    %v8772 = vadd.f32 0.0, %v8771
    %v8773 = vpop.f32.mrb[0].mxu0
    %v8774 = vpop.f32.mrb[0].mxu0
    %v8775 = vadd.f32 0.0, %v8774
    %v8776 = vpop.f32.mrb[0].mxu0
    %8777 = vmatprep.mubr.bf16.mxu0 0
    %8778 = vmatmul.mubr.bf16.gmra.mrb[0].mxu0 %v8556
    %v8779 = vpop.f32.mrb[0].mxu0
    %v8780 = vadd.f32 0.0, %v8779
    %v8781 = vpop.f32.mrb[0].mxu0
    %v8782 = vpop.f32.mrb[0].mxu0
    %v8783 = vadd.f32 0.0, %v8782
    %v8784 = vpop.f32.mrb[0].mxu0
    %8785 = vmatprep.mubr.bf16.mxu0 0
    %8786 = vmatmul.mubr.bf16.gmra.mrb[0].mxu0 %v8557
    %v8787 = vpop.f32.mrb[0].mxu0
    %v8788 = vadd.f32 0.0, %v8787
    %v8789 = vpop.f32.mrb[0].mxu0
    %v8790 = vpop.f32.mrb[0].mxu0
    %v8791 = vadd.f32 0.0, %v8790
    %v8792 = vpop.f32.mrb[0].mxu0
    %8793 = vmatprep.mubr.bf16.mxu0 0
    %8794 = vmatmul.mubr.bf16.gmra.mrb[0].mxu0 %v8558
    %v8795 = vpop.f32.mrb[0].mxu0
    %v8796 = vadd.f32 0.0, %v8795
    %v8797 = vpop.f32.mrb[0].mxu0
    %v8798 = vpop.f32.mrb[0].mxu0
    %v8799 = vadd.f32 0.0, %v8798
    %v8800 = vpop.f32.mrb[0].mxu0
    %8801 = vmatprep.mubr.bf16.mxu0 0
    %8802 = vmatmul.mubr.bf16.gmra.mrb[0].mxu0 %v8559
    %v8803 = vpop.f32.mrb[0].mxu0
    %v8804 = vadd.f32 0.0, %v8803
    %v8805 = vpop.f32.mrb[0].mxu0
    %v8806 = vpop.f32.mrb[0].mxu0
    %v8807 = vadd.f32 0.0, %v8806
    %v8808 = vpop.f32.mrb[0].mxu0
    %8809 = vmatprep.mubr.bf16.mxu0 0
    %8810 = vmatmul.mubr.bf16.gmra.mrb[0].mxu0 %v8560
    %v8811 = vpop.f32.mrb[0].mxu0
    %v8812 = vadd.f32 0.0, %v8811
    %v8813 = vpop.f32.mrb[0].mxu0
    %v8814 = vpop.f32.mrb[0].mxu0
    %v8815 = vadd.f32 0.0, %v8814
    %v8816 = vpop.f32.mrb[0].mxu0
    %8817 = vmatprep.mubr.bf16.mxu0 0
    %8818 = vmatmul.mubr.bf16.gmra.mrb[0].mxu0 %v8561
    %v8819 = vpop.f32.mrb[0].mxu0
    %v8820 = vadd.f32 0.0, %v8819
    %v8821 = vpop.f32.mrb[0].mxu0
    %v8822 = vpop.f32.mrb[0].mxu0
    %v8823 = vadd.f32 0.0, %v8822
    %v8824 = vpop.f32.mrb[0].mxu0
    %8825 = vmatprep.mubr.bf16.mxu0 0
    %8826 = vmatmul.mubr.bf16.gmra.mrb[0].mxu0 %v8562
    %v8827 = vpop.f32.mrb[0].mxu0
    %v8828 = vadd.f32 0.0, %v8827
    %v8829 = vpop.f32.mrb[0].mxu0
    %v8830 = vpop.f32.mrb[0].mxu0
    %v8831 = vadd.f32 0.0, %v8830
    %v8832 = vpop.f32.mrb[0].mxu0
    %8833 = vmatprep.mubr.bf16.mxu0 0
    %8834 = vmatmul.mubr.bf16.gmra.mrb[0].mxu0 %v8563
    %v8835 = vpop.f32.mrb[0].mxu0
    %v8836 = vadd.f32 0.0, %v8835
    %v8837 = vpop.f32.mrb[0].mxu0
    %v8838 = vpop.f32.mrb[0].mxu0
    %v8839 = vadd.f32 0.0, %v8838
    %v8840 = vpop.f32.mrb[0].mxu0
    %8841 = vmatprep.mubr.bf16.mxu0 0
    %8842 = vmatmul.mubr.bf16.gmra.mrb[0].mxu0 %v8564
    %v8843 = vpop.f32.mrb[0].mxu0
    %v8844 = vadd.f32 0.0, %v8843
    %v8845 = vpop.f32.mrb[0].mxu0
    %v8846 = vpop.f32.mrb[0].mxu0
    %v8847 = vadd.f32 0.0, %v8846
    %v8848 = vpop.f32.mrb[0].mxu0
    %8849 = vmatprep.mubr.bf16.mxu0 0
    %8850 = vmatmul.mubr.bf16.gmra.mrb[0].mxu0 %v8565
    %v8851 = vpop.f32.mrb[0].mxu0
    %v8852 = vadd.f32 0.0, %v8851
    %v8853 = vpop.f32.mrb[0].mxu0
    %v8854 = vpop.f32.mrb[0].mxu0
    %v8855 = vadd.f32 0.0, %v8854
    %v8856 = vpop.f32.mrb[0].mxu0
    %8857 = vmatprep.mubr.bf16.mxu0 0
    %8858 = vmatmul.mubr.bf16.gmra.mrb[0].mxu0 %v8566
    %v8859 = vpop.f32.mrb[0].mxu0
    %v8860 = vadd.f32 0.0, %v8859
    %v8861 = vpop.f32.mrb[0].mxu0
    %v8862 = vpop.f32.mrb[0].mxu0
    %v8863 = vadd.f32 0.0, %v8862
    %v8864 = vpop.f32.mrb[0].mxu0
    %8865 = vmatprep.mubr.bf16.mxu0 0
    %8866 = vmatmul.mubr.bf16.gmra.mrb[0].mxu0 %v8567
    %v8867 = vpop.f32.mrb[0].mxu0
    %v8868 = vadd.f32 0.0, %v8867
    %v8869 = vpop.f32.mrb[0].mxu0
    %v8870 = vpop.f32.mrb[0].mxu0
    %v8871 = vadd.f32 0.0, %v8870
    %v8872 = vpop.f32.mrb[0].mxu0
    %8873 = vmatprep.mubr.bf16.mxu0 0
    %8874 = vmatmul.mubr.bf16.gmra.mrb[0].mxu0 %v8568
    %v8875 = vpop.f32.mrb[0].mxu0
    %v8876 = vadd.f32 0.0, %v8875
    %v8877 = vpop.f32.mrb[0].mxu0
    %v8878 = vpop.f32.mrb[0].mxu0
    %v8879 = vadd.f32 0.0, %v8878
    %v8880 = vpop.f32.mrb[0].mxu0
    %8881 = vmatprep.mubr.bf16.mxu0 0
    %8882 = vmatmul.mubr.bf16.gmra.mrb[0].mxu0 %v8569
    %v8883 = vpop.f32.mrb[0].mxu0
    %v8884 = vadd.f32 0.0, %v8883
    %v8885 = vpop.f32.mrb[0].mxu0
    %v8886 = vpop.f32.mrb[0].mxu0
    %v8887 = vadd.f32 0.0, %v8886
    %v8888 = vpop.f32.mrb[0].mxu0
    %8889 = vmatprep.mubr.bf16.mxu0 0
    %8890 = vmatmul.mubr.bf16.gmra.mrb[0].mxu0 %v8570
    %v8891 = vpop.f32.mrb[0].mxu0
    %v8892 = vadd.f32 0.0, %v8891
    %v8893 = vpop.f32.mrb[0].mxu0
    %v8894 = vpop.f32.mrb[0].mxu0
    %v8895 = vadd.f32 0.0, %v8894
    %v8896 = vpop.f32.mrb[0].mxu0
    %8897 = vmatprep.mubr.bf16.mxu0 0
    %8898 = vmatmul.mubr.bf16.gmra.mrb[0].mxu0 %v8571
    %v8899 = vpop.f32.mrb[0].mxu0
    %v8900 = vadd.f32 0.0, %v8899
    %v8901 = vpop.f32.mrb[0].mxu0
    %v8902 = vpop.f32.mrb[0].mxu0
    %v8903 = vadd.f32 0.0, %v8902
    %v8904 = vpop.f32.mrb[0].mxu0
    %8905 = vmatprep.mubr.bf16.mxu0 0
    %8906 = vmatmul.mubr.bf16.gmra.mrb[0].mxu0 %v8572
    %v8907 = vpop.f32.mrb[0].mxu0
    %v8908 = vadd.f32 0.0, %v8907
    %v8909 = vpop.f32.mrb[0].mxu0
    %v8910 = vpop.f32.mrb[0].mxu0
    %v8911 = vadd.f32 0.0, %v8910
    %v8912 = vpop.f32.mrb[0].mxu0
    %8913 = vmatprep.mubr.bf16.mxu0 0
    %8914 = vmatmul.mubr.bf16.gmra.mrb[0].mxu0 %v8573
    %v8915 = vpop.f32.mrb[0].mxu0
    %v8916 = vadd.f32 0.0, %v8915
    %v8917 = vpop.f32.mrb[0].mxu0
    %v8918 = vpop.f32.mrb[0].mxu0
    %v8919 = vadd.f32 0.0, %v8918
    %v8920 = vpop.f32.mrb[0].mxu0
    %8921 = vmatprep.mubr.bf16.mxu0 0
    %8922 = vmatmul.mubr.bf16.gmra.mrb[0].mxu0 %v8574
    %v8923 = vpop.f32.mrb[0].mxu0
    %v8924 = vadd.f32 0.0, %v8923
    %v8925 = vpop.f32.mrb[0].mxu0
    %v8926 = vpop.f32.mrb[0].mxu0
    %v8927 = vadd.f32 0.0, %v8926
    %v8928 = vpop.f32.mrb[0].mxu0
    %8929 = vmatprep.mubr.bf16.mxu0 0
    %8930 = vmatmul.mubr.bf16.gmra.mrb[0].mxu0 %v8575
    %v8931 = vpop.f32.mrb[0].mxu0
    %v8932 = vadd.f32 0.0, %v8931
    %v8933 = vpop.f32.mrb[0].mxu0
    %v8934 = vpop.f32.mrb[0].mxu0
    %v8935 = vadd.f32 0.0, %v8934
    %v8936 = vpop.f32.mrb[0].mxu0
    %8937 = vmatprep.mubr.bf16.mxu0 0
    %8938 = vmatmul.mubr.bf16.gmra.mrb[0].mxu0 %v8576
    %v8939 = vpop.f32.mrb[0].mxu0
    %v8940 = vadd.f32 0.0, %v8939
    %v8941 = vpop.f32.mrb[0].mxu0
    %v8942 = vpop.f32.mrb[0].mxu0
    %v8943 = vadd.f32 0.0, %v8942
    %v8944 = vpop.f32.mrb[0].mxu0
    %8945 = vdwg.mxu0
    %v8946 = vadd.f32 %v7537, %v8692
    %v8947 = vadd.f32 %v7538, %v8695
    %v8948 = vadd.f32 %v7539, %v8700
    %v8949 = vadd.f32 %v7540, %v8703
    %v8950 = vadd.f32 %v7541, %v8708
    %v8951 = vadd.f32 %v7542, %v8711
    %v8952 = vadd.f32 %v7543, %v8716
    %v8953 = vadd.f32 %v7544, %v8719
    %v8954 = vadd.f32 %v7545, %v8724
    %v8955 = vadd.f32 %v7546, %v8727
    %v8956 = vadd.f32 %v7547, %v8732
    %v8957 = vadd.f32 %v7548, %v8735
    %v8958 = vadd.f32 %v7549, %v8740
    %v8959 = vadd.f32 %v7550, %v8743
    %v8960 = vadd.f32 %v7551, %v8748
    %v8961 = vadd.f32 %v7552, %v8751
    %v8962 = vadd.f32 %v7553, %v8756
    %v8963 = vadd.f32 %v7554, %v8759
    %v8964 = vadd.f32 %v7555, %v8764
    %v8965 = vadd.f32 %v7556, %v8767
    %v8966 = vadd.f32 %v7557, %v8772
    %v8967 = vadd.f32 %v7558, %v8775
    %v8968 = vadd.f32 %v7559, %v8780
    %v8969 = vadd.f32 %v7560, %v8783
    %v8970 = vadd.f32 %v7561, %v8788
    %v8971 = vadd.f32 %v7562, %v8791
    %v8972 = vadd.f32 %v7563, %v8796
    %v8973 = vadd.f32 %v7564, %v8799
    %v8974 = vadd.f32 %v7565, %v8804
    %v8975 = vadd.f32 %v7566, %v8807
    %v8976 = vadd.f32 %v7567, %v8812
    %v8977 = vadd.f32 %v7568, %v8815
    %v8978 = vadd.f32 %v7569, %v8820
    %v8979 = vadd.f32 %v7570, %v8823
    %v8980 = vadd.f32 %v7571, %v8828
    %v8981 = vadd.f32 %v7572, %v8831
    %v8982 = vadd.f32 %v7573, %v8836
    %v8983 = vadd.f32 %v7574, %v8839
    %v8984 = vadd.f32 %v7575, %v8844
    %v8985 = vadd.f32 %v7576, %v8847
    %v8986 = vadd.f32 %v7577, %v8852
    %v8987 = vadd.f32 %v7578, %v8855
    %v8988 = vadd.f32 %v7579, %v8860
    %v8989 = vadd.f32 %v7580, %v8863
    %v8990 = vadd.f32 %v7581, %v8868
    %v8991 = vadd.f32 %v7582, %v8871
    %v8992 = vadd.f32 %v7583, %v8876
    %v8993 = vadd.f32 %v7584, %v8879
    %v8994 = vadd.f32 %v7585, %v8884
    %v8995 = vadd.f32 %v7586, %v8887
    %v8996 = vadd.f32 %v7587, %v8892
    %v8997 = vadd.f32 %v7588, %v8895
    %v8998 = vadd.f32 %v7589, %v8900
    %v8999 = vadd.f32 %v7590, %v8903
    %v9000 = vadd.f32 %v7591, %v8908
    %v9001 = vadd.f32 %v7592, %v8911
    %v9002 = vadd.f32 %v7593, %v8916
    %v9003 = vadd.f32 %v7594, %v8919
    %v9004 = vadd.f32 %v7595, %v8924
    %v9005 = vadd.f32 %v7596, %v8927
    %v9006 = vadd.f32 %v7597, %v8932
    %v9007 = vadd.f32 %v7598, %v8935
    %v9008 = vadd.f32 %v7599, %v8940
    %v9009 = vadd.f32 %v7600, %v8943
    %v9010 = vld [vmem:[%s6927] sm:$0xe]
    %v9011 = vld [vmem:[%s6927 + $0xc] sm:$0xe]
    %v9012 = vld [vmem:[%s6927 + $0x18] sm:$0xe]
    %v9013 = vld [vmem:[%s6927 + $0x24] sm:$0xe]
    %v9014 = vld [vmem:[%s6927 + $0x30] sm:$0xe]
    %v9015 = vld [vmem:[%s6927 + $0x3c] sm:$0xe]
    %v9016 = vld [vmem:[%s6927 + $0x48] sm:$0xe]
    %v9017 = vld [vmem:[%s6927 + $0x54] sm:$0xe]
    %v9018 = vld [vmem:[%s6927 + $0x60] sm:$0xe]
    %v9019 = vld [vmem:[%s6927 + $0x6c] sm:$0xe]
    %v9020 = vld [vmem:[%s6927 + $0x78] sm:$0xe]
    %v9021 = vld [vmem:[%s6927 + $0x84] sm:$0xe]
    %v9022 = vld [vmem:[%s6927 + $0x90] sm:$0xe]
    %v9023 = vld [vmem:[%s6927 + $0x9c] sm:$0xe]
    %v9024 = vld [vmem:[%s6927 + $0xa8] sm:$0xe]
    %v9025 = vld [vmem:[%s6927 + $0xb4] sm:$0xe]
    %v9026 = vld [vmem:[%s6927 + $0xd8] sm:$0xe]
    %v9027 = vld [vmem:[%s6927 + $0xe4] sm:$0xe]
    %v9028 = vld [vmem:[%s6927 + $0xf0] sm:$0xe]
    %v9029 = vld [vmem:[%s6927 + $0xfc] sm:$0xe]
    %v9030 = vld [vmem:[%s6927 + $0x108] sm:$0xe]
    %v9031 = vld [vmem:[%s6927 + $0x114] sm:$0xe]
    %v9032 = vld [vmem:[%s6927 + $0x120] sm:$0xe]
    %v9033 = vld [vmem:[%s6927 + $0x12c] sm:$0xe]
    %v9034 = vld [vmem:[%s6927 + $0x138] sm:$0xe]
    %v9035 = vld [vmem:[%s6927 + $0x144] sm:$0xe]
    %v9036 = vld [vmem:[%s6927 + $0x150] sm:$0xe]
    %v9037 = vld [vmem:[%s6927 + $0x15c] sm:$0xe]
    %v9038 = vld [vmem:[%s6927 + $0x168] sm:$0xe]
    %v9039 = vld [vmem:[%s6927 + $0x174] sm:$0xe]
    %v9040 = vld [vmem:[%s6927 + $0x180] sm:$0xe]
    %v9041 = vld [vmem:[%s6927 + $0x18c] sm:$0xe]
    %v9138 = vrot.slane %v9010, 5
    %v9139 = vrot.slane %v9138, 4
    %v9140 = vrot.slane %v7602, 5
    %v9141 = vsel %vm3178, %v9139, %v9140
    %v9142 = vrot.slane %v9140, 4
    %v9143 = vrot.slane %v7603, 5
    %v9144 = vsel %vm3178, %v9142, %v9143
    %v9145 = vrot.slane %v9011, 5
    %v9146 = vrot.slane %v9145, 4
    %v9147 = vrot.slane %v7605, 5
    %v9148 = vsel %vm3178, %v9146, %v9147
    %v9149 = vrot.slane %v9147, 4
    %v9150 = vrot.slane %v7606, 5
    %v9151 = vsel %vm3178, %v9149, %v9150
    %v9152 = vrot.slane %v9012, 5
    %v9153 = vrot.slane %v9152, 4
    %v9154 = vrot.slane %v7608, 5
    %v9155 = vsel %vm3178, %v9153, %v9154
    %v9156 = vrot.slane %v9154, 4
    %v9157 = vrot.slane %v7609, 5
    %v9158 = vsel %vm3178, %v9156, %v9157
    %v9159 = vrot.slane %v9013, 5
    %v9160 = vrot.slane %v9159, 4
    %v9161 = vrot.slane %v7611, 5
    %v9162 = vsel %vm3178, %v9160, %v9161
    %v9163 = vrot.slane %v9161, 4
    %v9164 = vrot.slane %v7612, 5
    %v9165 = vsel %vm3178, %v9163, %v9164
    %v9166 = vrot.slane %v9014, 5
    %v9167 = vrot.slane %v9166, 4
    %v9168 = vrot.slane %v7614, 5
    %v9169 = vsel %vm3178, %v9167, %v9168
    %v9170 = vrot.slane %v9168, 4
    %v9171 = vrot.slane %v7615, 5
    %v9172 = vsel %vm3178, %v9170, %v9171
    %v9173 = vrot.slane %v9015, 5
    %v9174 = vrot.slane %v9173, 4
    %v9175 = vrot.slane %v7617, 5
    %v9176 = vsel %vm3178, %v9174, %v9175
    %v9177 = vrot.slane %v9175, 4
    %v9178 = vrot.slane %v7618, 5
    %v9179 = vsel %vm3178, %v9177, %v9178
    %v9180 = vrot.slane %v9016, 5
    %v9181 = vrot.slane %v9180, 4
    %v9182 = vrot.slane %v7620, 5
    %v9183 = vsel %vm3178, %v9181, %v9182
    %v9184 = vrot.slane %v9182, 4
    %v9185 = vrot.slane %v7621, 5
    %v9186 = vsel %vm3178, %v9184, %v9185
    %v9187 = vrot.slane %v9017, 5
    %v9188 = vrot.slane %v9187, 4
    %v9189 = vrot.slane %v7623, 5
    %v9190 = vsel %vm3178, %v9188, %v9189
    %v9191 = vrot.slane %v9189, 4
    %v9192 = vrot.slane %v7624, 5
    %v9193 = vsel %vm3178, %v9191, %v9192
    %v9194 = vrot.slane %v9018, 5
    %v9195 = vrot.slane %v9194, 4
    %v9196 = vrot.slane %v7626, 5
    %v9197 = vsel %vm3178, %v9195, %v9196
    %v9198 = vrot.slane %v9196, 4
    %v9199 = vrot.slane %v7627, 5
    %v9200 = vsel %vm3178, %v9198, %v9199
    %v9201 = vrot.slane %v9019, 5
    %v9202 = vrot.slane %v9201, 4
    %v9203 = vrot.slane %v7629, 5
    %v9204 = vsel %vm3178, %v9202, %v9203
    %v9205 = vrot.slane %v9203, 4
    %v9206 = vrot.slane %v7630, 5
    %v9207 = vsel %vm3178, %v9205, %v9206
    %v9208 = vrot.slane %v9020, 5
    %v9209 = vrot.slane %v9208, 4
    %v9210 = vrot.slane %v7632, 5
    %v9211 = vsel %vm3178, %v9209, %v9210
    %v9212 = vrot.slane %v9210, 4
    %v9213 = vrot.slane %v7633, 5
    %v9214 = vsel %vm3178, %v9212, %v9213
    %v9215 = vrot.slane %v9021, 5
    %v9216 = vrot.slane %v9215, 4
    %v9217 = vrot.slane %v7635, 5
    %v9218 = vsel %vm3178, %v9216, %v9217
    %v9219 = vrot.slane %v9217, 4
    %v9220 = vrot.slane %v7636, 5
    %v9221 = vsel %vm3178, %v9219, %v9220
    %v9222 = vrot.slane %v9022, 5
    %v9223 = vrot.slane %v9222, 4
    %v9224 = vrot.slane %v7638, 5
    %v9225 = vsel %vm3178, %v9223, %v9224
    %v9226 = vrot.slane %v9224, 4
    %v9227 = vrot.slane %v7639, 5
    %v9228 = vsel %vm3178, %v9226, %v9227
    %v9229 = vrot.slane %v9023, 5
    %v9230 = vrot.slane %v9229, 4
    %v9231 = vrot.slane %v7641, 5
    %v9232 = vsel %vm3178, %v9230, %v9231
    %v9233 = vrot.slane %v9231, 4
    %v9234 = vrot.slane %v7642, 5
    %v9235 = vsel %vm3178, %v9233, %v9234
    %v9236 = vrot.slane %v9024, 5
    %v9237 = vrot.slane %v9236, 4
    %v9238 = vrot.slane %v7644, 5
    %v9239 = vsel %vm3178, %v9237, %v9238
    %v9240 = vrot.slane %v9238, 4
    %v9241 = vrot.slane %v7645, 5
    %v9242 = vsel %vm3178, %v9240, %v9241
    %v9243 = vrot.slane %v9025, 5
    %v9244 = vrot.slane %v9243, 4
    %v9245 = vrot.slane %v7647, 5
    %v9246 = vsel %vm3178, %v9244, %v9245
    %v9247 = vrot.slane %v9245, 4
    %v9248 = vrot.slane %v7648, 5
    %v9249 = vsel %vm3178, %v9247, %v9248
    %v9250 = vrot.slane %v9026, 5
    %v9251 = vrot.slane %v9250, 4
    %v9252 = vrot.slane %v7650, 5
    %v9253 = vsel %vm3178, %v9251, %v9252
    %v9254 = vrot.slane %v9252, 4
    %v9255 = vrot.slane %v7651, 5
    %v9256 = vsel %vm3178, %v9254, %v9255
    %v9257 = vrot.slane %v9027, 5
    %v9258 = vrot.slane %v9257, 4
    %v9259 = vrot.slane %v7653, 5
    %v9260 = vsel %vm3178, %v9258, %v9259
    %v9261 = vrot.slane %v9259, 4
    %v9262 = vrot.slane %v7654, 5
    %v9263 = vsel %vm3178, %v9261, %v9262
    %v9264 = vrot.slane %v9028, 5
    %v9265 = vrot.slane %v9264, 4
    %v9266 = vrot.slane %v7656, 5
    %v9267 = vsel %vm3178, %v9265, %v9266
    %v9268 = vrot.slane %v9266, 4
    %v9269 = vrot.slane %v7657, 5
    %v9270 = vsel %vm3178, %v9268, %v9269
    %v9271 = vrot.slane %v9029, 5
    %v9272 = vrot.slane %v9271, 4
    %v9273 = vrot.slane %v7659, 5
    %v9274 = vsel %vm3178, %v9272, %v9273
    %v9275 = vrot.slane %v9273, 4
    %v9276 = vrot.slane %v7660, 5
    %v9277 = vsel %vm3178, %v9275, %v9276
    %v9278 = vrot.slane %v9030, 5
    %v9279 = vrot.slane %v9278, 4
    %v9280 = vrot.slane %v7662, 5
    %v9281 = vsel %vm3178, %v9279, %v9280
    %v9282 = vrot.slane %v9280, 4
    %v9283 = vrot.slane %v7663, 5
    %v9284 = vsel %vm3178, %v9282, %v9283
    %v9285 = vrot.slane %v9031, 5
    %v9286 = vrot.slane %v9285, 4
    %v9287 = vrot.slane %v7665, 5
    %v9288 = vsel %vm3178, %v9286, %v9287
    %v9289 = vrot.slane %v9287, 4
    %v9290 = vrot.slane %v7666, 5
    %v9291 = vsel %vm3178, %v9289, %v9290
    %v9292 = vrot.slane %v9032, 5
    %v9293 = vrot.slane %v9292, 4
    %v9294 = vrot.slane %v7668, 5
    %v9295 = vsel %vm3178, %v9293, %v9294
    %v9296 = vrot.slane %v9294, 4
    %v9297 = vrot.slane %v7669, 5
    %v9298 = vsel %vm3178, %v9296, %v9297
    %v9299 = vrot.slane %v9033, 5
    %v9300 = vrot.slane %v9299, 4
    %v9301 = vrot.slane %v7671, 5
    %v9302 = vsel %vm3178, %v9300, %v9301
    %v9303 = vrot.slane %v9301, 4
    %v9304 = vrot.slane %v7672, 5
    %v9305 = vsel %vm3178, %v9303, %v9304
    %v9306 = vrot.slane %v9034, 5
    %v9307 = vrot.slane %v9306, 4
    %v9308 = vrot.slane %v7674, 5
    %v9309 = vsel %vm3178, %v9307, %v9308
    %v9310 = vrot.slane %v9308, 4
    %v9311 = vrot.slane %v7675, 5
    %v9312 = vsel %vm3178, %v9310, %v9311
    %v9313 = vrot.slane %v9035, 5
    %v9314 = vrot.slane %v9313, 4
    %v9315 = vrot.slane %v7677, 5
    %v9316 = vsel %vm3178, %v9314, %v9315
    %v9317 = vrot.slane %v9315, 4
    %v9318 = vrot.slane %v7678, 5
    %v9319 = vsel %vm3178, %v9317, %v9318
    %v9320 = vrot.slane %v9036, 5
    %v9321 = vrot.slane %v9320, 4
    %v9322 = vrot.slane %v7680, 5
    %v9323 = vsel %vm3178, %v9321, %v9322
    %v9324 = vrot.slane %v9322, 4
    %v9325 = vrot.slane %v7681, 5
    %v9326 = vsel %vm3178, %v9324, %v9325
    %v9327 = vrot.slane %v9037, 5
    %v9328 = vrot.slane %v9327, 4
    %v9329 = vrot.slane %v7683, 5
    %v9330 = vsel %vm3178, %v9328, %v9329
    %v9331 = vrot.slane %v9329, 4
    %v9332 = vrot.slane %v7684, 5
    %v9333 = vsel %vm3178, %v9331, %v9332
    %v9334 = vrot.slane %v9038, 5
    %v9335 = vrot.slane %v9334, 4
    %v9336 = vrot.slane %v7686, 5
    %v9337 = vsel %vm3178, %v9335, %v9336
    %v9338 = vrot.slane %v9336, 4
    %v9339 = vrot.slane %v7687, 5
    %v9340 = vsel %vm3178, %v9338, %v9339
    %v9341 = vrot.slane %v9039, 5
    %v9342 = vrot.slane %v9341, 4
    %v9343 = vrot.slane %v7689, 5
    %v9344 = vsel %vm3178, %v9342, %v9343
    %v9345 = vrot.slane %v9343, 4
    %v9346 = vrot.slane %v7690, 5
    %v9347 = vsel %vm3178, %v9345, %v9346
    %v9348 = vrot.slane %v9040, 5
    %v9349 = vrot.slane %v9348, 4
    %v9350 = vrot.slane %v7692, 5
    %v9351 = vsel %vm3178, %v9349, %v9350
    %v9352 = vrot.slane %v9350, 4
    %v9353 = vrot.slane %v7693, 5
    %v9354 = vsel %vm3178, %v9352, %v9353
    %v9355 = vrot.slane %v9041, 5
    %v9356 = vrot.slane %v9355, 4
    %v9357 = vrot.slane %v7695, 5
    %v9358 = vsel %vm3178, %v9356, %v9357
    %v9359 = vrot.slane %v9357, 4
    %v9360 = vrot.slane %v7696, 5
    %v9361 = vsel %vm3178, %v9359, %v9360
    %v9362 = vld [vmem:[#allocation6 + $0x200] sm:$0xf]
    %v9363 = vld [vmem:[#allocation6 + $0x204] sm:$0xf]
    %v9364 = vld [vmem:[#allocation6 + $0x208] sm:$0xf]
    %v9365 = vld [vmem:[#allocation6 + $0x20c] sm:$0xf]
    %v9366 = vld [vmem:[#allocation6 + $0x210] sm:$0xf]
    %v9367 = vld [vmem:[#allocation6 + $0x214] sm:$0xf]
    %v9368 = vld [vmem:[#allocation6 + $0x218] sm:$0xf]
    %v9369 = vld [vmem:[#allocation6 + $0x21c] sm:$0xf]
    %v9370 = vld [vmem:[#allocation6 + $0x220] sm:$0xf]
    %v9371 = vld [vmem:[#allocation6 + $0x224] sm:$0xf]
    %v9372 = vld [vmem:[#allocation6 + $0x228] sm:$0xf]
    %v9373 = vld [vmem:[#allocation6 + $0x22c] sm:$0xf]
    %v9374 = vld [vmem:[#allocation6 + $0x230] sm:$0xf]
    %v9375 = vld [vmem:[#allocation6 + $0x234] sm:$0xf]
    %v9376 = vld [vmem:[#allocation6 + $0x238] sm:$0xf]
    %v9377 = vld [vmem:[#allocation6 + $0x23c] sm:$0xf]
    %v9378 = vunpack.c.l.b16 %v9141
    %v9379 = vunpack.c.l.b16 %v9144
    %v9380 = vunpack.c.l.b16 %v9148
    %v9381 = vunpack.c.l.b16 %v9151
    %v9382 = vunpack.c.l.b16 %v9155
    %v9383 = vunpack.c.l.b16 %v9158
    %v9384 = vunpack.c.l.b16 %v9162
    %v9385 = vunpack.c.l.b16 %v9165
    %v9386 = vunpack.c.l.b16 %v9169
    %v9387 = vunpack.c.l.b16 %v9172
    %v9388 = vunpack.c.l.b16 %v9176
    %v9389 = vunpack.c.l.b16 %v9179
    %v9390 = vunpack.c.l.b16 %v9183
    %v9391 = vunpack.c.l.b16 %v9186
    %v9392 = vunpack.c.l.b16 %v9190
    %v9393 = vunpack.c.l.b16 %v9193
    %v9394 = vunpack.c.l.b16 %v9197
    %v9395 = vunpack.c.l.b16 %v9200
    %v9396 = vunpack.c.l.b16 %v9204
    %v9397 = vunpack.c.l.b16 %v9207
    %v9398 = vunpack.c.l.b16 %v9211
    %v9399 = vunpack.c.l.b16 %v9214
    %v9400 = vunpack.c.l.b16 %v9218
    %v9401 = vunpack.c.l.b16 %v9221
    %v9402 = vunpack.c.l.b16 %v9225
    %v9403 = vunpack.c.l.b16 %v9228
    %v9404 = vunpack.c.l.b16 %v9232
    %v9405 = vunpack.c.l.b16 %v9235
    %v9406 = vunpack.c.l.b16 %v9239
    %v9407 = vunpack.c.l.b16 %v9242
    %v9408 = vunpack.c.l.b16 %v9246
    %v9409 = vunpack.c.l.b16 %v9249
    %v9410 = vunpack.c.l.b16 %v9253
    %v9411 = vunpack.c.l.b16 %v9256
    %v9412 = vunpack.c.l.b16 %v9260
    %v9413 = vunpack.c.l.b16 %v9263
    %v9414 = vunpack.c.l.b16 %v9267
    %v9415 = vunpack.c.l.b16 %v9270
    %v9416 = vunpack.c.l.b16 %v9274
    %v9417 = vunpack.c.l.b16 %v9277
    %v9418 = vunpack.c.l.b16 %v9281
    %v9419 = vunpack.c.l.b16 %v9284
    %v9420 = vunpack.c.l.b16 %v9288
    %v9421 = vunpack.c.l.b16 %v9291
    %v9422 = vunpack.c.l.b16 %v9295
    %v9423 = vunpack.c.l.b16 %v9298
    %v9424 = vunpack.c.l.b16 %v9302
    %v9425 = vunpack.c.l.b16 %v9305
    %v9426 = vunpack.c.l.b16 %v9309
    %v9427 = vunpack.c.l.b16 %v9312
    %v9428 = vunpack.c.l.b16 %v9316
    %v9429 = vunpack.c.l.b16 %v9319
    %v9430 = vunpack.c.l.b16 %v9323
    %v9431 = vunpack.c.l.b16 %v9326
    %v9432 = vunpack.c.l.b16 %v9330
    %v9433 = vunpack.c.l.b16 %v9333
    %v9434 = vunpack.c.l.b16 %v9337
    %v9435 = vunpack.c.l.b16 %v9340
    %v9436 = vunpack.c.l.b16 %v9344
    %v9437 = vunpack.c.l.b16 %v9347
    %v9438 = vunpack.c.l.b16 %v9351
    %v9439 = vunpack.c.l.b16 %v9354
    %v9440 = vunpack.c.l.b16 %v9358
    %v9441 = vunpack.c.l.b16 %v9361
    %v9442 = vpack.c.b16 %v9379, %v9378
    %v9443 = vpack.c.b16 %v9381, %v9380
    %v9444 = vpack.c.b16 %v9383, %v9382
    %v9445 = vpack.c.b16 %v9385, %v9384
    %v9446 = vpack.c.b16 %v9387, %v9386
    %v9447 = vpack.c.b16 %v9389, %v9388
    %v9448 = vpack.c.b16 %v9391, %v9390
    %v9449 = vpack.c.b16 %v9393, %v9392
    %v9450 = vpack.c.b16 %v9395, %v9394
    %v9451 = vpack.c.b16 %v9397, %v9396
    %v9452 = vpack.c.b16 %v9399, %v9398
    %v9453 = vpack.c.b16 %v9401, %v9400
    %v9454 = vpack.c.b16 %v9403, %v9402
    %v9455 = vpack.c.b16 %v9405, %v9404
    %v9456 = vpack.c.b16 %v9407, %v9406
    %v9457 = vpack.c.b16 %v9409, %v9408
    %v9458 = vpack.c.b16 %v9411, %v9410
    %v9459 = vpack.c.b16 %v9413, %v9412
    %v9460 = vpack.c.b16 %v9415, %v9414
    %v9461 = vpack.c.b16 %v9417, %v9416
    %v9462 = vpack.c.b16 %v9419, %v9418
    %v9463 = vpack.c.b16 %v9421, %v9420
    %v9464 = vpack.c.b16 %v9423, %v9422
    %v9465 = vpack.c.b16 %v9425, %v9424
    %v9466 = vpack.c.b16 %v9427, %v9426
    %v9467 = vpack.c.b16 %v9429, %v9428
    %v9468 = vpack.c.b16 %v9431, %v9430
    %v9469 = vpack.c.b16 %v9433, %v9432
    %v9470 = vpack.c.b16 %v9435, %v9434
    %v9471 = vpack.c.b16 %v9437, %v9436
    %v9472 = vpack.c.b16 %v9439, %v9438
    %v9473 = vpack.c.b16 %v9441, %v9440
    %v9522 = vunpack.c.l.b16 %v9362
    %v9523 = vunpack.c.l.b16 %v9363
    %v9524 = vunpack.c.l.b16 %v9364
    %v9525 = vunpack.c.l.b16 %v9365
    %v9526 = vunpack.c.l.b16 %v9366
    %v9527 = vunpack.c.l.b16 %v9367
    %v9528 = vunpack.c.l.b16 %v9368
    %v9529 = vunpack.c.l.b16 %v9369
    %v9530 = vunpack.c.l.b16 %v9370
    %v9531 = vunpack.c.l.b16 %v9371
    %v9532 = vunpack.c.l.b16 %v9372
    %v9533 = vunpack.c.l.b16 %v9373
    %v9534 = vunpack.c.l.b16 %v9374
    %v9535 = vunpack.c.l.b16 %v9375
    %v9536 = vunpack.c.l.b16 %v9376
    %v9537 = vunpack.c.l.b16 %v9377
    %v9538 = vpack.c.b16 %v9523, %v9522
    %v9539 = vpack.c.b16 %v9525, %v9524
    %v9540 = vpack.c.b16 %v9527, %v9526
    %v9541 = vpack.c.b16 %v9529, %v9528
    %v9542 = vpack.c.b16 %v9531, %v9530
    %v9543 = vpack.c.b16 %v9533, %v9532
    %v9544 = vpack.c.b16 %v9535, %v9534
    %v9545 = vpack.c.b16 %v9537, %v9536
    %9554 = vmatprep.subr.bf16.mxu0 0
    %9555 = vmatpush1.bf16.msra.mxu0 %v9538
    %9556 = vmatprep.subr.bf16.mxu0 0
    %9557 = vmatpush1.bf16.msra.mxu0 %v9539
    %9558 = vmatprep.subr.bf16.mxu0 0
    %9559 = vmatpush1.bf16.msra.mxu0 %v9540
    %9560 = vmatprep.subr.bf16.mxu0 0
    %9561 = vmatpush1.bf16.msra.mxu0 %v9541
    %9562 = vmatprep.subr.bf16.mxu0 0
    %9563 = vmatpush1.bf16.msra.mxu0 %v9542
    %9564 = vmatprep.subr.bf16.mxu0 0
    %9565 = vmatpush1.bf16.msra.mxu0 %v9543
    %9566 = vmatprep.subr.bf16.mxu0 0
    %9567 = vmatpush1.bf16.msra.mxu0 %v9544
    %9568 = vmatprep.subr.bf16.mxu0 0
    %9569 = vmatpush1.bf16.msra.mxu0 %v9545
    %9570 = vmatprep.subr.bf16.mxu0 0
    %9571 = vmatpush1.bf16.msra.mxu0 0
    %9572 = vmatprep.subr.bf16.mxu0 0
    %9573 = vmatpush1.bf16.msra.mxu0 0
    %9574 = vmatprep.subr.bf16.mxu0 0
    %9575 = vmatpush1.bf16.msra.mxu0 0
    %9576 = vmatprep.subr.bf16.mxu0 0
    %9577 = vmatpush1.bf16.msra.mxu0 0
    %9578 = vmatprep.subr.bf16.mxu0 0
    %9579 = vmatpush1.bf16.msra.mxu0 0
    %9580 = vmatprep.subr.bf16.mxu0 0
    %9581 = vmatpush1.bf16.msra.mxu0 0
    %9582 = vmatprep.subr.bf16.mxu0 0
    %9583 = vmatpush1.bf16.msra.mxu0 0
    %9584 = vmatprep.subr.bf16.mxu0 0
    %9585 = vmatpush1.bf16.msra.mxu0 0
    %9586 = vmatprep.mubr.bf16.mxu0 0
    %9587 = vmatmul.mubr.bf16.gmra.mrb[0].mxu0 %v9442
    %v9588 = vpop.f32.mrb[0].mxu0
    %v9589 = vadd.f32 0.0, %v9588
    %v9590 = vpop.f32.mrb[0].mxu0
    %v9591 = vpop.f32.mrb[0].mxu0
    %v9592 = vadd.f32 0.0, %v9591
    %v9593 = vpop.f32.mrb[0].mxu0
    %9594 = vmatprep.mubr.bf16.mxu0 0
    %9595 = vmatmul.mubr.bf16.gmra.mrb[0].mxu0 %v9443
    %v9596 = vpop.f32.mrb[0].mxu0
    %v9597 = vadd.f32 0.0, %v9596
    %v9598 = vpop.f32.mrb[0].mxu0
    %v9599 = vpop.f32.mrb[0].mxu0
    %v9600 = vadd.f32 0.0, %v9599
    %v9601 = vpop.f32.mrb[0].mxu0
    %9602 = vmatprep.mubr.bf16.mxu0 0
    %9603 = vmatmul.mubr.bf16.gmra.mrb[0].mxu0 %v9444
    %v9604 = vpop.f32.mrb[0].mxu0
    %v9605 = vadd.f32 0.0, %v9604
    %v9606 = vpop.f32.mrb[0].mxu0
    %v9607 = vpop.f32.mrb[0].mxu0
    %v9608 = vadd.f32 0.0, %v9607
    %v9609 = vpop.f32.mrb[0].mxu0
    %9610 = vmatprep.mubr.bf16.mxu0 0
    %9611 = vmatmul.mubr.bf16.gmra.mrb[0].mxu0 %v9445
    %v9612 = vpop.f32.mrb[0].mxu0
    %v9613 = vadd.f32 0.0, %v9612
    %v9614 = vpop.f32.mrb[0].mxu0
    %v9615 = vpop.f32.mrb[0].mxu0
    %v9616 = vadd.f32 0.0, %v9615
    %v9617 = vpop.f32.mrb[0].mxu0
    %9618 = vmatprep.mubr.bf16.mxu0 0
    %9619 = vmatmul.mubr.bf16.gmra.mrb[0].mxu0 %v9446
    %v9620 = vpop.f32.mrb[0].mxu0
    %v9621 = vadd.f32 0.0, %v9620
    %v9622 = vpop.f32.mrb[0].mxu0
    %v9623 = vpop.f32.mrb[0].mxu0
    %v9624 = vadd.f32 0.0, %v9623
    %v9625 = vpop.f32.mrb[0].mxu0
    %9626 = vmatprep.mubr.bf16.mxu0 0
    %9627 = vmatmul.mubr.bf16.gmra.mrb[0].mxu0 %v9447
    %v9628 = vpop.f32.mrb[0].mxu0
    %v9629 = vadd.f32 0.0, %v9628
    %v9630 = vpop.f32.mrb[0].mxu0
    %v9631 = vpop.f32.mrb[0].mxu0
    %v9632 = vadd.f32 0.0, %v9631
    %v9633 = vpop.f32.mrb[0].mxu0
    %9634 = vmatprep.mubr.bf16.mxu0 0
    %9635 = vmatmul.mubr.bf16.gmra.mrb[0].mxu0 %v9448
    %v9636 = vpop.f32.mrb[0].mxu0
    %v9637 = vadd.f32 0.0, %v9636
    %v9638 = vpop.f32.mrb[0].mxu0
    %v9639 = vpop.f32.mrb[0].mxu0
    %v9640 = vadd.f32 0.0, %v9639
    %v9641 = vpop.f32.mrb[0].mxu0
    %9642 = vmatprep.mubr.bf16.mxu0 0
    %9643 = vmatmul.mubr.bf16.gmra.mrb[0].mxu0 %v9449
    %v9644 = vpop.f32.mrb[0].mxu0
    %v9645 = vadd.f32 0.0, %v9644
    %v9646 = vpop.f32.mrb[0].mxu0
    %v9647 = vpop.f32.mrb[0].mxu0
    %v9648 = vadd.f32 0.0, %v9647
    %v9649 = vpop.f32.mrb[0].mxu0
    %9650 = vmatprep.mubr.bf16.mxu0 0
    %9651 = vmatmul.mubr.bf16.gmra.mrb[0].mxu0 %v9450
    %v9652 = vpop.f32.mrb[0].mxu0
    %v9653 = vadd.f32 0.0, %v9652
    %v9654 = vpop.f32.mrb[0].mxu0
    %v9655 = vpop.f32.mrb[0].mxu0
    %v9656 = vadd.f32 0.0, %v9655
    %v9657 = vpop.f32.mrb[0].mxu0
    %9658 = vmatprep.mubr.bf16.mxu0 0
    %9659 = vmatmul.mubr.bf16.gmra.mrb[0].mxu0 %v9451
    %v9660 = vpop.f32.mrb[0].mxu0
    %v9661 = vadd.f32 0.0, %v9660
    %v9662 = vpop.f32.mrb[0].mxu0
    %v9663 = vpop.f32.mrb[0].mxu0
    %v9664 = vadd.f32 0.0, %v9663
    %v9665 = vpop.f32.mrb[0].mxu0
    %9666 = vmatprep.mubr.bf16.mxu0 0
    %9667 = vmatmul.mubr.bf16.gmra.mrb[0].mxu0 %v9452
    %v9668 = vpop.f32.mrb[0].mxu0
    %v9669 = vadd.f32 0.0, %v9668
    %v9670 = vpop.f32.mrb[0].mxu0
    %v9671 = vpop.f32.mrb[0].mxu0
    %v9672 = vadd.f32 0.0, %v9671
    %v9673 = vpop.f32.mrb[0].mxu0
    %9674 = vmatprep.mubr.bf16.mxu0 0
    %9675 = vmatmul.mubr.bf16.gmra.mrb[0].mxu0 %v9453
    %v9676 = vpop.f32.mrb[0].mxu0
    %v9677 = vadd.f32 0.0, %v9676
    %v9678 = vpop.f32.mrb[0].mxu0
    %v9679 = vpop.f32.mrb[0].mxu0
    %v9680 = vadd.f32 0.0, %v9679
    %v9681 = vpop.f32.mrb[0].mxu0
    %9682 = vmatprep.mubr.bf16.mxu0 0
    %9683 = vmatmul.mubr.bf16.gmra.mrb[0].mxu0 %v9454
    %v9684 = vpop.f32.mrb[0].mxu0
    %v9685 = vadd.f32 0.0, %v9684
    %v9686 = vpop.f32.mrb[0].mxu0
    %v9687 = vpop.f32.mrb[0].mxu0
    %v9688 = vadd.f32 0.0, %v9687
    %v9689 = vpop.f32.mrb[0].mxu0
    %9690 = vmatprep.mubr.bf16.mxu0 0
    %9691 = vmatmul.mubr.bf16.gmra.mrb[0].mxu0 %v9455
    %v9692 = vpop.f32.mrb[0].mxu0
    %v9693 = vadd.f32 0.0, %v9692
    %v9694 = vpop.f32.mrb[0].mxu0
    %v9695 = vpop.f32.mrb[0].mxu0
    %v9696 = vadd.f32 0.0, %v9695
    %v9697 = vpop.f32.mrb[0].mxu0
    %9698 = vmatprep.mubr.bf16.mxu0 0
    %9699 = vmatmul.mubr.bf16.gmra.mrb[0].mxu0 %v9456
    %v9700 = vpop.f32.mrb[0].mxu0
    %v9701 = vadd.f32 0.0, %v9700
    %v9702 = vpop.f32.mrb[0].mxu0
    %v9703 = vpop.f32.mrb[0].mxu0
    %v9704 = vadd.f32 0.0, %v9703
    %v9705 = vpop.f32.mrb[0].mxu0
    %9706 = vmatprep.mubr.bf16.mxu0 0
    %9707 = vmatmul.mubr.bf16.gmra.mrb[0].mxu0 %v9457
    %v9708 = vpop.f32.mrb[0].mxu0
    %v9709 = vadd.f32 0.0, %v9708
    %v9710 = vpop.f32.mrb[0].mxu0
    %v9711 = vpop.f32.mrb[0].mxu0
    %v9712 = vadd.f32 0.0, %v9711
    %v9713 = vpop.f32.mrb[0].mxu0
    %9714 = vmatprep.mubr.bf16.mxu0 0
    %9715 = vmatmul.mubr.bf16.gmra.mrb[0].mxu0 %v9458
    %v9716 = vpop.f32.mrb[0].mxu0
    %v9717 = vadd.f32 0.0, %v9716
    %v9718 = vpop.f32.mrb[0].mxu0
    %v9719 = vpop.f32.mrb[0].mxu0
    %v9720 = vadd.f32 0.0, %v9719
    %v9721 = vpop.f32.mrb[0].mxu0
    %9722 = vmatprep.mubr.bf16.mxu0 0
    %9723 = vmatmul.mubr.bf16.gmra.mrb[0].mxu0 %v9459
    %v9724 = vpop.f32.mrb[0].mxu0
    %v9725 = vadd.f32 0.0, %v9724
    %v9726 = vpop.f32.mrb[0].mxu0
    %v9727 = vpop.f32.mrb[0].mxu0
    %v9728 = vadd.f32 0.0, %v9727
    %v9729 = vpop.f32.mrb[0].mxu0
    %9730 = vmatprep.mubr.bf16.mxu0 0
    %9731 = vmatmul.mubr.bf16.gmra.mrb[0].mxu0 %v9460
    %v9732 = vpop.f32.mrb[0].mxu0
    %v9733 = vadd.f32 0.0, %v9732
    %v9734 = vpop.f32.mrb[0].mxu0
    %v9735 = vpop.f32.mrb[0].mxu0
    %v9736 = vadd.f32 0.0, %v9735
    %v9737 = vpop.f32.mrb[0].mxu0
    %9738 = vmatprep.mubr.bf16.mxu0 0
    %9739 = vmatmul.mubr.bf16.gmra.mrb[0].mxu0 %v9461
    %v9740 = vpop.f32.mrb[0].mxu0
    %v9741 = vadd.f32 0.0, %v9740
    %v9742 = vpop.f32.mrb[0].mxu0
    %v9743 = vpop.f32.mrb[0].mxu0
    %v9744 = vadd.f32 0.0, %v9743
    %v9745 = vpop.f32.mrb[0].mxu0
    %9746 = vmatprep.mubr.bf16.mxu0 0
    %9747 = vmatmul.mubr.bf16.gmra.mrb[0].mxu0 %v9462
    %v9748 = vpop.f32.mrb[0].mxu0
    %v9749 = vadd.f32 0.0, %v9748
    %v9750 = vpop.f32.mrb[0].mxu0
    %v9751 = vpop.f32.mrb[0].mxu0
    %v9752 = vadd.f32 0.0, %v9751
    %v9753 = vpop.f32.mrb[0].mxu0
    %9754 = vmatprep.mubr.bf16.mxu0 0
    %9755 = vmatmul.mubr.bf16.gmra.mrb[0].mxu0 %v9463
    %v9756 = vpop.f32.mrb[0].mxu0
    %v9757 = vadd.f32 0.0, %v9756
    %v9758 = vpop.f32.mrb[0].mxu0
    %v9759 = vpop.f32.mrb[0].mxu0
    %v9760 = vadd.f32 0.0, %v9759
    %v9761 = vpop.f32.mrb[0].mxu0
    %9762 = vmatprep.mubr.bf16.mxu0 0
    %9763 = vmatmul.mubr.bf16.gmra.mrb[0].mxu0 %v9464
    %v9764 = vpop.f32.mrb[0].mxu0
    %v9765 = vadd.f32 0.0, %v9764
    %v9766 = vpop.f32.mrb[0].mxu0
    %v9767 = vpop.f32.mrb[0].mxu0
    %v9768 = vadd.f32 0.0, %v9767
    %v9769 = vpop.f32.mrb[0].mxu0
    %9770 = vmatprep.mubr.bf16.mxu0 0
    %9771 = vmatmul.mubr.bf16.gmra.mrb[0].mxu0 %v9465
    %v9772 = vpop.f32.mrb[0].mxu0
    %v9773 = vadd.f32 0.0, %v9772
    %v9774 = vpop.f32.mrb[0].mxu0
    %v9775 = vpop.f32.mrb[0].mxu0
    %v9776 = vadd.f32 0.0, %v9775
    %v9777 = vpop.f32.mrb[0].mxu0
    %9778 = vmatprep.mubr.bf16.mxu0 0
    %9779 = vmatmul.mubr.bf16.gmra.mrb[0].mxu0 %v9466
    %v9780 = vpop.f32.mrb[0].mxu0
    %v9781 = vadd.f32 0.0, %v9780
    %v9782 = vpop.f32.mrb[0].mxu0
    %v9783 = vpop.f32.mrb[0].mxu0
    %v9784 = vadd.f32 0.0, %v9783
    %v9785 = vpop.f32.mrb[0].mxu0
    %9786 = vmatprep.mubr.bf16.mxu0 0
    %9787 = vmatmul.mubr.bf16.gmra.mrb[0].mxu0 %v9467
    %v9788 = vpop.f32.mrb[0].mxu0
    %v9789 = vadd.f32 0.0, %v9788
    %v9790 = vpop.f32.mrb[0].mxu0
    %v9791 = vpop.f32.mrb[0].mxu0
    %v9792 = vadd.f32 0.0, %v9791
    %v9793 = vpop.f32.mrb[0].mxu0
    %9794 = vmatprep.mubr.bf16.mxu0 0
    %9795 = vmatmul.mubr.bf16.gmra.mrb[0].mxu0 %v9468
    %v9796 = vpop.f32.mrb[0].mxu0
    %v9797 = vadd.f32 0.0, %v9796
    %v9798 = vpop.f32.mrb[0].mxu0
    %v9799 = vpop.f32.mrb[0].mxu0
    %v9800 = vadd.f32 0.0, %v9799
    %v9801 = vpop.f32.mrb[0].mxu0
    %9802 = vmatprep.mubr.bf16.mxu0 0
    %9803 = vmatmul.mubr.bf16.gmra.mrb[0].mxu0 %v9469
    %v9804 = vpop.f32.mrb[0].mxu0
    %v9805 = vadd.f32 0.0, %v9804
    %v9806 = vpop.f32.mrb[0].mxu0
    %v9807 = vpop.f32.mrb[0].mxu0
    %v9808 = vadd.f32 0.0, %v9807
    %v9809 = vpop.f32.mrb[0].mxu0
    %9810 = vmatprep.mubr.bf16.mxu0 0
    %9811 = vmatmul.mubr.bf16.gmra.mrb[0].mxu0 %v9470
    %v9812 = vpop.f32.mrb[0].mxu0
    %v9813 = vadd.f32 0.0, %v9812
    %v9814 = vpop.f32.mrb[0].mxu0
    %v9815 = vpop.f32.mrb[0].mxu0
    %v9816 = vadd.f32 0.0, %v9815
    %v9817 = vpop.f32.mrb[0].mxu0
    %9818 = vmatprep.mubr.bf16.mxu0 0
    %9819 = vmatmul.mubr.bf16.gmra.mrb[0].mxu0 %v9471
    %v9820 = vpop.f32.mrb[0].mxu0
    %v9821 = vadd.f32 0.0, %v9820
    %v9822 = vpop.f32.mrb[0].mxu0
    %v9823 = vpop.f32.mrb[0].mxu0
    %v9824 = vadd.f32 0.0, %v9823
    %v9825 = vpop.f32.mrb[0].mxu0
    %9826 = vmatprep.mubr.bf16.mxu0 0
    %9827 = vmatmul.mubr.bf16.gmra.mrb[0].mxu0 %v9472
    %v9828 = vpop.f32.mrb[0].mxu0
    %v9829 = vadd.f32 0.0, %v9828
    %v9830 = vpop.f32.mrb[0].mxu0
    %v9831 = vpop.f32.mrb[0].mxu0
    %v9832 = vadd.f32 0.0, %v9831
    %v9833 = vpop.f32.mrb[0].mxu0
    %9834 = vmatprep.mubr.bf16.mxu0 0
    %9835 = vmatmul.mubr.bf16.gmra.mrb[0].mxu0 %v9473
    %v9836 = vpop.f32.mrb[0].mxu0
    %v9837 = vadd.f32 0.0, %v9836
    %v9838 = vpop.f32.mrb[0].mxu0
    %v9839 = vpop.f32.mrb[0].mxu0
    %v9840 = vadd.f32 0.0, %v9839
    %v9841 = vpop.f32.mrb[0].mxu0
    %9842 = vdwg.mxu0
    %v9843 = vadd.f32 %v8946, %v9589
    %v9844 = vadd.f32 %v8947, %v9592
    %v9845 = vadd.f32 %v8948, %v9597
    %v9846 = vadd.f32 %v8949, %v9600
    %v9847 = vadd.f32 %v8950, %v9605
    %v9848 = vadd.f32 %v8951, %v9608
    %v9849 = vadd.f32 %v8952, %v9613
    %v9850 = vadd.f32 %v8953, %v9616
    %v9851 = vadd.f32 %v8954, %v9621
    %v9852 = vadd.f32 %v8955, %v9624
    %v9853 = vadd.f32 %v8956, %v9629
    %v9854 = vadd.f32 %v8957, %v9632
    %v9855 = vadd.f32 %v8958, %v9637
    %v9856 = vadd.f32 %v8959, %v9640
    %v9857 = vadd.f32 %v8960, %v9645
    %v9858 = vadd.f32 %v8961, %v9648
    %v9859 = vadd.f32 %v8962, %v9653
    %v9860 = vadd.f32 %v8963, %v9656
    %v9861 = vadd.f32 %v8964, %v9661
    %v9862 = vadd.f32 %v8965, %v9664
    %v9863 = vadd.f32 %v8966, %v9669
    %v9864 = vadd.f32 %v8967, %v9672
    %v9865 = vadd.f32 %v8968, %v9677
    %v9866 = vadd.f32 %v8969, %v9680
    %v9867 = vadd.f32 %v8970, %v9685
    %v9868 = vadd.f32 %v8971, %v9688
    %v9869 = vadd.f32 %v8972, %v9693
    %v9870 = vadd.f32 %v8973, %v9696
    %v9871 = vadd.f32 %v8974, %v9701
    %v9872 = vadd.f32 %v8975, %v9704
    %v9873 = vadd.f32 %v8976, %v9709
    %v9874 = vadd.f32 %v8977, %v9712
    %v9875 = vadd.f32 %v8978, %v9717
    %v9876 = vadd.f32 %v8979, %v9720
    %v9877 = vadd.f32 %v8980, %v9725
    %v9878 = vadd.f32 %v8981, %v9728
    %v9879 = vadd.f32 %v8982, %v9733
    %v9880 = vadd.f32 %v8983, %v9736
    %v9881 = vadd.f32 %v8984, %v9741
    %v9882 = vadd.f32 %v8985, %v9744
    %v9883 = vadd.f32 %v8986, %v9749
    %v9884 = vadd.f32 %v8987, %v9752
    %v9885 = vadd.f32 %v8988, %v9757
    %v9886 = vadd.f32 %v8989, %v9760
    %v9887 = vadd.f32 %v8990, %v9765
    %v9888 = vadd.f32 %v8991, %v9768
    %v9889 = vadd.f32 %v8992, %v9773
    %v9890 = vadd.f32 %v8993, %v9776
    %v9891 = vadd.f32 %v8994, %v9781
    %v9892 = vadd.f32 %v8995, %v9784
    %v9893 = vadd.f32 %v8996, %v9789
    %v9894 = vadd.f32 %v8997, %v9792
    %v9895 = vadd.f32 %v8998, %v9797
    %v9896 = vadd.f32 %v8999, %v9800
    %v9897 = vadd.f32 %v9000, %v9805
    %v9898 = vadd.f32 %v9001, %v9808
    %v9899 = vadd.f32 %v9002, %v9813
    %v9900 = vadd.f32 %v9003, %v9816
    %v9901 = vadd.f32 %v9004, %v9821
    %v9902 = vadd.f32 %v9005, %v9824
    %v9903 = vadd.f32 %v9006, %v9829
    %v9904 = vadd.f32 %v9007, %v9832
    %v9905 = vadd.f32 %v9008, %v9837
    %v9906 = vadd.f32 %v9009, %v9840
    %v9907 = vpack.c.bf16 %v9844, %v9843
    %v9908 = vpack.c.bf16 %v9846, %v9845
    %v9909 = vpack.c.bf16 %v9848, %v9847
    %v9910 = vpack.c.bf16 %v9850, %v9849
    %v9911 = vpack.c.bf16 %v9852, %v9851
    %v9912 = vpack.c.bf16 %v9854, %v9853
    %v9913 = vpack.c.bf16 %v9856, %v9855
    %v9914 = vpack.c.bf16 %v9858, %v9857
    %v9915 = vpack.c.bf16 %v9860, %v9859
    %v9916 = vpack.c.bf16 %v9862, %v9861
    %v9917 = vpack.c.bf16 %v9864, %v9863
    %v9918 = vpack.c.bf16 %v9866, %v9865
    %v9919 = vpack.c.bf16 %v9868, %v9867
    %v9920 = vpack.c.bf16 %v9870, %v9869
    %v9921 = vpack.c.bf16 %v9872, %v9871
    %v9922 = vpack.c.bf16 %v9874, %v9873
    %v9923 = vpack.c.bf16 %v9876, %v9875
    %v9924 = vpack.c.bf16 %v9878, %v9877
    %v9925 = vpack.c.bf16 %v9880, %v9879
    %v9926 = vpack.c.bf16 %v9882, %v9881
    %v9927 = vpack.c.bf16 %v9884, %v9883
    %v9928 = vpack.c.bf16 %v9886, %v9885
    %v9929 = vpack.c.bf16 %v9888, %v9887
    %v9930 = vpack.c.bf16 %v9890, %v9889
    %v9931 = vpack.c.bf16 %v9892, %v9891
    %v9932 = vpack.c.bf16 %v9894, %v9893
    %v9933 = vpack.c.bf16 %v9896, %v9895
    %v9934 = vpack.c.bf16 %v9898, %v9897
    %v9935 = vpack.c.bf16 %v9900, %v9899
    %v9936 = vpack.c.bf16 %v9902, %v9901
    %v9937 = vpack.c.bf16 %v9904, %v9903
    %v9938 = vpack.c.bf16 %v9906, %v9905
    %v9971 = vunpack.c.l.b16 %v9907
    %v9972 = vunpack.c.h.b16 %v9907
    %v9973 = vunpack.c.l.b16 %v9908
    %v9974 = vunpack.c.h.b16 %v9908
    %v9975 = vunpack.c.l.b16 %v9909
    %v9976 = vunpack.c.h.b16 %v9909
    %v9977 = vunpack.c.l.b16 %v9910
    %v9978 = vunpack.c.h.b16 %v9910
    %v9979 = vunpack.c.l.b16 %v9911
    %v9980 = vunpack.c.h.b16 %v9911
    %v9981 = vunpack.c.l.b16 %v9912
    %v9982 = vunpack.c.h.b16 %v9912
    %v9983 = vunpack.c.l.b16 %v9913
    %v9984 = vunpack.c.h.b16 %v9913
    %v9985 = vunpack.c.l.b16 %v9914
    %v9986 = vunpack.c.h.b16 %v9914
    %v9987 = vunpack.c.l.b16 %v9915
    %v9988 = vunpack.c.h.b16 %v9915
    %v9989 = vunpack.c.l.b16 %v9916
    %v9990 = vunpack.c.h.b16 %v9916
    %v9991 = vunpack.c.l.b16 %v9917
    %v9992 = vunpack.c.h.b16 %v9917
    %v9993 = vunpack.c.l.b16 %v9918
    %v9994 = vunpack.c.h.b16 %v9918
    %v9995 = vunpack.c.l.b16 %v9919
    %v9996 = vunpack.c.h.b16 %v9919
    %v9997 = vunpack.c.l.b16 %v9920
    %v9998 = vunpack.c.h.b16 %v9920
    %v9999 = vunpack.c.l.b16 %v9921
    %v10000 = vunpack.c.h.b16 %v9921
    %v10001 = vunpack.c.l.b16 %v9922
    %v10002 = vunpack.c.h.b16 %v9922
    %v10003 = vunpack.c.l.b16 %v9923
    %v10004 = vunpack.c.h.b16 %v9923
    %v10005 = vunpack.c.l.b16 %v9924
    %v10006 = vunpack.c.h.b16 %v9924
    %v10007 = vunpack.c.l.b16 %v9925
    %v10008 = vunpack.c.h.b16 %v9925
    %v10009 = vunpack.c.l.b16 %v9926
    %v10010 = vunpack.c.h.b16 %v9926
    %v10011 = vunpack.c.l.b16 %v9927
    %v10012 = vunpack.c.h.b16 %v9927
    %v10013 = vunpack.c.l.b16 %v9928
    %v10014 = vunpack.c.h.b16 %v9928
    %v10015 = vunpack.c.l.b16 %v9929
    %v10016 = vunpack.c.h.b16 %v9929
    %v10017 = vunpack.c.l.b16 %v9930
    %v10018 = vunpack.c.h.b16 %v9930
    %v10019 = vunpack.c.l.b16 %v9931
    %v10020 = vunpack.c.h.b16 %v9931
    %v10021 = vunpack.c.l.b16 %v9932
    %v10022 = vunpack.c.h.b16 %v9932
    %v10023 = vunpack.c.l.b16 %v9933
    %v10024 = vunpack.c.h.b16 %v9933
    %v10025 = vunpack.c.l.b16 %v9934
    %v10026 = vunpack.c.h.b16 %v9934
    %v10027 = vunpack.c.l.b16 %v9935
    %v10028 = vunpack.c.h.b16 %v9935
    %v10029 = vunpack.c.l.b16 %v9936
    %v10030 = vunpack.c.h.b16 %v9936
    %v10031 = vunpack.c.l.b16 %v9937
    %v10032 = vunpack.c.h.b16 %v9937
    %v10033 = vunpack.c.l.b16 %v9938
    %v10034 = vunpack.c.h.b16 %v9938
    %v10035 = vpack.c.b16 %v9971, %v9971
    %v10036 = vpack.c.b16 %v9972, %v9972
    %v10037 = vpack.c.b16 %v9973, %v9973
    %v10038 = vpack.c.b16 %v9974, %v9974
    %v10039 = vpack.c.b16 %v9975, %v9975
    %v10040 = vpack.c.b16 %v9976, %v9976
    %v10041 = vpack.c.b16 %v9977, %v9977
    %v10042 = vpack.c.b16 %v9978, %v9978
    %v10043 = vpack.c.b16 %v9979, %v9979
    %v10044 = vpack.c.b16 %v9980, %v9980
    %v10045 = vpack.c.b16 %v9981, %v9981
    %v10046 = vpack.c.b16 %v9982, %v9982
    %v10047 = vpack.c.b16 %v9983, %v9983
    %v10048 = vpack.c.b16 %v9984, %v9984
    %v10049 = vpack.c.b16 %v9985, %v9985
    %v10050 = vpack.c.b16 %v9986, %v9986
    %v10051 = vpack.c.b16 %v9987, %v9987
    %v10052 = vpack.c.b16 %v9988, %v9988
    %v10053 = vpack.c.b16 %v9989, %v9989
    %v10054 = vpack.c.b16 %v9990, %v9990
    %v10055 = vpack.c.b16 %v9991, %v9991
    %v10056 = vpack.c.b16 %v9992, %v9992
    %v10057 = vpack.c.b16 %v9993, %v9993
    %v10058 = vpack.c.b16 %v9994, %v9994
    %v10059 = vpack.c.b16 %v9995, %v9995
    %v10060 = vpack.c.b16 %v9996, %v9996
    %v10061 = vpack.c.b16 %v9997, %v9997
    %v10062 = vpack.c.b16 %v9998, %v9998
    %v10063 = vpack.c.b16 %v9999, %v9999
    %v10064 = vpack.c.b16 %v10000, %v10000
    %v10065 = vpack.c.b16 %v10001, %v10001
    %v10066 = vpack.c.b16 %v10002, %v10002
    %v10067 = vpack.c.b16 %v10003, %v10003
    %v10068 = vpack.c.b16 %v10004, %v10004
    %v10069 = vpack.c.b16 %v10005, %v10005
    %v10070 = vpack.c.b16 %v10006, %v10006
    %v10071 = vpack.c.b16 %v10007, %v10007
    %v10072 = vpack.c.b16 %v10008, %v10008
    %v10073 = vpack.c.b16 %v10009, %v10009
    %v10074 = vpack.c.b16 %v10010, %v10010
    %v10075 = vpack.c.b16 %v10011, %v10011
    %v10076 = vpack.c.b16 %v10012, %v10012
    %v10077 = vpack.c.b16 %v10013, %v10013
    %v10078 = vpack.c.b16 %v10014, %v10014
    %v10079 = vpack.c.b16 %v10015, %v10015
    %v10080 = vpack.c.b16 %v10016, %v10016
    %v10081 = vpack.c.b16 %v10017, %v10017
    %v10082 = vpack.c.b16 %v10018, %v10018
    %v10083 = vpack.c.b16 %v10019, %v10019
    %v10084 = vpack.c.b16 %v10020, %v10020
    %v10085 = vpack.c.b16 %v10021, %v10021
    %v10086 = vpack.c.b16 %v10022, %v10022
    %v10087 = vpack.c.b16 %v10023, %v10023
    %v10088 = vpack.c.b16 %v10024, %v10024
    %v10089 = vpack.c.b16 %v10025, %v10025
    %v10090 = vpack.c.b16 %v10026, %v10026
    %v10091 = vpack.c.b16 %v10027, %v10027
    %v10092 = vpack.c.b16 %v10028, %v10028
    %v10093 = vpack.c.b16 %v10029, %v10029
    %v10094 = vpack.c.b16 %v10030, %v10030
    %v10095 = vpack.c.b16 %v10031, %v10031
    %v10096 = vpack.c.b16 %v10032, %v10032
    %v10097 = vpack.c.b16 %v10033, %v10033
    %v10098 = vpack.c.b16 %v10034, %v10034
    %10163 = vst [vmem:[#allocation8] sm:$0xf] %v10035
    %10164 = vst [vmem:[#allocation8 + $0x4] sm:$0xf] %v10036
    %10165 = vst [vmem:[#allocation8 + $0x8] sm:$0xf] %v10037
    %10166 = vst [vmem:[#allocation8 + $0xc] sm:$0xf] %v10038
    %10167 = vst [vmem:[#allocation8 + $0x10] sm:$0xf] %v10039
    %10168 = vst [vmem:[#allocation8 + $0x14] sm:$0xf] %v10040
    %10169 = vst [vmem:[#allocation8 + $0x18] sm:$0xf] %v10041
    %10170 = vst [vmem:[#allocation8 + $0x1c] sm:$0xf] %v10042
    %10171 = vst [vmem:[#allocation8 + $0x20] sm:$0xf] %v10043
    %10172 = vst [vmem:[#allocation8 + $0x24] sm:$0xf] %v10044
    %10173 = vst [vmem:[#allocation8 + $0x28] sm:$0xf] %v10045
    %10174 = vst [vmem:[#allocation8 + $0x2c] sm:$0xf] %v10046
    %10175 = vst [vmem:[#allocation8 + $0x30] sm:$0xf] %v10047
    %10176 = vst [vmem:[#allocation8 + $0x34] sm:$0xf] %v10048
    %10177 = vst [vmem:[#allocation8 + $0x38] sm:$0xf] %v10049
    %10178 = vst [vmem:[#allocation8 + $0x3c] sm:$0xf] %v10050
    %10179 = vst [vmem:[#allocation8 + $0x40] sm:$0xf] %v10051
    %10180 = vst [vmem:[#allocation8 + $0x44] sm:$0xf] %v10052
    %10181 = vst [vmem:[#allocation8 + $0x48] sm:$0xf] %v10053
    %10182 = vst [vmem:[#allocation8 + $0x4c] sm:$0xf] %v10054
    %10183 = vst [vmem:[#allocation8 + $0x50] sm:$0xf] %v10055
    %10184 = vst [vmem:[#allocation8 + $0x54] sm:$0xf] %v10056
    %10185 = vst [vmem:[#allocation8 + $0x58] sm:$0xf] %v10057
    %10186 = vst [vmem:[#allocation8 + $0x5c] sm:$0xf] %v10058
    %10187 = vst [vmem:[#allocation8 + $0x60] sm:$0xf] %v10059
    %10188 = vst [vmem:[#allocation8 + $0x64] sm:$0xf] %v10060
    %10189 = vst [vmem:[#allocation8 + $0x68] sm:$0xf] %v10061
    %10190 = vst [vmem:[#allocation8 + $0x6c] sm:$0xf] %v10062
    %10191 = vst [vmem:[#allocation8 + $0x70] sm:$0xf] %v10063
    %10192 = vst [vmem:[#allocation8 + $0x74] sm:$0xf] %v10064
    %10193 = vst [vmem:[#allocation8 + $0x78] sm:$0xf] %v10065
    %10194 = vst [vmem:[#allocation8 + $0x7c] sm:$0xf] %v10066
    %10195 = vst [vmem:[#allocation8 + $0x80] sm:$0xf] %v10067
    %10196 = vst [vmem:[#allocation8 + $0x84] sm:$0xf] %v10068
    %10197 = vst [vmem:[#allocation8 + $0x88] sm:$0xf] %v10069
    %10198 = vst [vmem:[#allocation8 + $0x8c] sm:$0xf] %v10070
    %10199 = vst [vmem:[#allocation8 + $0x90] sm:$0xf] %v10071
    %10200 = vst [vmem:[#allocation8 + $0x94] sm:$0xf] %v10072
    %10201 = vst [vmem:[#allocation8 + $0x98] sm:$0xf] %v10073
    %10202 = vst [vmem:[#allocation8 + $0x9c] sm:$0xf] %v10074
    %10203 = vst [vmem:[#allocation8 + $0xa0] sm:$0xf] %v10075
    %10204 = vst [vmem:[#allocation8 + $0xa4] sm:$0xf] %v10076
    %10205 = vst [vmem:[#allocation8 + $0xa8] sm:$0xf] %v10077
    %10206 = vst [vmem:[#allocation8 + $0xac] sm:$0xf] %v10078
    %10207 = vst [vmem:[#allocation8 + $0xb0] sm:$0xf] %v10079
    %10208 = vst [vmem:[#allocation8 + $0xb4] sm:$0xf] %v10080
    %10209 = vst [vmem:[#allocation8 + $0xb8] sm:$0xf] %v10081
    %10210 = vst [vmem:[#allocation8 + $0xbc] sm:$0xf] %v10082
    %10211 = vst [vmem:[#allocation8 + $0xc0] sm:$0xf] %v10083
    %10212 = vst [vmem:[#allocation8 + $0xc4] sm:$0xf] %v10084
    %10213 = vst [vmem:[#allocation8 + $0xc8] sm:$0xf] %v10085
    %10214 = vst [vmem:[#allocation8 + $0xcc] sm:$0xf] %v10086
    %10215 = vst [vmem:[#allocation8 + $0xd0] sm:$0xf] %v10087
    %10216 = vst [vmem:[#allocation8 + $0xd4] sm:$0xf] %v10088
    %10217 = vst [vmem:[#allocation8 + $0xd8] sm:$0xf] %v10089
    %10218 = vst [vmem:[#allocation8 + $0xdc] sm:$0xf] %v10090
    %10219 = vst [vmem:[#allocation8 + $0xe0] sm:$0xf] %v10091
    %10220 = vst [vmem:[#allocation8 + $0xe4] sm:$0xf] %v10092
    %10221 = vst [vmem:[#allocation8 + $0xe8] sm:$0xf] %v10093
    %10222 = vst [vmem:[#allocation8 + $0xec] sm:$0xf] %v10094
    %10223 = vst [vmem:[#allocation8 + $0xf0] sm:$0xf] %v10095
    %10224 = vst [vmem:[#allocation8 + $0xf4] sm:$0xf] %v10096
    %10225 = vst [vmem:[#allocation8 + $0xf8] sm:$0xf] %v10097
    %10226 = vst [vmem:[#allocation8 + $0xfc] sm:$0xf] %v10098
    %v10227 = vadd.f32 %v9843, %v9844
    %v10228 = vadd.f32 %v10227, %v9845
    %v10229 = vadd.f32 %v10228, %v9846
    %v10230 = vadd.f32 %v10229, %v9847
    %v10231 = vadd.f32 %v10230, %v9848
    %v10232 = vadd.f32 %v10231, %v9849
    %v10233 = vadd.f32 %v10232, %v9850
    %v10234 = vadd.f32 %v10233, %v9851
    %v10235 = vadd.f32 %v10234, %v9852
    %v10236 = vadd.f32 %v10235, %v9853
    %v10237 = vadd.f32 %v10236, %v9854
    %v10238 = vadd.f32 %v10237, %v9855
    %v10239 = vadd.f32 %v10238, %v9856
    %v10240 = vadd.f32 %v10239, %v9857
    %v10241 = vadd.f32 %v10240, %v9858
    %v10242 = vadd.f32 %v10241, %v9859
    %v10243 = vadd.f32 %v10242, %v9860
    %v10244 = vadd.f32 %v10243, %v9861
    %v10245 = vadd.f32 %v10244, %v9862
    %v10246 = vadd.f32 %v10245, %v9863
    %v10247 = vadd.f32 %v10246, %v9864
    %v10248 = vadd.f32 %v10247, %v9865
    %v10249 = vadd.f32 %v10248, %v9866
    %v10250 = vadd.f32 %v10249, %v9867
    %v10251 = vadd.f32 %v10250, %v9868
    %v10252 = vadd.f32 %v10251, %v9869
    %v10253 = vadd.f32 %v10252, %v9870
    %v10254 = vadd.f32 %v10253, %v9871
    %v10255 = vadd.f32 %v10254, %v9872
    %v10256 = vadd.f32 %v10255, %v9873
    %v10257 = vadd.f32 %v10256, %v9874
    %v10258 = vadd.f32 %v10257, %v9875
    %v10259 = vadd.f32 %v10258, %v9876
    %v10260 = vadd.f32 %v10259, %v9877
    %v10261 = vadd.f32 %v10260, %v9878
    %v10262 = vadd.f32 %v10261, %v9879
    %v10263 = vadd.f32 %v10262, %v9880
    %v10264 = vadd.f32 %v10263, %v9881
    %v10265 = vadd.f32 %v10264, %v9882
    %v10266 = vadd.f32 %v10265, %v9883
    %v10267 = vadd.f32 %v10266, %v9884
    %v10268 = vadd.f32 %v10267, %v9885
    %v10269 = vadd.f32 %v10268, %v9886
    %v10270 = vadd.f32 %v10269, %v9887
    %v10271 = vadd.f32 %v10270, %v9888
    %v10272 = vadd.f32 %v10271, %v9889
    %v10273 = vadd.f32 %v10272, %v9890
    %v10274 = vadd.f32 %v10273, %v9891
    %v10275 = vadd.f32 %v10274, %v9892
    %v10276 = vadd.f32 %v10275, %v9893
    %v10277 = vadd.f32 %v10276, %v9894
    %v10278 = vadd.f32 %v10277, %v9895
    %v10279 = vadd.f32 %v10278, %v9896
    %v10280 = vadd.f32 %v10279, %v9897
    %v10281 = vadd.f32 %v10280, %v9898
    %v10282 = vadd.f32 %v10281, %v9899
    %v10283 = vadd.f32 %v10282, %v9900
    %v10284 = vadd.f32 %v10283, %v9901
    %v10285 = vadd.f32 %v10284, %v9902
    %v10286 = vadd.f32 %v10285, %v9903
    %v10287 = vadd.f32 %v10286, %v9904
    %v10288 = vadd.f32 %v10287, %v9905
    %v10289 = vadd.f32 %v10288, %v9906
    %v10290 = vrot.slane %v10289, 4
    %v10291 = vadd.f32 %v10289, %v10290
    %v10292 = vrot.slane %v10291, 2
    %v10293 = vadd.f32 %v10291, %v10292
    %v10294 = vrot.slane %v10293, 1
    %v10295 = vadd.f32 %v10293, %v10294
    %v10296 = vmul.f32 %v9843, %v9843
    %v10297 = vmul.f32 %v9844, %v9844
    %v10298 = vmul.f32 %v9845, %v9845
    %v10299 = vmul.f32 %v9846, %v9846
    %v10300 = vmul.f32 %v9847, %v9847
    %v10301 = vmul.f32 %v9848, %v9848
    %v10302 = vmul.f32 %v9849, %v9849
    %v10303 = vmul.f32 %v9850, %v9850
    %v10304 = vmul.f32 %v9851, %v9851
    %v10305 = vmul.f32 %v9852, %v9852
    %v10306 = vmul.f32 %v9853, %v9853
    %v10307 = vmul.f32 %v9854, %v9854
    %v10308 = vmul.f32 %v9855, %v9855
    %v10309 = vmul.f32 %v9856, %v9856
    %v10310 = vmul.f32 %v9857, %v9857
    %v10311 = vmul.f32 %v9858, %v9858
    %v10312 = vmul.f32 %v9859, %v9859
    %v10313 = vmul.f32 %v9860, %v9860
    %v10314 = vmul.f32 %v9861, %v9861
    %v10315 = vmul.f32 %v9862, %v9862
    %v10316 = vmul.f32 %v9863, %v9863
    %v10317 = vmul.f32 %v9864, %v9864
    %v10318 = vmul.f32 %v9865, %v9865
    %v10319 = vmul.f32 %v9866, %v9866
    %v10320 = vmul.f32 %v9867, %v9867
    %v10321 = vmul.f32 %v9868, %v9868
    %v10322 = vmul.f32 %v9869, %v9869
    %v10323 = vmul.f32 %v9870, %v9870
    %v10324 = vmul.f32 %v9871, %v9871
    %v10325 = vmul.f32 %v9872, %v9872
    %v10326 = vmul.f32 %v9873, %v9873
    %v10327 = vmul.f32 %v9874, %v9874
    %v10328 = vmul.f32 %v9875, %v9875
    %v10329 = vmul.f32 %v9876, %v9876
    %v10330 = vmul.f32 %v9877, %v9877
    %v10331 = vmul.f32 %v9878, %v9878
    %v10332 = vmul.f32 %v9879, %v9879
    %v10333 = vmul.f32 %v9880, %v9880
    %v10334 = vmul.f32 %v9881, %v9881
    %v10335 = vmul.f32 %v9882, %v9882
    %v10336 = vmul.f32 %v9883, %v9883
    %v10337 = vmul.f32 %v9884, %v9884
    %v10338 = vmul.f32 %v9885, %v9885
    %v10339 = vmul.f32 %v9886, %v9886
    %v10340 = vmul.f32 %v9887, %v9887
    %v10341 = vmul.f32 %v9888, %v9888
    %v10342 = vmul.f32 %v9889, %v9889
    %v10343 = vmul.f32 %v9890, %v9890
    %v10344 = vmul.f32 %v9891, %v9891
    %v10345 = vmul.f32 %v9892, %v9892
    %v10346 = vmul.f32 %v9893, %v9893
    %v10347 = vmul.f32 %v9894, %v9894
    %v10348 = vmul.f32 %v9895, %v9895
    %v10349 = vmul.f32 %v9896, %v9896
    %v10350 = vmul.f32 %v9897, %v9897
    %v10351 = vmul.f32 %v9898, %v9898
    %v10352 = vmul.f32 %v9899, %v9899
    %v10353 = vmul.f32 %v9900, %v9900
    %v10354 = vmul.f32 %v9901, %v9901
    %v10355 = vmul.f32 %v9902, %v9902
    %v10356 = vmul.f32 %v9903, %v9903
    %v10357 = vmul.f32 %v9904, %v9904
    %v10358 = vmul.f32 %v9905, %v9905
    %v10359 = vmul.f32 %v9906, %v9906
    %v10360 = vadd.f32 %v10296, %v10297
    %v10361 = vadd.f32 %v10360, %v10298
    %v10362 = vadd.f32 %v10361, %v10299
    %v10363 = vadd.f32 %v10362, %v10300
    %v10364 = vadd.f32 %v10363, %v10301
    %v10365 = vadd.f32 %v10364, %v10302
    %v10366 = vadd.f32 %v10365, %v10303
    %v10367 = vadd.f32 %v10366, %v10304
    %v10368 = vadd.f32 %v10367, %v10305
    %v10369 = vadd.f32 %v10368, %v10306
    %v10370 = vadd.f32 %v10369, %v10307
    %v10371 = vadd.f32 %v10370, %v10308
    %v10372 = vadd.f32 %v10371, %v10309
    %v10373 = vadd.f32 %v10372, %v10310
    %v10374 = vadd.f32 %v10373, %v10311
    %v10375 = vadd.f32 %v10374, %v10312
    %v10376 = vadd.f32 %v10375, %v10313
    %v10377 = vadd.f32 %v10376, %v10314
    %v10378 = vadd.f32 %v10377, %v10315
    %v10379 = vadd.f32 %v10378, %v10316
    %v10380 = vadd.f32 %v10379, %v10317
    %v10381 = vadd.f32 %v10380, %v10318
    %v10382 = vadd.f32 %v10381, %v10319
    %v10383 = vadd.f32 %v10382, %v10320
    %v10384 = vadd.f32 %v10383, %v10321
    %v10385 = vadd.f32 %v10384, %v10322
    %v10386 = vadd.f32 %v10385, %v10323
    %v10387 = vadd.f32 %v10386, %v10324
    %v10388 = vadd.f32 %v10387, %v10325
    %v10389 = vadd.f32 %v10388, %v10326
    %v10390 = vadd.f32 %v10389, %v10327
    %v10391 = vadd.f32 %v10390, %v10328
    %v10392 = vadd.f32 %v10391, %v10329
    %v10393 = vadd.f32 %v10392, %v10330
    %v10394 = vadd.f32 %v10393, %v10331
    %v10395 = vadd.f32 %v10394, %v10332
    %v10396 = vadd.f32 %v10395, %v10333
    %v10397 = vadd.f32 %v10396, %v10334
    %v10398 = vadd.f32 %v10397, %v10335
    %v10399 = vadd.f32 %v10398, %v10336
    %v10400 = vadd.f32 %v10399, %v10337
    %v10401 = vadd.f32 %v10400, %v10338
    %v10402 = vadd.f32 %v10401, %v10339
    %v10403 = vadd.f32 %v10402, %v10340
    %v10404 = vadd.f32 %v10403, %v10341
    %v10405 = vadd.f32 %v10404, %v10342
    %v10406 = vadd.f32 %v10405, %v10343
    %v10407 = vadd.f32 %v10406, %v10344
    %v10408 = vadd.f32 %v10407, %v10345
    %v10409 = vadd.f32 %v10408, %v10346
    %v10410 = vadd.f32 %v10409, %v10347
    %v10411 = vadd.f32 %v10410, %v10348
    %v10412 = vadd.f32 %v10411, %v10349
    %v10413 = vadd.f32 %v10412, %v10350
    %v10414 = vadd.f32 %v10413, %v10351
    %v10415 = vadd.f32 %v10414, %v10352
    %v10416 = vadd.f32 %v10415, %v10353
    %v10417 = vadd.f32 %v10416, %v10354
    %v10418 = vadd.f32 %v10417, %v10355
    %v10419 = vadd.f32 %v10418, %v10356
    %v10420 = vadd.f32 %v10419, %v10357
    %v10421 = vadd.f32 %v10420, %v10358
    %v10422 = vadd.f32 %v10421, %v10359
    %v10423 = vrot.slane %v10422, 4
    %v10424 = vadd.f32 %v10422, %v10423
    %v10425 = vrot.slane %v10424, 2
    %v10426 = vadd.f32 %v10424, %v10425
    %v10427 = vrot.slane %v10426, 1
    %v10428 = vadd.f32 %v10426, %v10427
    %vm10429 = vcmask 1040384
    %v10430 = vsel %vm10429, %v10295, %v10428
    %10431 = vst [vmem:[#allocation9] sm:$0x3] %v10430
    // Predicated region
    $region18: #{tpu_custom_call.1} parent=1 // pred_check
      _
    $region19: #{tpu_custom_call.1} parent=1 // pred_check_branch
      %10433 = sbr.rel (0) target = $region21
    $region20: #{tpu_custom_call.1} parent=1 // pred_region
      %s10435 = ssub.s32 4096, 4096
      %10436 = vsyncadd [#allocation5], %s10435
      %s10437 = sshll.u32 [#allocation8], 4
      %s10438 = int_to_ptr.vmem [resolvable:$true] %s10437
      %10443 = dma.vmem_to_hbm [thread:$0]  %s10438, 4096, %s2, [#allocation5], 64, 64, 4
    $region21: #{tpu_custom_call.1} parent=1 // pred_fallthru
      _
    // Predicated region
    $region22: #{tpu_custom_call.1} parent=1 // pred_check
      _
    $region23: #{tpu_custom_call.1} parent=1 // pred_check_branch
      %10445 = sbr.rel (0) target = $region25
    $region24: #{tpu_custom_call.1} parent=1 // pred_region
      %s10447 = ssub.s32 32, 32
      %10448 = vsyncadd [#allocation10], %s10447
      %s10450 = sshll.u32 [#allocation9], 4
      %s10451 = int_to_ptr.vmem [resolvable:$true] %s10450
      %10453 = dma.vmem_to_hbm [thread:$0]  %s10451, 32, %s3, [#allocation10]
    $region25: #{tpu_custom_call.1} parent=1 // pred_fallthru
      _
    // Predicated region
    $region26: #{tpu_custom_call.1} parent=1 // pred_check
      _
    $region27: #{tpu_custom_call.1} parent=1 // pred_check_branch
      %10455 = sbr.rel (0) target = $region29
    $region28: #{tpu_custom_call.1} parent=1 // pred_region
      %10456 = dma.done [#allocation5], 4096
    $region29: #{tpu_custom_call.1} parent=1 // pred_fallthru
      _
    // Predicated region
    $region30: #{tpu_custom_call.1} parent=1 // pred_check
      _
    $region31: #{tpu_custom_call.1} parent=1 // pred_check_branch
      %10458 = sbr.rel (0) target = $region33
    $region32: #{tpu_custom_call.1} parent=1 // pred_region
      %10459 = dma.done [#allocation10], 32
    $region33: #{tpu_custom_call.1} parent=1 // pred_fallthru
      _
    %10460 = vsyncpa [#allocation4], 1
    %10461 = vsyncpa [#allocation7], 1
    %10462 = vsyncpa [#allocation5], 1
    %10463 = vsyncpa [#allocation10], 1

</llo_original>
